<compile_context>
chip_gen: v7x
topology: tpu7x:2x2x1
jax: 0.10.0
libtpu: 0.0.40
codegen_flags: <defaults>
</compile_context>

<pallas_src>
import math
import functools

import jax
import jax.numpy as jnp
from jax.experimental import pallas as pl
from jax.experimental.pallas import tpu as pltpu

D_MODEL = 64
N_HEAD = 16
HEAD_DIM = D_MODEL // N_HEAD  # 4


# ------------------------------ fused kernel ------------------------------- #

def _fused_mha_kernel(x1_ref, x2_ref, wqk_ref, bqk_ref, wkv_ref, bkv_ref,
                      wo_ref, bo_ref, out_ref, key2_ref, val2_ref,
                      *, batch, seq):
    # Fused projections (lane-dense 128-wide outputs):
    #   qk = x1 @ [Wq | Wk] + [bq | bk]   -> (B*S, 2*D)
    #   kv = x2 @ [Wk | Wv] + [bk | bv]   -> (B*S, 2*D)
    qk = jnp.dot(x1_ref[...], wqk_ref[...],
                 preferred_element_type=jnp.float32) + bqk_ref[...]
    kv = jnp.dot(x2_ref[...], wkv_ref[...],
                 preferred_element_type=jnp.float32) + bkv_ref[...]

    q = qk[:, :D_MODEL]          # query(x1)
    k = qk[:, D_MODEL:]          # key(x1)
    key_x2 = kv[:, :D_MODEL]     # self.key(x2)
    v = kv[:, D_MODEL:]          # self.value(x2) == attention V

    key2_ref[...] = key_x2
    val2_ref[...] = v

    scale = 1.0 / math.sqrt(HEAD_DIM)

    # Multi-head scaled dot-product attention, statically unrolled over
    # (batch, head).  All operands live in vregs; no HBM traffic.
    batch_outs = []
    for b in range(batch):
        r0, r1 = b * seq, (b + 1) * seq
        q_b = q[r0:r1, :]
        k_b = k[r0:r1, :]
        v_b = v[r0:r1, :]
        head_outs = []
        for h in range(N_HEAD):
            c0, c1 = h * HEAD_DIM, (h + 1) * HEAD_DIM
            q_h = q_b[:, c0:c1]                       # (S, hd)
            k_h = k_b[:, c0:c1]                       # (S, hd)
            v_h = v_b[:, c0:c1]                       # (S, hd)
            s = jnp.dot(q_h, k_h.T,
                        preferred_element_type=jnp.float32) * scale   # (S, S)
            m = jnp.max(s, axis=-1, keepdims=True)
            p = jnp.exp(s - m)
            p = p * pl.reciprocal(jnp.sum(p, axis=-1, keepdims=True),
                                  approx=False)
            head_outs.append(jnp.dot(p, v_h,
                                     preferred_element_type=jnp.float32))
        batch_outs.append(jnp.concatenate(head_outs, axis=-1))        # (S, D)
    attn = jnp.concatenate(batch_outs, axis=0)                        # (B*S, D)

    out_ref[...] = jnp.dot(attn, wo_ref[...],
                           preferred_element_type=jnp.float32) + bo_ref[...]


# ------------------------------- model glue -------------------------------- #

def init_params(key):
    ks = jax.random.split(key, 4)
    scale = 1.0 / math.sqrt(D_MODEL)

    def mk(k):
        return scale * jax.random.normal(k, (D_MODEL, D_MODEL), jnp.float32)

    Wq, Wk, Wv, Wo = (mk(k) for k in ks)
    bq = jnp.zeros((D_MODEL,), jnp.float32)
    bk = jnp.full((D_MODEL,), 0.01, jnp.float32)
    bv = jnp.full((D_MODEL,), -0.01, jnp.float32)
    bo = jnp.zeros((D_MODEL,), jnp.float32)
    return dict(Wq=Wq, bq=bq, Wk=Wk, bk=bk, Wv=Wv, bv=bv, Wo=Wo, bo=bo)


def pack_params(params):
    """Pre-concatenate weights once so the kernel sees fused, lane-dense slabs."""
    return dict(
        wqk=jnp.concatenate([params["Wq"], params["Wk"]], axis=1),            # (64, 128)
        bqk=jnp.concatenate([params["bq"], params["bk"]]).reshape(1, 2 * D_MODEL),
        wkv=jnp.concatenate([params["Wk"], params["Wv"]], axis=1),            # (64, 128)
        bkv=jnp.concatenate([params["bk"], params["bv"]]).reshape(1, 2 * D_MODEL),
        wo=params["Wo"],                                                      # (64, 64)
        bo=params["bo"].reshape(1, D_MODEL),
    )


@jax.jit
def model_forward(x1, x2, p):
    B, S, D = x1.shape
    BS = B * S
    x1f = x1.reshape(BS, D)
    x2f = x2.reshape(BS, D)

    kernel = functools.partial(_fused_mha_kernel, batch=B, seq=S)

    full = lambda shape: pl.BlockSpec(shape, lambda i: (0,) * len(shape))

    out, key_x2, value_x2 = pl.pallas_call(
        kernel,
        out_shape=(
            jax.ShapeDtypeStruct((BS, D), jnp.float32),
            jax.ShapeDtypeStruct((BS, D), jnp.float32),
            jax.ShapeDtypeStruct((BS, D), jnp.float32),
        ),
        grid=(1,),
        in_specs=[
            full((BS, D)),            # x1
            full((BS, D)),            # x2
            full((D, 2 * D)),         # [Wq | Wk]
            full((1, 2 * D)),         # [bq | bk]
            full((D, 2 * D)),         # [Wk | Wv]
            full((1, 2 * D)),         # [bk | bv]
            full((D, D)),             # Wo
            full((1, D)),             # bo
        ],
        out_specs=(
            full((BS, D)),
            full((BS, D)),
            full((BS, D)),
        ),
        compiler_params=pltpu.CompilerParams(dimension_semantics=("arbitrary",)),
    )(x1f, x2f, p["wqk"], p["bqk"], p["wkv"], p["bkv"], p["wo"], p["bo"])

    return (out.reshape(B, S, D),
            key_x2.reshape(B, S, D),
            value_x2.reshape(B, S, D))


def reference_forward(x1, x2, params):
    """Pure-JAX reference for correctness checking."""
    B, S, D = x1.shape
    q = x1 @ params["Wq"] + params["bq"]
    k = x1 @ params["Wk"] + params["bk"]
    v = x2 @ params["Wv"] + params["bv"]
    key_x2 = x2 @ params["Wk"] + params["bk"]
    value_x2 = x2 @ params["Wv"] + params["bv"]

    qh = q.reshape(B, S, N_HEAD, HEAD_DIM).transpose(0, 2, 1, 3)
    kh = k.reshape(B, S, N_HEAD, HEAD_DIM).transpose(0, 2, 1, 3)
    vh = v.reshape(B, S, N_HEAD, HEAD_DIM).transpose(0, 2, 1, 3)
    s = jnp.einsum("bhqd,bhkd->bhqk", qh, kh) / math.sqrt(HEAD_DIM)
    p = jax.nn.softmax(s, axis=-1)
    o = jnp.einsum("bhqk,bhkd->bhqd", p, vh)
    o = o.transpose(0, 2, 1, 3).reshape(B, S, D)
    out = o @ params["Wo"] + params["bo"]
    return out, key_x2, value_x2


if __name__ == "__main__":
    key = jax.random.PRNGKey(0)
    kp, k1, k2 = jax.random.split(key, 3)
    params = init_params(kp)
    packed = pack_params(params)

    B, S = 2, 8
    x1 = jax.random.normal(k1, (B, S, D_MODEL), jnp.float32)
    x2 = jax.random.normal(k2, (B, S, D_MODEL), jnp.float32)

    out = model_forward(x1, x2, packed)
    out = jax.block_until_ready(out)

    ref = reference_forward(x1, x2, params)
    for a, b in zip(out, ref):
        assert a.shape == b.shape and a.dtype == b.dtype
        assert jnp.max(jnp.abs(a - b)) < 1e-4

    print("KERNEL_OK")
</pallas_src>

<mosaic_0001>
module attributes {stable_mosaic.version = 11 : i64} {
  func.func @_fused_mha_kernel(%arg0: i32, %arg1: memref<16x64xf32, #tpu.memory_space<vmem>>, %arg2: memref<16x64xf32, #tpu.memory_space<vmem>>, %arg3: memref<64x128xf32, #tpu.memory_space<vmem>>, %arg4: memref<1x128xf32, #tpu.memory_space<vmem>>, %arg5: memref<64x128xf32, #tpu.memory_space<vmem>>, %arg6: memref<1x128xf32, #tpu.memory_space<vmem>>, %arg7: memref<64x64xf32, #tpu.memory_space<vmem>>, %arg8: memref<1x64xf32, #tpu.memory_space<vmem>>, %arg9: memref<16x64xf32, #tpu.memory_space<vmem>>, %arg10: memref<16x64xf32, #tpu.memory_space<vmem>>, %arg11: memref<16x64xf32, #tpu.memory_space<vmem>>) attributes {dimension_semantics = [#tpu.dimension_semantics<arbitrary>], iteration_bounds = array<i64: 1>, scalar_prefetch = 0 : i64, scratch_operands = 0 : i64, tpu.core_type = #tpu.core_type<tc>, window_params = [{pipeline_mode = #tpu.pipeline_mode<synchronous>, transform_indices = @transform_0, window_bounds = array<i64: 16, 64>}, {pipeline_mode = #tpu.pipeline_mode<synchronous>, transform_indices = @transform_1, window_bounds = array<i64: 16, 64>}, {pipeline_mode = #tpu.pipeline_mode<synchronous>, transform_indices = @transform_2, window_bounds = array<i64: 64, 128>}, {pipeline_mode = #tpu.pipeline_mode<synchronous>, transform_indices = @transform_3, window_bounds = array<i64: 1, 128>}, {pipeline_mode = #tpu.pipeline_mode<synchronous>, transform_indices = @transform_4, window_bounds = array<i64: 64, 128>}, {pipeline_mode = #tpu.pipeline_mode<synchronous>, transform_indices = @transform_5, window_bounds = array<i64: 1, 128>}, {pipeline_mode = #tpu.pipeline_mode<synchronous>, transform_indices = @transform_6, window_bounds = array<i64: 64, 64>}, {pipeline_mode = #tpu.pipeline_mode<synchronous>, transform_indices = @transform_7, window_bounds = array<i64: 1, 64>}, {pipeline_mode = #tpu.pipeline_mode<synchronous>, transform_indices = @transform_8, window_bounds = array<i64: 16, 64>}, {pipeline_mode = #tpu.pipeline_mode<synchronous>, transform_indices = @transform_9, window_bounds = array<i64: 16, 64>}, {pipeline_mode = #tpu.pipeline_mode<synchronous>, transform_indices = @transform_10, window_bounds = array<i64: 16, 64>}]} {
    %c0 = arith.constant 0 : index
    %c0_0 = arith.constant 0 : index
    %0 = vector.load %arg1[%c0, %c0_0] : memref<16x64xf32, #tpu.memory_space<vmem>>, vector<16x64xf32>
    %c0_1 = arith.constant 0 : index
    %c0_2 = arith.constant 0 : index
    %1 = vector.load %arg3[%c0_1, %c0_2] : memref<64x128xf32, #tpu.memory_space<vmem>>, vector<64x128xf32>
    %cst = arith.constant dense<0.000000e+00> : vector<16x128xf32>
    %2 = tpu.matmul %0, %1, %cst {dimension_numbers = #tpu.dot_dimension_numbers<[1], [0], [0], [1], [0, 0, 1, 1], [], []>} : vector<16x64xf32>, vector<64x128xf32>, vector<16x128xf32> -> vector<16x128xf32>
    %c0_3 = arith.constant 0 : index
    %c0_4 = arith.constant 0 : index
    %3 = vector.load %arg4[%c0_3, %c0_4] : memref<1x128xf32, #tpu.memory_space<vmem>>, vector<1x128xf32>
    %4 = vector.broadcast %3 : vector<1x128xf32> to vector<16x128xf32>
    %5 = arith.addf %2, %4 : vector<16x128xf32>
    %c0_5 = arith.constant 0 : index
    %c0_6 = arith.constant 0 : index
    %6 = vector.load %arg2[%c0_5, %c0_6] : memref<16x64xf32, #tpu.memory_space<vmem>>, vector<16x64xf32>
    %c0_7 = arith.constant 0 : index
    %c0_8 = arith.constant 0 : index
    %7 = vector.load %arg5[%c0_7, %c0_8] : memref<64x128xf32, #tpu.memory_space<vmem>>, vector<64x128xf32>
    %cst_9 = arith.constant dense<0.000000e+00> : vector<16x128xf32>
    %8 = tpu.matmul %6, %7, %cst_9 {dimension_numbers = #tpu.dot_dimension_numbers<[1], [0], [0], [1], [0, 0, 1, 1], [], []>} : vector<16x64xf32>, vector<64x128xf32>, vector<16x128xf32> -> vector<16x128xf32>
    %c0_10 = arith.constant 0 : index
    %c0_11 = arith.constant 0 : index
    %9 = vector.load %arg6[%c0_10, %c0_11] : memref<1x128xf32, #tpu.memory_space<vmem>>, vector<1x128xf32>
    %10 = vector.broadcast %9 : vector<1x128xf32> to vector<16x128xf32>
    %11 = arith.addf %8, %10 : vector<16x128xf32>
    %12 = vector.extract_strided_slice %5 {offsets = [0, 0], sizes = [16, 64], strides = [1, 1]} : vector<16x128xf32> to vector<16x64xf32>
    %13 = vector.extract_strided_slice %5 {offsets = [0, 64], sizes = [16, 64], strides = [1, 1]} : vector<16x128xf32> to vector<16x64xf32>
    %14 = vector.extract_strided_slice %11 {offsets = [0, 0], sizes = [16, 64], strides = [1, 1]} : vector<16x128xf32> to vector<16x64xf32>
    %15 = vector.extract_strided_slice %11 {offsets = [0, 64], sizes = [16, 64], strides = [1, 1]} : vector<16x128xf32> to vector<16x64xf32>
    %c0_12 = arith.constant 0 : index
    %c0_13 = arith.constant 0 : index
    %16 = vector.load %arg10[%c0_12, %c0_13] : memref<16x64xf32, #tpu.memory_space<vmem>>, vector<16x64xf32>
    tpu.vector_store %arg10[%c0_12, %c0_13], %14 {strides = array<i32>} : memref<16x64xf32, #tpu.memory_space<vmem>>, vector<16x64xf32>,
    %c0_14 = arith.constant 0 : index
    %c0_15 = arith.constant 0 : index
    %17 = vector.load %arg11[%c0_14, %c0_15] : memref<16x64xf32, #tpu.memory_space<vmem>>, vector<16x64xf32>
    tpu.vector_store %arg11[%c0_14, %c0_15], %15 {strides = array<i32>} : memref<16x64xf32, #tpu.memory_space<vmem>>, vector<16x64xf32>,
    %18 = vector.extract_strided_slice %12 {offsets = [0, 0], sizes = [8, 64], strides = [1, 1]} : vector<16x64xf32> to vector<8x64xf32>
    %19 = vector.extract_strided_slice %13 {offsets = [0, 0], sizes = [8, 64], strides = [1, 1]} : vector<16x64xf32> to vector<8x64xf32>
    %20 = vector.extract_strided_slice %15 {offsets = [0, 0], sizes = [8, 64], strides = [1, 1]} : vector<16x64xf32> to vector<8x64xf32>
    %21 = vector.extract_strided_slice %18 {offsets = [0, 0], sizes = [8, 4], strides = [1, 1]} : vector<8x64xf32> to vector<8x4xf32>
    %22 = vector.extract_strided_slice %19 {offsets = [0, 0], sizes = [8, 4], strides = [1, 1]} : vector<8x64xf32> to vector<8x4xf32>
    %23 = vector.extract_strided_slice %20 {offsets = [0, 0], sizes = [8, 4], strides = [1, 1]} : vector<8x64xf32> to vector<8x4xf32>
    %24 = tpu.transpose %22, [1, 0] : vector<8x4xf32> -> vector<4x8xf32>
    %cst_16 = arith.constant dense<0.000000e+00> : vector<8x8xf32>
    %25 = tpu.matmul %21, %24, %cst_16 {dimension_numbers = #tpu.dot_dimension_numbers<[1], [0], [0], [1], [0, 0, 1, 1], [], []>} : vector<8x4xf32>, vector<4x8xf32>, vector<8x8xf32> -> vector<8x8xf32>
    %cst_17 = arith.constant 5.000000e-01 : f32
    %26 = vector.broadcast %cst_17 : f32 to vector<8x8xf32>
    %27 = arith.mulf %25, %26 : vector<8x8xf32>
    %cst_18 = arith.constant dense<0xFF800000> : vector<8xf32>
    %28 = vector.multi_reduction <maximumf>, %27, %cst_18 [1] : vector<8x8xf32> to vector<8xf32>
    %29 = vector.shape_cast %28 : vector<8xf32> to vector<8x1xf32>
    %30 = vector.broadcast %29 : vector<8x1xf32> to vector<8x8xf32>
    %31 = arith.subf %27, %30 : vector<8x8xf32>
    %32 = math.exp %31 : vector<8x8xf32>
    %cst_19 = arith.constant dense<0.000000e+00> : vector<8xf32>
    %33 = vector.multi_reduction <add>, %32, %cst_19 [1] : vector<8x8xf32> to vector<8xf32>
    %34 = vector.shape_cast %33 : vector<8xf32> to vector<8x1xf32>
    %35 = tpu.reciprocal %34 : vector<8x1xf32> -> vector<8x1xf32>
    %36 = vector.broadcast %35 : vector<8x1xf32> to vector<8x8xf32>
    %37 = arith.mulf %32, %36 : vector<8x8xf32>
    %cst_20 = arith.constant dense<0.000000e+00> : vector<8x4xf32>
    %38 = tpu.matmul %37, %23, %cst_20 {dimension_numbers = #tpu.dot_dimension_numbers<[1], [0], [0], [1], [0, 0, 1, 1], [], []>} : vector<8x8xf32>, vector<8x4xf32>, vector<8x4xf32> -> vector<8x4xf32>
    %39 = vector.extract_strided_slice %18 {offsets = [0, 4], sizes = [8, 4], strides = [1, 1]} : vector<8x64xf32> to vector<8x4xf32>
    %40 = vector.extract_strided_slice %19 {offsets = [0, 4], sizes = [8, 4], strides = [1, 1]} : vector<8x64xf32> to vector<8x4xf32>
    %41 = vector.extract_strided_slice %20 {offsets = [0, 4], sizes = [8, 4], strides = [1, 1]} : vector<8x64xf32> to vector<8x4xf32>
    %42 = tpu.transpose %40, [1, 0] : vector<8x4xf32> -> vector<4x8xf32>
    %cst_21 = arith.constant dense<0.000000e+00> : vector<8x8xf32>
    %43 = tpu.matmul %39, %42, %cst_21 {dimension_numbers = #tpu.dot_dimension_numbers<[1], [0], [0], [1], [0, 0, 1, 1], [], []>} : vector<8x4xf32>, vector<4x8xf32>, vector<8x8xf32> -> vector<8x8xf32>
    %cst_22 = arith.constant 5.000000e-01 : f32
    %44 = vector.broadcast %cst_22 : f32 to vector<8x8xf32>
    %45 = arith.mulf %43, %44 : vector<8x8xf32>
    %cst_23 = arith.constant dense<0xFF800000> : vector<8xf32>
    %46 = vector.multi_reduction <maximumf>, %45, %cst_23 [1] : vector<8x8xf32> to vector<8xf32>
    %47 = vector.shape_cast %46 : vector<8xf32> to vector<8x1xf32>
    %48 = vector.broadcast %47 : vector<8x1xf32> to vector<8x8xf32>
    %49 = arith.subf %45, %48 : vector<8x8xf32>
    %50 = math.exp %49 : vector<8x8xf32>
    %cst_24 = arith.constant dense<0.000000e+00> : vector<8xf32>
    %51 = vector.multi_reduction <add>, %50, %cst_24 [1] : vector<8x8xf32> to vector<8xf32>
    %52 = vector.shape_cast %51 : vector<8xf32> to vector<8x1xf32>
    %53 = tpu.reciprocal %52 : vector<8x1xf32> -> vector<8x1xf32>
    %54 = vector.broadcast %53 : vector<8x1xf32> to vector<8x8xf32>
    %55 = arith.mulf %50, %54 : vector<8x8xf32>
    %cst_25 = arith.constant dense<0.000000e+00> : vector<8x4xf32>
    %56 = tpu.matmul %55, %41, %cst_25 {dimension_numbers = #tpu.dot_dimension_numbers<[1], [0], [0], [1], [0, 0, 1, 1], [], []>} : vector<8x8xf32>, vector<8x4xf32>, vector<8x4xf32> -> vector<8x4xf32>
    %57 = vector.extract_strided_slice %18 {offsets = [0, 8], sizes = [8, 4], strides = [1, 1]} : vector<8x64xf32> to vector<8x4xf32>
    %58 = vector.extract_strided_slice %19 {offsets = [0, 8], sizes = [8, 4], strides = [1, 1]} : vector<8x64xf32> to vector<8x4xf32>
    %59 = vector.extract_strided_slice %20 {offsets = [0, 8], sizes = [8, 4], strides = [1, 1]} : vector<8x64xf32> to vector<8x4xf32>
    %60 = tpu.transpose %58, [1, 0] : vector<8x4xf32> -> vector<4x8xf32>
    %cst_26 = arith.constant dense<0.000000e+00> : vector<8x8xf32>
    %61 = tpu.matmul %57, %60, %cst_26 {dimension_numbers = #tpu.dot_dimension_numbers<[1], [0], [0], [1], [0, 0, 1, 1], [], []>} : vector<8x4xf32>, vector<4x8xf32>, vector<8x8xf32> -> vector<8x8xf32>
    %cst_27 = arith.constant 5.000000e-01 : f32
    %62 = vector.broadcast %cst_27 : f32 to vector<8x8xf32>
    %63 = arith.mulf %61, %62 : vector<8x8xf32>
    %cst_28 = arith.constant dense<0xFF800000> : vector<8xf32>
    %64 = vector.multi_reduction <maximumf>, %63, %cst_28 [1] : vector<8x8xf32> to vector<8xf32>
    %65 = vector.shape_cast %64 : vector<8xf32> to vector<8x1xf32>
    %66 = vector.broadcast %65 : vector<8x1xf32> to vector<8x8xf32>
    %67 = arith.subf %63, %66 : vector<8x8xf32>
    %68 = math.exp %67 : vector<8x8xf32>
    %cst_29 = arith.constant dense<0.000000e+00> : vector<8xf32>
    %69 = vector.multi_reduction <add>, %68, %cst_29 [1] : vector<8x8xf32> to vector<8xf32>
    %70 = vector.shape_cast %69 : vector<8xf32> to vector<8x1xf32>
    %71 = tpu.reciprocal %70 : vector<8x1xf32> -> vector<8x1xf32>
    %72 = vector.broadcast %71 : vector<8x1xf32> to vector<8x8xf32>
    %73 = arith.mulf %68, %72 : vector<8x8xf32>
    %cst_30 = arith.constant dense<0.000000e+00> : vector<8x4xf32>
    %74 = tpu.matmul %73, %59, %cst_30 {dimension_numbers = #tpu.dot_dimension_numbers<[1], [0], [0], [1], [0, 0, 1, 1], [], []>} : vector<8x8xf32>, vector<8x4xf32>, vector<8x4xf32> -> vector<8x4xf32>
    %75 = vector.extract_strided_slice %18 {offsets = [0, 12], sizes = [8, 4], strides = [1, 1]} : vector<8x64xf32> to vector<8x4xf32>
    %76 = vector.extract_strided_slice %19 {offsets = [0, 12], sizes = [8, 4], strides = [1, 1]} : vector<8x64xf32> to vector<8x4xf32>
    %77 = vector.extract_strided_slice %20 {offsets = [0, 12], sizes = [8, 4], strides = [1, 1]} : vector<8x64xf32> to vector<8x4xf32>
    %78 = tpu.transpose %76, [1, 0] : vector<8x4xf32> -> vector<4x8xf32>
    %cst_31 = arith.constant dense<0.000000e+00> : vector<8x8xf32>
    %79 = tpu.matmul %75, %78, %cst_31 {dimension_numbers = #tpu.dot_dimension_numbers<[1], [0], [0], [1], [0, 0, 1, 1], [], []>} : vector<8x4xf32>, vector<4x8xf32>, vector<8x8xf32> -> vector<8x8xf32>
    %cst_32 = arith.constant 5.000000e-01 : f32
    %80 = vector.broadcast %cst_32 : f32 to vector<8x8xf32>
    %81 = arith.mulf %79, %80 : vector<8x8xf32>
    %cst_33 = arith.constant dense<0xFF800000> : vector<8xf32>
    %82 = vector.multi_reduction <maximumf>, %81, %cst_33 [1] : vector<8x8xf32> to vector<8xf32>
    %83 = vector.shape_cast %82 : vector<8xf32> to vector<8x1xf32>
    %84 = vector.broadcast %83 : vector<8x1xf32> to vector<8x8xf32>
    %85 = arith.subf %81, %84 : vector<8x8xf32>
    %86 = math.exp %85 : vector<8x8xf32>
    %cst_34 = arith.constant dense<0.000000e+00> : vector<8xf32>
    %87 = vector.multi_reduction <add>, %86, %cst_34 [1] : vector<8x8xf32> to vector<8xf32>
    %88 = vector.shape_cast %87 : vector<8xf32> to vector<8x1xf32>
    %89 = tpu.reciprocal %88 : vector<8x1xf32> -> vector<8x1xf32>
    %90 = vector.broadcast %89 : vector<8x1xf32> to vector<8x8xf32>
    %91 = arith.mulf %86, %90 : vector<8x8xf32>
    %cst_35 = arith.constant dense<0.000000e+00> : vector<8x4xf32>
    %92 = tpu.matmul %91, %77, %cst_35 {dimension_numbers = #tpu.dot_dimension_numbers<[1], [0], [0], [1], [0, 0, 1, 1], [], []>} : vector<8x8xf32>, vector<8x4xf32>, vector<8x4xf32> -> vector<8x4xf32>
    %93 = vector.extract_strided_slice %18 {offsets = [0, 16], sizes = [8, 4], strides = [1, 1]} : vector<8x64xf32> to vector<8x4xf32>
    %94 = vector.extract_strided_slice %19 {offsets = [0, 16], sizes = [8, 4], strides = [1, 1]} : vector<8x64xf32> to vector<8x4xf32>
    %95 = vector.extract_strided_slice %20 {offsets = [0, 16], sizes = [8, 4], strides = [1, 1]} : vector<8x64xf32> to vector<8x4xf32>
    %96 = tpu.transpose %94, [1, 0] : vector<8x4xf32> -> vector<4x8xf32>
    %cst_36 = arith.constant dense<0.000000e+00> : vector<8x8xf32>
    %97 = tpu.matmul %93, %96, %cst_36 {dimension_numbers = #tpu.dot_dimension_numbers<[1], [0], [0], [1], [0, 0, 1, 1], [], []>} : vector<8x4xf32>, vector<4x8xf32>, vector<8x8xf32> -> vector<8x8xf32>
    %cst_37 = arith.constant 5.000000e-01 : f32
    %98 = vector.broadcast %cst_37 : f32 to vector<8x8xf32>
    %99 = arith.mulf %97, %98 : vector<8x8xf32>
    %cst_38 = arith.constant dense<0xFF800000> : vector<8xf32>
    %100 = vector.multi_reduction <maximumf>, %99, %cst_38 [1] : vector<8x8xf32> to vector<8xf32>
    %101 = vector.shape_cast %100 : vector<8xf32> to vector<8x1xf32>
    %102 = vector.broadcast %101 : vector<8x1xf32> to vector<8x8xf32>
    %103 = arith.subf %99, %102 : vector<8x8xf32>
    %104 = math.exp %103 : vector<8x8xf32>
    %cst_39 = arith.constant dense<0.000000e+00> : vector<8xf32>
    %105 = vector.multi_reduction <add>, %104, %cst_39 [1] : vector<8x8xf32> to vector<8xf32>
    %106 = vector.shape_cast %105 : vector<8xf32> to vector<8x1xf32>
    %107 = tpu.reciprocal %106 : vector<8x1xf32> -> vector<8x1xf32>
    %108 = vector.broadcast %107 : vector<8x1xf32> to vector<8x8xf32>
    %109 = arith.mulf %104, %108 : vector<8x8xf32>
    %cst_40 = arith.constant dense<0.000000e+00> : vector<8x4xf32>
    %110 = tpu.matmul %109, %95, %cst_40 {dimension_numbers = #tpu.dot_dimension_numbers<[1], [0], [0], [1], [0, 0, 1, 1], [], []>} : vector<8x8xf32>, vector<8x4xf32>, vector<8x4xf32> -> vector<8x4xf32>
    %111 = vector.extract_strided_slice %18 {offsets = [0, 20], sizes = [8, 4], strides = [1, 1]} : vector<8x64xf32> to vector<8x4xf32>
    %112 = vector.extract_strided_slice %19 {offsets = [0, 20], sizes = [8, 4], strides = [1, 1]} : vector<8x64xf32> to vector<8x4xf32>
    %113 = vector.extract_strided_slice %20 {offsets = [0, 20], sizes = [8, 4], strides = [1, 1]} : vector<8x64xf32> to vector<8x4xf32>
    %114 = tpu.transpose %112, [1, 0] : vector<8x4xf32> -> vector<4x8xf32>
    %cst_41 = arith.constant dense<0.000000e+00> : vector<8x8xf32>
    %115 = tpu.matmul %111, %114, %cst_41 {dimension_numbers = #tpu.dot_dimension_numbers<[1], [0], [0], [1], [0, 0, 1, 1], [], []>} : vector<8x4xf32>, vector<4x8xf32>, vector<8x8xf32> -> vector<8x8xf32>
    %cst_42 = arith.constant 5.000000e-01 : f32
    %116 = vector.broadcast %cst_42 : f32 to vector<8x8xf32>
    %117 = arith.mulf %115, %116 : vector<8x8xf32>
    %cst_43 = arith.constant dense<0xFF800000> : vector<8xf32>
    %118 = vector.multi_reduction <maximumf>, %117, %cst_43 [1] : vector<8x8xf32> to vector<8xf32>
    %119 = vector.shape_cast %118 : vector<8xf32> to vector<8x1xf32>
    %120 = vector.broadcast %119 : vector<8x1xf32> to vector<8x8xf32>
    %121 = arith.subf %117, %120 : vector<8x8xf32>
    %122 = math.exp %121 : vector<8x8xf32>
    %cst_44 = arith.constant dense<0.000000e+00> : vector<8xf32>
    %123 = vector.multi_reduction <add>, %122, %cst_44 [1] : vector<8x8xf32> to vector<8xf32>
    %124 = vector.shape_cast %123 : vector<8xf32> to vector<8x1xf32>
    %125 = tpu.reciprocal %124 : vector<8x1xf32> -> vector<8x1xf32>
    %126 = vector.broadcast %125 : vector<8x1xf32> to vector<8x8xf32>
    %127 = arith.mulf %122, %126 : vector<8x8xf32>
    %cst_45 = arith.constant dense<0.000000e+00> : vector<8x4xf32>
    %128 = tpu.matmul %127, %113, %cst_45 {dimension_numbers = #tpu.dot_dimension_numbers<[1], [0], [0], [1], [0, 0, 1, 1], [], []>} : vector<8x8xf32>, vector<8x4xf32>, vector<8x4xf32> -> vector<8x4xf32>
    %129 = vector.extract_strided_slice %18 {offsets = [0, 24], sizes = [8, 4], strides = [1, 1]} : vector<8x64xf32> to vector<8x4xf32>
    %130 = vector.extract_strided_slice %19 {offsets = [0, 24], sizes = [8, 4], strides = [1, 1]} : vector<8x64xf32> to vector<8x4xf32>
    %131 = vector.extract_strided_slice %20 {offsets = [0, 24], sizes = [8, 4], strides = [1, 1]} : vector<8x64xf32> to vector<8x4xf32>
    %132 = tpu.transpose %130, [1, 0] : vector<8x4xf32> -> vector<4x8xf32>
    %cst_46 = arith.constant dense<0.000000e+00> : vector<8x8xf32>
    %133 = tpu.matmul %129, %132, %cst_46 {dimension_numbers = #tpu.dot_dimension_numbers<[1], [0], [0], [1], [0, 0, 1, 1], [], []>} : vector<8x4xf32>, vector<4x8xf32>, vector<8x8xf32> -> vector<8x8xf32>
    %cst_47 = arith.constant 5.000000e-01 : f32
    %134 = vector.broadcast %cst_47 : f32 to vector<8x8xf32>
    %135 = arith.mulf %133, %134 : vector<8x8xf32>
    %cst_48 = arith.constant dense<0xFF800000> : vector<8xf32>
    %136 = vector.multi_reduction <maximumf>, %135, %cst_48 [1] : vector<8x8xf32> to vector<8xf32>
    %137 = vector.shape_cast %136 : vector<8xf32> to vector<8x1xf32>
    %138 = vector.broadcast %137 : vector<8x1xf32> to vector<8x8xf32>
    %139 = arith.subf %135, %138 : vector<8x8xf32>
    %140 = math.exp %139 : vector<8x8xf32>
    %cst_49 = arith.constant dense<0.000000e+00> : vector<8xf32>
    %141 = vector.multi_reduction <add>, %140, %cst_49 [1] : vector<8x8xf32> to vector<8xf32>
    %142 = vector.shape_cast %141 : vector<8xf32> to vector<8x1xf32>
    %143 = tpu.reciprocal %142 : vector<8x1xf32> -> vector<8x1xf32>
    %144 = vector.broadcast %143 : vector<8x1xf32> to vector<8x8xf32>
    %145 = arith.mulf %140, %144 : vector<8x8xf32>
    %cst_50 = arith.constant dense<0.000000e+00> : vector<8x4xf32>
    %146 = tpu.matmul %145, %131, %cst_50 {dimension_numbers = #tpu.dot_dimension_numbers<[1], [0], [0], [1], [0, 0, 1, 1], [], []>} : vector<8x8xf32>, vector<8x4xf32>, vector<8x4xf32> -> vector<8x4xf32>
    %147 = vector.extract_strided_slice %18 {offsets = [0, 28], sizes = [8, 4], strides = [1, 1]} : vector<8x64xf32> to vector<8x4xf32>
    %148 = vector.extract_strided_slice %19 {offsets = [0, 28], sizes = [8, 4], strides = [1, 1]} : vector<8x64xf32> to vector<8x4xf32>
    %149 = vector.extract_strided_slice %20 {offsets = [0, 28], sizes = [8, 4], strides = [1, 1]} : vector<8x64xf32> to vector<8x4xf32>
    %150 = tpu.transpose %148, [1, 0] : vector<8x4xf32> -> vector<4x8xf32>
    %cst_51 = arith.constant dense<0.000000e+00> : vector<8x8xf32>
    %151 = tpu.matmul %147, %150, %cst_51 {dimension_numbers = #tpu.dot_dimension_numbers<[1], [0], [0], [1], [0, 0, 1, 1], [], []>} : vector<8x4xf32>, vector<4x8xf32>, vector<8x8xf32> -> vector<8x8xf32>
    %cst_52 = arith.constant 5.000000e-01 : f32
    %152 = vector.broadcast %cst_52 : f32 to vector<8x8xf32>
    %153 = arith.mulf %151, %152 : vector<8x8xf32>
    %cst_53 = arith.constant dense<0xFF800000> : vector<8xf32>
    %154 = vector.multi_reduction <maximumf>, %153, %cst_53 [1] : vector<8x8xf32> to vector<8xf32>
    %155 = vector.shape_cast %154 : vector<8xf32> to vector<8x1xf32>
    %156 = vector.broadcast %155 : vector<8x1xf32> to vector<8x8xf32>
    %157 = arith.subf %153, %156 : vector<8x8xf32>
    %158 = math.exp %157 : vector<8x8xf32>
    %cst_54 = arith.constant dense<0.000000e+00> : vector<8xf32>
    %159 = vector.multi_reduction <add>, %158, %cst_54 [1] : vector<8x8xf32> to vector<8xf32>
    %160 = vector.shape_cast %159 : vector<8xf32> to vector<8x1xf32>
    %161 = tpu.reciprocal %160 : vector<8x1xf32> -> vector<8x1xf32>
    %162 = vector.broadcast %161 : vector<8x1xf32> to vector<8x8xf32>
    %163 = arith.mulf %158, %162 : vector<8x8xf32>
    %cst_55 = arith.constant dense<0.000000e+00> : vector<8x4xf32>
    %164 = tpu.matmul %163, %149, %cst_55 {dimension_numbers = #tpu.dot_dimension_numbers<[1], [0], [0], [1], [0, 0, 1, 1], [], []>} : vector<8x8xf32>, vector<8x4xf32>, vector<8x4xf32> -> vector<8x4xf32>
    %165 = vector.extract_strided_slice %18 {offsets = [0, 32], sizes = [8, 4], strides = [1, 1]} : vector<8x64xf32> to vector<8x4xf32>
    %166 = vector.extract_strided_slice %19 {offsets = [0, 32], sizes = [8, 4], strides = [1, 1]} : vector<8x64xf32> to vector<8x4xf32>
    %167 = vector.extract_strided_slice %20 {offsets = [0, 32], sizes = [8, 4], strides = [1, 1]} : vector<8x64xf32> to vector<8x4xf32>
    %168 = tpu.transpose %166, [1, 0] : vector<8x4xf32> -> vector<4x8xf32>
    %cst_56 = arith.constant dense<0.000000e+00> : vector<8x8xf32>
    %169 = tpu.matmul %165, %168, %cst_56 {dimension_numbers = #tpu.dot_dimension_numbers<[1], [0], [0], [1], [0, 0, 1, 1], [], []>} : vector<8x4xf32>, vector<4x8xf32>, vector<8x8xf32> -> vector<8x8xf32>
    %cst_57 = arith.constant 5.000000e-01 : f32
    %170 = vector.broadcast %cst_57 : f32 to vector<8x8xf32>
    %171 = arith.mulf %169, %170 : vector<8x8xf32>
    %cst_58 = arith.constant dense<0xFF800000> : vector<8xf32>
    %172 = vector.multi_reduction <maximumf>, %171, %cst_58 [1] : vector<8x8xf32> to vector<8xf32>
    %173 = vector.shape_cast %172 : vector<8xf32> to vector<8x1xf32>
    %174 = vector.broadcast %173 : vector<8x1xf32> to vector<8x8xf32>
    %175 = arith.subf %171, %174 : vector<8x8xf32>
    %176 = math.exp %175 : vector<8x8xf32>
    %cst_59 = arith.constant dense<0.000000e+00> : vector<8xf32>
    %177 = vector.multi_reduction <add>, %176, %cst_59 [1] : vector<8x8xf32> to vector<8xf32>
    %178 = vector.shape_cast %177 : vector<8xf32> to vector<8x1xf32>
    %179 = tpu.reciprocal %178 : vector<8x1xf32> -> vector<8x1xf32>
    %180 = vector.broadcast %179 : vector<8x1xf32> to vector<8x8xf32>
    %181 = arith.mulf %176, %180 : vector<8x8xf32>
    %cst_60 = arith.constant dense<0.000000e+00> : vector<8x4xf32>
    %182 = tpu.matmul %181, %167, %cst_60 {dimension_numbers = #tpu.dot_dimension_numbers<[1], [0], [0], [1], [0, 0, 1, 1], [], []>} : vector<8x8xf32>, vector<8x4xf32>, vector<8x4xf32> -> vector<8x4xf32>
    %183 = vector.extract_strided_slice %18 {offsets = [0, 36], sizes = [8, 4], strides = [1, 1]} : vector<8x64xf32> to vector<8x4xf32>
    %184 = vector.extract_strided_slice %19 {offsets = [0, 36], sizes = [8, 4], strides = [1, 1]} : vector<8x64xf32> to vector<8x4xf32>
    %185 = vector.extract_strided_slice %20 {offsets = [0, 36], sizes = [8, 4], strides = [1, 1]} : vector<8x64xf32> to vector<8x4xf32>
    %186 = tpu.transpose %184, [1, 0] : vector<8x4xf32> -> vector<4x8xf32>
    %cst_61 = arith.constant dense<0.000000e+00> : vector<8x8xf32>
    %187 = tpu.matmul %183, %186, %cst_61 {dimension_numbers = #tpu.dot_dimension_numbers<[1], [0], [0], [1], [0, 0, 1, 1], [], []>} : vector<8x4xf32>, vector<4x8xf32>, vector<8x8xf32> -> vector<8x8xf32>
    %cst_62 = arith.constant 5.000000e-01 : f32
    %188 = vector.broadcast %cst_62 : f32 to vector<8x8xf32>
    %189 = arith.mulf %187, %188 : vector<8x8xf32>
    %cst_63 = arith.constant dense<0xFF800000> : vector<8xf32>
    %190 = vector.multi_reduction <maximumf>, %189, %cst_63 [1] : vector<8x8xf32> to vector<8xf32>
    %191 = vector.shape_cast %190 : vector<8xf32> to vector<8x1xf32>
    %192 = vector.broadcast %191 : vector<8x1xf32> to vector<8x8xf32>
    %193 = arith.subf %189, %192 : vector<8x8xf32>
    %194 = math.exp %193 : vector<8x8xf32>
    %cst_64 = arith.constant dense<0.000000e+00> : vector<8xf32>
    %195 = vector.multi_reduction <add>, %194, %cst_64 [1] : vector<8x8xf32> to vector<8xf32>
    %196 = vector.shape_cast %195 : vector<8xf32> to vector<8x1xf32>
    %197 = tpu.reciprocal %196 : vector<8x1xf32> -> vector<8x1xf32>
    %198 = vector.broadcast %197 : vector<8x1xf32> to vector<8x8xf32>
    %199 = arith.mulf %194, %198 : vector<8x8xf32>
    %cst_65 = arith.constant dense<0.000000e+00> : vector<8x4xf32>
    %200 = tpu.matmul %199, %185, %cst_65 {dimension_numbers = #tpu.dot_dimension_numbers<[1], [0], [0], [1], [0, 0, 1, 1], [], []>} : vector<8x8xf32>, vector<8x4xf32>, vector<8x4xf32> -> vector<8x4xf32>
    %201 = vector.extract_strided_slice %18 {offsets = [0, 40], sizes = [8, 4], strides = [1, 1]} : vector<8x64xf32> to vector<8x4xf32>
    %202 = vector.extract_strided_slice %19 {offsets = [0, 40], sizes = [8, 4], strides = [1, 1]} : vector<8x64xf32> to vector<8x4xf32>
    %203 = vector.extract_strided_slice %20 {offsets = [0, 40], sizes = [8, 4], strides = [1, 1]} : vector<8x64xf32> to vector<8x4xf32>
    %204 = tpu.transpose %202, [1, 0] : vector<8x4xf32> -> vector<4x8xf32>
    %cst_66 = arith.constant dense<0.000000e+00> : vector<8x8xf32>
    %205 = tpu.matmul %201, %204, %cst_66 {dimension_numbers = #tpu.dot_dimension_numbers<[1], [0], [0], [1], [0, 0, 1, 1], [], []>} : vector<8x4xf32>, vector<4x8xf32>, vector<8x8xf32> -> vector<8x8xf32>
    %cst_67 = arith.constant 5.000000e-01 : f32
    %206 = vector.broadcast %cst_67 : f32 to vector<8x8xf32>
    %207 = arith.mulf %205, %206 : vector<8x8xf32>
    %cst_68 = arith.constant dense<0xFF800000> : vector<8xf32>
    %208 = vector.multi_reduction <maximumf>, %207, %cst_68 [1] : vector<8x8xf32> to vector<8xf32>
    %209 = vector.shape_cast %208 : vector<8xf32> to vector<8x1xf32>
    %210 = vector.broadcast %209 : vector<8x1xf32> to vector<8x8xf32>
    %211 = arith.subf %207, %210 : vector<8x8xf32>
    %212 = math.exp %211 : vector<8x8xf32>
    %cst_69 = arith.constant dense<0.000000e+00> : vector<8xf32>
    %213 = vector.multi_reduction <add>, %212, %cst_69 [1] : vector<8x8xf32> to vector<8xf32>
    %214 = vector.shape_cast %213 : vector<8xf32> to vector<8x1xf32>
    %215 = tpu.reciprocal %214 : vector<8x1xf32> -> vector<8x1xf32>
    %216 = vector.broadcast %215 : vector<8x1xf32> to vector<8x8xf32>
    %217 = arith.mulf %212, %216 : vector<8x8xf32>
    %cst_70 = arith.constant dense<0.000000e+00> : vector<8x4xf32>
    %218 = tpu.matmul %217, %203, %cst_70 {dimension_numbers = #tpu.dot_dimension_numbers<[1], [0], [0], [1], [0, 0, 1, 1], [], []>} : vector<8x8xf32>, vector<8x4xf32>, vector<8x4xf32> -> vector<8x4xf32>
    %219 = vector.extract_strided_slice %18 {offsets = [0, 44], sizes = [8, 4], strides = [1, 1]} : vector<8x64xf32> to vector<8x4xf32>
    %220 = vector.extract_strided_slice %19 {offsets = [0, 44], sizes = [8, 4], strides = [1, 1]} : vector<8x64xf32> to vector<8x4xf32>
    %221 = vector.extract_strided_slice %20 {offsets = [0, 44], sizes = [8, 4], strides = [1, 1]} : vector<8x64xf32> to vector<8x4xf32>
    %222 = tpu.transpose %220, [1, 0] : vector<8x4xf32> -> vector<4x8xf32>
    %cst_71 = arith.constant dense<0.000000e+00> : vector<8x8xf32>
    %223 = tpu.matmul %219, %222, %cst_71 {dimension_numbers = #tpu.dot_dimension_numbers<[1], [0], [0], [1], [0, 0, 1, 1], [], []>} : vector<8x4xf32>, vector<4x8xf32>, vector<8x8xf32> -> vector<8x8xf32>
    %cst_72 = arith.constant 5.000000e-01 : f32
    %224 = vector.broadcast %cst_72 : f32 to vector<8x8xf32>
    %225 = arith.mulf %223, %224 : vector<8x8xf32>
    %cst_73 = arith.constant dense<0xFF800000> : vector<8xf32>
    %226 = vector.multi_reduction <maximumf>, %225, %cst_73 [1] : vector<8x8xf32> to vector<8xf32>
    %227 = vector.shape_cast %226 : vector<8xf32> to vector<8x1xf32>
    %228 = vector.broadcast %227 : vector<8x1xf32> to vector<8x8xf32>
    %229 = arith.subf %225, %228 : vector<8x8xf32>
    %230 = math.exp %229 : vector<8x8xf32>
    %cst_74 = arith.constant dense<0.000000e+00> : vector<8xf32>
    %231 = vector.multi_reduction <add>, %230, %cst_74 [1] : vector<8x8xf32> to vector<8xf32>
    %232 = vector.shape_cast %231 : vector<8xf32> to vector<8x1xf32>
    %233 = tpu.reciprocal %232 : vector<8x1xf32> -> vector<8x1xf32>
    %234 = vector.broadcast %233 : vector<8x1xf32> to vector<8x8xf32>
    %235 = arith.mulf %230, %234 : vector<8x8xf32>
    %cst_75 = arith.constant dense<0.000000e+00> : vector<8x4xf32>
    %236 = tpu.matmul %235, %221, %cst_75 {dimension_numbers = #tpu.dot_dimension_numbers<[1], [0], [0], [1], [0, 0, 1, 1], [], []>} : vector<8x8xf32>, vector<8x4xf32>, vector<8x4xf32> -> vector<8x4xf32>
    %237 = vector.extract_strided_slice %18 {offsets = [0, 48], sizes = [8, 4], strides = [1, 1]} : vector<8x64xf32> to vector<8x4xf32>
    %238 = vector.extract_strided_slice %19 {offsets = [0, 48], sizes = [8, 4], strides = [1, 1]} : vector<8x64xf32> to vector<8x4xf32>
    %239 = vector.extract_strided_slice %20 {offsets = [0, 48], sizes = [8, 4], strides = [1, 1]} : vector<8x64xf32> to vector<8x4xf32>
    %240 = tpu.transpose %238, [1, 0] : vector<8x4xf32> -> vector<4x8xf32>
    %cst_76 = arith.constant dense<0.000000e+00> : vector<8x8xf32>
    %241 = tpu.matmul %237, %240, %cst_76 {dimension_numbers = #tpu.dot_dimension_numbers<[1], [0], [0], [1], [0, 0, 1, 1], [], []>} : vector<8x4xf32>, vector<4x8xf32>, vector<8x8xf32> -> vector<8x8xf32>
    %cst_77 = arith.constant 5.000000e-01 : f32
    %242 = vector.broadcast %cst_77 : f32 to vector<8x8xf32>
    %243 = arith.mulf %241, %242 : vector<8x8xf32>
    %cst_78 = arith.constant dense<0xFF800000> : vector<8xf32>
    %244 = vector.multi_reduction <maximumf>, %243, %cst_78 [1] : vector<8x8xf32> to vector<8xf32>
    %245 = vector.shape_cast %244 : vector<8xf32> to vector<8x1xf32>
    %246 = vector.broadcast %245 : vector<8x1xf32> to vector<8x8xf32>
    %247 = arith.subf %243, %246 : vector<8x8xf32>
    %248 = math.exp %247 : vector<8x8xf32>
    %cst_79 = arith.constant dense<0.000000e+00> : vector<8xf32>
    %249 = vector.multi_reduction <add>, %248, %cst_79 [1] : vector<8x8xf32> to vector<8xf32>
    %250 = vector.shape_cast %249 : vector<8xf32> to vector<8x1xf32>
    %251 = tpu.reciprocal %250 : vector<8x1xf32> -> vector<8x1xf32>
    %252 = vector.broadcast %251 : vector<8x1xf32> to vector<8x8xf32>
    %253 = arith.mulf %248, %252 : vector<8x8xf32>
    %cst_80 = arith.constant dense<0.000000e+00> : vector<8x4xf32>
    %254 = tpu.matmul %253, %239, %cst_80 {dimension_numbers = #tpu.dot_dimension_numbers<[1], [0], [0], [1], [0, 0, 1, 1], [], []>} : vector<8x8xf32>, vector<8x4xf32>, vector<8x4xf32> -> vector<8x4xf32>
    %255 = vector.extract_strided_slice %18 {offsets = [0, 52], sizes = [8, 4], strides = [1, 1]} : vector<8x64xf32> to vector<8x4xf32>
    %256 = vector.extract_strided_slice %19 {offsets = [0, 52], sizes = [8, 4], strides = [1, 1]} : vector<8x64xf32> to vector<8x4xf32>
    %257 = vector.extract_strided_slice %20 {offsets = [0, 52], sizes = [8, 4], strides = [1, 1]} : vector<8x64xf32> to vector<8x4xf32>
    %258 = tpu.transpose %256, [1, 0] : vector<8x4xf32> -> vector<4x8xf32>
    %cst_81 = arith.constant dense<0.000000e+00> : vector<8x8xf32>
    %259 = tpu.matmul %255, %258, %cst_81 {dimension_numbers = #tpu.dot_dimension_numbers<[1], [0], [0], [1], [0, 0, 1, 1], [], []>} : vector<8x4xf32>, vector<4x8xf32>, vector<8x8xf32> -> vector<8x8xf32>
    %cst_82 = arith.constant 5.000000e-01 : f32
    %260 = vector.broadcast %cst_82 : f32 to vector<8x8xf32>
    %261 = arith.mulf %259, %260 : vector<8x8xf32>
    %cst_83 = arith.constant dense<0xFF800000> : vector<8xf32>
    %262 = vector.multi_reduction <maximumf>, %261, %cst_83 [1] : vector<8x8xf32> to vector<8xf32>
    %263 = vector.shape_cast %262 : vector<8xf32> to vector<8x1xf32>
    %264 = vector.broadcast %263 : vector<8x1xf32> to vector<8x8xf32>
    %265 = arith.subf %261, %264 : vector<8x8xf32>
    %266 = math.exp %265 : vector<8x8xf32>
    %cst_84 = arith.constant dense<0.000000e+00> : vector<8xf32>
    %267 = vector.multi_reduction <add>, %266, %cst_84 [1] : vector<8x8xf32> to vector<8xf32>
    %268 = vector.shape_cast %267 : vector<8xf32> to vector<8x1xf32>
    %269 = tpu.reciprocal %268 : vector<8x1xf32> -> vector<8x1xf32>
    %270 = vector.broadcast %269 : vector<8x1xf32> to vector<8x8xf32>
    %271 = arith.mulf %266, %270 : vector<8x8xf32>
    %cst_85 = arith.constant dense<0.000000e+00> : vector<8x4xf32>
    %272 = tpu.matmul %271, %257, %cst_85 {dimension_numbers = #tpu.dot_dimension_numbers<[1], [0], [0], [1], [0, 0, 1, 1], [], []>} : vector<8x8xf32>, vector<8x4xf32>, vector<8x4xf32> -> vector<8x4xf32>
    %273 = vector.extract_strided_slice %18 {offsets = [0, 56], sizes = [8, 4], strides = [1, 1]} : vector<8x64xf32> to vector<8x4xf32>
    %274 = vector.extract_strided_slice %19 {offsets = [0, 56], sizes = [8, 4], strides = [1, 1]} : vector<8x64xf32> to vector<8x4xf32>
    %275 = vector.extract_strided_slice %20 {offsets = [0, 56], sizes = [8, 4], strides = [1, 1]} : vector<8x64xf32> to vector<8x4xf32>
    %276 = tpu.transpose %274, [1, 0] : vector<8x4xf32> -> vector<4x8xf32>
    %cst_86 = arith.constant dense<0.000000e+00> : vector<8x8xf32>
    %277 = tpu.matmul %273, %276, %cst_86 {dimension_numbers = #tpu.dot_dimension_numbers<[1], [0], [0], [1], [0, 0, 1, 1], [], []>} : vector<8x4xf32>, vector<4x8xf32>, vector<8x8xf32> -> vector<8x8xf32>
    %cst_87 = arith.constant 5.000000e-01 : f32
    %278 = vector.broadcast %cst_87 : f32 to vector<8x8xf32>
    %279 = arith.mulf %277, %278 : vector<8x8xf32>
    %cst_88 = arith.constant dense<0xFF800000> : vector<8xf32>
    %280 = vector.multi_reduction <maximumf>, %279, %cst_88 [1] : vector<8x8xf32> to vector<8xf32>
    %281 = vector.shape_cast %280 : vector<8xf32> to vector<8x1xf32>
    %282 = vector.broadcast %281 : vector<8x1xf32> to vector<8x8xf32>
    %283 = arith.subf %279, %282 : vector<8x8xf32>
    %284 = math.exp %283 : vector<8x8xf32>
    %cst_89 = arith.constant dense<0.000000e+00> : vector<8xf32>
    %285 = vector.multi_reduction <add>, %284, %cst_89 [1] : vector<8x8xf32> to vector<8xf32>
    %286 = vector.shape_cast %285 : vector<8xf32> to vector<8x1xf32>
    %287 = tpu.reciprocal %286 : vector<8x1xf32> -> vector<8x1xf32>
    %288 = vector.broadcast %287 : vector<8x1xf32> to vector<8x8xf32>
    %289 = arith.mulf %284, %288 : vector<8x8xf32>
    %cst_90 = arith.constant dense<0.000000e+00> : vector<8x4xf32>
    %290 = tpu.matmul %289, %275, %cst_90 {dimension_numbers = #tpu.dot_dimension_numbers<[1], [0], [0], [1], [0, 0, 1, 1], [], []>} : vector<8x8xf32>, vector<8x4xf32>, vector<8x4xf32> -> vector<8x4xf32>
    %291 = vector.extract_strided_slice %18 {offsets = [0, 60], sizes = [8, 4], strides = [1, 1]} : vector<8x64xf32> to vector<8x4xf32>
    %292 = vector.extract_strided_slice %19 {offsets = [0, 60], sizes = [8, 4], strides = [1, 1]} : vector<8x64xf32> to vector<8x4xf32>
    %293 = vector.extract_strided_slice %20 {offsets = [0, 60], sizes = [8, 4], strides = [1, 1]} : vector<8x64xf32> to vector<8x4xf32>
    %294 = tpu.transpose %292, [1, 0] : vector<8x4xf32> -> vector<4x8xf32>
    %cst_91 = arith.constant dense<0.000000e+00> : vector<8x8xf32>
    %295 = tpu.matmul %291, %294, %cst_91 {dimension_numbers = #tpu.dot_dimension_numbers<[1], [0], [0], [1], [0, 0, 1, 1], [], []>} : vector<8x4xf32>, vector<4x8xf32>, vector<8x8xf32> -> vector<8x8xf32>
    %cst_92 = arith.constant 5.000000e-01 : f32
    %296 = vector.broadcast %cst_92 : f32 to vector<8x8xf32>
    %297 = arith.mulf %295, %296 : vector<8x8xf32>
    %cst_93 = arith.constant dense<0xFF800000> : vector<8xf32>
    %298 = vector.multi_reduction <maximumf>, %297, %cst_93 [1] : vector<8x8xf32> to vector<8xf32>
    %299 = vector.shape_cast %298 : vector<8xf32> to vector<8x1xf32>
    %300 = vector.broadcast %299 : vector<8x1xf32> to vector<8x8xf32>
    %301 = arith.subf %297, %300 : vector<8x8xf32>
    %302 = math.exp %301 : vector<8x8xf32>
    %cst_94 = arith.constant dense<0.000000e+00> : vector<8xf32>
    %303 = vector.multi_reduction <add>, %302, %cst_94 [1] : vector<8x8xf32> to vector<8xf32>
    %304 = vector.shape_cast %303 : vector<8xf32> to vector<8x1xf32>
    %305 = tpu.reciprocal %304 : vector<8x1xf32> -> vector<8x1xf32>
    %306 = vector.broadcast %305 : vector<8x1xf32> to vector<8x8xf32>
    %307 = arith.mulf %302, %306 : vector<8x8xf32>
    %cst_95 = arith.constant dense<0.000000e+00> : vector<8x4xf32>
    %308 = tpu.matmul %307, %293, %cst_95 {dimension_numbers = #tpu.dot_dimension_numbers<[1], [0], [0], [1], [0, 0, 1, 1], [], []>} : vector<8x8xf32>, vector<8x4xf32>, vector<8x4xf32> -> vector<8x4xf32>
    %309 = tpu.concatenate %38, %56, %74, %92, %110, %128, %146, %164, %182, %200, %218, %236, %254, %272, %290, %308 in 1 : vector<8x4xf32>, vector<8x4xf32>, vector<8x4xf32>, vector<8x4xf32>, vector<8x4xf32>, vector<8x4xf32>, vector<8x4xf32>, vector<8x4xf32>, vector<8x4xf32>, vector<8x4xf32>, vector<8x4xf32>, vector<8x4xf32>, vector<8x4xf32>, vector<8x4xf32>, vector<8x4xf32>, vector<8x4xf32> -> vector<8x64xf32>
    %310 = vector.extract_strided_slice %12 {offsets = [8, 0], sizes = [8, 64], strides = [1, 1]} : vector<16x64xf32> to vector<8x64xf32>
    %311 = vector.extract_strided_slice %13 {offsets = [8, 0], sizes = [8, 64], strides = [1, 1]} : vector<16x64xf32> to vector<8x64xf32>
    %312 = vector.extract_strided_slice %15 {offsets = [8, 0], sizes = [8, 64], strides = [1, 1]} : vector<16x64xf32> to vector<8x64xf32>
    %313 = vector.extract_strided_slice %310 {offsets = [0, 0], sizes = [8, 4], strides = [1, 1]} : vector<8x64xf32> to vector<8x4xf32>
    %314 = vector.extract_strided_slice %311 {offsets = [0, 0], sizes = [8, 4], strides = [1, 1]} : vector<8x64xf32> to vector<8x4xf32>
    %315 = vector.extract_strided_slice %312 {offsets = [0, 0], sizes = [8, 4], strides = [1, 1]} : vector<8x64xf32> to vector<8x4xf32>
    %316 = tpu.transpose %314, [1, 0] : vector<8x4xf32> -> vector<4x8xf32>
    %cst_96 = arith.constant dense<0.000000e+00> : vector<8x8xf32>
    %317 = tpu.matmul %313, %316, %cst_96 {dimension_numbers = #tpu.dot_dimension_numbers<[1], [0], [0], [1], [0, 0, 1, 1], [], []>} : vector<8x4xf32>, vector<4x8xf32>, vector<8x8xf32> -> vector<8x8xf32>
    %cst_97 = arith.constant 5.000000e-01 : f32
    %318 = vector.broadcast %cst_97 : f32 to vector<8x8xf32>
    %319 = arith.mulf %317, %318 : vector<8x8xf32>
    %cst_98 = arith.constant dense<0xFF800000> : vector<8xf32>
    %320 = vector.multi_reduction <maximumf>, %319, %cst_98 [1] : vector<8x8xf32> to vector<8xf32>
    %321 = vector.shape_cast %320 : vector<8xf32> to vector<8x1xf32>
    %322 = vector.broadcast %321 : vector<8x1xf32> to vector<8x8xf32>
    %323 = arith.subf %319, %322 : vector<8x8xf32>
    %324 = math.exp %323 : vector<8x8xf32>
    %cst_99 = arith.constant dense<0.000000e+00> : vector<8xf32>
    %325 = vector.multi_reduction <add>, %324, %cst_99 [1] : vector<8x8xf32> to vector<8xf32>
    %326 = vector.shape_cast %325 : vector<8xf32> to vector<8x1xf32>
    %327 = tpu.reciprocal %326 : vector<8x1xf32> -> vector<8x1xf32>
    %328 = vector.broadcast %327 : vector<8x1xf32> to vector<8x8xf32>
    %329 = arith.mulf %324, %328 : vector<8x8xf32>
    %cst_100 = arith.constant dense<0.000000e+00> : vector<8x4xf32>
    %330 = tpu.matmul %329, %315, %cst_100 {dimension_numbers = #tpu.dot_dimension_numbers<[1], [0], [0], [1], [0, 0, 1, 1], [], []>} : vector<8x8xf32>, vector<8x4xf32>, vector<8x4xf32> -> vector<8x4xf32>
    %331 = vector.extract_strided_slice %310 {offsets = [0, 4], sizes = [8, 4], strides = [1, 1]} : vector<8x64xf32> to vector<8x4xf32>
    %332 = vector.extract_strided_slice %311 {offsets = [0, 4], sizes = [8, 4], strides = [1, 1]} : vector<8x64xf32> to vector<8x4xf32>
    %333 = vector.extract_strided_slice %312 {offsets = [0, 4], sizes = [8, 4], strides = [1, 1]} : vector<8x64xf32> to vector<8x4xf32>
    %334 = tpu.transpose %332, [1, 0] : vector<8x4xf32> -> vector<4x8xf32>
    %cst_101 = arith.constant dense<0.000000e+00> : vector<8x8xf32>
    %335 = tpu.matmul %331, %334, %cst_101 {dimension_numbers = #tpu.dot_dimension_numbers<[1], [0], [0], [1], [0, 0, 1, 1], [], []>} : vector<8x4xf32>, vector<4x8xf32>, vector<8x8xf32> -> vector<8x8xf32>
    %cst_102 = arith.constant 5.000000e-01 : f32
    %336 = vector.broadcast %cst_102 : f32 to vector<8x8xf32>
    %337 = arith.mulf %335, %336 : vector<8x8xf32>
    %cst_103 = arith.constant dense<0xFF800000> : vector<8xf32>
    %338 = vector.multi_reduction <maximumf>, %337, %cst_103 [1] : vector<8x8xf32> to vector<8xf32>
    %339 = vector.shape_cast %338 : vector<8xf32> to vector<8x1xf32>
    %340 = vector.broadcast %339 : vector<8x1xf32> to vector<8x8xf32>
    %341 = arith.subf %337, %340 : vector<8x8xf32>
    %342 = math.exp %341 : vector<8x8xf32>
    %cst_104 = arith.constant dense<0.000000e+00> : vector<8xf32>
    %343 = vector.multi_reduction <add>, %342, %cst_104 [1] : vector<8x8xf32> to vector<8xf32>
    %344 = vector.shape_cast %343 : vector<8xf32> to vector<8x1xf32>
    %345 = tpu.reciprocal %344 : vector<8x1xf32> -> vector<8x1xf32>
    %346 = vector.broadcast %345 : vector<8x1xf32> to vector<8x8xf32>
    %347 = arith.mulf %342, %346 : vector<8x8xf32>
    %cst_105 = arith.constant dense<0.000000e+00> : vector<8x4xf32>
    %348 = tpu.matmul %347, %333, %cst_105 {dimension_numbers = #tpu.dot_dimension_numbers<[1], [0], [0], [1], [0, 0, 1, 1], [], []>} : vector<8x8xf32>, vector<8x4xf32>, vector<8x4xf32> -> vector<8x4xf32>
    %349 = vector.extract_strided_slice %310 {offsets = [0, 8], sizes = [8, 4], strides = [1, 1]} : vector<8x64xf32> to vector<8x4xf32>
    %350 = vector.extract_strided_slice %311 {offsets = [0, 8], sizes = [8, 4], strides = [1, 1]} : vector<8x64xf32> to vector<8x4xf32>
    %351 = vector.extract_strided_slice %312 {offsets = [0, 8], sizes = [8, 4], strides = [1, 1]} : vector<8x64xf32> to vector<8x4xf32>
    %352 = tpu.transpose %350, [1, 0] : vector<8x4xf32> -> vector<4x8xf32>
    %cst_106 = arith.constant dense<0.000000e+00> : vector<8x8xf32>
    %353 = tpu.matmul %349, %352, %cst_106 {dimension_numbers = #tpu.dot_dimension_numbers<[1], [0], [0], [1], [0, 0, 1, 1], [], []>} : vector<8x4xf32>, vector<4x8xf32>, vector<8x8xf32> -> vector<8x8xf32>
    %cst_107 = arith.constant 5.000000e-01 : f32
    %354 = vector.broadcast %cst_107 : f32 to vector<8x8xf32>
    %355 = arith.mulf %353, %354 : vector<8x8xf32>
    %cst_108 = arith.constant dense<0xFF800000> : vector<8xf32>
    %356 = vector.multi_reduction <maximumf>, %355, %cst_108 [1] : vector<8x8xf32> to vector<8xf32>
    %357 = vector.shape_cast %356 : vector<8xf32> to vector<8x1xf32>
    %358 = vector.broadcast %357 : vector<8x1xf32> to vector<8x8xf32>
    %359 = arith.subf %355, %358 : vector<8x8xf32>
    %360 = math.exp %359 : vector<8x8xf32>
    %cst_109 = arith.constant dense<0.000000e+00> : vector<8xf32>
    %361 = vector.multi_reduction <add>, %360, %cst_109 [1] : vector<8x8xf32> to vector<8xf32>
    %362 = vector.shape_cast %361 : vector<8xf32> to vector<8x1xf32>
    %363 = tpu.reciprocal %362 : vector<8x1xf32> -> vector<8x1xf32>
    %364 = vector.broadcast %363 : vector<8x1xf32> to vector<8x8xf32>
    %365 = arith.mulf %360, %364 : vector<8x8xf32>
    %cst_110 = arith.constant dense<0.000000e+00> : vector<8x4xf32>
    %366 = tpu.matmul %365, %351, %cst_110 {dimension_numbers = #tpu.dot_dimension_numbers<[1], [0], [0], [1], [0, 0, 1, 1], [], []>} : vector<8x8xf32>, vector<8x4xf32>, vector<8x4xf32> -> vector<8x4xf32>
    %367 = vector.extract_strided_slice %310 {offsets = [0, 12], sizes = [8, 4], strides = [1, 1]} : vector<8x64xf32> to vector<8x4xf32>
    %368 = vector.extract_strided_slice %311 {offsets = [0, 12], sizes = [8, 4], strides = [1, 1]} : vector<8x64xf32> to vector<8x4xf32>
    %369 = vector.extract_strided_slice %312 {offsets = [0, 12], sizes = [8, 4], strides = [1, 1]} : vector<8x64xf32> to vector<8x4xf32>
    %370 = tpu.transpose %368, [1, 0] : vector<8x4xf32> -> vector<4x8xf32>
    %cst_111 = arith.constant dense<0.000000e+00> : vector<8x8xf32>
    %371 = tpu.matmul %367, %370, %cst_111 {dimension_numbers = #tpu.dot_dimension_numbers<[1], [0], [0], [1], [0, 0, 1, 1], [], []>} : vector<8x4xf32>, vector<4x8xf32>, vector<8x8xf32> -> vector<8x8xf32>
    %cst_112 = arith.constant 5.000000e-01 : f32
    %372 = vector.broadcast %cst_112 : f32 to vector<8x8xf32>
    %373 = arith.mulf %371, %372 : vector<8x8xf32>
    %cst_113 = arith.constant dense<0xFF800000> : vector<8xf32>
    %374 = vector.multi_reduction <maximumf>, %373, %cst_113 [1] : vector<8x8xf32> to vector<8xf32>
    %375 = vector.shape_cast %374 : vector<8xf32> to vector<8x1xf32>
    %376 = vector.broadcast %375 : vector<8x1xf32> to vector<8x8xf32>
    %377 = arith.subf %373, %376 : vector<8x8xf32>
    %378 = math.exp %377 : vector<8x8xf32>
    %cst_114 = arith.constant dense<0.000000e+00> : vector<8xf32>
    %379 = vector.multi_reduction <add>, %378, %cst_114 [1] : vector<8x8xf32> to vector<8xf32>
    %380 = vector.shape_cast %379 : vector<8xf32> to vector<8x1xf32>
    %381 = tpu.reciprocal %380 : vector<8x1xf32> -> vector<8x1xf32>
    %382 = vector.broadcast %381 : vector<8x1xf32> to vector<8x8xf32>
    %383 = arith.mulf %378, %382 : vector<8x8xf32>
    %cst_115 = arith.constant dense<0.000000e+00> : vector<8x4xf32>
    %384 = tpu.matmul %383, %369, %cst_115 {dimension_numbers = #tpu.dot_dimension_numbers<[1], [0], [0], [1], [0, 0, 1, 1], [], []>} : vector<8x8xf32>, vector<8x4xf32>, vector<8x4xf32> -> vector<8x4xf32>
    %385 = vector.extract_strided_slice %310 {offsets = [0, 16], sizes = [8, 4], strides = [1, 1]} : vector<8x64xf32> to vector<8x4xf32>
    %386 = vector.extract_strided_slice %311 {offsets = [0, 16], sizes = [8, 4], strides = [1, 1]} : vector<8x64xf32> to vector<8x4xf32>
    %387 = vector.extract_strided_slice %312 {offsets = [0, 16], sizes = [8, 4], strides = [1, 1]} : vector<8x64xf32> to vector<8x4xf32>
    %388 = tpu.transpose %386, [1, 0] : vector<8x4xf32> -> vector<4x8xf32>
    %cst_116 = arith.constant dense<0.000000e+00> : vector<8x8xf32>
    %389 = tpu.matmul %385, %388, %cst_116 {dimension_numbers = #tpu.dot_dimension_numbers<[1], [0], [0], [1], [0, 0, 1, 1], [], []>} : vector<8x4xf32>, vector<4x8xf32>, vector<8x8xf32> -> vector<8x8xf32>
    %cst_117 = arith.constant 5.000000e-01 : f32
    %390 = vector.broadcast %cst_117 : f32 to vector<8x8xf32>
    %391 = arith.mulf %389, %390 : vector<8x8xf32>
    %cst_118 = arith.constant dense<0xFF800000> : vector<8xf32>
    %392 = vector.multi_reduction <maximumf>, %391, %cst_118 [1] : vector<8x8xf32> to vector<8xf32>
    %393 = vector.shape_cast %392 : vector<8xf32> to vector<8x1xf32>
    %394 = vector.broadcast %393 : vector<8x1xf32> to vector<8x8xf32>
    %395 = arith.subf %391, %394 : vector<8x8xf32>
    %396 = math.exp %395 : vector<8x8xf32>
    %cst_119 = arith.constant dense<0.000000e+00> : vector<8xf32>
    %397 = vector.multi_reduction <add>, %396, %cst_119 [1] : vector<8x8xf32> to vector<8xf32>
    %398 = vector.shape_cast %397 : vector<8xf32> to vector<8x1xf32>
    %399 = tpu.reciprocal %398 : vector<8x1xf32> -> vector<8x1xf32>
    %400 = vector.broadcast %399 : vector<8x1xf32> to vector<8x8xf32>
    %401 = arith.mulf %396, %400 : vector<8x8xf32>
    %cst_120 = arith.constant dense<0.000000e+00> : vector<8x4xf32>
    %402 = tpu.matmul %401, %387, %cst_120 {dimension_numbers = #tpu.dot_dimension_numbers<[1], [0], [0], [1], [0, 0, 1, 1], [], []>} : vector<8x8xf32>, vector<8x4xf32>, vector<8x4xf32> -> vector<8x4xf32>
    %403 = vector.extract_strided_slice %310 {offsets = [0, 20], sizes = [8, 4], strides = [1, 1]} : vector<8x64xf32> to vector<8x4xf32>
    %404 = vector.extract_strided_slice %311 {offsets = [0, 20], sizes = [8, 4], strides = [1, 1]} : vector<8x64xf32> to vector<8x4xf32>
    %405 = vector.extract_strided_slice %312 {offsets = [0, 20], sizes = [8, 4], strides = [1, 1]} : vector<8x64xf32> to vector<8x4xf32>
    %406 = tpu.transpose %404, [1, 0] : vector<8x4xf32> -> vector<4x8xf32>
    %cst_121 = arith.constant dense<0.000000e+00> : vector<8x8xf32>
    %407 = tpu.matmul %403, %406, %cst_121 {dimension_numbers = #tpu.dot_dimension_numbers<[1], [0], [0], [1], [0, 0, 1, 1], [], []>} : vector<8x4xf32>, vector<4x8xf32>, vector<8x8xf32> -> vector<8x8xf32>
    %cst_122 = arith.constant 5.000000e-01 : f32
    %408 = vector.broadcast %cst_122 : f32 to vector<8x8xf32>
    %409 = arith.mulf %407, %408 : vector<8x8xf32>
    %cst_123 = arith.constant dense<0xFF800000> : vector<8xf32>
    %410 = vector.multi_reduction <maximumf>, %409, %cst_123 [1] : vector<8x8xf32> to vector<8xf32>
    %411 = vector.shape_cast %410 : vector<8xf32> to vector<8x1xf32>
    %412 = vector.broadcast %411 : vector<8x1xf32> to vector<8x8xf32>
    %413 = arith.subf %409, %412 : vector<8x8xf32>
    %414 = math.exp %413 : vector<8x8xf32>
    %cst_124 = arith.constant dense<0.000000e+00> : vector<8xf32>
    %415 = vector.multi_reduction <add>, %414, %cst_124 [1] : vector<8x8xf32> to vector<8xf32>
    %416 = vector.shape_cast %415 : vector<8xf32> to vector<8x1xf32>
    %417 = tpu.reciprocal %416 : vector<8x1xf32> -> vector<8x1xf32>
    %418 = vector.broadcast %417 : vector<8x1xf32> to vector<8x8xf32>
    %419 = arith.mulf %414, %418 : vector<8x8xf32>
    %cst_125 = arith.constant dense<0.000000e+00> : vector<8x4xf32>
    %420 = tpu.matmul %419, %405, %cst_125 {dimension_numbers = #tpu.dot_dimension_numbers<[1], [0], [0], [1], [0, 0, 1, 1], [], []>} : vector<8x8xf32>, vector<8x4xf32>, vector<8x4xf32> -> vector<8x4xf32>
    %421 = vector.extract_strided_slice %310 {offsets = [0, 24], sizes = [8, 4], strides = [1, 1]} : vector<8x64xf32> to vector<8x4xf32>
    %422 = vector.extract_strided_slice %311 {offsets = [0, 24], sizes = [8, 4], strides = [1, 1]} : vector<8x64xf32> to vector<8x4xf32>
    %423 = vector.extract_strided_slice %312 {offsets = [0, 24], sizes = [8, 4], strides = [1, 1]} : vector<8x64xf32> to vector<8x4xf32>
    %424 = tpu.transpose %422, [1, 0] : vector<8x4xf32> -> vector<4x8xf32>
    %cst_126 = arith.constant dense<0.000000e+00> : vector<8x8xf32>
    %425 = tpu.matmul %421, %424, %cst_126 {dimension_numbers = #tpu.dot_dimension_numbers<[1], [0], [0], [1], [0, 0, 1, 1], [], []>} : vector<8x4xf32>, vector<4x8xf32>, vector<8x8xf32> -> vector<8x8xf32>
    %cst_127 = arith.constant 5.000000e-01 : f32
    %426 = vector.broadcast %cst_127 : f32 to vector<8x8xf32>
    %427 = arith.mulf %425, %426 : vector<8x8xf32>
    %cst_128 = arith.constant dense<0xFF800000> : vector<8xf32>
    %428 = vector.multi_reduction <maximumf>, %427, %cst_128 [1] : vector<8x8xf32> to vector<8xf32>
    %429 = vector.shape_cast %428 : vector<8xf32> to vector<8x1xf32>
    %430 = vector.broadcast %429 : vector<8x1xf32> to vector<8x8xf32>
    %431 = arith.subf %427, %430 : vector<8x8xf32>
    %432 = math.exp %431 : vector<8x8xf32>
    %cst_129 = arith.constant dense<0.000000e+00> : vector<8xf32>
    %433 = vector.multi_reduction <add>, %432, %cst_129 [1] : vector<8x8xf32> to vector<8xf32>
    %434 = vector.shape_cast %433 : vector<8xf32> to vector<8x1xf32>
    %435 = tpu.reciprocal %434 : vector<8x1xf32> -> vector<8x1xf32>
    %436 = vector.broadcast %435 : vector<8x1xf32> to vector<8x8xf32>
    %437 = arith.mulf %432, %436 : vector<8x8xf32>
    %cst_130 = arith.constant dense<0.000000e+00> : vector<8x4xf32>
    %438 = tpu.matmul %437, %423, %cst_130 {dimension_numbers = #tpu.dot_dimension_numbers<[1], [0], [0], [1], [0, 0, 1, 1], [], []>} : vector<8x8xf32>, vector<8x4xf32>, vector<8x4xf32> -> vector<8x4xf32>
    %439 = vector.extract_strided_slice %310 {offsets = [0, 28], sizes = [8, 4], strides = [1, 1]} : vector<8x64xf32> to vector<8x4xf32>
    %440 = vector.extract_strided_slice %311 {offsets = [0, 28], sizes = [8, 4], strides = [1, 1]} : vector<8x64xf32> to vector<8x4xf32>
    %441 = vector.extract_strided_slice %312 {offsets = [0, 28], sizes = [8, 4], strides = [1, 1]} : vector<8x64xf32> to vector<8x4xf32>
    %442 = tpu.transpose %440, [1, 0] : vector<8x4xf32> -> vector<4x8xf32>
    %cst_131 = arith.constant dense<0.000000e+00> : vector<8x8xf32>
    %443 = tpu.matmul %439, %442, %cst_131 {dimension_numbers = #tpu.dot_dimension_numbers<[1], [0], [0], [1], [0, 0, 1, 1], [], []>} : vector<8x4xf32>, vector<4x8xf32>, vector<8x8xf32> -> vector<8x8xf32>
    %cst_132 = arith.constant 5.000000e-01 : f32
    %444 = vector.broadcast %cst_132 : f32 to vector<8x8xf32>
    %445 = arith.mulf %443, %444 : vector<8x8xf32>
    %cst_133 = arith.constant dense<0xFF800000> : vector<8xf32>
    %446 = vector.multi_reduction <maximumf>, %445, %cst_133 [1] : vector<8x8xf32> to vector<8xf32>
    %447 = vector.shape_cast %446 : vector<8xf32> to vector<8x1xf32>
    %448 = vector.broadcast %447 : vector<8x1xf32> to vector<8x8xf32>
    %449 = arith.subf %445, %448 : vector<8x8xf32>
    %450 = math.exp %449 : vector<8x8xf32>
    %cst_134 = arith.constant dense<0.000000e+00> : vector<8xf32>
    %451 = vector.multi_reduction <add>, %450, %cst_134 [1] : vector<8x8xf32> to vector<8xf32>
    %452 = vector.shape_cast %451 : vector<8xf32> to vector<8x1xf32>
    %453 = tpu.reciprocal %452 : vector<8x1xf32> -> vector<8x1xf32>
    %454 = vector.broadcast %453 : vector<8x1xf32> to vector<8x8xf32>
    %455 = arith.mulf %450, %454 : vector<8x8xf32>
    %cst_135 = arith.constant dense<0.000000e+00> : vector<8x4xf32>
    %456 = tpu.matmul %455, %441, %cst_135 {dimension_numbers = #tpu.dot_dimension_numbers<[1], [0], [0], [1], [0, 0, 1, 1], [], []>} : vector<8x8xf32>, vector<8x4xf32>, vector<8x4xf32> -> vector<8x4xf32>
    %457 = vector.extract_strided_slice %310 {offsets = [0, 32], sizes = [8, 4], strides = [1, 1]} : vector<8x64xf32> to vector<8x4xf32>
    %458 = vector.extract_strided_slice %311 {offsets = [0, 32], sizes = [8, 4], strides = [1, 1]} : vector<8x64xf32> to vector<8x4xf32>
    %459 = vector.extract_strided_slice %312 {offsets = [0, 32], sizes = [8, 4], strides = [1, 1]} : vector<8x64xf32> to vector<8x4xf32>
    %460 = tpu.transpose %458, [1, 0] : vector<8x4xf32> -> vector<4x8xf32>
    %cst_136 = arith.constant dense<0.000000e+00> : vector<8x8xf32>
    %461 = tpu.matmul %457, %460, %cst_136 {dimension_numbers = #tpu.dot_dimension_numbers<[1], [0], [0], [1], [0, 0, 1, 1], [], []>} : vector<8x4xf32>, vector<4x8xf32>, vector<8x8xf32> -> vector<8x8xf32>
    %cst_137 = arith.constant 5.000000e-01 : f32
    %462 = vector.broadcast %cst_137 : f32 to vector<8x8xf32>
    %463 = arith.mulf %461, %462 : vector<8x8xf32>
    %cst_138 = arith.constant dense<0xFF800000> : vector<8xf32>
    %464 = vector.multi_reduction <maximumf>, %463, %cst_138 [1] : vector<8x8xf32> to vector<8xf32>
    %465 = vector.shape_cast %464 : vector<8xf32> to vector<8x1xf32>
    %466 = vector.broadcast %465 : vector<8x1xf32> to vector<8x8xf32>
    %467 = arith.subf %463, %466 : vector<8x8xf32>
    %468 = math.exp %467 : vector<8x8xf32>
    %cst_139 = arith.constant dense<0.000000e+00> : vector<8xf32>
    %469 = vector.multi_reduction <add>, %468, %cst_139 [1] : vector<8x8xf32> to vector<8xf32>
    %470 = vector.shape_cast %469 : vector<8xf32> to vector<8x1xf32>
    %471 = tpu.reciprocal %470 : vector<8x1xf32> -> vector<8x1xf32>
    %472 = vector.broadcast %471 : vector<8x1xf32> to vector<8x8xf32>
    %473 = arith.mulf %468, %472 : vector<8x8xf32>
    %cst_140 = arith.constant dense<0.000000e+00> : vector<8x4xf32>
    %474 = tpu.matmul %473, %459, %cst_140 {dimension_numbers = #tpu.dot_dimension_numbers<[1], [0], [0], [1], [0, 0, 1, 1], [], []>} : vector<8x8xf32>, vector<8x4xf32>, vector<8x4xf32> -> vector<8x4xf32>
    %475 = vector.extract_strided_slice %310 {offsets = [0, 36], sizes = [8, 4], strides = [1, 1]} : vector<8x64xf32> to vector<8x4xf32>
    %476 = vector.extract_strided_slice %311 {offsets = [0, 36], sizes = [8, 4], strides = [1, 1]} : vector<8x64xf32> to vector<8x4xf32>
    %477 = vector.extract_strided_slice %312 {offsets = [0, 36], sizes = [8, 4], strides = [1, 1]} : vector<8x64xf32> to vector<8x4xf32>
    %478 = tpu.transpose %476, [1, 0] : vector<8x4xf32> -> vector<4x8xf32>
    %cst_141 = arith.constant dense<0.000000e+00> : vector<8x8xf32>
    %479 = tpu.matmul %475, %478, %cst_141 {dimension_numbers = #tpu.dot_dimension_numbers<[1], [0], [0], [1], [0, 0, 1, 1], [], []>} : vector<8x4xf32>, vector<4x8xf32>, vector<8x8xf32> -> vector<8x8xf32>
    %cst_142 = arith.constant 5.000000e-01 : f32
    %480 = vector.broadcast %cst_142 : f32 to vector<8x8xf32>
    %481 = arith.mulf %479, %480 : vector<8x8xf32>
    %cst_143 = arith.constant dense<0xFF800000> : vector<8xf32>
    %482 = vector.multi_reduction <maximumf>, %481, %cst_143 [1] : vector<8x8xf32> to vector<8xf32>
    %483 = vector.shape_cast %482 : vector<8xf32> to vector<8x1xf32>
    %484 = vector.broadcast %483 : vector<8x1xf32> to vector<8x8xf32>
    %485 = arith.subf %481, %484 : vector<8x8xf32>
    %486 = math.exp %485 : vector<8x8xf32>
    %cst_144 = arith.constant dense<0.000000e+00> : vector<8xf32>
    %487 = vector.multi_reduction <add>, %486, %cst_144 [1] : vector<8x8xf32> to vector<8xf32>
    %488 = vector.shape_cast %487 : vector<8xf32> to vector<8x1xf32>
    %489 = tpu.reciprocal %488 : vector<8x1xf32> -> vector<8x1xf32>
    %490 = vector.broadcast %489 : vector<8x1xf32> to vector<8x8xf32>
    %491 = arith.mulf %486, %490 : vector<8x8xf32>
    %cst_145 = arith.constant dense<0.000000e+00> : vector<8x4xf32>
    %492 = tpu.matmul %491, %477, %cst_145 {dimension_numbers = #tpu.dot_dimension_numbers<[1], [0], [0], [1], [0, 0, 1, 1], [], []>} : vector<8x8xf32>, vector<8x4xf32>, vector<8x4xf32> -> vector<8x4xf32>
    %493 = vector.extract_strided_slice %310 {offsets = [0, 40], sizes = [8, 4], strides = [1, 1]} : vector<8x64xf32> to vector<8x4xf32>
    %494 = vector.extract_strided_slice %311 {offsets = [0, 40], sizes = [8, 4], strides = [1, 1]} : vector<8x64xf32> to vector<8x4xf32>
    %495 = vector.extract_strided_slice %312 {offsets = [0, 40], sizes = [8, 4], strides = [1, 1]} : vector<8x64xf32> to vector<8x4xf32>
    %496 = tpu.transpose %494, [1, 0] : vector<8x4xf32> -> vector<4x8xf32>
    %cst_146 = arith.constant dense<0.000000e+00> : vector<8x8xf32>
    %497 = tpu.matmul %493, %496, %cst_146 {dimension_numbers = #tpu.dot_dimension_numbers<[1], [0], [0], [1], [0, 0, 1, 1], [], []>} : vector<8x4xf32>, vector<4x8xf32>, vector<8x8xf32> -> vector<8x8xf32>
    %cst_147 = arith.constant 5.000000e-01 : f32
    %498 = vector.broadcast %cst_147 : f32 to vector<8x8xf32>
    %499 = arith.mulf %497, %498 : vector<8x8xf32>
    %cst_148 = arith.constant dense<0xFF800000> : vector<8xf32>
    %500 = vector.multi_reduction <maximumf>, %499, %cst_148 [1] : vector<8x8xf32> to vector<8xf32>
    %501 = vector.shape_cast %500 : vector<8xf32> to vector<8x1xf32>
    %502 = vector.broadcast %501 : vector<8x1xf32> to vector<8x8xf32>
    %503 = arith.subf %499, %502 : vector<8x8xf32>
    %504 = math.exp %503 : vector<8x8xf32>
    %cst_149 = arith.constant dense<0.000000e+00> : vector<8xf32>
    %505 = vector.multi_reduction <add>, %504, %cst_149 [1] : vector<8x8xf32> to vector<8xf32>
    %506 = vector.shape_cast %505 : vector<8xf32> to vector<8x1xf32>
    %507 = tpu.reciprocal %506 : vector<8x1xf32> -> vector<8x1xf32>
    %508 = vector.broadcast %507 : vector<8x1xf32> to vector<8x8xf32>
    %509 = arith.mulf %504, %508 : vector<8x8xf32>
    %cst_150 = arith.constant dense<0.000000e+00> : vector<8x4xf32>
    %510 = tpu.matmul %509, %495, %cst_150 {dimension_numbers = #tpu.dot_dimension_numbers<[1], [0], [0], [1], [0, 0, 1, 1], [], []>} : vector<8x8xf32>, vector<8x4xf32>, vector<8x4xf32> -> vector<8x4xf32>
    %511 = vector.extract_strided_slice %310 {offsets = [0, 44], sizes = [8, 4], strides = [1, 1]} : vector<8x64xf32> to vector<8x4xf32>
    %512 = vector.extract_strided_slice %311 {offsets = [0, 44], sizes = [8, 4], strides = [1, 1]} : vector<8x64xf32> to vector<8x4xf32>
    %513 = vector.extract_strided_slice %312 {offsets = [0, 44], sizes = [8, 4], strides = [1, 1]} : vector<8x64xf32> to vector<8x4xf32>
    %514 = tpu.transpose %512, [1, 0] : vector<8x4xf32> -> vector<4x8xf32>
    %cst_151 = arith.constant dense<0.000000e+00> : vector<8x8xf32>
    %515 = tpu.matmul %511, %514, %cst_151 {dimension_numbers = #tpu.dot_dimension_numbers<[1], [0], [0], [1], [0, 0, 1, 1], [], []>} : vector<8x4xf32>, vector<4x8xf32>, vector<8x8xf32> -> vector<8x8xf32>
    %cst_152 = arith.constant 5.000000e-01 : f32
    %516 = vector.broadcast %cst_152 : f32 to vector<8x8xf32>
    %517 = arith.mulf %515, %516 : vector<8x8xf32>
    %cst_153 = arith.constant dense<0xFF800000> : vector<8xf32>
    %518 = vector.multi_reduction <maximumf>, %517, %cst_153 [1] : vector<8x8xf32> to vector<8xf32>
    %519 = vector.shape_cast %518 : vector<8xf32> to vector<8x1xf32>
    %520 = vector.broadcast %519 : vector<8x1xf32> to vector<8x8xf32>
    %521 = arith.subf %517, %520 : vector<8x8xf32>
    %522 = math.exp %521 : vector<8x8xf32>
    %cst_154 = arith.constant dense<0.000000e+00> : vector<8xf32>
    %523 = vector.multi_reduction <add>, %522, %cst_154 [1] : vector<8x8xf32> to vector<8xf32>
    %524 = vector.shape_cast %523 : vector<8xf32> to vector<8x1xf32>
    %525 = tpu.reciprocal %524 : vector<8x1xf32> -> vector<8x1xf32>
    %526 = vector.broadcast %525 : vector<8x1xf32> to vector<8x8xf32>
    %527 = arith.mulf %522, %526 : vector<8x8xf32>
    %cst_155 = arith.constant dense<0.000000e+00> : vector<8x4xf32>
    %528 = tpu.matmul %527, %513, %cst_155 {dimension_numbers = #tpu.dot_dimension_numbers<[1], [0], [0], [1], [0, 0, 1, 1], [], []>} : vector<8x8xf32>, vector<8x4xf32>, vector<8x4xf32> -> vector<8x4xf32>
    %529 = vector.extract_strided_slice %310 {offsets = [0, 48], sizes = [8, 4], strides = [1, 1]} : vector<8x64xf32> to vector<8x4xf32>
    %530 = vector.extract_strided_slice %311 {offsets = [0, 48], sizes = [8, 4], strides = [1, 1]} : vector<8x64xf32> to vector<8x4xf32>
    %531 = vector.extract_strided_slice %312 {offsets = [0, 48], sizes = [8, 4], strides = [1, 1]} : vector<8x64xf32> to vector<8x4xf32>
    %532 = tpu.transpose %530, [1, 0] : vector<8x4xf32> -> vector<4x8xf32>
    %cst_156 = arith.constant dense<0.000000e+00> : vector<8x8xf32>
    %533 = tpu.matmul %529, %532, %cst_156 {dimension_numbers = #tpu.dot_dimension_numbers<[1], [0], [0], [1], [0, 0, 1, 1], [], []>} : vector<8x4xf32>, vector<4x8xf32>, vector<8x8xf32> -> vector<8x8xf32>
    %cst_157 = arith.constant 5.000000e-01 : f32
    %534 = vector.broadcast %cst_157 : f32 to vector<8x8xf32>
    %535 = arith.mulf %533, %534 : vector<8x8xf32>
    %cst_158 = arith.constant dense<0xFF800000> : vector<8xf32>
    %536 = vector.multi_reduction <maximumf>, %535, %cst_158 [1] : vector<8x8xf32> to vector<8xf32>
    %537 = vector.shape_cast %536 : vector<8xf32> to vector<8x1xf32>
    %538 = vector.broadcast %537 : vector<8x1xf32> to vector<8x8xf32>
    %539 = arith.subf %535, %538 : vector<8x8xf32>
    %540 = math.exp %539 : vector<8x8xf32>
    %cst_159 = arith.constant dense<0.000000e+00> : vector<8xf32>
    %541 = vector.multi_reduction <add>, %540, %cst_159 [1] : vector<8x8xf32> to vector<8xf32>
    %542 = vector.shape_cast %541 : vector<8xf32> to vector<8x1xf32>
    %543 = tpu.reciprocal %542 : vector<8x1xf32> -> vector<8x1xf32>
    %544 = vector.broadcast %543 : vector<8x1xf32> to vector<8x8xf32>
    %545 = arith.mulf %540, %544 : vector<8x8xf32>
    %cst_160 = arith.constant dense<0.000000e+00> : vector<8x4xf32>
    %546 = tpu.matmul %545, %531, %cst_160 {dimension_numbers = #tpu.dot_dimension_numbers<[1], [0], [0], [1], [0, 0, 1, 1], [], []>} : vector<8x8xf32>, vector<8x4xf32>, vector<8x4xf32> -> vector<8x4xf32>
    %547 = vector.extract_strided_slice %310 {offsets = [0, 52], sizes = [8, 4], strides = [1, 1]} : vector<8x64xf32> to vector<8x4xf32>
    %548 = vector.extract_strided_slice %311 {offsets = [0, 52], sizes = [8, 4], strides = [1, 1]} : vector<8x64xf32> to vector<8x4xf32>
    %549 = vector.extract_strided_slice %312 {offsets = [0, 52], sizes = [8, 4], strides = [1, 1]} : vector<8x64xf32> to vector<8x4xf32>
    %550 = tpu.transpose %548, [1, 0] : vector<8x4xf32> -> vector<4x8xf32>
    %cst_161 = arith.constant dense<0.000000e+00> : vector<8x8xf32>
    %551 = tpu.matmul %547, %550, %cst_161 {dimension_numbers = #tpu.dot_dimension_numbers<[1], [0], [0], [1], [0, 0, 1, 1], [], []>} : vector<8x4xf32>, vector<4x8xf32>, vector<8x8xf32> -> vector<8x8xf32>
    %cst_162 = arith.constant 5.000000e-01 : f32
    %552 = vector.broadcast %cst_162 : f32 to vector<8x8xf32>
    %553 = arith.mulf %551, %552 : vector<8x8xf32>
    %cst_163 = arith.constant dense<0xFF800000> : vector<8xf32>
    %554 = vector.multi_reduction <maximumf>, %553, %cst_163 [1] : vector<8x8xf32> to vector<8xf32>
    %555 = vector.shape_cast %554 : vector<8xf32> to vector<8x1xf32>
    %556 = vector.broadcast %555 : vector<8x1xf32> to vector<8x8xf32>
    %557 = arith.subf %553, %556 : vector<8x8xf32>
    %558 = math.exp %557 : vector<8x8xf32>
    %cst_164 = arith.constant dense<0.000000e+00> : vector<8xf32>
    %559 = vector.multi_reduction <add>, %558, %cst_164 [1] : vector<8x8xf32> to vector<8xf32>
    %560 = vector.shape_cast %559 : vector<8xf32> to vector<8x1xf32>
    %561 = tpu.reciprocal %560 : vector<8x1xf32> -> vector<8x1xf32>
    %562 = vector.broadcast %561 : vector<8x1xf32> to vector<8x8xf32>
    %563 = arith.mulf %558, %562 : vector<8x8xf32>
    %cst_165 = arith.constant dense<0.000000e+00> : vector<8x4xf32>
    %564 = tpu.matmul %563, %549, %cst_165 {dimension_numbers = #tpu.dot_dimension_numbers<[1], [0], [0], [1], [0, 0, 1, 1], [], []>} : vector<8x8xf32>, vector<8x4xf32>, vector<8x4xf32> -> vector<8x4xf32>
    %565 = vector.extract_strided_slice %310 {offsets = [0, 56], sizes = [8, 4], strides = [1, 1]} : vector<8x64xf32> to vector<8x4xf32>
    %566 = vector.extract_strided_slice %311 {offsets = [0, 56], sizes = [8, 4], strides = [1, 1]} : vector<8x64xf32> to vector<8x4xf32>
    %567 = vector.extract_strided_slice %312 {offsets = [0, 56], sizes = [8, 4], strides = [1, 1]} : vector<8x64xf32> to vector<8x4xf32>
    %568 = tpu.transpose %566, [1, 0] : vector<8x4xf32> -> vector<4x8xf32>
    %cst_166 = arith.constant dense<0.000000e+00> : vector<8x8xf32>
    %569 = tpu.matmul %565, %568, %cst_166 {dimension_numbers = #tpu.dot_dimension_numbers<[1], [0], [0], [1], [0, 0, 1, 1], [], []>} : vector<8x4xf32>, vector<4x8xf32>, vector<8x8xf32> -> vector<8x8xf32>
    %cst_167 = arith.constant 5.000000e-01 : f32
    %570 = vector.broadcast %cst_167 : f32 to vector<8x8xf32>
    %571 = arith.mulf %569, %570 : vector<8x8xf32>
    %cst_168 = arith.constant dense<0xFF800000> : vector<8xf32>
    %572 = vector.multi_reduction <maximumf>, %571, %cst_168 [1] : vector<8x8xf32> to vector<8xf32>
    %573 = vector.shape_cast %572 : vector<8xf32> to vector<8x1xf32>
    %574 = vector.broadcast %573 : vector<8x1xf32> to vector<8x8xf32>
    %575 = arith.subf %571, %574 : vector<8x8xf32>
    %576 = math.exp %575 : vector<8x8xf32>
    %cst_169 = arith.constant dense<0.000000e+00> : vector<8xf32>
    %577 = vector.multi_reduction <add>, %576, %cst_169 [1] : vector<8x8xf32> to vector<8xf32>
    %578 = vector.shape_cast %577 : vector<8xf32> to vector<8x1xf32>
    %579 = tpu.reciprocal %578 : vector<8x1xf32> -> vector<8x1xf32>
    %580 = vector.broadcast %579 : vector<8x1xf32> to vector<8x8xf32>
    %581 = arith.mulf %576, %580 : vector<8x8xf32>
    %cst_170 = arith.constant dense<0.000000e+00> : vector<8x4xf32>
    %582 = tpu.matmul %581, %567, %cst_170 {dimension_numbers = #tpu.dot_dimension_numbers<[1], [0], [0], [1], [0, 0, 1, 1], [], []>} : vector<8x8xf32>, vector<8x4xf32>, vector<8x4xf32> -> vector<8x4xf32>
    %583 = vector.extract_strided_slice %310 {offsets = [0, 60], sizes = [8, 4], strides = [1, 1]} : vector<8x64xf32> to vector<8x4xf32>
    %584 = vector.extract_strided_slice %311 {offsets = [0, 60], sizes = [8, 4], strides = [1, 1]} : vector<8x64xf32> to vector<8x4xf32>
    %585 = vector.extract_strided_slice %312 {offsets = [0, 60], sizes = [8, 4], strides = [1, 1]} : vector<8x64xf32> to vector<8x4xf32>
    %586 = tpu.transpose %584, [1, 0] : vector<8x4xf32> -> vector<4x8xf32>
    %cst_171 = arith.constant dense<0.000000e+00> : vector<8x8xf32>
    %587 = tpu.matmul %583, %586, %cst_171 {dimension_numbers = #tpu.dot_dimension_numbers<[1], [0], [0], [1], [0, 0, 1, 1], [], []>} : vector<8x4xf32>, vector<4x8xf32>, vector<8x8xf32> -> vector<8x8xf32>
    %cst_172 = arith.constant 5.000000e-01 : f32
    %588 = vector.broadcast %cst_172 : f32 to vector<8x8xf32>
    %589 = arith.mulf %587, %588 : vector<8x8xf32>
    %cst_173 = arith.constant dense<0xFF800000> : vector<8xf32>
    %590 = vector.multi_reduction <maximumf>, %589, %cst_173 [1] : vector<8x8xf32> to vector<8xf32>
    %591 = vector.shape_cast %590 : vector<8xf32> to vector<8x1xf32>
    %592 = vector.broadcast %591 : vector<8x1xf32> to vector<8x8xf32>
    %593 = arith.subf %589, %592 : vector<8x8xf32>
    %594 = math.exp %593 : vector<8x8xf32>
    %cst_174 = arith.constant dense<0.000000e+00> : vector<8xf32>
    %595 = vector.multi_reduction <add>, %594, %cst_174 [1] : vector<8x8xf32> to vector<8xf32>
    %596 = vector.shape_cast %595 : vector<8xf32> to vector<8x1xf32>
    %597 = tpu.reciprocal %596 : vector<8x1xf32> -> vector<8x1xf32>
    %598 = vector.broadcast %597 : vector<8x1xf32> to vector<8x8xf32>
    %599 = arith.mulf %594, %598 : vector<8x8xf32>
    %cst_175 = arith.constant dense<0.000000e+00> : vector<8x4xf32>
    %600 = tpu.matmul %599, %585, %cst_175 {dimension_numbers = #tpu.dot_dimension_numbers<[1], [0], [0], [1], [0, 0, 1, 1], [], []>} : vector<8x8xf32>, vector<8x4xf32>, vector<8x4xf32> -> vector<8x4xf32>
    %601 = tpu.concatenate %330, %348, %366, %384, %402, %420, %438, %456, %474, %492, %510, %528, %546, %564, %582, %600 in 1 : vector<8x4xf32>, vector<8x4xf32>, vector<8x4xf32>, vector<8x4xf32>, vector<8x4xf32>, vector<8x4xf32>, vector<8x4xf32>, vector<8x4xf32>, vector<8x4xf32>, vector<8x4xf32>, vector<8x4xf32>, vector<8x4xf32>, vector<8x4xf32>, vector<8x4xf32>, vector<8x4xf32>, vector<8x4xf32> -> vector<8x64xf32>
    %602 = tpu.concatenate %309, %601 in 0 : vector<8x64xf32>, vector<8x64xf32> -> vector<16x64xf32>
    %c0_176 = arith.constant 0 : index
    %c0_177 = arith.constant 0 : index
    %603 = vector.load %arg7[%c0_176, %c0_177] : memref<64x64xf32, #tpu.memory_space<vmem>>, vector<64x64xf32>
    %cst_178 = arith.constant dense<0.000000e+00> : vector<16x64xf32>
    %604 = tpu.matmul %602, %603, %cst_178 {dimension_numbers = #tpu.dot_dimension_numbers<[1], [0], [0], [1], [0, 0, 1, 1], [], []>} : vector<16x64xf32>, vector<64x64xf32>, vector<16x64xf32> -> vector<16x64xf32>
    %c0_179 = arith.constant 0 : index
    %c0_180 = arith.constant 0 : index
    %605 = vector.load %arg8[%c0_179, %c0_180] : memref<1x64xf32, #tpu.memory_space<vmem>>, vector<1x64xf32>
    %606 = vector.broadcast %605 : vector<1x64xf32> to vector<16x64xf32>
    %607 = arith.addf %604, %606 : vector<16x64xf32>
    %c0_181 = arith.constant 0 : index
    %c0_182 = arith.constant 0 : index
    %608 = vector.load %arg9[%c0_181, %c0_182] : memref<16x64xf32, #tpu.memory_space<vmem>>, vector<16x64xf32>
    tpu.vector_store %arg9[%c0_181, %c0_182], %607 {strides = array<i32>} : memref<16x64xf32, #tpu.memory_space<vmem>>, vector<16x64xf32>,
    return
  }
  func.func @transform_0(%arg0: i32) -> (i32, i32) {
    %c0_i32 = arith.constant 0 : i32
    %c0_i32_0 = arith.constant 0 : i32
    %c0_i32_1 = arith.constant 0 : i32
    return %c0_i32, %c0_i32_0 : i32, i32
  }
  func.func @transform_1(%arg0: i32) -> (i32, i32) {
    %c0_i32 = arith.constant 0 : i32
    %c0_i32_0 = arith.constant 0 : i32
    %c0_i32_1 = arith.constant 0 : i32
    return %c0_i32, %c0_i32_0 : i32, i32
  }
  func.func @transform_2(%arg0: i32) -> (i32, i32) {
    %c0_i32 = arith.constant 0 : i32
    %c0_i32_0 = arith.constant 0 : i32
    %c0_i32_1 = arith.constant 0 : i32
    return %c0_i32, %c0_i32_0 : i32, i32
  }
  func.func @transform_3(%arg0: i32) -> (i32, i32) {
    %c0_i32 = arith.constant 0 : i32
    %c0_i32_0 = arith.constant 0 : i32
    %c0_i32_1 = arith.constant 0 : i32
    return %c0_i32, %c0_i32_0 : i32, i32
  }
  func.func @transform_4(%arg0: i32) -> (i32, i32) {
    %c0_i32 = arith.constant 0 : i32
    %c0_i32_0 = arith.constant 0 : i32
    %c0_i32_1 = arith.constant 0 : i32
    return %c0_i32, %c0_i32_0 : i32, i32
  }
  func.func @transform_5(%arg0: i32) -> (i32, i32) {
    %c0_i32 = arith.constant 0 : i32
    %c0_i32_0 = arith.constant 0 : i32
    %c0_i32_1 = arith.constant 0 : i32
    return %c0_i32, %c0_i32_0 : i32, i32
  }
  func.func @transform_6(%arg0: i32) -> (i32, i32) {
    %c0_i32 = arith.constant 0 : i32
    %c0_i32_0 = arith.constant 0 : i32
    %c0_i32_1 = arith.constant 0 : i32
    return %c0_i32, %c0_i32_0 : i32, i32
  }
  func.func @transform_7(%arg0: i32) -> (i32, i32) {
    %c0_i32 = arith.constant 0 : i32
    %c0_i32_0 = arith.constant 0 : i32
    %c0_i32_1 = arith.constant 0 : i32
    return %c0_i32, %c0_i32_0 : i32, i32
  }
  func.func @transform_8(%arg0: i32) -> (i32, i32) {
    %c0_i32 = arith.constant 0 : i32
    %c0_i32_0 = arith.constant 0 : i32
    %c0_i32_1 = arith.constant 0 : i32
    return %c0_i32, %c0_i32_0 : i32, i32
  }
  func.func @transform_9(%arg0: i32) -> (i32, i32) {
    %c0_i32 = arith.constant 0 : i32
    %c0_i32_0 = arith.constant 0 : i32
    %c0_i32_1 = arith.constant 0 : i32
    return %c0_i32, %c0_i32_0 : i32, i32
  }
  func.func @transform_10(%arg0: i32) -> (i32, i32) {
    %c0_i32 = arith.constant 0 : i32
    %c0_i32_0 = arith.constant 0 : i32
    %c0_i32_1 = arith.constant 0 : i32
    return %c0_i32, %c0_i32_0 : i32, i32
  }
}

</mosaic_0001>

<llo_original>
// kernel: model_forward.1
$region0: #{model_forward.1}
  #allocation0 [shape = 'u32[]', space=smem, size = 0x4, offset = 0x4, fixed_abs, tag = 'smem constant byte address 0x4 - core index']
  #allocation1 [shape = 'u32[144,128]{1,0:T(1,128)}', space=vmem, size = 0x12000, scoped, tag = 'internal scratch']
  %s0 = inlined_call_operand.hbm [shape: f32[16,64], index: 0, kind: input, shape index: {}]
  %s1 = inlined_call_operand.hbm [shape: f32[16,64], index: 1, kind: input, shape index: {}]
  %s2 = inlined_call_operand.hbm [shape: f32[64,128], index: 2, kind: input, shape index: {}]
  %s3 = inlined_call_operand.vmem [shape: f32[1,128], index: 3, kind: input, shape index: {}]
  %s4 = inlined_call_operand.hbm [shape: f32[64,128], index: 4, kind: input, shape index: {}]
  %s5 = inlined_call_operand.vmem [shape: f32[1,128], index: 5, kind: input, shape index: {}]
  %s6 = inlined_call_operand.hbm [shape: f32[64,64], index: 6, kind: input, shape index: {}]
  %s7 = inlined_call_operand.vmem [shape: f32[1,64], index: 7, kind: input, shape index: {}]
  %s8 = inlined_call_operand.hbm [shape: f32[16,64], index: 8, kind: output, shape index: {0}]
  %s9 = inlined_call_operand.hbm [shape: f32[16,64], index: 9, kind: output, shape index: {1}]
  %s10 = inlined_call_operand.hbm [shape: f32[16,64], index: 10, kind: output, shape index: {2}]
  %11 = xla_tuple %s8, %s9, %s10
  %s12 = sld [smem:[#allocation0]]
  $region78: #{model_forward.1} parent=0
    _
  %s14 = ssub.s32 1, %s12
  %s15 = scalar_select 0, %s14, %s12
  $region1: #{model_forward.1} parent=0
    #allocation2 [shape = 'u8[8192]{0}', space=vmem, size = 0x2000, scoped, tag = 'input window, operand 0, single buffered']
    #allocation3 [shape = 's32[1]{0}', space=sflag, size = 0x4, scoped, tag = 'scoped memory for model_forward.1']
    #allocation4 [shape = 's32[1]{0}', space=sflag, size = 0x4, scoped, tag = 'scoped memory for model_forward.1']
    #allocation5 [shape = 'u8[8192]{0}', space=vmem, size = 0x2000, scoped, tag = 'input window, operand 1, single buffered']
    #allocation6 [shape = 's32[1]{0}', space=sflag, size = 0x4, scoped, tag = 'scoped memory for model_forward.1']
    #allocation7 [shape = 'u8[32768]{0}', space=vmem, size = 0x8000, scoped, tag = 'input window, operand 2, single buffered']
    #allocation8 [shape = 'u8[32768]{0}', space=vmem, size = 0x8000, scoped, tag = 'input window, operand 4, single buffered']
    #allocation9 [shape = 's32[1]{0}', space=sflag, size = 0x4, scoped, tag = 'scoped memory for model_forward.1']
    #allocation10 [shape = 'u8[32768]{0}', space=vmem, size = 0x8000, scoped, tag = 'input window, operand 6, single buffered']
    #allocation11 [shape = 'u8[8192]{0}', space=vmem, size = 0x2000, scoped, tag = 'output window, operand 0, single buffered']
    #allocation12 [shape = 'u8[8192]{0}', space=vmem, size = 0x2000, scoped, tag = 'output window, operand 1, single buffered']
    #allocation13 [shape = 's32[1]{0}', space=sflag, size = 0x4, scoped, tag = 'scoped memory for model_forward.1']
    #allocation14 [shape = 'u8[8192]{0}', space=vmem, size = 0x2000, scoped, tag = 'output window, operand 2, single buffered']
    %16 = vsyncpa [#allocation3], 0
    %17 = vsyncpa [#allocation6], 0
    %18 = vsyncpa [#allocation9], 0
    %19 = vsyncpa [#allocation4], 0
    %20 = vsyncpa [#allocation13], 0
    // Predicated region
    $region2: #{model_forward.1} parent=1 // pred_check
      _
    $region3: #{model_forward.1} parent=1 // pred_check_branch
      %22 = sbr.rel (0) target = $region5
    $region4: #{model_forward.1} parent=1 // pred_region
      %s24 = ssub.s32 256, 256
      %25 = vsyncadd [#allocation3], %s24
      %s26 = sshll.u32 [#allocation2], 4
      %s27 = int_to_ptr.vmem [resolvable:$true] %s26
      %32 = dma.hbm_to_vmem [thread:$0]  %s0, 256, %s27, [#allocation3], 128, 128, 8
    $region5: #{model_forward.1} parent=1 // pred_fallthru
      _
    // Predicated region
    $region6: #{model_forward.1} parent=1 // pred_check
      _
    $region7: #{model_forward.1} parent=1 // pred_check_branch
      %34 = sbr.rel (0) target = $region9
    $region8: #{model_forward.1} parent=1 // pred_region
      %s36 = ssub.s32 256, 256
      %37 = vsyncadd [#allocation6], %s36
      %s38 = sshll.u32 [#allocation5], 4
      %s39 = int_to_ptr.vmem [resolvable:$true] %s38
      %44 = dma.hbm_to_vmem [thread:$0]  %s1, 256, %s39, [#allocation6], 128, 128, 8
    $region9: #{model_forward.1} parent=1 // pred_fallthru
      _
    // Predicated region
    $region10: #{model_forward.1} parent=1 // pred_check
      _
    $region11: #{model_forward.1} parent=1 // pred_check_branch
      %46 = sbr.rel (0) target = $region13
    $region12: #{model_forward.1} parent=1 // pred_region
      %s48 = ssub.s32 1024, 1024
      %49 = vsyncadd [#allocation6], %s48
      %s50 = sshll.u32 [#allocation7], 4
      %s51 = int_to_ptr.vmem [resolvable:$true] %s50
      %56 = dma.hbm_to_vmem [thread:$0]  %s2, 1024, %s51, [#allocation6], 128, 128, 8
    $region13: #{model_forward.1} parent=1 // pred_fallthru
      _
    // Predicated region
    $region14: #{model_forward.1} parent=1 // pred_check
      _
    $region15: #{model_forward.1} parent=1 // pred_check_branch
      %58 = sbr.rel (0) target = $region17
    $region16: #{model_forward.1} parent=1 // pred_region
      _
    $region17: #{model_forward.1} parent=1 // pred_fallthru
      _
    // Predicated region
    $region18: #{model_forward.1} parent=1 // pred_check
      _
    $region19: #{model_forward.1} parent=1 // pred_check_branch
      %60 = sbr.rel (0) target = $region21
    $region20: #{model_forward.1} parent=1 // pred_region
      %s62 = ssub.s32 1024, 1024
      %63 = vsyncadd [#allocation9], %s62
      %s64 = sshll.u32 [#allocation8], 4
      %s65 = int_to_ptr.vmem [resolvable:$true] %s64
      %70 = dma.hbm_to_vmem [thread:$0]  %s4, 1024, %s65, [#allocation9], 128, 128, 8
    $region21: #{model_forward.1} parent=1 // pred_fallthru
      _
    // Predicated region
    $region22: #{model_forward.1} parent=1 // pred_check
      _
    $region23: #{model_forward.1} parent=1 // pred_check_branch
      %72 = sbr.rel (0) target = $region25
    $region24: #{model_forward.1} parent=1 // pred_region
      _
    $region25: #{model_forward.1} parent=1 // pred_fallthru
      _
    // Predicated region
    $region26: #{model_forward.1} parent=1 // pred_check
      _
    $region27: #{model_forward.1} parent=1 // pred_check_branch
      %74 = sbr.rel (0) target = $region29
    $region28: #{model_forward.1} parent=1 // pred_region
      %s76 = ssub.s32 1024, 1024
      %77 = vsyncadd [#allocation9], %s76
      %s78 = sshll.u32 [#allocation10], 4
      %s79 = int_to_ptr.vmem [resolvable:$true] %s78
      %84 = dma.hbm_to_vmem [thread:$0]  %s6, 1024, %s79, [#allocation9], 128, 128, 8
    $region29: #{model_forward.1} parent=1 // pred_fallthru
      _
    // Predicated region
    $region30: #{model_forward.1} parent=1 // pred_check
      _
    $region31: #{model_forward.1} parent=1 // pred_check_branch
      %86 = sbr.rel (0) target = $region33
    $region32: #{model_forward.1} parent=1 // pred_region
      _
    $region33: #{model_forward.1} parent=1 // pred_fallthru
      _
    // Predicated region
    $region34: #{model_forward.1} parent=1 // pred_check
      _
    $region35: #{model_forward.1} parent=1 // pred_check_branch
      %88 = sbr.rel (0) target = $region37
    $region36: #{model_forward.1} parent=1 // pred_region
      %89 = dma.done [#allocation3], 256
    $region37: #{model_forward.1} parent=1 // pred_fallthru
      _
    // Predicated region
    $region38: #{model_forward.1} parent=1 // pred_check
      _
    $region39: #{model_forward.1} parent=1 // pred_check_branch
      %91 = sbr.rel (0) target = $region41
    $region40: #{model_forward.1} parent=1 // pred_region
      %92 = dma.done [#allocation6], 256
    $region41: #{model_forward.1} parent=1 // pred_fallthru
      _
    // Predicated region
    $region42: #{model_forward.1} parent=1 // pred_check
      _
    $region43: #{model_forward.1} parent=1 // pred_check_branch
      %94 = sbr.rel (0) target = $region45
    $region44: #{model_forward.1} parent=1 // pred_region
      %95 = dma.done [#allocation6], 1024
    $region45: #{model_forward.1} parent=1 // pred_fallthru
      _
    // Predicated region
    $region46: #{model_forward.1} parent=1 // pred_check
      _
    $region47: #{model_forward.1} parent=1 // pred_check_branch
      %97 = sbr.rel (0) target = $region49
    $region48: #{model_forward.1} parent=1 // pred_region
      %98 = dma.done [#allocation9], 1024
    $region49: #{model_forward.1} parent=1 // pred_fallthru
      _
    // Predicated region
    $region50: #{model_forward.1} parent=1 // pred_check
      _
    $region51: #{model_forward.1} parent=1 // pred_check_branch
      %100 = sbr.rel (0) target = $region53
    $region52: #{model_forward.1} parent=1 // pred_region
      %101 = dma.done [#allocation9], 1024
    $region53: #{model_forward.1} parent=1 // pred_fallthru
      _
    %v102 = vld [vmem:[#allocation2] sm:$0xff]
    %v103 = vld [vmem:[#allocation2 + $0x8] sm:$0xff]
    %v104 = vld [vmem:[#allocation7] sm:$0xff]
    %v105 = vld [vmem:[#allocation7 + $0x8] sm:$0xff]
    %v106 = vld [vmem:[#allocation7 + $0x10] sm:$0xff]
    %v107 = vld [vmem:[#allocation7 + $0x18] sm:$0xff]
    %v108 = vld [vmem:[#allocation7 + $0x20] sm:$0xff]
    %v109 = vld [vmem:[#allocation7 + $0x28] sm:$0xff]
    %v110 = vld [vmem:[#allocation7 + $0x30] sm:$0xff]
    %v111 = vld [vmem:[#allocation7 + $0x38] sm:$0xff]
    %v112 = vld [vmem:[%s3] sm:$0x1]
    %v114 = vlaneseq
    %v115 = vshrl.u32 %v114, 7
    %v116 = vsub.s32 0, %v115
    %v117 = vrot.slane %v112, %v116
    %vm119 = vcmask 523264
    %v121 = vsel %vm119, %v102, 0
    %v124 = vsel %vm119, %v103, 0
    %126 = vmatprep.subr.mxu0 0.0
    %127 = vmatpush1.msra.mxu0 %v104
    %128 = vmatprep.subr.mxu0 0.0
    %129 = vmatpush1.msra.mxu0 %v105
    %130 = vmatprep.subr.mxu0 0.0
    %131 = vmatpush1.msra.mxu0 %v106
    %132 = vmatprep.subr.mxu0 0.0
    %133 = vmatpush1.msra.mxu0 %v107
    %134 = vmatprep.subr.mxu0 0.0
    %135 = vmatpush1.msra.mxu0 %v108
    %136 = vmatprep.subr.mxu0 0.0
    %137 = vmatpush1.msra.mxu0 %v109
    %138 = vmatprep.subr.mxu0 0.0
    %139 = vmatpush1.msra.mxu0 %v110
    %140 = vmatprep.subr.mxu0 0.0
    %141 = vmatpush1.msra.mxu0 %v111
    %142 = vmatprep.subr.mxu0 0.0
    %143 = vmatpush1.msra.mxu0 0.0
    %144 = vmatprep.subr.mxu0 0.0
    %145 = vmatpush1.msra.mxu0 0.0
    %146 = vmatprep.subr.mxu0 0.0
    %147 = vmatpush1.msra.mxu0 0.0
    %148 = vmatprep.subr.mxu0 0.0
    %149 = vmatpush1.msra.mxu0 0.0
    %150 = vmatprep.subr.mxu0 0.0
    %151 = vmatpush1.msra.mxu0 0.0
    %152 = vmatprep.subr.mxu0 0.0
    %153 = vmatpush1.msra.mxu0 0.0
    %154 = vmatprep.subr.mxu0 0.0
    %155 = vmatpush1.msra.mxu0 0.0
    %156 = vmatprep.subr.mxu0 0.0
    %157 = vmatpush1.msra.mxu0 0.0
    %158 = vmatprep.subr.mxu0 0.0
    %159 = vmatpush1.msra.mxu0 0.0
    %160 = vmatprep.subr.mxu0 0.0
    %161 = vmatpush1.msra.mxu0 0.0
    %162 = vmatprep.subr.mxu0 0.0
    %163 = vmatpush1.msra.mxu0 0.0
    %164 = vmatprep.subr.mxu0 0.0
    %165 = vmatpush1.msra.mxu0 0.0
    %166 = vmatprep.subr.mxu0 0.0
    %167 = vmatpush1.msra.mxu0 0.0
    %168 = vmatprep.subr.mxu0 0.0
    %169 = vmatpush1.msra.mxu0 0.0
    %170 = vmatprep.subr.mxu0 0.0
    %171 = vmatpush1.msra.mxu0 0.0
    %172 = vmatprep.subr.mxu0 0.0
    %173 = vmatpush1.msra.mxu0 0.0
    %174 = vmatprep.subr.mxu0 0.0
    %175 = vmatpush1.msra.mxu0 0.0
    %176 = vmatprep.subr.mxu0 0.0
    %177 = vmatpush1.msra.mxu0 0.0
    %178 = vmatprep.subr.mxu0 0.0
    %179 = vmatpush1.msra.mxu0 0.0
    %180 = vmatprep.subr.mxu0 0.0
    %181 = vmatpush1.msra.mxu0 0.0
    %182 = vmatprep.subr.mxu0 0.0
    %183 = vmatpush1.msra.mxu0 0.0
    %184 = vmatprep.subr.mxu0 0.0
    %185 = vmatpush1.msra.mxu0 0.0
    %186 = vmatprep.subr.mxu0 0.0
    %187 = vmatpush1.msra.mxu0 0.0
    %188 = vmatprep.subr.mxu0 0.0
    %189 = vmatpush1.msra.mxu0 0.0
    %190 = vmatprep.mubr.f32.mxu0 0.0
    %191 = vmatmul.mubr.f32.gmra.mrb[0].mxu0 %v121
    %v192 = vpop.f32.mrb[0].mxu0
    %v193 = vadd.f32 %v117, %v192
    %v194 = vpop.f32.mrb[0].mxu0
    %195 = vmatprep.mubr.f32.mxu0 0.0
    %196 = vmatmul.mubr.f32.gmra.mrb[0].mxu0 %v124
    %v197 = vpop.f32.mrb[0].mxu0
    %v198 = vadd.f32 %v117, %v197
    %v199 = vpop.f32.mrb[0].mxu0
    %200 = vdwg.mxu0
    %v201 = vld [vmem:[#allocation5] sm:$0xff]
    %v202 = vld [vmem:[#allocation5 + $0x8] sm:$0xff]
    %v203 = vld [vmem:[#allocation8] sm:$0xff]
    %v204 = vld [vmem:[#allocation8 + $0x8] sm:$0xff]
    %v205 = vld [vmem:[#allocation8 + $0x10] sm:$0xff]
    %v206 = vld [vmem:[#allocation8 + $0x18] sm:$0xff]
    %v207 = vld [vmem:[#allocation8 + $0x20] sm:$0xff]
    %v208 = vld [vmem:[#allocation8 + $0x28] sm:$0xff]
    %v209 = vld [vmem:[#allocation8 + $0x30] sm:$0xff]
    %v210 = vld [vmem:[#allocation8 + $0x38] sm:$0xff]
    %v211 = vld [vmem:[%s5] sm:$0x1]
    %v213 = vlaneseq
    %v214 = vshrl.u32 %v213, 7
    %v215 = vsub.s32 0, %v214
    %v216 = vrot.slane %v211, %v215
    %v219 = vsel %vm119, %v201, 0
    %v222 = vsel %vm119, %v202, 0
    %224 = vmatprep.subr.mxu0 0.0
    %225 = vmatpush1.msra.mxu0 %v203
    %226 = vmatprep.subr.mxu0 0.0
    %227 = vmatpush1.msra.mxu0 %v204
    %228 = vmatprep.subr.mxu0 0.0
    %229 = vmatpush1.msra.mxu0 %v205
    %230 = vmatprep.subr.mxu0 0.0
    %231 = vmatpush1.msra.mxu0 %v206
    %232 = vmatprep.subr.mxu0 0.0
    %233 = vmatpush1.msra.mxu0 %v207
    %234 = vmatprep.subr.mxu0 0.0
    %235 = vmatpush1.msra.mxu0 %v208
    %236 = vmatprep.subr.mxu0 0.0
    %237 = vmatpush1.msra.mxu0 %v209
    %238 = vmatprep.subr.mxu0 0.0
    %239 = vmatpush1.msra.mxu0 %v210
    %240 = vmatprep.subr.mxu0 0.0
    %241 = vmatpush1.msra.mxu0 0.0
    %242 = vmatprep.subr.mxu0 0.0
    %243 = vmatpush1.msra.mxu0 0.0
    %244 = vmatprep.subr.mxu0 0.0
    %245 = vmatpush1.msra.mxu0 0.0
    %246 = vmatprep.subr.mxu0 0.0
    %247 = vmatpush1.msra.mxu0 0.0
    %248 = vmatprep.subr.mxu0 0.0
    %249 = vmatpush1.msra.mxu0 0.0
    %250 = vmatprep.subr.mxu0 0.0
    %251 = vmatpush1.msra.mxu0 0.0
    %252 = vmatprep.subr.mxu0 0.0
    %253 = vmatpush1.msra.mxu0 0.0
    %254 = vmatprep.subr.mxu0 0.0
    %255 = vmatpush1.msra.mxu0 0.0
    %256 = vmatprep.subr.mxu0 0.0
    %257 = vmatpush1.msra.mxu0 0.0
    %258 = vmatprep.subr.mxu0 0.0
    %259 = vmatpush1.msra.mxu0 0.0
    %260 = vmatprep.subr.mxu0 0.0
    %261 = vmatpush1.msra.mxu0 0.0
    %262 = vmatprep.subr.mxu0 0.0
    %263 = vmatpush1.msra.mxu0 0.0
    %264 = vmatprep.subr.mxu0 0.0
    %265 = vmatpush1.msra.mxu0 0.0
    %266 = vmatprep.subr.mxu0 0.0
    %267 = vmatpush1.msra.mxu0 0.0
    %268 = vmatprep.subr.mxu0 0.0
    %269 = vmatpush1.msra.mxu0 0.0
    %270 = vmatprep.subr.mxu0 0.0
    %271 = vmatpush1.msra.mxu0 0.0
    %272 = vmatprep.subr.mxu0 0.0
    %273 = vmatpush1.msra.mxu0 0.0
    %274 = vmatprep.subr.mxu0 0.0
    %275 = vmatpush1.msra.mxu0 0.0
    %276 = vmatprep.subr.mxu0 0.0
    %277 = vmatpush1.msra.mxu0 0.0
    %278 = vmatprep.subr.mxu0 0.0
    %279 = vmatpush1.msra.mxu0 0.0
    %280 = vmatprep.subr.mxu0 0.0
    %281 = vmatpush1.msra.mxu0 0.0
    %282 = vmatprep.subr.mxu0 0.0
    %283 = vmatpush1.msra.mxu0 0.0
    %284 = vmatprep.subr.mxu0 0.0
    %285 = vmatpush1.msra.mxu0 0.0
    %286 = vmatprep.subr.mxu0 0.0
    %287 = vmatpush1.msra.mxu0 0.0
    %288 = vmatprep.mubr.f32.mxu0 0.0
    %289 = vmatmul.mubr.f32.gmra.mrb[0].mxu0 %v219
    %v290 = vpop.f32.mrb[0].mxu0
    %v291 = vadd.f32 %v216, %v290
    %v292 = vpop.f32.mrb[0].mxu0
    %293 = vmatprep.mubr.f32.mxu0 0.0
    %294 = vmatmul.mubr.f32.gmra.mrb[0].mxu0 %v222
    %v295 = vpop.f32.mrb[0].mxu0
    %v296 = vadd.f32 %v216, %v295
    %v297 = vpop.f32.mrb[0].mxu0
    %298 = vdwg.mxu0
    %299 = vst.msk [vmem:[#allocation12] sm:$0xff] %vm119, %v291
    %300 = vst.msk [vmem:[#allocation12 + $0x8] sm:$0xff] %vm119, %v296
    %303 = vrot.lane.b32.xlu0 %v291, 64
    %v304 = vpop.permute.xlu0 %303
    %305 = vrot.lane.b32.xlu0 %v296, 64
    %v306 = vpop.permute.xlu0 %305
    %309 = vst.msk [vmem:[#allocation14] sm:$0xff] %vm119, %v304
    %310 = vst.msk [vmem:[#allocation14 + $0x8] sm:$0xff] %vm119, %v306
    %312 = vrot.lane.b32.xlu0 %v193, 64
    %v313 = vpop.permute.xlu0 %312
    %vm314 = vcmask 31744
    %v315 = vsel %vm314, %v193, 0
    %v317 = vsel %vm314, %v313, 0
    %319 = vmatprep.subr.mxu0 0.0
    %320 = vmatpush1.xpose.msra.mxu0 %v317
    %321 = vmatprep.subr.mxu0 0.0
    %322 = vmatpush1.xpose.msra.mxu0 0.0
    %323 = vmatprep.subr.mxu0 0.0
    %324 = vmatpush1.xpose.msra.mxu0 0.0
    %325 = vmatprep.subr.mxu0 0.0
    %326 = vmatpush1.xpose.msra.mxu0 0.0
    %327 = vmatprep.subr.mxu0 0.0
    %328 = vmatpush1.xpose.msra.mxu0 0.0
    %329 = vmatprep.subr.mxu0 0.0
    %330 = vmatpush1.xpose.msra.mxu0 0.0
    %331 = vmatprep.subr.mxu0 0.0
    %332 = vmatpush1.xpose.msra.mxu0 0.0
    %333 = vmatprep.subr.mxu0 0.0
    %334 = vmatpush1.xpose.msra.mxu0 0.0
    %335 = vmatprep.subr.mxu0 0.0
    %336 = vmatpush1.xpose.msra.mxu0 0.0
    %337 = vmatprep.subr.mxu0 0.0
    %338 = vmatpush1.xpose.msra.mxu0 0.0
    %339 = vmatprep.subr.mxu0 0.0
    %340 = vmatpush1.xpose.msra.mxu0 0.0
    %341 = vmatprep.subr.mxu0 0.0
    %342 = vmatpush1.xpose.msra.mxu0 0.0
    %343 = vmatprep.subr.mxu0 0.0
    %344 = vmatpush1.xpose.msra.mxu0 0.0
    %345 = vmatprep.subr.mxu0 0.0
    %346 = vmatpush1.xpose.msra.mxu0 0.0
    %347 = vmatprep.subr.mxu0 0.0
    %348 = vmatpush1.xpose.msra.mxu0 0.0
    %349 = vmatprep.subr.mxu0 0.0
    %350 = vmatpush1.xpose.msra.mxu0 0.0
    %351 = vmatprep.subr.mxu0 0.0
    %352 = vmatpush1.xpose.msra.mxu0 0.0
    %353 = vmatprep.subr.mxu0 0.0
    %354 = vmatpush1.xpose.msra.mxu0 0.0
    %355 = vmatprep.subr.mxu0 0.0
    %356 = vmatpush1.xpose.msra.mxu0 0.0
    %357 = vmatprep.subr.mxu0 0.0
    %358 = vmatpush1.xpose.msra.mxu0 0.0
    %359 = vmatprep.subr.mxu0 0.0
    %360 = vmatpush1.xpose.msra.mxu0 0.0
    %361 = vmatprep.subr.mxu0 0.0
    %362 = vmatpush1.xpose.msra.mxu0 0.0
    %363 = vmatprep.subr.mxu0 0.0
    %364 = vmatpush1.xpose.msra.mxu0 0.0
    %365 = vmatprep.subr.mxu0 0.0
    %366 = vmatpush1.xpose.msra.mxu0 0.0
    %367 = vmatprep.subr.mxu0 0.0
    %368 = vmatpush1.xpose.msra.mxu0 0.0
    %369 = vmatprep.subr.mxu0 0.0
    %370 = vmatpush1.xpose.msra.mxu0 0.0
    %371 = vmatprep.subr.mxu0 0.0
    %372 = vmatpush1.xpose.msra.mxu0 0.0
    %373 = vmatprep.subr.mxu0 0.0
    %374 = vmatpush1.xpose.msra.mxu0 0.0
    %375 = vmatprep.subr.mxu0 0.0
    %376 = vmatpush1.xpose.msra.mxu0 0.0
    %377 = vmatprep.subr.mxu0 0.0
    %378 = vmatpush1.xpose.msra.mxu0 0.0
    %379 = vmatprep.subr.mxu0 0.0
    %380 = vmatpush1.xpose.msra.mxu0 0.0
    %381 = vmatprep.subr.mxu0 0.0
    %382 = vmatpush1.xpose.msra.mxu0 0.0
    %383 = vmatprep.mubr.f32.mxu0 0.0
    %384 = vmatmul.mubr.f32.gmra.mrb[0].mxu0 %v315
    %v385 = vpop.f32.mrb[0].mxu0
    %v386 = vadd.f32 0.0, %v385
    %v387 = vpop.f32.mrb[0].mxu0
    %388 = vdwg.mxu0
    %v389 = vmul.f32 %v386, 0.5
    %vm390 = vcmask 64512
    %v391 = vsel %vm390, %v389, -inf
    %392 = vmax.xlane.f32.xlu0 %v391
    %v393 = vpop.xlane.xlu0 %392
    %v394 = vsub.f32 %v389, %v393
    %v395 = vmul.f32 %v394, 1.442695
    %v396 = vpow.pop %v395
    %v397 = vsel %vm390, %v396, 0.0
    %398 = vadd.xlane.f32.xlu0 %v397
    %v399 = vpop.xlane.xlu0 %398
    %v400 = vrcp.pop %v399
    %v401 = vmul.f32 %v396, %v400
    %v403 = vsel %vm390, %v401, 0
    %405 = vmatprep.subr.mxu0 0.0
    %406 = vmatpush1.msra.mxu0 %v304
    %407 = vmatprep.subr.mxu0 0.0
    %408 = vmatpush1.msra.mxu0 0.0
    %409 = vmatprep.subr.mxu0 0.0
    %410 = vmatpush1.msra.mxu0 0.0
    %411 = vmatprep.subr.mxu0 0.0
    %412 = vmatpush1.msra.mxu0 0.0
    %413 = vmatprep.subr.mxu0 0.0
    %414 = vmatpush1.msra.mxu0 0.0
    %415 = vmatprep.subr.mxu0 0.0
    %416 = vmatpush1.msra.mxu0 0.0
    %417 = vmatprep.subr.mxu0 0.0
    %418 = vmatpush1.msra.mxu0 0.0
    %419 = vmatprep.subr.mxu0 0.0
    %420 = vmatpush1.msra.mxu0 0.0
    %421 = vmatprep.subr.mxu0 0.0
    %422 = vmatpush1.msra.mxu0 0.0
    %423 = vmatprep.subr.mxu0 0.0
    %424 = vmatpush1.msra.mxu0 0.0
    %425 = vmatprep.subr.mxu0 0.0
    %426 = vmatpush1.msra.mxu0 0.0
    %427 = vmatprep.subr.mxu0 0.0
    %428 = vmatpush1.msra.mxu0 0.0
    %429 = vmatprep.subr.mxu0 0.0
    %430 = vmatpush1.msra.mxu0 0.0
    %431 = vmatprep.subr.mxu0 0.0
    %432 = vmatpush1.msra.mxu0 0.0
    %433 = vmatprep.subr.mxu0 0.0
    %434 = vmatpush1.msra.mxu0 0.0
    %435 = vmatprep.subr.mxu0 0.0
    %436 = vmatpush1.msra.mxu0 0.0
    %437 = vmatprep.subr.mxu0 0.0
    %438 = vmatpush1.msra.mxu0 0.0
    %439 = vmatprep.subr.mxu0 0.0
    %440 = vmatpush1.msra.mxu0 0.0
    %441 = vmatprep.subr.mxu0 0.0
    %442 = vmatpush1.msra.mxu0 0.0
    %443 = vmatprep.subr.mxu0 0.0
    %444 = vmatpush1.msra.mxu0 0.0
    %445 = vmatprep.subr.mxu0 0.0
    %446 = vmatpush1.msra.mxu0 0.0
    %447 = vmatprep.subr.mxu0 0.0
    %448 = vmatpush1.msra.mxu0 0.0
    %449 = vmatprep.subr.mxu0 0.0
    %450 = vmatpush1.msra.mxu0 0.0
    %451 = vmatprep.subr.mxu0 0.0
    %452 = vmatpush1.msra.mxu0 0.0
    %453 = vmatprep.subr.mxu0 0.0
    %454 = vmatpush1.msra.mxu0 0.0
    %455 = vmatprep.subr.mxu0 0.0
    %456 = vmatpush1.msra.mxu0 0.0
    %457 = vmatprep.subr.mxu0 0.0
    %458 = vmatpush1.msra.mxu0 0.0
    %459 = vmatprep.subr.mxu0 0.0
    %460 = vmatpush1.msra.mxu0 0.0
    %461 = vmatprep.subr.mxu0 0.0
    %462 = vmatpush1.msra.mxu0 0.0
    %463 = vmatprep.subr.mxu0 0.0
    %464 = vmatpush1.msra.mxu0 0.0
    %465 = vmatprep.subr.mxu0 0.0
    %466 = vmatpush1.msra.mxu0 0.0
    %467 = vmatprep.subr.mxu0 0.0
    %468 = vmatpush1.msra.mxu0 0.0
    %469 = vmatprep.mubr.f32.mxu0 0.0
    %470 = vmatmul.mubr.f32.gmra.mrb[0].mxu0 %v403
    %v471 = vpop.f32.mrb[0].mxu0
    %v472 = vadd.f32 0.0, %v471
    %v473 = vpop.f32.mrb[0].mxu0
    %474 = vdwg.mxu0
    %475 = vrot.lane.b32.xlu0 %v193, 124
    %v476 = vpop.permute.xlu0 %475
    %477 = vrot.lane.b32.xlu0 %v193, 60
    %v478 = vpop.permute.xlu0 %477
    %v479 = vsel %vm314, %v476, 0
    %v481 = vsel %vm314, %v478, 0
    %483 = vmatprep.subr.mxu0 0.0
    %484 = vmatpush1.xpose.msra.mxu0 %v481
    %485 = vmatprep.subr.mxu0 0.0
    %486 = vmatpush1.xpose.msra.mxu0 0.0
    %487 = vmatprep.subr.mxu0 0.0
    %488 = vmatpush1.xpose.msra.mxu0 0.0
    %489 = vmatprep.subr.mxu0 0.0
    %490 = vmatpush1.xpose.msra.mxu0 0.0
    %491 = vmatprep.subr.mxu0 0.0
    %492 = vmatpush1.xpose.msra.mxu0 0.0
    %493 = vmatprep.subr.mxu0 0.0
    %494 = vmatpush1.xpose.msra.mxu0 0.0
    %495 = vmatprep.subr.mxu0 0.0
    %496 = vmatpush1.xpose.msra.mxu0 0.0
    %497 = vmatprep.subr.mxu0 0.0
    %498 = vmatpush1.xpose.msra.mxu0 0.0
    %499 = vmatprep.subr.mxu0 0.0
    %500 = vmatpush1.xpose.msra.mxu0 0.0
    %501 = vmatprep.subr.mxu0 0.0
    %502 = vmatpush1.xpose.msra.mxu0 0.0
    %503 = vmatprep.subr.mxu0 0.0
    %504 = vmatpush1.xpose.msra.mxu0 0.0
    %505 = vmatprep.subr.mxu0 0.0
    %506 = vmatpush1.xpose.msra.mxu0 0.0
    %507 = vmatprep.subr.mxu0 0.0
    %508 = vmatpush1.xpose.msra.mxu0 0.0
    %509 = vmatprep.subr.mxu0 0.0
    %510 = vmatpush1.xpose.msra.mxu0 0.0
    %511 = vmatprep.subr.mxu0 0.0
    %512 = vmatpush1.xpose.msra.mxu0 0.0
    %513 = vmatprep.subr.mxu0 0.0
    %514 = vmatpush1.xpose.msra.mxu0 0.0
    %515 = vmatprep.subr.mxu0 0.0
    %516 = vmatpush1.xpose.msra.mxu0 0.0
    %517 = vmatprep.subr.mxu0 0.0
    %518 = vmatpush1.xpose.msra.mxu0 0.0
    %519 = vmatprep.subr.mxu0 0.0
    %520 = vmatpush1.xpose.msra.mxu0 0.0
    %521 = vmatprep.subr.mxu0 0.0
    %522 = vmatpush1.xpose.msra.mxu0 0.0
    %523 = vmatprep.subr.mxu0 0.0
    %524 = vmatpush1.xpose.msra.mxu0 0.0
    %525 = vmatprep.subr.mxu0 0.0
    %526 = vmatpush1.xpose.msra.mxu0 0.0
    %527 = vmatprep.subr.mxu0 0.0
    %528 = vmatpush1.xpose.msra.mxu0 0.0
    %529 = vmatprep.subr.mxu0 0.0
    %530 = vmatpush1.xpose.msra.mxu0 0.0
    %531 = vmatprep.subr.mxu0 0.0
    %532 = vmatpush1.xpose.msra.mxu0 0.0
    %533 = vmatprep.subr.mxu0 0.0
    %534 = vmatpush1.xpose.msra.mxu0 0.0
    %535 = vmatprep.subr.mxu0 0.0
    %536 = vmatpush1.xpose.msra.mxu0 0.0
    %537 = vmatprep.subr.mxu0 0.0
    %538 = vmatpush1.xpose.msra.mxu0 0.0
    %539 = vmatprep.subr.mxu0 0.0
    %540 = vmatpush1.xpose.msra.mxu0 0.0
    %541 = vmatprep.subr.mxu0 0.0
    %542 = vmatpush1.xpose.msra.mxu0 0.0
    %543 = vmatprep.subr.mxu0 0.0
    %544 = vmatpush1.xpose.msra.mxu0 0.0
    %545 = vmatprep.subr.mxu0 0.0
    %546 = vmatpush1.xpose.msra.mxu0 0.0
    %547 = vmatprep.mubr.f32.mxu0 0.0
    %548 = vmatmul.mubr.f32.gmra.mrb[0].mxu0 %v479
    %v549 = vpop.f32.mrb[0].mxu0
    %v550 = vadd.f32 0.0, %v549
    %v551 = vpop.f32.mrb[0].mxu0
    %552 = vdwg.mxu0
    %v553 = vmul.f32 %v550, 0.5
    %v554 = vsel %vm390, %v553, -inf
    %555 = vmax.xlane.f32.xlu0 %v554
    %v556 = vpop.xlane.xlu0 %555
    %v557 = vsub.f32 %v553, %v556
    %v558 = vmul.f32 %v557, 1.442695
    %v559 = vpow.pop %v558
    %v560 = vsel %vm390, %v559, 0.0
    %561 = vadd.xlane.f32.xlu0 %v560
    %v562 = vpop.xlane.xlu0 %561
    %v563 = vrcp.pop %v562
    %v564 = vmul.f32 %v559, %v563
    %565 = vrot.lane.b32.xlu0 %v291, 60
    %v566 = vpop.permute.xlu0 %565
    %v569 = vsel %vm390, %v564, 0
    %571 = vmatprep.subr.mxu0 0.0
    %572 = vmatpush1.msra.mxu0 %v566
    %573 = vmatprep.subr.mxu0 0.0
    %574 = vmatpush1.msra.mxu0 0.0
    %575 = vmatprep.subr.mxu0 0.0
    %576 = vmatpush1.msra.mxu0 0.0
    %577 = vmatprep.subr.mxu0 0.0
    %578 = vmatpush1.msra.mxu0 0.0
    %579 = vmatprep.subr.mxu0 0.0
    %580 = vmatpush1.msra.mxu0 0.0
    %581 = vmatprep.subr.mxu0 0.0
    %582 = vmatpush1.msra.mxu0 0.0
    %583 = vmatprep.subr.mxu0 0.0
    %584 = vmatpush1.msra.mxu0 0.0
    %585 = vmatprep.subr.mxu0 0.0
    %586 = vmatpush1.msra.mxu0 0.0
    %587 = vmatprep.subr.mxu0 0.0
    %588 = vmatpush1.msra.mxu0 0.0
    %589 = vmatprep.subr.mxu0 0.0
    %590 = vmatpush1.msra.mxu0 0.0
    %591 = vmatprep.subr.mxu0 0.0
    %592 = vmatpush1.msra.mxu0 0.0
    %593 = vmatprep.subr.mxu0 0.0
    %594 = vmatpush1.msra.mxu0 0.0
    %595 = vmatprep.subr.mxu0 0.0
    %596 = vmatpush1.msra.mxu0 0.0
    %597 = vmatprep.subr.mxu0 0.0
    %598 = vmatpush1.msra.mxu0 0.0
    %599 = vmatprep.subr.mxu0 0.0
    %600 = vmatpush1.msra.mxu0 0.0
    %601 = vmatprep.subr.mxu0 0.0
    %602 = vmatpush1.msra.mxu0 0.0
    %603 = vmatprep.subr.mxu0 0.0
    %604 = vmatpush1.msra.mxu0 0.0
    %605 = vmatprep.subr.mxu0 0.0
    %606 = vmatpush1.msra.mxu0 0.0
    %607 = vmatprep.subr.mxu0 0.0
    %608 = vmatpush1.msra.mxu0 0.0
    %609 = vmatprep.subr.mxu0 0.0
    %610 = vmatpush1.msra.mxu0 0.0
    %611 = vmatprep.subr.mxu0 0.0
    %612 = vmatpush1.msra.mxu0 0.0
    %613 = vmatprep.subr.mxu0 0.0
    %614 = vmatpush1.msra.mxu0 0.0
    %615 = vmatprep.subr.mxu0 0.0
    %616 = vmatpush1.msra.mxu0 0.0
    %617 = vmatprep.subr.mxu0 0.0
    %618 = vmatpush1.msra.mxu0 0.0
    %619 = vmatprep.subr.mxu0 0.0
    %620 = vmatpush1.msra.mxu0 0.0
    %621 = vmatprep.subr.mxu0 0.0
    %622 = vmatpush1.msra.mxu0 0.0
    %623 = vmatprep.subr.mxu0 0.0
    %624 = vmatpush1.msra.mxu0 0.0
    %625 = vmatprep.subr.mxu0 0.0
    %626 = vmatpush1.msra.mxu0 0.0
    %627 = vmatprep.subr.mxu0 0.0
    %628 = vmatpush1.msra.mxu0 0.0
    %629 = vmatprep.subr.mxu0 0.0
    %630 = vmatpush1.msra.mxu0 0.0
    %631 = vmatprep.subr.mxu0 0.0
    %632 = vmatpush1.msra.mxu0 0.0
    %633 = vmatprep.subr.mxu0 0.0
    %634 = vmatpush1.msra.mxu0 0.0
    %635 = vmatprep.mubr.f32.mxu0 0.0
    %636 = vmatmul.mubr.f32.gmra.mrb[0].mxu0 %v569
    %v637 = vpop.f32.mrb[0].mxu0
    %v638 = vadd.f32 0.0, %v637
    %v639 = vpop.f32.mrb[0].mxu0
    %640 = vdwg.mxu0
    %641 = vrot.lane.b32.xlu0 %v193, 120
    %v642 = vpop.permute.xlu0 %641
    %643 = vrot.lane.b32.xlu0 %v193, 56
    %v644 = vpop.permute.xlu0 %643
    %v645 = vsel %vm314, %v642, 0
    %v647 = vsel %vm314, %v644, 0
    %649 = vmatprep.subr.mxu0 0.0
    %650 = vmatpush1.xpose.msra.mxu0 %v647
    %651 = vmatprep.subr.mxu0 0.0
    %652 = vmatpush1.xpose.msra.mxu0 0.0
    %653 = vmatprep.subr.mxu0 0.0
    %654 = vmatpush1.xpose.msra.mxu0 0.0
    %655 = vmatprep.subr.mxu0 0.0
    %656 = vmatpush1.xpose.msra.mxu0 0.0
    %657 = vmatprep.subr.mxu0 0.0
    %658 = vmatpush1.xpose.msra.mxu0 0.0
    %659 = vmatprep.subr.mxu0 0.0
    %660 = vmatpush1.xpose.msra.mxu0 0.0
    %661 = vmatprep.subr.mxu0 0.0
    %662 = vmatpush1.xpose.msra.mxu0 0.0
    %663 = vmatprep.subr.mxu0 0.0
    %664 = vmatpush1.xpose.msra.mxu0 0.0
    %665 = vmatprep.subr.mxu0 0.0
    %666 = vmatpush1.xpose.msra.mxu0 0.0
    %667 = vmatprep.subr.mxu0 0.0
    %668 = vmatpush1.xpose.msra.mxu0 0.0
    %669 = vmatprep.subr.mxu0 0.0
    %670 = vmatpush1.xpose.msra.mxu0 0.0
    %671 = vmatprep.subr.mxu0 0.0
    %672 = vmatpush1.xpose.msra.mxu0 0.0
    %673 = vmatprep.subr.mxu0 0.0
    %674 = vmatpush1.xpose.msra.mxu0 0.0
    %675 = vmatprep.subr.mxu0 0.0
    %676 = vmatpush1.xpose.msra.mxu0 0.0
    %677 = vmatprep.subr.mxu0 0.0
    %678 = vmatpush1.xpose.msra.mxu0 0.0
    %679 = vmatprep.subr.mxu0 0.0
    %680 = vmatpush1.xpose.msra.mxu0 0.0
    %681 = vmatprep.subr.mxu0 0.0
    %682 = vmatpush1.xpose.msra.mxu0 0.0
    %683 = vmatprep.subr.mxu0 0.0
    %684 = vmatpush1.xpose.msra.mxu0 0.0
    %685 = vmatprep.subr.mxu0 0.0
    %686 = vmatpush1.xpose.msra.mxu0 0.0
    %687 = vmatprep.subr.mxu0 0.0
    %688 = vmatpush1.xpose.msra.mxu0 0.0
    %689 = vmatprep.subr.mxu0 0.0
    %690 = vmatpush1.xpose.msra.mxu0 0.0
    %691 = vmatprep.subr.mxu0 0.0
    %692 = vmatpush1.xpose.msra.mxu0 0.0
    %693 = vmatprep.subr.mxu0 0.0
    %694 = vmatpush1.xpose.msra.mxu0 0.0
    %695 = vmatprep.subr.mxu0 0.0
    %696 = vmatpush1.xpose.msra.mxu0 0.0
    %697 = vmatprep.subr.mxu0 0.0
    %698 = vmatpush1.xpose.msra.mxu0 0.0
    %699 = vmatprep.subr.mxu0 0.0
    %700 = vmatpush1.xpose.msra.mxu0 0.0
    %701 = vmatprep.subr.mxu0 0.0
    %702 = vmatpush1.xpose.msra.mxu0 0.0
    %703 = vmatprep.subr.mxu0 0.0
    %704 = vmatpush1.xpose.msra.mxu0 0.0
    %705 = vmatprep.subr.mxu0 0.0
    %706 = vmatpush1.xpose.msra.mxu0 0.0
    %707 = vmatprep.subr.mxu0 0.0
    %708 = vmatpush1.xpose.msra.mxu0 0.0
    %709 = vmatprep.subr.mxu0 0.0
    %710 = vmatpush1.xpose.msra.mxu0 0.0
    %711 = vmatprep.subr.mxu0 0.0
    %712 = vmatpush1.xpose.msra.mxu0 0.0
    %713 = vmatprep.mubr.f32.mxu0 0.0
    %714 = vmatmul.mubr.f32.gmra.mrb[0].mxu0 %v645
    %v715 = vpop.f32.mrb[0].mxu0
    %v716 = vadd.f32 0.0, %v715
    %v717 = vpop.f32.mrb[0].mxu0
    %718 = vdwg.mxu0
    %v719 = vmul.f32 %v716, 0.5
    %v720 = vsel %vm390, %v719, -inf
    %721 = vmax.xlane.f32.xlu0 %v720
    %v722 = vpop.xlane.xlu0 %721
    %v723 = vsub.f32 %v719, %v722
    %v724 = vmul.f32 %v723, 1.442695
    %v725 = vpow.pop %v724
    %v726 = vsel %vm390, %v725, 0.0
    %727 = vadd.xlane.f32.xlu0 %v726
    %v728 = vpop.xlane.xlu0 %727
    %v729 = vrcp.pop %v728
    %v730 = vmul.f32 %v725, %v729
    %731 = vrot.lane.b32.xlu0 %v291, 56
    %v732 = vpop.permute.xlu0 %731
    %v735 = vsel %vm390, %v730, 0
    %737 = vmatprep.subr.mxu0 0.0
    %738 = vmatpush1.msra.mxu0 %v732
    %739 = vmatprep.subr.mxu0 0.0
    %740 = vmatpush1.msra.mxu0 0.0
    %741 = vmatprep.subr.mxu0 0.0
    %742 = vmatpush1.msra.mxu0 0.0
    %743 = vmatprep.subr.mxu0 0.0
    %744 = vmatpush1.msra.mxu0 0.0
    %745 = vmatprep.subr.mxu0 0.0
    %746 = vmatpush1.msra.mxu0 0.0
    %747 = vmatprep.subr.mxu0 0.0
    %748 = vmatpush1.msra.mxu0 0.0
    %749 = vmatprep.subr.mxu0 0.0
    %750 = vmatpush1.msra.mxu0 0.0
    %751 = vmatprep.subr.mxu0 0.0
    %752 = vmatpush1.msra.mxu0 0.0
    %753 = vmatprep.subr.mxu0 0.0
    %754 = vmatpush1.msra.mxu0 0.0
    %755 = vmatprep.subr.mxu0 0.0
    %756 = vmatpush1.msra.mxu0 0.0
    %757 = vmatprep.subr.mxu0 0.0
    %758 = vmatpush1.msra.mxu0 0.0
    %759 = vmatprep.subr.mxu0 0.0
    %760 = vmatpush1.msra.mxu0 0.0
    %761 = vmatprep.subr.mxu0 0.0
    %762 = vmatpush1.msra.mxu0 0.0
    %763 = vmatprep.subr.mxu0 0.0
    %764 = vmatpush1.msra.mxu0 0.0
    %765 = vmatprep.subr.mxu0 0.0
    %766 = vmatpush1.msra.mxu0 0.0
    %767 = vmatprep.subr.mxu0 0.0
    %768 = vmatpush1.msra.mxu0 0.0
    %769 = vmatprep.subr.mxu0 0.0
    %770 = vmatpush1.msra.mxu0 0.0
    %771 = vmatprep.subr.mxu0 0.0
    %772 = vmatpush1.msra.mxu0 0.0
    %773 = vmatprep.subr.mxu0 0.0
    %774 = vmatpush1.msra.mxu0 0.0
    %775 = vmatprep.subr.mxu0 0.0
    %776 = vmatpush1.msra.mxu0 0.0
    %777 = vmatprep.subr.mxu0 0.0
    %778 = vmatpush1.msra.mxu0 0.0
    %779 = vmatprep.subr.mxu0 0.0
    %780 = vmatpush1.msra.mxu0 0.0
    %781 = vmatprep.subr.mxu0 0.0
    %782 = vmatpush1.msra.mxu0 0.0
    %783 = vmatprep.subr.mxu0 0.0
    %784 = vmatpush1.msra.mxu0 0.0
    %785 = vmatprep.subr.mxu0 0.0
    %786 = vmatpush1.msra.mxu0 0.0
    %787 = vmatprep.subr.mxu0 0.0
    %788 = vmatpush1.msra.mxu0 0.0
    %789 = vmatprep.subr.mxu0 0.0
    %790 = vmatpush1.msra.mxu0 0.0
    %791 = vmatprep.subr.mxu0 0.0
    %792 = vmatpush1.msra.mxu0 0.0
    %793 = vmatprep.subr.mxu0 0.0
    %794 = vmatpush1.msra.mxu0 0.0
    %795 = vmatprep.subr.mxu0 0.0
    %796 = vmatpush1.msra.mxu0 0.0
    %797 = vmatprep.subr.mxu0 0.0
    %798 = vmatpush1.msra.mxu0 0.0
    %799 = vmatprep.subr.mxu0 0.0
    %800 = vmatpush1.msra.mxu0 0.0
    %801 = vmatprep.mubr.f32.mxu0 0.0
    %802 = vmatmul.mubr.f32.gmra.mrb[0].mxu0 %v735
    %v803 = vpop.f32.mrb[0].mxu0
    %v804 = vadd.f32 0.0, %v803
    %v805 = vpop.f32.mrb[0].mxu0
    %806 = vdwg.mxu0
    %807 = vrot.lane.b32.xlu0 %v193, 116
    %v808 = vpop.permute.xlu0 %807
    %809 = vrot.lane.b32.xlu0 %v193, 52
    %v810 = vpop.permute.xlu0 %809
    %v811 = vsel %vm314, %v808, 0
    %v813 = vsel %vm314, %v810, 0
    %815 = vmatprep.subr.mxu0 0.0
    %816 = vmatpush1.xpose.msra.mxu0 %v813
    %817 = vmatprep.subr.mxu0 0.0
    %818 = vmatpush1.xpose.msra.mxu0 0.0
    %819 = vmatprep.subr.mxu0 0.0
    %820 = vmatpush1.xpose.msra.mxu0 0.0
    %821 = vmatprep.subr.mxu0 0.0
    %822 = vmatpush1.xpose.msra.mxu0 0.0
    %823 = vmatprep.subr.mxu0 0.0
    %824 = vmatpush1.xpose.msra.mxu0 0.0
    %825 = vmatprep.subr.mxu0 0.0
    %826 = vmatpush1.xpose.msra.mxu0 0.0
    %827 = vmatprep.subr.mxu0 0.0
    %828 = vmatpush1.xpose.msra.mxu0 0.0
    %829 = vmatprep.subr.mxu0 0.0
    %830 = vmatpush1.xpose.msra.mxu0 0.0
    %831 = vmatprep.subr.mxu0 0.0
    %832 = vmatpush1.xpose.msra.mxu0 0.0
    %833 = vmatprep.subr.mxu0 0.0
    %834 = vmatpush1.xpose.msra.mxu0 0.0
    %835 = vmatprep.subr.mxu0 0.0
    %836 = vmatpush1.xpose.msra.mxu0 0.0
    %837 = vmatprep.subr.mxu0 0.0
    %838 = vmatpush1.xpose.msra.mxu0 0.0
    %839 = vmatprep.subr.mxu0 0.0
    %840 = vmatpush1.xpose.msra.mxu0 0.0
    %841 = vmatprep.subr.mxu0 0.0
    %842 = vmatpush1.xpose.msra.mxu0 0.0
    %843 = vmatprep.subr.mxu0 0.0
    %844 = vmatpush1.xpose.msra.mxu0 0.0
    %845 = vmatprep.subr.mxu0 0.0
    %846 = vmatpush1.xpose.msra.mxu0 0.0
    %847 = vmatprep.subr.mxu0 0.0
    %848 = vmatpush1.xpose.msra.mxu0 0.0
    %849 = vmatprep.subr.mxu0 0.0
    %850 = vmatpush1.xpose.msra.mxu0 0.0
    %851 = vmatprep.subr.mxu0 0.0
    %852 = vmatpush1.xpose.msra.mxu0 0.0
    %853 = vmatprep.subr.mxu0 0.0
    %854 = vmatpush1.xpose.msra.mxu0 0.0
    %855 = vmatprep.subr.mxu0 0.0
    %856 = vmatpush1.xpose.msra.mxu0 0.0
    %857 = vmatprep.subr.mxu0 0.0
    %858 = vmatpush1.xpose.msra.mxu0 0.0
    %859 = vmatprep.subr.mxu0 0.0
    %860 = vmatpush1.xpose.msra.mxu0 0.0
    %861 = vmatprep.subr.mxu0 0.0
    %862 = vmatpush1.xpose.msra.mxu0 0.0
    %863 = vmatprep.subr.mxu0 0.0
    %864 = vmatpush1.xpose.msra.mxu0 0.0
    %865 = vmatprep.subr.mxu0 0.0
    %866 = vmatpush1.xpose.msra.mxu0 0.0
    %867 = vmatprep.subr.mxu0 0.0
    %868 = vmatpush1.xpose.msra.mxu0 0.0
    %869 = vmatprep.subr.mxu0 0.0
    %870 = vmatpush1.xpose.msra.mxu0 0.0
    %871 = vmatprep.subr.mxu0 0.0
    %872 = vmatpush1.xpose.msra.mxu0 0.0
    %873 = vmatprep.subr.mxu0 0.0
    %874 = vmatpush1.xpose.msra.mxu0 0.0
    %875 = vmatprep.subr.mxu0 0.0
    %876 = vmatpush1.xpose.msra.mxu0 0.0
    %877 = vmatprep.subr.mxu0 0.0
    %878 = vmatpush1.xpose.msra.mxu0 0.0
    %879 = vmatprep.mubr.f32.mxu0 0.0
    %880 = vmatmul.mubr.f32.gmra.mrb[0].mxu0 %v811
    %v881 = vpop.f32.mrb[0].mxu0
    %v882 = vadd.f32 0.0, %v881
    %v883 = vpop.f32.mrb[0].mxu0
    %884 = vdwg.mxu0
    %v885 = vmul.f32 %v882, 0.5
    %v886 = vsel %vm390, %v885, -inf
    %887 = vmax.xlane.f32.xlu0 %v886
    %v888 = vpop.xlane.xlu0 %887
    %v889 = vsub.f32 %v885, %v888
    %v890 = vmul.f32 %v889, 1.442695
    %v891 = vpow.pop %v890
    %v892 = vsel %vm390, %v891, 0.0
    %893 = vadd.xlane.f32.xlu0 %v892
    %v894 = vpop.xlane.xlu0 %893
    %v895 = vrcp.pop %v894
    %v896 = vmul.f32 %v891, %v895
    %897 = vrot.lane.b32.xlu0 %v291, 52
    %v898 = vpop.permute.xlu0 %897
    %v901 = vsel %vm390, %v896, 0
    %903 = vmatprep.subr.mxu0 0.0
    %904 = vmatpush1.msra.mxu0 %v898
    %905 = vmatprep.subr.mxu0 0.0
    %906 = vmatpush1.msra.mxu0 0.0
    %907 = vmatprep.subr.mxu0 0.0
    %908 = vmatpush1.msra.mxu0 0.0
    %909 = vmatprep.subr.mxu0 0.0
    %910 = vmatpush1.msra.mxu0 0.0
    %911 = vmatprep.subr.mxu0 0.0
    %912 = vmatpush1.msra.mxu0 0.0
    %913 = vmatprep.subr.mxu0 0.0
    %914 = vmatpush1.msra.mxu0 0.0
    %915 = vmatprep.subr.mxu0 0.0
    %916 = vmatpush1.msra.mxu0 0.0
    %917 = vmatprep.subr.mxu0 0.0
    %918 = vmatpush1.msra.mxu0 0.0
    %919 = vmatprep.subr.mxu0 0.0
    %920 = vmatpush1.msra.mxu0 0.0
    %921 = vmatprep.subr.mxu0 0.0
    %922 = vmatpush1.msra.mxu0 0.0
    %923 = vmatprep.subr.mxu0 0.0
    %924 = vmatpush1.msra.mxu0 0.0
    %925 = vmatprep.subr.mxu0 0.0
    %926 = vmatpush1.msra.mxu0 0.0
    %927 = vmatprep.subr.mxu0 0.0
    %928 = vmatpush1.msra.mxu0 0.0
    %929 = vmatprep.subr.mxu0 0.0
    %930 = vmatpush1.msra.mxu0 0.0
    %931 = vmatprep.subr.mxu0 0.0
    %932 = vmatpush1.msra.mxu0 0.0
    %933 = vmatprep.subr.mxu0 0.0
    %934 = vmatpush1.msra.mxu0 0.0
    %935 = vmatprep.subr.mxu0 0.0
    %936 = vmatpush1.msra.mxu0 0.0
    %937 = vmatprep.subr.mxu0 0.0
    %938 = vmatpush1.msra.mxu0 0.0
    %939 = vmatprep.subr.mxu0 0.0
    %940 = vmatpush1.msra.mxu0 0.0
    %941 = vmatprep.subr.mxu0 0.0
    %942 = vmatpush1.msra.mxu0 0.0
    %943 = vmatprep.subr.mxu0 0.0
    %944 = vmatpush1.msra.mxu0 0.0
    %945 = vmatprep.subr.mxu0 0.0
    %946 = vmatpush1.msra.mxu0 0.0
    %947 = vmatprep.subr.mxu0 0.0
    %948 = vmatpush1.msra.mxu0 0.0
    %949 = vmatprep.subr.mxu0 0.0
    %950 = vmatpush1.msra.mxu0 0.0
    %951 = vmatprep.subr.mxu0 0.0
    %952 = vmatpush1.msra.mxu0 0.0
    %953 = vmatprep.subr.mxu0 0.0
    %954 = vmatpush1.msra.mxu0 0.0
    %955 = vmatprep.subr.mxu0 0.0
    %956 = vmatpush1.msra.mxu0 0.0
    %957 = vmatprep.subr.mxu0 0.0
    %958 = vmatpush1.msra.mxu0 0.0
    %959 = vmatprep.subr.mxu0 0.0
    %960 = vmatpush1.msra.mxu0 0.0
    %961 = vmatprep.subr.mxu0 0.0
    %962 = vmatpush1.msra.mxu0 0.0
    %963 = vmatprep.subr.mxu0 0.0
    %964 = vmatpush1.msra.mxu0 0.0
    %965 = vmatprep.subr.mxu0 0.0
    %966 = vmatpush1.msra.mxu0 0.0
    %967 = vmatprep.mubr.f32.mxu0 0.0
    %968 = vmatmul.mubr.f32.gmra.mrb[0].mxu0 %v901
    %v969 = vpop.f32.mrb[0].mxu0
    %v970 = vadd.f32 0.0, %v969
    %v971 = vpop.f32.mrb[0].mxu0
    %972 = vdwg.mxu0
    %973 = vrot.lane.b32.xlu0 %v193, 112
    %v974 = vpop.permute.xlu0 %973
    %975 = vrot.lane.b32.xlu0 %v193, 48
    %v976 = vpop.permute.xlu0 %975
    %v977 = vsel %vm314, %v974, 0
    %v979 = vsel %vm314, %v976, 0
    %981 = vmatprep.subr.mxu0 0.0
    %982 = vmatpush1.xpose.msra.mxu0 %v979
    %983 = vmatprep.subr.mxu0 0.0
    %984 = vmatpush1.xpose.msra.mxu0 0.0
    %985 = vmatprep.subr.mxu0 0.0
    %986 = vmatpush1.xpose.msra.mxu0 0.0
    %987 = vmatprep.subr.mxu0 0.0
    %988 = vmatpush1.xpose.msra.mxu0 0.0
    %989 = vmatprep.subr.mxu0 0.0
    %990 = vmatpush1.xpose.msra.mxu0 0.0
    %991 = vmatprep.subr.mxu0 0.0
    %992 = vmatpush1.xpose.msra.mxu0 0.0
    %993 = vmatprep.subr.mxu0 0.0
    %994 = vmatpush1.xpose.msra.mxu0 0.0
    %995 = vmatprep.subr.mxu0 0.0
    %996 = vmatpush1.xpose.msra.mxu0 0.0
    %997 = vmatprep.subr.mxu0 0.0
    %998 = vmatpush1.xpose.msra.mxu0 0.0
    %999 = vmatprep.subr.mxu0 0.0
    %1000 = vmatpush1.xpose.msra.mxu0 0.0
    %1001 = vmatprep.subr.mxu0 0.0
    %1002 = vmatpush1.xpose.msra.mxu0 0.0
    %1003 = vmatprep.subr.mxu0 0.0
    %1004 = vmatpush1.xpose.msra.mxu0 0.0
    %1005 = vmatprep.subr.mxu0 0.0
    %1006 = vmatpush1.xpose.msra.mxu0 0.0
    %1007 = vmatprep.subr.mxu0 0.0
    %1008 = vmatpush1.xpose.msra.mxu0 0.0
    %1009 = vmatprep.subr.mxu0 0.0
    %1010 = vmatpush1.xpose.msra.mxu0 0.0
    %1011 = vmatprep.subr.mxu0 0.0
    %1012 = vmatpush1.xpose.msra.mxu0 0.0
    %1013 = vmatprep.subr.mxu0 0.0
    %1014 = vmatpush1.xpose.msra.mxu0 0.0
    %1015 = vmatprep.subr.mxu0 0.0
    %1016 = vmatpush1.xpose.msra.mxu0 0.0
    %1017 = vmatprep.subr.mxu0 0.0
    %1018 = vmatpush1.xpose.msra.mxu0 0.0
    %1019 = vmatprep.subr.mxu0 0.0
    %1020 = vmatpush1.xpose.msra.mxu0 0.0
    %1021 = vmatprep.subr.mxu0 0.0
    %1022 = vmatpush1.xpose.msra.mxu0 0.0
    %1023 = vmatprep.subr.mxu0 0.0
    %1024 = vmatpush1.xpose.msra.mxu0 0.0
    %1025 = vmatprep.subr.mxu0 0.0
    %1026 = vmatpush1.xpose.msra.mxu0 0.0
    %1027 = vmatprep.subr.mxu0 0.0
    %1028 = vmatpush1.xpose.msra.mxu0 0.0
    %1029 = vmatprep.subr.mxu0 0.0
    %1030 = vmatpush1.xpose.msra.mxu0 0.0
    %1031 = vmatprep.subr.mxu0 0.0
    %1032 = vmatpush1.xpose.msra.mxu0 0.0
    %1033 = vmatprep.subr.mxu0 0.0
    %1034 = vmatpush1.xpose.msra.mxu0 0.0
    %1035 = vmatprep.subr.mxu0 0.0
    %1036 = vmatpush1.xpose.msra.mxu0 0.0
    %1037 = vmatprep.subr.mxu0 0.0
    %1038 = vmatpush1.xpose.msra.mxu0 0.0
    %1039 = vmatprep.subr.mxu0 0.0
    %1040 = vmatpush1.xpose.msra.mxu0 0.0
    %1041 = vmatprep.subr.mxu0 0.0
    %1042 = vmatpush1.xpose.msra.mxu0 0.0
    %1043 = vmatprep.subr.mxu0 0.0
    %1044 = vmatpush1.xpose.msra.mxu0 0.0
    %1045 = vmatprep.mubr.f32.mxu0 0.0
    %1046 = vmatmul.mubr.f32.gmra.mrb[0].mxu0 %v977
    %v1047 = vpop.f32.mrb[0].mxu0
    %v1048 = vadd.f32 0.0, %v1047
    %v1049 = vpop.f32.mrb[0].mxu0
    %1050 = vdwg.mxu0
    %v1051 = vmul.f32 %v1048, 0.5
    %v1052 = vsel %vm390, %v1051, -inf
    %1053 = vmax.xlane.f32.xlu0 %v1052
    %v1054 = vpop.xlane.xlu0 %1053
    %v1055 = vsub.f32 %v1051, %v1054
    %v1056 = vmul.f32 %v1055, 1.442695
    %v1057 = vpow.pop %v1056
    %v1058 = vsel %vm390, %v1057, 0.0
    %1059 = vadd.xlane.f32.xlu0 %v1058
    %v1060 = vpop.xlane.xlu0 %1059
    %v1061 = vrcp.pop %v1060
    %v1062 = vmul.f32 %v1057, %v1061
    %1063 = vrot.lane.b32.xlu0 %v291, 48
    %v1064 = vpop.permute.xlu0 %1063
    %v1067 = vsel %vm390, %v1062, 0
    %1069 = vmatprep.subr.mxu0 0.0
    %1070 = vmatpush1.msra.mxu0 %v1064
    %1071 = vmatprep.subr.mxu0 0.0
    %1072 = vmatpush1.msra.mxu0 0.0
    %1073 = vmatprep.subr.mxu0 0.0
    %1074 = vmatpush1.msra.mxu0 0.0
    %1075 = vmatprep.subr.mxu0 0.0
    %1076 = vmatpush1.msra.mxu0 0.0
    %1077 = vmatprep.subr.mxu0 0.0
    %1078 = vmatpush1.msra.mxu0 0.0
    %1079 = vmatprep.subr.mxu0 0.0
    %1080 = vmatpush1.msra.mxu0 0.0
    %1081 = vmatprep.subr.mxu0 0.0
    %1082 = vmatpush1.msra.mxu0 0.0
    %1083 = vmatprep.subr.mxu0 0.0
    %1084 = vmatpush1.msra.mxu0 0.0
    %1085 = vmatprep.subr.mxu0 0.0
    %1086 = vmatpush1.msra.mxu0 0.0
    %1087 = vmatprep.subr.mxu0 0.0
    %1088 = vmatpush1.msra.mxu0 0.0
    %1089 = vmatprep.subr.mxu0 0.0
    %1090 = vmatpush1.msra.mxu0 0.0
    %1091 = vmatprep.subr.mxu0 0.0
    %1092 = vmatpush1.msra.mxu0 0.0
    %1093 = vmatprep.subr.mxu0 0.0
    %1094 = vmatpush1.msra.mxu0 0.0
    %1095 = vmatprep.subr.mxu0 0.0
    %1096 = vmatpush1.msra.mxu0 0.0
    %1097 = vmatprep.subr.mxu0 0.0
    %1098 = vmatpush1.msra.mxu0 0.0
    %1099 = vmatprep.subr.mxu0 0.0
    %1100 = vmatpush1.msra.mxu0 0.0
    %1101 = vmatprep.subr.mxu0 0.0
    %1102 = vmatpush1.msra.mxu0 0.0
    %1103 = vmatprep.subr.mxu0 0.0
    %1104 = vmatpush1.msra.mxu0 0.0
    %1105 = vmatprep.subr.mxu0 0.0
    %1106 = vmatpush1.msra.mxu0 0.0
    %1107 = vmatprep.subr.mxu0 0.0
    %1108 = vmatpush1.msra.mxu0 0.0
    %1109 = vmatprep.subr.mxu0 0.0
    %1110 = vmatpush1.msra.mxu0 0.0
    %1111 = vmatprep.subr.mxu0 0.0
    %1112 = vmatpush1.msra.mxu0 0.0
    %1113 = vmatprep.subr.mxu0 0.0
    %1114 = vmatpush1.msra.mxu0 0.0
    %1115 = vmatprep.subr.mxu0 0.0
    %1116 = vmatpush1.msra.mxu0 0.0
    %1117 = vmatprep.subr.mxu0 0.0
    %1118 = vmatpush1.msra.mxu0 0.0
    %1119 = vmatprep.subr.mxu0 0.0
    %1120 = vmatpush1.msra.mxu0 0.0
    %1121 = vmatprep.subr.mxu0 0.0
    %1122 = vmatpush1.msra.mxu0 0.0
    %1123 = vmatprep.subr.mxu0 0.0
    %1124 = vmatpush1.msra.mxu0 0.0
    %1125 = vmatprep.subr.mxu0 0.0
    %1126 = vmatpush1.msra.mxu0 0.0
    %1127 = vmatprep.subr.mxu0 0.0
    %1128 = vmatpush1.msra.mxu0 0.0
    %1129 = vmatprep.subr.mxu0 0.0
    %1130 = vmatpush1.msra.mxu0 0.0
    %1131 = vmatprep.subr.mxu0 0.0
    %1132 = vmatpush1.msra.mxu0 0.0
    %1133 = vmatprep.mubr.f32.mxu0 0.0
    %1134 = vmatmul.mubr.f32.gmra.mrb[0].mxu0 %v1067
    %v1135 = vpop.f32.mrb[0].mxu0
    %v1136 = vadd.f32 0.0, %v1135
    %v1137 = vpop.f32.mrb[0].mxu0
    %1138 = vdwg.mxu0
    %1139 = vrot.lane.b32.xlu0 %v193, 108
    %v1140 = vpop.permute.xlu0 %1139
    %1141 = vrot.lane.b32.xlu0 %v193, 44
    %v1142 = vpop.permute.xlu0 %1141
    %v1143 = vsel %vm314, %v1140, 0
    %v1145 = vsel %vm314, %v1142, 0
    %1147 = vmatprep.subr.mxu0 0.0
    %1148 = vmatpush1.xpose.msra.mxu0 %v1145
    %1149 = vmatprep.subr.mxu0 0.0
    %1150 = vmatpush1.xpose.msra.mxu0 0.0
    %1151 = vmatprep.subr.mxu0 0.0
    %1152 = vmatpush1.xpose.msra.mxu0 0.0
    %1153 = vmatprep.subr.mxu0 0.0
    %1154 = vmatpush1.xpose.msra.mxu0 0.0
    %1155 = vmatprep.subr.mxu0 0.0
    %1156 = vmatpush1.xpose.msra.mxu0 0.0
    %1157 = vmatprep.subr.mxu0 0.0
    %1158 = vmatpush1.xpose.msra.mxu0 0.0
    %1159 = vmatprep.subr.mxu0 0.0
    %1160 = vmatpush1.xpose.msra.mxu0 0.0
    %1161 = vmatprep.subr.mxu0 0.0
    %1162 = vmatpush1.xpose.msra.mxu0 0.0
    %1163 = vmatprep.subr.mxu0 0.0
    %1164 = vmatpush1.xpose.msra.mxu0 0.0
    %1165 = vmatprep.subr.mxu0 0.0
    %1166 = vmatpush1.xpose.msra.mxu0 0.0
    %1167 = vmatprep.subr.mxu0 0.0
    %1168 = vmatpush1.xpose.msra.mxu0 0.0
    %1169 = vmatprep.subr.mxu0 0.0
    %1170 = vmatpush1.xpose.msra.mxu0 0.0
    %1171 = vmatprep.subr.mxu0 0.0
    %1172 = vmatpush1.xpose.msra.mxu0 0.0
    %1173 = vmatprep.subr.mxu0 0.0
    %1174 = vmatpush1.xpose.msra.mxu0 0.0
    %1175 = vmatprep.subr.mxu0 0.0
    %1176 = vmatpush1.xpose.msra.mxu0 0.0
    %1177 = vmatprep.subr.mxu0 0.0
    %1178 = vmatpush1.xpose.msra.mxu0 0.0
    %1179 = vmatprep.subr.mxu0 0.0
    %1180 = vmatpush1.xpose.msra.mxu0 0.0
    %1181 = vmatprep.subr.mxu0 0.0
    %1182 = vmatpush1.xpose.msra.mxu0 0.0
    %1183 = vmatprep.subr.mxu0 0.0
    %1184 = vmatpush1.xpose.msra.mxu0 0.0
    %1185 = vmatprep.subr.mxu0 0.0
    %1186 = vmatpush1.xpose.msra.mxu0 0.0
    %1187 = vmatprep.subr.mxu0 0.0
    %1188 = vmatpush1.xpose.msra.mxu0 0.0
    %1189 = vmatprep.subr.mxu0 0.0
    %1190 = vmatpush1.xpose.msra.mxu0 0.0
    %1191 = vmatprep.subr.mxu0 0.0
    %1192 = vmatpush1.xpose.msra.mxu0 0.0
    %1193 = vmatprep.subr.mxu0 0.0
    %1194 = vmatpush1.xpose.msra.mxu0 0.0
    %1195 = vmatprep.subr.mxu0 0.0
    %1196 = vmatpush1.xpose.msra.mxu0 0.0
    %1197 = vmatprep.subr.mxu0 0.0
    %1198 = vmatpush1.xpose.msra.mxu0 0.0
    %1199 = vmatprep.subr.mxu0 0.0
    %1200 = vmatpush1.xpose.msra.mxu0 0.0
    %1201 = vmatprep.subr.mxu0 0.0
    %1202 = vmatpush1.xpose.msra.mxu0 0.0
    %1203 = vmatprep.subr.mxu0 0.0
    %1204 = vmatpush1.xpose.msra.mxu0 0.0
    %1205 = vmatprep.subr.mxu0 0.0
    %1206 = vmatpush1.xpose.msra.mxu0 0.0
    %1207 = vmatprep.subr.mxu0 0.0
    %1208 = vmatpush1.xpose.msra.mxu0 0.0
    %1209 = vmatprep.subr.mxu0 0.0
    %1210 = vmatpush1.xpose.msra.mxu0 0.0
    %1211 = vmatprep.mubr.f32.mxu0 0.0
    %1212 = vmatmul.mubr.f32.gmra.mrb[0].mxu0 %v1143
    %v1213 = vpop.f32.mrb[0].mxu0
    %v1214 = vadd.f32 0.0, %v1213
    %v1215 = vpop.f32.mrb[0].mxu0
    %1216 = vdwg.mxu0
    %v1217 = vmul.f32 %v1214, 0.5
    %v1218 = vsel %vm390, %v1217, -inf
    %1219 = vmax.xlane.f32.xlu0 %v1218
    %v1220 = vpop.xlane.xlu0 %1219
    %v1221 = vsub.f32 %v1217, %v1220
    %v1222 = vmul.f32 %v1221, 1.442695
    %v1223 = vpow.pop %v1222
    %v1224 = vsel %vm390, %v1223, 0.0
    %1225 = vadd.xlane.f32.xlu0 %v1224
    %v1226 = vpop.xlane.xlu0 %1225
    %v1227 = vrcp.pop %v1226
    %v1228 = vmul.f32 %v1223, %v1227
    %1229 = vrot.lane.b32.xlu0 %v291, 44
    %v1230 = vpop.permute.xlu0 %1229
    %v1233 = vsel %vm390, %v1228, 0
    %1235 = vmatprep.subr.mxu0 0.0
    %1236 = vmatpush1.msra.mxu0 %v1230
    %1237 = vmatprep.subr.mxu0 0.0
    %1238 = vmatpush1.msra.mxu0 0.0
    %1239 = vmatprep.subr.mxu0 0.0
    %1240 = vmatpush1.msra.mxu0 0.0
    %1241 = vmatprep.subr.mxu0 0.0
    %1242 = vmatpush1.msra.mxu0 0.0
    %1243 = vmatprep.subr.mxu0 0.0
    %1244 = vmatpush1.msra.mxu0 0.0
    %1245 = vmatprep.subr.mxu0 0.0
    %1246 = vmatpush1.msra.mxu0 0.0
    %1247 = vmatprep.subr.mxu0 0.0
    %1248 = vmatpush1.msra.mxu0 0.0
    %1249 = vmatprep.subr.mxu0 0.0
    %1250 = vmatpush1.msra.mxu0 0.0
    %1251 = vmatprep.subr.mxu0 0.0
    %1252 = vmatpush1.msra.mxu0 0.0
    %1253 = vmatprep.subr.mxu0 0.0
    %1254 = vmatpush1.msra.mxu0 0.0
    %1255 = vmatprep.subr.mxu0 0.0
    %1256 = vmatpush1.msra.mxu0 0.0
    %1257 = vmatprep.subr.mxu0 0.0
    %1258 = vmatpush1.msra.mxu0 0.0
    %1259 = vmatprep.subr.mxu0 0.0
    %1260 = vmatpush1.msra.mxu0 0.0
    %1261 = vmatprep.subr.mxu0 0.0
    %1262 = vmatpush1.msra.mxu0 0.0
    %1263 = vmatprep.subr.mxu0 0.0
    %1264 = vmatpush1.msra.mxu0 0.0
    %1265 = vmatprep.subr.mxu0 0.0
    %1266 = vmatpush1.msra.mxu0 0.0
    %1267 = vmatprep.subr.mxu0 0.0
    %1268 = vmatpush1.msra.mxu0 0.0
    %1269 = vmatprep.subr.mxu0 0.0
    %1270 = vmatpush1.msra.mxu0 0.0
    %1271 = vmatprep.subr.mxu0 0.0
    %1272 = vmatpush1.msra.mxu0 0.0
    %1273 = vmatprep.subr.mxu0 0.0
    %1274 = vmatpush1.msra.mxu0 0.0
    %1275 = vmatprep.subr.mxu0 0.0
    %1276 = vmatpush1.msra.mxu0 0.0
    %1277 = vmatprep.subr.mxu0 0.0
    %1278 = vmatpush1.msra.mxu0 0.0
    %1279 = vmatprep.subr.mxu0 0.0
    %1280 = vmatpush1.msra.mxu0 0.0
    %1281 = vmatprep.subr.mxu0 0.0
    %1282 = vmatpush1.msra.mxu0 0.0
    %1283 = vmatprep.subr.mxu0 0.0
    %1284 = vmatpush1.msra.mxu0 0.0
    %1285 = vmatprep.subr.mxu0 0.0
    %1286 = vmatpush1.msra.mxu0 0.0
    %1287 = vmatprep.subr.mxu0 0.0
    %1288 = vmatpush1.msra.mxu0 0.0
    %1289 = vmatprep.subr.mxu0 0.0
    %1290 = vmatpush1.msra.mxu0 0.0
    %1291 = vmatprep.subr.mxu0 0.0
    %1292 = vmatpush1.msra.mxu0 0.0
    %1293 = vmatprep.subr.mxu0 0.0
    %1294 = vmatpush1.msra.mxu0 0.0
    %1295 = vmatprep.subr.mxu0 0.0
    %1296 = vmatpush1.msra.mxu0 0.0
    %1297 = vmatprep.subr.mxu0 0.0
    %1298 = vmatpush1.msra.mxu0 0.0
    %1299 = vmatprep.mubr.f32.mxu0 0.0
    %1300 = vmatmul.mubr.f32.gmra.mrb[0].mxu0 %v1233
    %v1301 = vpop.f32.mrb[0].mxu0
    %v1302 = vadd.f32 0.0, %v1301
    %v1303 = vpop.f32.mrb[0].mxu0
    %1304 = vdwg.mxu0
    %1305 = vrot.lane.b32.xlu0 %v193, 104
    %v1306 = vpop.permute.xlu0 %1305
    %1307 = vrot.lane.b32.xlu0 %v193, 40
    %v1308 = vpop.permute.xlu0 %1307
    %v1309 = vsel %vm314, %v1306, 0
    %v1311 = vsel %vm314, %v1308, 0
    %1313 = vmatprep.subr.mxu0 0.0
    %1314 = vmatpush1.xpose.msra.mxu0 %v1311
    %1315 = vmatprep.subr.mxu0 0.0
    %1316 = vmatpush1.xpose.msra.mxu0 0.0
    %1317 = vmatprep.subr.mxu0 0.0
    %1318 = vmatpush1.xpose.msra.mxu0 0.0
    %1319 = vmatprep.subr.mxu0 0.0
    %1320 = vmatpush1.xpose.msra.mxu0 0.0
    %1321 = vmatprep.subr.mxu0 0.0
    %1322 = vmatpush1.xpose.msra.mxu0 0.0
    %1323 = vmatprep.subr.mxu0 0.0
    %1324 = vmatpush1.xpose.msra.mxu0 0.0
    %1325 = vmatprep.subr.mxu0 0.0
    %1326 = vmatpush1.xpose.msra.mxu0 0.0
    %1327 = vmatprep.subr.mxu0 0.0
    %1328 = vmatpush1.xpose.msra.mxu0 0.0
    %1329 = vmatprep.subr.mxu0 0.0
    %1330 = vmatpush1.xpose.msra.mxu0 0.0
    %1331 = vmatprep.subr.mxu0 0.0
    %1332 = vmatpush1.xpose.msra.mxu0 0.0
    %1333 = vmatprep.subr.mxu0 0.0
    %1334 = vmatpush1.xpose.msra.mxu0 0.0
    %1335 = vmatprep.subr.mxu0 0.0
    %1336 = vmatpush1.xpose.msra.mxu0 0.0
    %1337 = vmatprep.subr.mxu0 0.0
    %1338 = vmatpush1.xpose.msra.mxu0 0.0
    %1339 = vmatprep.subr.mxu0 0.0
    %1340 = vmatpush1.xpose.msra.mxu0 0.0
    %1341 = vmatprep.subr.mxu0 0.0
    %1342 = vmatpush1.xpose.msra.mxu0 0.0
    %1343 = vmatprep.subr.mxu0 0.0
    %1344 = vmatpush1.xpose.msra.mxu0 0.0
    %1345 = vmatprep.subr.mxu0 0.0
    %1346 = vmatpush1.xpose.msra.mxu0 0.0
    %1347 = vmatprep.subr.mxu0 0.0
    %1348 = vmatpush1.xpose.msra.mxu0 0.0
    %1349 = vmatprep.subr.mxu0 0.0
    %1350 = vmatpush1.xpose.msra.mxu0 0.0
    %1351 = vmatprep.subr.mxu0 0.0
    %1352 = vmatpush1.xpose.msra.mxu0 0.0
    %1353 = vmatprep.subr.mxu0 0.0
    %1354 = vmatpush1.xpose.msra.mxu0 0.0
    %1355 = vmatprep.subr.mxu0 0.0
    %1356 = vmatpush1.xpose.msra.mxu0 0.0
    %1357 = vmatprep.subr.mxu0 0.0
    %1358 = vmatpush1.xpose.msra.mxu0 0.0
    %1359 = vmatprep.subr.mxu0 0.0
    %1360 = vmatpush1.xpose.msra.mxu0 0.0
    %1361 = vmatprep.subr.mxu0 0.0
    %1362 = vmatpush1.xpose.msra.mxu0 0.0
    %1363 = vmatprep.subr.mxu0 0.0
    %1364 = vmatpush1.xpose.msra.mxu0 0.0
    %1365 = vmatprep.subr.mxu0 0.0
    %1366 = vmatpush1.xpose.msra.mxu0 0.0
    %1367 = vmatprep.subr.mxu0 0.0
    %1368 = vmatpush1.xpose.msra.mxu0 0.0
    %1369 = vmatprep.subr.mxu0 0.0
    %1370 = vmatpush1.xpose.msra.mxu0 0.0
    %1371 = vmatprep.subr.mxu0 0.0
    %1372 = vmatpush1.xpose.msra.mxu0 0.0
    %1373 = vmatprep.subr.mxu0 0.0
    %1374 = vmatpush1.xpose.msra.mxu0 0.0
    %1375 = vmatprep.subr.mxu0 0.0
    %1376 = vmatpush1.xpose.msra.mxu0 0.0
    %1377 = vmatprep.mubr.f32.mxu0 0.0
    %1378 = vmatmul.mubr.f32.gmra.mrb[0].mxu0 %v1309
    %v1379 = vpop.f32.mrb[0].mxu0
    %v1380 = vadd.f32 0.0, %v1379
    %v1381 = vpop.f32.mrb[0].mxu0
    %1382 = vdwg.mxu0
    %v1383 = vmul.f32 %v1380, 0.5
    %v1384 = vsel %vm390, %v1383, -inf
    %1385 = vmax.xlane.f32.xlu0 %v1384
    %v1386 = vpop.xlane.xlu0 %1385
    %v1387 = vsub.f32 %v1383, %v1386
    %v1388 = vmul.f32 %v1387, 1.442695
    %v1389 = vpow.pop %v1388
    %v1390 = vsel %vm390, %v1389, 0.0
    %1391 = vadd.xlane.f32.xlu0 %v1390
    %v1392 = vpop.xlane.xlu0 %1391
    %v1393 = vrcp.pop %v1392
    %v1394 = vmul.f32 %v1389, %v1393
    %1395 = vrot.lane.b32.xlu0 %v291, 40
    %v1396 = vpop.permute.xlu0 %1395
    %v1399 = vsel %vm390, %v1394, 0
    %1401 = vmatprep.subr.mxu0 0.0
    %1402 = vmatpush1.msra.mxu0 %v1396
    %1403 = vmatprep.subr.mxu0 0.0
    %1404 = vmatpush1.msra.mxu0 0.0
    %1405 = vmatprep.subr.mxu0 0.0
    %1406 = vmatpush1.msra.mxu0 0.0
    %1407 = vmatprep.subr.mxu0 0.0
    %1408 = vmatpush1.msra.mxu0 0.0
    %1409 = vmatprep.subr.mxu0 0.0
    %1410 = vmatpush1.msra.mxu0 0.0
    %1411 = vmatprep.subr.mxu0 0.0
    %1412 = vmatpush1.msra.mxu0 0.0
    %1413 = vmatprep.subr.mxu0 0.0
    %1414 = vmatpush1.msra.mxu0 0.0
    %1415 = vmatprep.subr.mxu0 0.0
    %1416 = vmatpush1.msra.mxu0 0.0
    %1417 = vmatprep.subr.mxu0 0.0
    %1418 = vmatpush1.msra.mxu0 0.0
    %1419 = vmatprep.subr.mxu0 0.0
    %1420 = vmatpush1.msra.mxu0 0.0
    %1421 = vmatprep.subr.mxu0 0.0
    %1422 = vmatpush1.msra.mxu0 0.0
    %1423 = vmatprep.subr.mxu0 0.0
    %1424 = vmatpush1.msra.mxu0 0.0
    %1425 = vmatprep.subr.mxu0 0.0
    %1426 = vmatpush1.msra.mxu0 0.0
    %1427 = vmatprep.subr.mxu0 0.0
    %1428 = vmatpush1.msra.mxu0 0.0
    %1429 = vmatprep.subr.mxu0 0.0
    %1430 = vmatpush1.msra.mxu0 0.0
    %1431 = vmatprep.subr.mxu0 0.0
    %1432 = vmatpush1.msra.mxu0 0.0
    %1433 = vmatprep.subr.mxu0 0.0
    %1434 = vmatpush1.msra.mxu0 0.0
    %1435 = vmatprep.subr.mxu0 0.0
    %1436 = vmatpush1.msra.mxu0 0.0
    %1437 = vmatprep.subr.mxu0 0.0
    %1438 = vmatpush1.msra.mxu0 0.0
    %1439 = vmatprep.subr.mxu0 0.0
    %1440 = vmatpush1.msra.mxu0 0.0
    %1441 = vmatprep.subr.mxu0 0.0
    %1442 = vmatpush1.msra.mxu0 0.0
    %1443 = vmatprep.subr.mxu0 0.0
    %1444 = vmatpush1.msra.mxu0 0.0
    %1445 = vmatprep.subr.mxu0 0.0
    %1446 = vmatpush1.msra.mxu0 0.0
    %1447 = vmatprep.subr.mxu0 0.0
    %1448 = vmatpush1.msra.mxu0 0.0
    %1449 = vmatprep.subr.mxu0 0.0
    %1450 = vmatpush1.msra.mxu0 0.0
    %1451 = vmatprep.subr.mxu0 0.0
    %1452 = vmatpush1.msra.mxu0 0.0
    %1453 = vmatprep.subr.mxu0 0.0
    %1454 = vmatpush1.msra.mxu0 0.0
    %1455 = vmatprep.subr.mxu0 0.0
    %1456 = vmatpush1.msra.mxu0 0.0
    %1457 = vmatprep.subr.mxu0 0.0
    %1458 = vmatpush1.msra.mxu0 0.0
    %1459 = vmatprep.subr.mxu0 0.0
    %1460 = vmatpush1.msra.mxu0 0.0
    %1461 = vmatprep.subr.mxu0 0.0
    %1462 = vmatpush1.msra.mxu0 0.0
    %1463 = vmatprep.subr.mxu0 0.0
    %1464 = vmatpush1.msra.mxu0 0.0
    %1465 = vmatprep.mubr.f32.mxu0 0.0
    %1466 = vmatmul.mubr.f32.gmra.mrb[0].mxu0 %v1399
    %v1467 = vpop.f32.mrb[0].mxu0
    %v1468 = vadd.f32 0.0, %v1467
    %v1469 = vpop.f32.mrb[0].mxu0
    %1470 = vdwg.mxu0
    %1471 = vrot.lane.b32.xlu0 %v193, 100
    %v1472 = vpop.permute.xlu0 %1471
    %1473 = vrot.lane.b32.xlu0 %v193, 36
    %v1474 = vpop.permute.xlu0 %1473
    %v1475 = vsel %vm314, %v1472, 0
    %v1477 = vsel %vm314, %v1474, 0
    %1479 = vmatprep.subr.mxu0 0.0
    %1480 = vmatpush1.xpose.msra.mxu0 %v1477
    %1481 = vmatprep.subr.mxu0 0.0
    %1482 = vmatpush1.xpose.msra.mxu0 0.0
    %1483 = vmatprep.subr.mxu0 0.0
    %1484 = vmatpush1.xpose.msra.mxu0 0.0
    %1485 = vmatprep.subr.mxu0 0.0
    %1486 = vmatpush1.xpose.msra.mxu0 0.0
    %1487 = vmatprep.subr.mxu0 0.0
    %1488 = vmatpush1.xpose.msra.mxu0 0.0
    %1489 = vmatprep.subr.mxu0 0.0
    %1490 = vmatpush1.xpose.msra.mxu0 0.0
    %1491 = vmatprep.subr.mxu0 0.0
    %1492 = vmatpush1.xpose.msra.mxu0 0.0
    %1493 = vmatprep.subr.mxu0 0.0
    %1494 = vmatpush1.xpose.msra.mxu0 0.0
    %1495 = vmatprep.subr.mxu0 0.0
    %1496 = vmatpush1.xpose.msra.mxu0 0.0
    %1497 = vmatprep.subr.mxu0 0.0
    %1498 = vmatpush1.xpose.msra.mxu0 0.0
    %1499 = vmatprep.subr.mxu0 0.0
    %1500 = vmatpush1.xpose.msra.mxu0 0.0
    %1501 = vmatprep.subr.mxu0 0.0
    %1502 = vmatpush1.xpose.msra.mxu0 0.0
    %1503 = vmatprep.subr.mxu0 0.0
    %1504 = vmatpush1.xpose.msra.mxu0 0.0
    %1505 = vmatprep.subr.mxu0 0.0
    %1506 = vmatpush1.xpose.msra.mxu0 0.0
    %1507 = vmatprep.subr.mxu0 0.0
    %1508 = vmatpush1.xpose.msra.mxu0 0.0
    %1509 = vmatprep.subr.mxu0 0.0
    %1510 = vmatpush1.xpose.msra.mxu0 0.0
    %1511 = vmatprep.subr.mxu0 0.0
    %1512 = vmatpush1.xpose.msra.mxu0 0.0
    %1513 = vmatprep.subr.mxu0 0.0
    %1514 = vmatpush1.xpose.msra.mxu0 0.0
    %1515 = vmatprep.subr.mxu0 0.0
    %1516 = vmatpush1.xpose.msra.mxu0 0.0
    %1517 = vmatprep.subr.mxu0 0.0
    %1518 = vmatpush1.xpose.msra.mxu0 0.0
    %1519 = vmatprep.subr.mxu0 0.0
    %1520 = vmatpush1.xpose.msra.mxu0 0.0
    %1521 = vmatprep.subr.mxu0 0.0
    %1522 = vmatpush1.xpose.msra.mxu0 0.0
    %1523 = vmatprep.subr.mxu0 0.0
    %1524 = vmatpush1.xpose.msra.mxu0 0.0
    %1525 = vmatprep.subr.mxu0 0.0
    %1526 = vmatpush1.xpose.msra.mxu0 0.0
    %1527 = vmatprep.subr.mxu0 0.0
    %1528 = vmatpush1.xpose.msra.mxu0 0.0
    %1529 = vmatprep.subr.mxu0 0.0
    %1530 = vmatpush1.xpose.msra.mxu0 0.0
    %1531 = vmatprep.subr.mxu0 0.0
    %1532 = vmatpush1.xpose.msra.mxu0 0.0
    %1533 = vmatprep.subr.mxu0 0.0
    %1534 = vmatpush1.xpose.msra.mxu0 0.0
    %1535 = vmatprep.subr.mxu0 0.0
    %1536 = vmatpush1.xpose.msra.mxu0 0.0
    %1537 = vmatprep.subr.mxu0 0.0
    %1538 = vmatpush1.xpose.msra.mxu0 0.0
    %1539 = vmatprep.subr.mxu0 0.0
    %1540 = vmatpush1.xpose.msra.mxu0 0.0
    %1541 = vmatprep.subr.mxu0 0.0
    %1542 = vmatpush1.xpose.msra.mxu0 0.0
    %1543 = vmatprep.mubr.f32.mxu0 0.0
    %1544 = vmatmul.mubr.f32.gmra.mrb[0].mxu0 %v1475
    %v1545 = vpop.f32.mrb[0].mxu0
    %v1546 = vadd.f32 0.0, %v1545
    %v1547 = vpop.f32.mrb[0].mxu0
    %1548 = vdwg.mxu0
    %v1549 = vmul.f32 %v1546, 0.5
    %v1550 = vsel %vm390, %v1549, -inf
    %1551 = vmax.xlane.f32.xlu0 %v1550
    %v1552 = vpop.xlane.xlu0 %1551
    %v1553 = vsub.f32 %v1549, %v1552
    %v1554 = vmul.f32 %v1553, 1.442695
    %v1555 = vpow.pop %v1554
    %v1556 = vsel %vm390, %v1555, 0.0
    %1557 = vadd.xlane.f32.xlu0 %v1556
    %v1558 = vpop.xlane.xlu0 %1557
    %v1559 = vrcp.pop %v1558
    %v1560 = vmul.f32 %v1555, %v1559
    %1561 = vrot.lane.b32.xlu0 %v291, 36
    %v1562 = vpop.permute.xlu0 %1561
    %v1565 = vsel %vm390, %v1560, 0
    %1567 = vmatprep.subr.mxu0 0.0
    %1568 = vmatpush1.msra.mxu0 %v1562
    %1569 = vmatprep.subr.mxu0 0.0
    %1570 = vmatpush1.msra.mxu0 0.0
    %1571 = vmatprep.subr.mxu0 0.0
    %1572 = vmatpush1.msra.mxu0 0.0
    %1573 = vmatprep.subr.mxu0 0.0
    %1574 = vmatpush1.msra.mxu0 0.0
    %1575 = vmatprep.subr.mxu0 0.0
    %1576 = vmatpush1.msra.mxu0 0.0
    %1577 = vmatprep.subr.mxu0 0.0
    %1578 = vmatpush1.msra.mxu0 0.0
    %1579 = vmatprep.subr.mxu0 0.0
    %1580 = vmatpush1.msra.mxu0 0.0
    %1581 = vmatprep.subr.mxu0 0.0
    %1582 = vmatpush1.msra.mxu0 0.0
    %1583 = vmatprep.subr.mxu0 0.0
    %1584 = vmatpush1.msra.mxu0 0.0
    %1585 = vmatprep.subr.mxu0 0.0
    %1586 = vmatpush1.msra.mxu0 0.0
    %1587 = vmatprep.subr.mxu0 0.0
    %1588 = vmatpush1.msra.mxu0 0.0
    %1589 = vmatprep.subr.mxu0 0.0
    %1590 = vmatpush1.msra.mxu0 0.0
    %1591 = vmatprep.subr.mxu0 0.0
    %1592 = vmatpush1.msra.mxu0 0.0
    %1593 = vmatprep.subr.mxu0 0.0
    %1594 = vmatpush1.msra.mxu0 0.0
    %1595 = vmatprep.subr.mxu0 0.0
    %1596 = vmatpush1.msra.mxu0 0.0
    %1597 = vmatprep.subr.mxu0 0.0
    %1598 = vmatpush1.msra.mxu0 0.0
    %1599 = vmatprep.subr.mxu0 0.0
    %1600 = vmatpush1.msra.mxu0 0.0
    %1601 = vmatprep.subr.mxu0 0.0
    %1602 = vmatpush1.msra.mxu0 0.0
    %1603 = vmatprep.subr.mxu0 0.0
    %1604 = vmatpush1.msra.mxu0 0.0
    %1605 = vmatprep.subr.mxu0 0.0
    %1606 = vmatpush1.msra.mxu0 0.0
    %1607 = vmatprep.subr.mxu0 0.0
    %1608 = vmatpush1.msra.mxu0 0.0
    %1609 = vmatprep.subr.mxu0 0.0
    %1610 = vmatpush1.msra.mxu0 0.0
    %1611 = vmatprep.subr.mxu0 0.0
    %1612 = vmatpush1.msra.mxu0 0.0
    %1613 = vmatprep.subr.mxu0 0.0
    %1614 = vmatpush1.msra.mxu0 0.0
    %1615 = vmatprep.subr.mxu0 0.0
    %1616 = vmatpush1.msra.mxu0 0.0
    %1617 = vmatprep.subr.mxu0 0.0
    %1618 = vmatpush1.msra.mxu0 0.0
    %1619 = vmatprep.subr.mxu0 0.0
    %1620 = vmatpush1.msra.mxu0 0.0
    %1621 = vmatprep.subr.mxu0 0.0
    %1622 = vmatpush1.msra.mxu0 0.0
    %1623 = vmatprep.subr.mxu0 0.0
    %1624 = vmatpush1.msra.mxu0 0.0
    %1625 = vmatprep.subr.mxu0 0.0
    %1626 = vmatpush1.msra.mxu0 0.0
    %1627 = vmatprep.subr.mxu0 0.0
    %1628 = vmatpush1.msra.mxu0 0.0
    %1629 = vmatprep.subr.mxu0 0.0
    %1630 = vmatpush1.msra.mxu0 0.0
    %1631 = vmatprep.mubr.f32.mxu0 0.0
    %1632 = vmatmul.mubr.f32.gmra.mrb[0].mxu0 %v1565
    %v1633 = vpop.f32.mrb[0].mxu0
    %v1634 = vadd.f32 0.0, %v1633
    %v1635 = vpop.f32.mrb[0].mxu0
    %1636 = vdwg.mxu0
    %1637 = vrot.lane.b32.xlu0 %v193, 96
    %v1638 = vpop.permute.xlu0 %1637
    %1639 = vrot.lane.b32.xlu0 %v193, 32
    %v1640 = vpop.permute.xlu0 %1639
    %v1641 = vsel %vm314, %v1638, 0
    %v1643 = vsel %vm314, %v1640, 0
    %1645 = vmatprep.subr.mxu0 0.0
    %1646 = vmatpush1.xpose.msra.mxu0 %v1643
    %1647 = vmatprep.subr.mxu0 0.0
    %1648 = vmatpush1.xpose.msra.mxu0 0.0
    %1649 = vmatprep.subr.mxu0 0.0
    %1650 = vmatpush1.xpose.msra.mxu0 0.0
    %1651 = vmatprep.subr.mxu0 0.0
    %1652 = vmatpush1.xpose.msra.mxu0 0.0
    %1653 = vmatprep.subr.mxu0 0.0
    %1654 = vmatpush1.xpose.msra.mxu0 0.0
    %1655 = vmatprep.subr.mxu0 0.0
    %1656 = vmatpush1.xpose.msra.mxu0 0.0
    %1657 = vmatprep.subr.mxu0 0.0
    %1658 = vmatpush1.xpose.msra.mxu0 0.0
    %1659 = vmatprep.subr.mxu0 0.0
    %1660 = vmatpush1.xpose.msra.mxu0 0.0
    %1661 = vmatprep.subr.mxu0 0.0
    %1662 = vmatpush1.xpose.msra.mxu0 0.0
    %1663 = vmatprep.subr.mxu0 0.0
    %1664 = vmatpush1.xpose.msra.mxu0 0.0
    %1665 = vmatprep.subr.mxu0 0.0
    %1666 = vmatpush1.xpose.msra.mxu0 0.0
    %1667 = vmatprep.subr.mxu0 0.0
    %1668 = vmatpush1.xpose.msra.mxu0 0.0
    %1669 = vmatprep.subr.mxu0 0.0
    %1670 = vmatpush1.xpose.msra.mxu0 0.0
    %1671 = vmatprep.subr.mxu0 0.0
    %1672 = vmatpush1.xpose.msra.mxu0 0.0
    %1673 = vmatprep.subr.mxu0 0.0
    %1674 = vmatpush1.xpose.msra.mxu0 0.0
    %1675 = vmatprep.subr.mxu0 0.0
    %1676 = vmatpush1.xpose.msra.mxu0 0.0
    %1677 = vmatprep.subr.mxu0 0.0
    %1678 = vmatpush1.xpose.msra.mxu0 0.0
    %1679 = vmatprep.subr.mxu0 0.0
    %1680 = vmatpush1.xpose.msra.mxu0 0.0
    %1681 = vmatprep.subr.mxu0 0.0
    %1682 = vmatpush1.xpose.msra.mxu0 0.0
    %1683 = vmatprep.subr.mxu0 0.0
    %1684 = vmatpush1.xpose.msra.mxu0 0.0
    %1685 = vmatprep.subr.mxu0 0.0
    %1686 = vmatpush1.xpose.msra.mxu0 0.0
    %1687 = vmatprep.subr.mxu0 0.0
    %1688 = vmatpush1.xpose.msra.mxu0 0.0
    %1689 = vmatprep.subr.mxu0 0.0
    %1690 = vmatpush1.xpose.msra.mxu0 0.0
    %1691 = vmatprep.subr.mxu0 0.0
    %1692 = vmatpush1.xpose.msra.mxu0 0.0
    %1693 = vmatprep.subr.mxu0 0.0
    %1694 = vmatpush1.xpose.msra.mxu0 0.0
    %1695 = vmatprep.subr.mxu0 0.0
    %1696 = vmatpush1.xpose.msra.mxu0 0.0
    %1697 = vmatprep.subr.mxu0 0.0
    %1698 = vmatpush1.xpose.msra.mxu0 0.0
    %1699 = vmatprep.subr.mxu0 0.0
    %1700 = vmatpush1.xpose.msra.mxu0 0.0
    %1701 = vmatprep.subr.mxu0 0.0
    %1702 = vmatpush1.xpose.msra.mxu0 0.0
    %1703 = vmatprep.subr.mxu0 0.0
    %1704 = vmatpush1.xpose.msra.mxu0 0.0
    %1705 = vmatprep.subr.mxu0 0.0
    %1706 = vmatpush1.xpose.msra.mxu0 0.0
    %1707 = vmatprep.subr.mxu0 0.0
    %1708 = vmatpush1.xpose.msra.mxu0 0.0
    %1709 = vmatprep.mubr.f32.mxu0 0.0
    %1710 = vmatmul.mubr.f32.gmra.mrb[0].mxu0 %v1641
    %v1711 = vpop.f32.mrb[0].mxu0
    %v1712 = vadd.f32 0.0, %v1711
    %v1713 = vpop.f32.mrb[0].mxu0
    %1714 = vdwg.mxu0
    %v1715 = vmul.f32 %v1712, 0.5
    %v1716 = vsel %vm390, %v1715, -inf
    %1717 = vmax.xlane.f32.xlu0 %v1716
    %v1718 = vpop.xlane.xlu0 %1717
    %v1719 = vsub.f32 %v1715, %v1718
    %v1720 = vmul.f32 %v1719, 1.442695
    %v1721 = vpow.pop %v1720
    %v1722 = vsel %vm390, %v1721, 0.0
    %1723 = vadd.xlane.f32.xlu0 %v1722
    %v1724 = vpop.xlane.xlu0 %1723
    %v1725 = vrcp.pop %v1724
    %v1726 = vmul.f32 %v1721, %v1725
    %1727 = vrot.lane.b32.xlu0 %v291, 32
    %v1728 = vpop.permute.xlu0 %1727
    %v1731 = vsel %vm390, %v1726, 0
    %1733 = vmatprep.subr.mxu0 0.0
    %1734 = vmatpush1.msra.mxu0 %v1728
    %1735 = vmatprep.subr.mxu0 0.0
    %1736 = vmatpush1.msra.mxu0 0.0
    %1737 = vmatprep.subr.mxu0 0.0
    %1738 = vmatpush1.msra.mxu0 0.0
    %1739 = vmatprep.subr.mxu0 0.0
    %1740 = vmatpush1.msra.mxu0 0.0
    %1741 = vmatprep.subr.mxu0 0.0
    %1742 = vmatpush1.msra.mxu0 0.0
    %1743 = vmatprep.subr.mxu0 0.0
    %1744 = vmatpush1.msra.mxu0 0.0
    %1745 = vmatprep.subr.mxu0 0.0
    %1746 = vmatpush1.msra.mxu0 0.0
    %1747 = vmatprep.subr.mxu0 0.0
    %1748 = vmatpush1.msra.mxu0 0.0
    %1749 = vmatprep.subr.mxu0 0.0
    %1750 = vmatpush1.msra.mxu0 0.0
    %1751 = vmatprep.subr.mxu0 0.0
    %1752 = vmatpush1.msra.mxu0 0.0
    %1753 = vmatprep.subr.mxu0 0.0
    %1754 = vmatpush1.msra.mxu0 0.0
    %1755 = vmatprep.subr.mxu0 0.0
    %1756 = vmatpush1.msra.mxu0 0.0
    %1757 = vmatprep.subr.mxu0 0.0
    %1758 = vmatpush1.msra.mxu0 0.0
    %1759 = vmatprep.subr.mxu0 0.0
    %1760 = vmatpush1.msra.mxu0 0.0
    %1761 = vmatprep.subr.mxu0 0.0
    %1762 = vmatpush1.msra.mxu0 0.0
    %1763 = vmatprep.subr.mxu0 0.0
    %1764 = vmatpush1.msra.mxu0 0.0
    %1765 = vmatprep.subr.mxu0 0.0
    %1766 = vmatpush1.msra.mxu0 0.0
    %1767 = vmatprep.subr.mxu0 0.0
    %1768 = vmatpush1.msra.mxu0 0.0
    %1769 = vmatprep.subr.mxu0 0.0
    %1770 = vmatpush1.msra.mxu0 0.0
    %1771 = vmatprep.subr.mxu0 0.0
    %1772 = vmatpush1.msra.mxu0 0.0
    %1773 = vmatprep.subr.mxu0 0.0
    %1774 = vmatpush1.msra.mxu0 0.0
    %1775 = vmatprep.subr.mxu0 0.0
    %1776 = vmatpush1.msra.mxu0 0.0
    %1777 = vmatprep.subr.mxu0 0.0
    %1778 = vmatpush1.msra.mxu0 0.0
    %1779 = vmatprep.subr.mxu0 0.0
    %1780 = vmatpush1.msra.mxu0 0.0
    %1781 = vmatprep.subr.mxu0 0.0
    %1782 = vmatpush1.msra.mxu0 0.0
    %1783 = vmatprep.subr.mxu0 0.0
    %1784 = vmatpush1.msra.mxu0 0.0
    %1785 = vmatprep.subr.mxu0 0.0
    %1786 = vmatpush1.msra.mxu0 0.0
    %1787 = vmatprep.subr.mxu0 0.0
    %1788 = vmatpush1.msra.mxu0 0.0
    %1789 = vmatprep.subr.mxu0 0.0
    %1790 = vmatpush1.msra.mxu0 0.0
    %1791 = vmatprep.subr.mxu0 0.0
    %1792 = vmatpush1.msra.mxu0 0.0
    %1793 = vmatprep.subr.mxu0 0.0
    %1794 = vmatpush1.msra.mxu0 0.0
    %1795 = vmatprep.subr.mxu0 0.0
    %1796 = vmatpush1.msra.mxu0 0.0
    %1797 = vmatprep.mubr.f32.mxu0 0.0
    %1798 = vmatmul.mubr.f32.gmra.mrb[0].mxu0 %v1731
    %v1799 = vpop.f32.mrb[0].mxu0
    %v1800 = vadd.f32 0.0, %v1799
    %v1801 = vpop.f32.mrb[0].mxu0
    %1802 = vdwg.mxu0
    %1803 = vrot.lane.b32.xlu0 %v193, 92
    %v1804 = vpop.permute.xlu0 %1803
    %1805 = vrot.lane.b32.xlu0 %v193, 28
    %v1806 = vpop.permute.xlu0 %1805
    %v1807 = vsel %vm314, %v1804, 0
    %v1809 = vsel %vm314, %v1806, 0
    %1811 = vmatprep.subr.mxu0 0.0
    %1812 = vmatpush1.xpose.msra.mxu0 %v1809
    %1813 = vmatprep.subr.mxu0 0.0
    %1814 = vmatpush1.xpose.msra.mxu0 0.0
    %1815 = vmatprep.subr.mxu0 0.0
    %1816 = vmatpush1.xpose.msra.mxu0 0.0
    %1817 = vmatprep.subr.mxu0 0.0
    %1818 = vmatpush1.xpose.msra.mxu0 0.0
    %1819 = vmatprep.subr.mxu0 0.0
    %1820 = vmatpush1.xpose.msra.mxu0 0.0
    %1821 = vmatprep.subr.mxu0 0.0
    %1822 = vmatpush1.xpose.msra.mxu0 0.0
    %1823 = vmatprep.subr.mxu0 0.0
    %1824 = vmatpush1.xpose.msra.mxu0 0.0
    %1825 = vmatprep.subr.mxu0 0.0
    %1826 = vmatpush1.xpose.msra.mxu0 0.0
    %1827 = vmatprep.subr.mxu0 0.0
    %1828 = vmatpush1.xpose.msra.mxu0 0.0
    %1829 = vmatprep.subr.mxu0 0.0
    %1830 = vmatpush1.xpose.msra.mxu0 0.0
    %1831 = vmatprep.subr.mxu0 0.0
    %1832 = vmatpush1.xpose.msra.mxu0 0.0
    %1833 = vmatprep.subr.mxu0 0.0
    %1834 = vmatpush1.xpose.msra.mxu0 0.0
    %1835 = vmatprep.subr.mxu0 0.0
    %1836 = vmatpush1.xpose.msra.mxu0 0.0
    %1837 = vmatprep.subr.mxu0 0.0
    %1838 = vmatpush1.xpose.msra.mxu0 0.0
    %1839 = vmatprep.subr.mxu0 0.0
    %1840 = vmatpush1.xpose.msra.mxu0 0.0
    %1841 = vmatprep.subr.mxu0 0.0
    %1842 = vmatpush1.xpose.msra.mxu0 0.0
    %1843 = vmatprep.subr.mxu0 0.0
    %1844 = vmatpush1.xpose.msra.mxu0 0.0
    %1845 = vmatprep.subr.mxu0 0.0
    %1846 = vmatpush1.xpose.msra.mxu0 0.0
    %1847 = vmatprep.subr.mxu0 0.0
    %1848 = vmatpush1.xpose.msra.mxu0 0.0
    %1849 = vmatprep.subr.mxu0 0.0
    %1850 = vmatpush1.xpose.msra.mxu0 0.0
    %1851 = vmatprep.subr.mxu0 0.0
    %1852 = vmatpush1.xpose.msra.mxu0 0.0
    %1853 = vmatprep.subr.mxu0 0.0
    %1854 = vmatpush1.xpose.msra.mxu0 0.0
    %1855 = vmatprep.subr.mxu0 0.0
    %1856 = vmatpush1.xpose.msra.mxu0 0.0
    %1857 = vmatprep.subr.mxu0 0.0
    %1858 = vmatpush1.xpose.msra.mxu0 0.0
    %1859 = vmatprep.subr.mxu0 0.0
    %1860 = vmatpush1.xpose.msra.mxu0 0.0
    %1861 = vmatprep.subr.mxu0 0.0
    %1862 = vmatpush1.xpose.msra.mxu0 0.0
    %1863 = vmatprep.subr.mxu0 0.0
    %1864 = vmatpush1.xpose.msra.mxu0 0.0
    %1865 = vmatprep.subr.mxu0 0.0
    %1866 = vmatpush1.xpose.msra.mxu0 0.0
    %1867 = vmatprep.subr.mxu0 0.0
    %1868 = vmatpush1.xpose.msra.mxu0 0.0
    %1869 = vmatprep.subr.mxu0 0.0
    %1870 = vmatpush1.xpose.msra.mxu0 0.0
    %1871 = vmatprep.subr.mxu0 0.0
    %1872 = vmatpush1.xpose.msra.mxu0 0.0
    %1873 = vmatprep.subr.mxu0 0.0
    %1874 = vmatpush1.xpose.msra.mxu0 0.0
    %1875 = vmatprep.mubr.f32.mxu0 0.0
    %1876 = vmatmul.mubr.f32.gmra.mrb[0].mxu0 %v1807
    %v1877 = vpop.f32.mrb[0].mxu0
    %v1878 = vadd.f32 0.0, %v1877
    %v1879 = vpop.f32.mrb[0].mxu0
    %1880 = vdwg.mxu0
    %v1881 = vmul.f32 %v1878, 0.5
    %v1882 = vsel %vm390, %v1881, -inf
    %1883 = vmax.xlane.f32.xlu0 %v1882
    %v1884 = vpop.xlane.xlu0 %1883
    %v1885 = vsub.f32 %v1881, %v1884
    %v1886 = vmul.f32 %v1885, 1.442695
    %v1887 = vpow.pop %v1886
    %v1888 = vsel %vm390, %v1887, 0.0
    %1889 = vadd.xlane.f32.xlu0 %v1888
    %v1890 = vpop.xlane.xlu0 %1889
    %v1891 = vrcp.pop %v1890
    %v1892 = vmul.f32 %v1887, %v1891
    %1893 = vrot.lane.b32.xlu0 %v291, 28
    %v1894 = vpop.permute.xlu0 %1893
    %v1897 = vsel %vm390, %v1892, 0
    %1899 = vmatprep.subr.mxu0 0.0
    %1900 = vmatpush1.msra.mxu0 %v1894
    %1901 = vmatprep.subr.mxu0 0.0
    %1902 = vmatpush1.msra.mxu0 0.0
    %1903 = vmatprep.subr.mxu0 0.0
    %1904 = vmatpush1.msra.mxu0 0.0
    %1905 = vmatprep.subr.mxu0 0.0
    %1906 = vmatpush1.msra.mxu0 0.0
    %1907 = vmatprep.subr.mxu0 0.0
    %1908 = vmatpush1.msra.mxu0 0.0
    %1909 = vmatprep.subr.mxu0 0.0
    %1910 = vmatpush1.msra.mxu0 0.0
    %1911 = vmatprep.subr.mxu0 0.0
    %1912 = vmatpush1.msra.mxu0 0.0
    %1913 = vmatprep.subr.mxu0 0.0
    %1914 = vmatpush1.msra.mxu0 0.0
    %1915 = vmatprep.subr.mxu0 0.0
    %1916 = vmatpush1.msra.mxu0 0.0
    %1917 = vmatprep.subr.mxu0 0.0
    %1918 = vmatpush1.msra.mxu0 0.0
    %1919 = vmatprep.subr.mxu0 0.0
    %1920 = vmatpush1.msra.mxu0 0.0
    %1921 = vmatprep.subr.mxu0 0.0
    %1922 = vmatpush1.msra.mxu0 0.0
    %1923 = vmatprep.subr.mxu0 0.0
    %1924 = vmatpush1.msra.mxu0 0.0
    %1925 = vmatprep.subr.mxu0 0.0
    %1926 = vmatpush1.msra.mxu0 0.0
    %1927 = vmatprep.subr.mxu0 0.0
    %1928 = vmatpush1.msra.mxu0 0.0
    %1929 = vmatprep.subr.mxu0 0.0
    %1930 = vmatpush1.msra.mxu0 0.0
    %1931 = vmatprep.subr.mxu0 0.0
    %1932 = vmatpush1.msra.mxu0 0.0
    %1933 = vmatprep.subr.mxu0 0.0
    %1934 = vmatpush1.msra.mxu0 0.0
    %1935 = vmatprep.subr.mxu0 0.0
    %1936 = vmatpush1.msra.mxu0 0.0
    %1937 = vmatprep.subr.mxu0 0.0
    %1938 = vmatpush1.msra.mxu0 0.0
    %1939 = vmatprep.subr.mxu0 0.0
    %1940 = vmatpush1.msra.mxu0 0.0
    %1941 = vmatprep.subr.mxu0 0.0
    %1942 = vmatpush1.msra.mxu0 0.0
    %1943 = vmatprep.subr.mxu0 0.0
    %1944 = vmatpush1.msra.mxu0 0.0
    %1945 = vmatprep.subr.mxu0 0.0
    %1946 = vmatpush1.msra.mxu0 0.0
    %1947 = vmatprep.subr.mxu0 0.0
    %1948 = vmatpush1.msra.mxu0 0.0
    %1949 = vmatprep.subr.mxu0 0.0
    %1950 = vmatpush1.msra.mxu0 0.0
    %1951 = vmatprep.subr.mxu0 0.0
    %1952 = vmatpush1.msra.mxu0 0.0
    %1953 = vmatprep.subr.mxu0 0.0
    %1954 = vmatpush1.msra.mxu0 0.0
    %1955 = vmatprep.subr.mxu0 0.0
    %1956 = vmatpush1.msra.mxu0 0.0
    %1957 = vmatprep.subr.mxu0 0.0
    %1958 = vmatpush1.msra.mxu0 0.0
    %1959 = vmatprep.subr.mxu0 0.0
    %1960 = vmatpush1.msra.mxu0 0.0
    %1961 = vmatprep.subr.mxu0 0.0
    %1962 = vmatpush1.msra.mxu0 0.0
    %1963 = vmatprep.mubr.f32.mxu0 0.0
    %1964 = vmatmul.mubr.f32.gmra.mrb[0].mxu0 %v1897
    %v1965 = vpop.f32.mrb[0].mxu0
    %v1966 = vadd.f32 0.0, %v1965
    %v1967 = vpop.f32.mrb[0].mxu0
    %1968 = vdwg.mxu0
    %1969 = vrot.lane.b32.xlu0 %v193, 88
    %v1970 = vpop.permute.xlu0 %1969
    %1971 = vrot.lane.b32.xlu0 %v193, 24
    %v1972 = vpop.permute.xlu0 %1971
    %v1973 = vsel %vm314, %v1970, 0
    %v1975 = vsel %vm314, %v1972, 0
    %1977 = vmatprep.subr.mxu0 0.0
    %1978 = vmatpush1.xpose.msra.mxu0 %v1975
    %1979 = vmatprep.subr.mxu0 0.0
    %1980 = vmatpush1.xpose.msra.mxu0 0.0
    %1981 = vmatprep.subr.mxu0 0.0
    %1982 = vmatpush1.xpose.msra.mxu0 0.0
    %1983 = vmatprep.subr.mxu0 0.0
    %1984 = vmatpush1.xpose.msra.mxu0 0.0
    %1985 = vmatprep.subr.mxu0 0.0
    %1986 = vmatpush1.xpose.msra.mxu0 0.0
    %1987 = vmatprep.subr.mxu0 0.0
    %1988 = vmatpush1.xpose.msra.mxu0 0.0
    %1989 = vmatprep.subr.mxu0 0.0
    %1990 = vmatpush1.xpose.msra.mxu0 0.0
    %1991 = vmatprep.subr.mxu0 0.0
    %1992 = vmatpush1.xpose.msra.mxu0 0.0
    %1993 = vmatprep.subr.mxu0 0.0
    %1994 = vmatpush1.xpose.msra.mxu0 0.0
    %1995 = vmatprep.subr.mxu0 0.0
    %1996 = vmatpush1.xpose.msra.mxu0 0.0
    %1997 = vmatprep.subr.mxu0 0.0
    %1998 = vmatpush1.xpose.msra.mxu0 0.0
    %1999 = vmatprep.subr.mxu0 0.0
    %2000 = vmatpush1.xpose.msra.mxu0 0.0
    %2001 = vmatprep.subr.mxu0 0.0
    %2002 = vmatpush1.xpose.msra.mxu0 0.0
    %2003 = vmatprep.subr.mxu0 0.0
    %2004 = vmatpush1.xpose.msra.mxu0 0.0
    %2005 = vmatprep.subr.mxu0 0.0
    %2006 = vmatpush1.xpose.msra.mxu0 0.0
    %2007 = vmatprep.subr.mxu0 0.0
    %2008 = vmatpush1.xpose.msra.mxu0 0.0
    %2009 = vmatprep.subr.mxu0 0.0
    %2010 = vmatpush1.xpose.msra.mxu0 0.0
    %2011 = vmatprep.subr.mxu0 0.0
    %2012 = vmatpush1.xpose.msra.mxu0 0.0
    %2013 = vmatprep.subr.mxu0 0.0
    %2014 = vmatpush1.xpose.msra.mxu0 0.0
    %2015 = vmatprep.subr.mxu0 0.0
    %2016 = vmatpush1.xpose.msra.mxu0 0.0
    %2017 = vmatprep.subr.mxu0 0.0
    %2018 = vmatpush1.xpose.msra.mxu0 0.0
    %2019 = vmatprep.subr.mxu0 0.0
    %2020 = vmatpush1.xpose.msra.mxu0 0.0
    %2021 = vmatprep.subr.mxu0 0.0
    %2022 = vmatpush1.xpose.msra.mxu0 0.0
    %2023 = vmatprep.subr.mxu0 0.0
    %2024 = vmatpush1.xpose.msra.mxu0 0.0
    %2025 = vmatprep.subr.mxu0 0.0
    %2026 = vmatpush1.xpose.msra.mxu0 0.0
    %2027 = vmatprep.subr.mxu0 0.0
    %2028 = vmatpush1.xpose.msra.mxu0 0.0
    %2029 = vmatprep.subr.mxu0 0.0
    %2030 = vmatpush1.xpose.msra.mxu0 0.0
    %2031 = vmatprep.subr.mxu0 0.0
    %2032 = vmatpush1.xpose.msra.mxu0 0.0
    %2033 = vmatprep.subr.mxu0 0.0
    %2034 = vmatpush1.xpose.msra.mxu0 0.0
    %2035 = vmatprep.subr.mxu0 0.0
    %2036 = vmatpush1.xpose.msra.mxu0 0.0
    %2037 = vmatprep.subr.mxu0 0.0
    %2038 = vmatpush1.xpose.msra.mxu0 0.0
    %2039 = vmatprep.subr.mxu0 0.0
    %2040 = vmatpush1.xpose.msra.mxu0 0.0
    %2041 = vmatprep.mubr.f32.mxu0 0.0
    %2042 = vmatmul.mubr.f32.gmra.mrb[0].mxu0 %v1973
    %v2043 = vpop.f32.mrb[0].mxu0
    %v2044 = vadd.f32 0.0, %v2043
    %v2045 = vpop.f32.mrb[0].mxu0
    %2046 = vdwg.mxu0
    %v2047 = vmul.f32 %v2044, 0.5
    %v2048 = vsel %vm390, %v2047, -inf
    %2049 = vmax.xlane.f32.xlu0 %v2048
    %v2050 = vpop.xlane.xlu0 %2049
    %v2051 = vsub.f32 %v2047, %v2050
    %v2052 = vmul.f32 %v2051, 1.442695
    %v2053 = vpow.pop %v2052
    %v2054 = vsel %vm390, %v2053, 0.0
    %2055 = vadd.xlane.f32.xlu0 %v2054
    %v2056 = vpop.xlane.xlu0 %2055
    %v2057 = vrcp.pop %v2056
    %v2058 = vmul.f32 %v2053, %v2057
    %2059 = vrot.lane.b32.xlu0 %v291, 24
    %v2060 = vpop.permute.xlu0 %2059
    %v2063 = vsel %vm390, %v2058, 0
    %2065 = vmatprep.subr.mxu0 0.0
    %2066 = vmatpush1.msra.mxu0 %v2060
    %2067 = vmatprep.subr.mxu0 0.0
    %2068 = vmatpush1.msra.mxu0 0.0
    %2069 = vmatprep.subr.mxu0 0.0
    %2070 = vmatpush1.msra.mxu0 0.0
    %2071 = vmatprep.subr.mxu0 0.0
    %2072 = vmatpush1.msra.mxu0 0.0
    %2073 = vmatprep.subr.mxu0 0.0
    %2074 = vmatpush1.msra.mxu0 0.0
    %2075 = vmatprep.subr.mxu0 0.0
    %2076 = vmatpush1.msra.mxu0 0.0
    %2077 = vmatprep.subr.mxu0 0.0
    %2078 = vmatpush1.msra.mxu0 0.0
    %2079 = vmatprep.subr.mxu0 0.0
    %2080 = vmatpush1.msra.mxu0 0.0
    %2081 = vmatprep.subr.mxu0 0.0
    %2082 = vmatpush1.msra.mxu0 0.0
    %2083 = vmatprep.subr.mxu0 0.0
    %2084 = vmatpush1.msra.mxu0 0.0
    %2085 = vmatprep.subr.mxu0 0.0
    %2086 = vmatpush1.msra.mxu0 0.0
    %2087 = vmatprep.subr.mxu0 0.0
    %2088 = vmatpush1.msra.mxu0 0.0
    %2089 = vmatprep.subr.mxu0 0.0
    %2090 = vmatpush1.msra.mxu0 0.0
    %2091 = vmatprep.subr.mxu0 0.0
    %2092 = vmatpush1.msra.mxu0 0.0
    %2093 = vmatprep.subr.mxu0 0.0
    %2094 = vmatpush1.msra.mxu0 0.0
    %2095 = vmatprep.subr.mxu0 0.0
    %2096 = vmatpush1.msra.mxu0 0.0
    %2097 = vmatprep.subr.mxu0 0.0
    %2098 = vmatpush1.msra.mxu0 0.0
    %2099 = vmatprep.subr.mxu0 0.0
    %2100 = vmatpush1.msra.mxu0 0.0
    %2101 = vmatprep.subr.mxu0 0.0
    %2102 = vmatpush1.msra.mxu0 0.0
    %2103 = vmatprep.subr.mxu0 0.0
    %2104 = vmatpush1.msra.mxu0 0.0
    %2105 = vmatprep.subr.mxu0 0.0
    %2106 = vmatpush1.msra.mxu0 0.0
    %2107 = vmatprep.subr.mxu0 0.0
    %2108 = vmatpush1.msra.mxu0 0.0
    %2109 = vmatprep.subr.mxu0 0.0
    %2110 = vmatpush1.msra.mxu0 0.0
    %2111 = vmatprep.subr.mxu0 0.0
    %2112 = vmatpush1.msra.mxu0 0.0
    %2113 = vmatprep.subr.mxu0 0.0
    %2114 = vmatpush1.msra.mxu0 0.0
    %2115 = vmatprep.subr.mxu0 0.0
    %2116 = vmatpush1.msra.mxu0 0.0
    %2117 = vmatprep.subr.mxu0 0.0
    %2118 = vmatpush1.msra.mxu0 0.0
    %2119 = vmatprep.subr.mxu0 0.0
    %2120 = vmatpush1.msra.mxu0 0.0
    %2121 = vmatprep.subr.mxu0 0.0
    %2122 = vmatpush1.msra.mxu0 0.0
    %2123 = vmatprep.subr.mxu0 0.0
    %2124 = vmatpush1.msra.mxu0 0.0
    %2125 = vmatprep.subr.mxu0 0.0
    %2126 = vmatpush1.msra.mxu0 0.0
    %2127 = vmatprep.subr.mxu0 0.0
    %2128 = vmatpush1.msra.mxu0 0.0
    %2129 = vmatprep.mubr.f32.mxu0 0.0
    %2130 = vmatmul.mubr.f32.gmra.mrb[0].mxu0 %v2063
    %v2131 = vpop.f32.mrb[0].mxu0
    %v2132 = vadd.f32 0.0, %v2131
    %v2133 = vpop.f32.mrb[0].mxu0
    %2134 = vdwg.mxu0
    %2135 = vrot.lane.b32.xlu0 %v193, 84
    %v2136 = vpop.permute.xlu0 %2135
    %2137 = vrot.lane.b32.xlu0 %v193, 20
    %v2138 = vpop.permute.xlu0 %2137
    %v2139 = vsel %vm314, %v2136, 0
    %v2141 = vsel %vm314, %v2138, 0
    %2143 = vmatprep.subr.mxu0 0.0
    %2144 = vmatpush1.xpose.msra.mxu0 %v2141
    %2145 = vmatprep.subr.mxu0 0.0
    %2146 = vmatpush1.xpose.msra.mxu0 0.0
    %2147 = vmatprep.subr.mxu0 0.0
    %2148 = vmatpush1.xpose.msra.mxu0 0.0
    %2149 = vmatprep.subr.mxu0 0.0
    %2150 = vmatpush1.xpose.msra.mxu0 0.0
    %2151 = vmatprep.subr.mxu0 0.0
    %2152 = vmatpush1.xpose.msra.mxu0 0.0
    %2153 = vmatprep.subr.mxu0 0.0
    %2154 = vmatpush1.xpose.msra.mxu0 0.0
    %2155 = vmatprep.subr.mxu0 0.0
    %2156 = vmatpush1.xpose.msra.mxu0 0.0
    %2157 = vmatprep.subr.mxu0 0.0
    %2158 = vmatpush1.xpose.msra.mxu0 0.0
    %2159 = vmatprep.subr.mxu0 0.0
    %2160 = vmatpush1.xpose.msra.mxu0 0.0
    %2161 = vmatprep.subr.mxu0 0.0
    %2162 = vmatpush1.xpose.msra.mxu0 0.0
    %2163 = vmatprep.subr.mxu0 0.0
    %2164 = vmatpush1.xpose.msra.mxu0 0.0
    %2165 = vmatprep.subr.mxu0 0.0
    %2166 = vmatpush1.xpose.msra.mxu0 0.0
    %2167 = vmatprep.subr.mxu0 0.0
    %2168 = vmatpush1.xpose.msra.mxu0 0.0
    %2169 = vmatprep.subr.mxu0 0.0
    %2170 = vmatpush1.xpose.msra.mxu0 0.0
    %2171 = vmatprep.subr.mxu0 0.0
    %2172 = vmatpush1.xpose.msra.mxu0 0.0
    %2173 = vmatprep.subr.mxu0 0.0
    %2174 = vmatpush1.xpose.msra.mxu0 0.0
    %2175 = vmatprep.subr.mxu0 0.0
    %2176 = vmatpush1.xpose.msra.mxu0 0.0
    %2177 = vmatprep.subr.mxu0 0.0
    %2178 = vmatpush1.xpose.msra.mxu0 0.0
    %2179 = vmatprep.subr.mxu0 0.0
    %2180 = vmatpush1.xpose.msra.mxu0 0.0
    %2181 = vmatprep.subr.mxu0 0.0
    %2182 = vmatpush1.xpose.msra.mxu0 0.0
    %2183 = vmatprep.subr.mxu0 0.0
    %2184 = vmatpush1.xpose.msra.mxu0 0.0
    %2185 = vmatprep.subr.mxu0 0.0
    %2186 = vmatpush1.xpose.msra.mxu0 0.0
    %2187 = vmatprep.subr.mxu0 0.0
    %2188 = vmatpush1.xpose.msra.mxu0 0.0
    %2189 = vmatprep.subr.mxu0 0.0
    %2190 = vmatpush1.xpose.msra.mxu0 0.0
    %2191 = vmatprep.subr.mxu0 0.0
    %2192 = vmatpush1.xpose.msra.mxu0 0.0
    %2193 = vmatprep.subr.mxu0 0.0
    %2194 = vmatpush1.xpose.msra.mxu0 0.0
    %2195 = vmatprep.subr.mxu0 0.0
    %2196 = vmatpush1.xpose.msra.mxu0 0.0
    %2197 = vmatprep.subr.mxu0 0.0
    %2198 = vmatpush1.xpose.msra.mxu0 0.0
    %2199 = vmatprep.subr.mxu0 0.0
    %2200 = vmatpush1.xpose.msra.mxu0 0.0
    %2201 = vmatprep.subr.mxu0 0.0
    %2202 = vmatpush1.xpose.msra.mxu0 0.0
    %2203 = vmatprep.subr.mxu0 0.0
    %2204 = vmatpush1.xpose.msra.mxu0 0.0
    %2205 = vmatprep.subr.mxu0 0.0
    %2206 = vmatpush1.xpose.msra.mxu0 0.0
    %2207 = vmatprep.mubr.f32.mxu0 0.0
    %2208 = vmatmul.mubr.f32.gmra.mrb[0].mxu0 %v2139
    %v2209 = vpop.f32.mrb[0].mxu0
    %v2210 = vadd.f32 0.0, %v2209
    %v2211 = vpop.f32.mrb[0].mxu0
    %2212 = vdwg.mxu0
    %v2213 = vmul.f32 %v2210, 0.5
    %v2214 = vsel %vm390, %v2213, -inf
    %2215 = vmax.xlane.f32.xlu0 %v2214
    %v2216 = vpop.xlane.xlu0 %2215
    %v2217 = vsub.f32 %v2213, %v2216
    %v2218 = vmul.f32 %v2217, 1.442695
    %v2219 = vpow.pop %v2218
    %v2220 = vsel %vm390, %v2219, 0.0
    %2221 = vadd.xlane.f32.xlu0 %v2220
    %v2222 = vpop.xlane.xlu0 %2221
    %v2223 = vrcp.pop %v2222
    %v2224 = vmul.f32 %v2219, %v2223
    %2225 = vrot.lane.b32.xlu0 %v291, 20
    %v2226 = vpop.permute.xlu0 %2225
    %v2229 = vsel %vm390, %v2224, 0
    %2231 = vmatprep.subr.mxu0 0.0
    %2232 = vmatpush1.msra.mxu0 %v2226
    %2233 = vmatprep.subr.mxu0 0.0
    %2234 = vmatpush1.msra.mxu0 0.0
    %2235 = vmatprep.subr.mxu0 0.0
    %2236 = vmatpush1.msra.mxu0 0.0
    %2237 = vmatprep.subr.mxu0 0.0
    %2238 = vmatpush1.msra.mxu0 0.0
    %2239 = vmatprep.subr.mxu0 0.0
    %2240 = vmatpush1.msra.mxu0 0.0
    %2241 = vmatprep.subr.mxu0 0.0
    %2242 = vmatpush1.msra.mxu0 0.0
    %2243 = vmatprep.subr.mxu0 0.0
    %2244 = vmatpush1.msra.mxu0 0.0
    %2245 = vmatprep.subr.mxu0 0.0
    %2246 = vmatpush1.msra.mxu0 0.0
    %2247 = vmatprep.subr.mxu0 0.0
    %2248 = vmatpush1.msra.mxu0 0.0
    %2249 = vmatprep.subr.mxu0 0.0
    %2250 = vmatpush1.msra.mxu0 0.0
    %2251 = vmatprep.subr.mxu0 0.0
    %2252 = vmatpush1.msra.mxu0 0.0
    %2253 = vmatprep.subr.mxu0 0.0
    %2254 = vmatpush1.msra.mxu0 0.0
    %2255 = vmatprep.subr.mxu0 0.0
    %2256 = vmatpush1.msra.mxu0 0.0
    %2257 = vmatprep.subr.mxu0 0.0
    %2258 = vmatpush1.msra.mxu0 0.0
    %2259 = vmatprep.subr.mxu0 0.0
    %2260 = vmatpush1.msra.mxu0 0.0
    %2261 = vmatprep.subr.mxu0 0.0
    %2262 = vmatpush1.msra.mxu0 0.0
    %2263 = vmatprep.subr.mxu0 0.0
    %2264 = vmatpush1.msra.mxu0 0.0
    %2265 = vmatprep.subr.mxu0 0.0
    %2266 = vmatpush1.msra.mxu0 0.0
    %2267 = vmatprep.subr.mxu0 0.0
    %2268 = vmatpush1.msra.mxu0 0.0
    %2269 = vmatprep.subr.mxu0 0.0
    %2270 = vmatpush1.msra.mxu0 0.0
    %2271 = vmatprep.subr.mxu0 0.0
    %2272 = vmatpush1.msra.mxu0 0.0
    %2273 = vmatprep.subr.mxu0 0.0
    %2274 = vmatpush1.msra.mxu0 0.0
    %2275 = vmatprep.subr.mxu0 0.0
    %2276 = vmatpush1.msra.mxu0 0.0
    %2277 = vmatprep.subr.mxu0 0.0
    %2278 = vmatpush1.msra.mxu0 0.0
    %2279 = vmatprep.subr.mxu0 0.0
    %2280 = vmatpush1.msra.mxu0 0.0
    %2281 = vmatprep.subr.mxu0 0.0
    %2282 = vmatpush1.msra.mxu0 0.0
    %2283 = vmatprep.subr.mxu0 0.0
    %2284 = vmatpush1.msra.mxu0 0.0
    %2285 = vmatprep.subr.mxu0 0.0
    %2286 = vmatpush1.msra.mxu0 0.0
    %2287 = vmatprep.subr.mxu0 0.0
    %2288 = vmatpush1.msra.mxu0 0.0
    %2289 = vmatprep.subr.mxu0 0.0
    %2290 = vmatpush1.msra.mxu0 0.0
    %2291 = vmatprep.subr.mxu0 0.0
    %2292 = vmatpush1.msra.mxu0 0.0
    %2293 = vmatprep.subr.mxu0 0.0
    %2294 = vmatpush1.msra.mxu0 0.0
    %2295 = vmatprep.mubr.f32.mxu0 0.0
    %2296 = vmatmul.mubr.f32.gmra.mrb[0].mxu0 %v2229
    %v2297 = vpop.f32.mrb[0].mxu0
    %v2298 = vadd.f32 0.0, %v2297
    %v2299 = vpop.f32.mrb[0].mxu0
    %2300 = vdwg.mxu0
    %2301 = vrot.lane.b32.xlu0 %v193, 80
    %v2302 = vpop.permute.xlu0 %2301
    %2303 = vrot.lane.b32.xlu0 %v193, 16
    %v2304 = vpop.permute.xlu0 %2303
    %v2305 = vsel %vm314, %v2302, 0
    %v2307 = vsel %vm314, %v2304, 0
    %2309 = vmatprep.subr.mxu0 0.0
    %2310 = vmatpush1.xpose.msra.mxu0 %v2307
    %2311 = vmatprep.subr.mxu0 0.0
    %2312 = vmatpush1.xpose.msra.mxu0 0.0
    %2313 = vmatprep.subr.mxu0 0.0
    %2314 = vmatpush1.xpose.msra.mxu0 0.0
    %2315 = vmatprep.subr.mxu0 0.0
    %2316 = vmatpush1.xpose.msra.mxu0 0.0
    %2317 = vmatprep.subr.mxu0 0.0
    %2318 = vmatpush1.xpose.msra.mxu0 0.0
    %2319 = vmatprep.subr.mxu0 0.0
    %2320 = vmatpush1.xpose.msra.mxu0 0.0
    %2321 = vmatprep.subr.mxu0 0.0
    %2322 = vmatpush1.xpose.msra.mxu0 0.0
    %2323 = vmatprep.subr.mxu0 0.0
    %2324 = vmatpush1.xpose.msra.mxu0 0.0
    %2325 = vmatprep.subr.mxu0 0.0
    %2326 = vmatpush1.xpose.msra.mxu0 0.0
    %2327 = vmatprep.subr.mxu0 0.0
    %2328 = vmatpush1.xpose.msra.mxu0 0.0
    %2329 = vmatprep.subr.mxu0 0.0
    %2330 = vmatpush1.xpose.msra.mxu0 0.0
    %2331 = vmatprep.subr.mxu0 0.0
    %2332 = vmatpush1.xpose.msra.mxu0 0.0
    %2333 = vmatprep.subr.mxu0 0.0
    %2334 = vmatpush1.xpose.msra.mxu0 0.0
    %2335 = vmatprep.subr.mxu0 0.0
    %2336 = vmatpush1.xpose.msra.mxu0 0.0
    %2337 = vmatprep.subr.mxu0 0.0
    %2338 = vmatpush1.xpose.msra.mxu0 0.0
    %2339 = vmatprep.subr.mxu0 0.0
    %2340 = vmatpush1.xpose.msra.mxu0 0.0
    %2341 = vmatprep.subr.mxu0 0.0
    %2342 = vmatpush1.xpose.msra.mxu0 0.0
    %2343 = vmatprep.subr.mxu0 0.0
    %2344 = vmatpush1.xpose.msra.mxu0 0.0
    %2345 = vmatprep.subr.mxu0 0.0
    %2346 = vmatpush1.xpose.msra.mxu0 0.0
    %2347 = vmatprep.subr.mxu0 0.0
    %2348 = vmatpush1.xpose.msra.mxu0 0.0
    %2349 = vmatprep.subr.mxu0 0.0
    %2350 = vmatpush1.xpose.msra.mxu0 0.0
    %2351 = vmatprep.subr.mxu0 0.0
    %2352 = vmatpush1.xpose.msra.mxu0 0.0
    %2353 = vmatprep.subr.mxu0 0.0
    %2354 = vmatpush1.xpose.msra.mxu0 0.0
    %2355 = vmatprep.subr.mxu0 0.0
    %2356 = vmatpush1.xpose.msra.mxu0 0.0
    %2357 = vmatprep.subr.mxu0 0.0
    %2358 = vmatpush1.xpose.msra.mxu0 0.0
    %2359 = vmatprep.subr.mxu0 0.0
    %2360 = vmatpush1.xpose.msra.mxu0 0.0
    %2361 = vmatprep.subr.mxu0 0.0
    %2362 = vmatpush1.xpose.msra.mxu0 0.0
    %2363 = vmatprep.subr.mxu0 0.0
    %2364 = vmatpush1.xpose.msra.mxu0 0.0
    %2365 = vmatprep.subr.mxu0 0.0
    %2366 = vmatpush1.xpose.msra.mxu0 0.0
    %2367 = vmatprep.subr.mxu0 0.0
    %2368 = vmatpush1.xpose.msra.mxu0 0.0
    %2369 = vmatprep.subr.mxu0 0.0
    %2370 = vmatpush1.xpose.msra.mxu0 0.0
    %2371 = vmatprep.subr.mxu0 0.0
    %2372 = vmatpush1.xpose.msra.mxu0 0.0
    %2373 = vmatprep.mubr.f32.mxu0 0.0
    %2374 = vmatmul.mubr.f32.gmra.mrb[0].mxu0 %v2305
    %v2375 = vpop.f32.mrb[0].mxu0
    %v2376 = vadd.f32 0.0, %v2375
    %v2377 = vpop.f32.mrb[0].mxu0
    %2378 = vdwg.mxu0
    %v2379 = vmul.f32 %v2376, 0.5
    %v2380 = vsel %vm390, %v2379, -inf
    %2381 = vmax.xlane.f32.xlu0 %v2380
    %v2382 = vpop.xlane.xlu0 %2381
    %v2383 = vsub.f32 %v2379, %v2382
    %v2384 = vmul.f32 %v2383, 1.442695
    %v2385 = vpow.pop %v2384
    %v2386 = vsel %vm390, %v2385, 0.0
    %2387 = vadd.xlane.f32.xlu0 %v2386
    %v2388 = vpop.xlane.xlu0 %2387
    %v2389 = vrcp.pop %v2388
    %v2390 = vmul.f32 %v2385, %v2389
    %2391 = vrot.lane.b32.xlu0 %v291, 16
    %v2392 = vpop.permute.xlu0 %2391
    %v2395 = vsel %vm390, %v2390, 0
    %2397 = vmatprep.subr.mxu0 0.0
    %2398 = vmatpush1.msra.mxu0 %v2392
    %2399 = vmatprep.subr.mxu0 0.0
    %2400 = vmatpush1.msra.mxu0 0.0
    %2401 = vmatprep.subr.mxu0 0.0
    %2402 = vmatpush1.msra.mxu0 0.0
    %2403 = vmatprep.subr.mxu0 0.0
    %2404 = vmatpush1.msra.mxu0 0.0
    %2405 = vmatprep.subr.mxu0 0.0
    %2406 = vmatpush1.msra.mxu0 0.0
    %2407 = vmatprep.subr.mxu0 0.0
    %2408 = vmatpush1.msra.mxu0 0.0
    %2409 = vmatprep.subr.mxu0 0.0
    %2410 = vmatpush1.msra.mxu0 0.0
    %2411 = vmatprep.subr.mxu0 0.0
    %2412 = vmatpush1.msra.mxu0 0.0
    %2413 = vmatprep.subr.mxu0 0.0
    %2414 = vmatpush1.msra.mxu0 0.0
    %2415 = vmatprep.subr.mxu0 0.0
    %2416 = vmatpush1.msra.mxu0 0.0
    %2417 = vmatprep.subr.mxu0 0.0
    %2418 = vmatpush1.msra.mxu0 0.0
    %2419 = vmatprep.subr.mxu0 0.0
    %2420 = vmatpush1.msra.mxu0 0.0
    %2421 = vmatprep.subr.mxu0 0.0
    %2422 = vmatpush1.msra.mxu0 0.0
    %2423 = vmatprep.subr.mxu0 0.0
    %2424 = vmatpush1.msra.mxu0 0.0
    %2425 = vmatprep.subr.mxu0 0.0
    %2426 = vmatpush1.msra.mxu0 0.0
    %2427 = vmatprep.subr.mxu0 0.0
    %2428 = vmatpush1.msra.mxu0 0.0
    %2429 = vmatprep.subr.mxu0 0.0
    %2430 = vmatpush1.msra.mxu0 0.0
    %2431 = vmatprep.subr.mxu0 0.0
    %2432 = vmatpush1.msra.mxu0 0.0
    %2433 = vmatprep.subr.mxu0 0.0
    %2434 = vmatpush1.msra.mxu0 0.0
    %2435 = vmatprep.subr.mxu0 0.0
    %2436 = vmatpush1.msra.mxu0 0.0
    %2437 = vmatprep.subr.mxu0 0.0
    %2438 = vmatpush1.msra.mxu0 0.0
    %2439 = vmatprep.subr.mxu0 0.0
    %2440 = vmatpush1.msra.mxu0 0.0
    %2441 = vmatprep.subr.mxu0 0.0
    %2442 = vmatpush1.msra.mxu0 0.0
    %2443 = vmatprep.subr.mxu0 0.0
    %2444 = vmatpush1.msra.mxu0 0.0
    %2445 = vmatprep.subr.mxu0 0.0
    %2446 = vmatpush1.msra.mxu0 0.0
    %2447 = vmatprep.subr.mxu0 0.0
    %2448 = vmatpush1.msra.mxu0 0.0
    %2449 = vmatprep.subr.mxu0 0.0
    %2450 = vmatpush1.msra.mxu0 0.0
    %2451 = vmatprep.subr.mxu0 0.0
    %2452 = vmatpush1.msra.mxu0 0.0
    %2453 = vmatprep.subr.mxu0 0.0
    %2454 = vmatpush1.msra.mxu0 0.0
    %2455 = vmatprep.subr.mxu0 0.0
    %2456 = vmatpush1.msra.mxu0 0.0
    %2457 = vmatprep.subr.mxu0 0.0
    %2458 = vmatpush1.msra.mxu0 0.0
    %2459 = vmatprep.subr.mxu0 0.0
    %2460 = vmatpush1.msra.mxu0 0.0
    %2461 = vmatprep.mubr.f32.mxu0 0.0
    %2462 = vmatmul.mubr.f32.gmra.mrb[0].mxu0 %v2395
    %v2463 = vpop.f32.mrb[0].mxu0
    %v2464 = vadd.f32 0.0, %v2463
    %v2465 = vpop.f32.mrb[0].mxu0
    %2466 = vdwg.mxu0
    %2467 = vrot.lane.b32.xlu0 %v193, 76
    %v2468 = vpop.permute.xlu0 %2467
    %2469 = vrot.lane.b32.xlu0 %v193, 12
    %v2470 = vpop.permute.xlu0 %2469
    %v2471 = vsel %vm314, %v2468, 0
    %v2473 = vsel %vm314, %v2470, 0
    %2475 = vmatprep.subr.mxu0 0.0
    %2476 = vmatpush1.xpose.msra.mxu0 %v2473
    %2477 = vmatprep.subr.mxu0 0.0
    %2478 = vmatpush1.xpose.msra.mxu0 0.0
    %2479 = vmatprep.subr.mxu0 0.0
    %2480 = vmatpush1.xpose.msra.mxu0 0.0
    %2481 = vmatprep.subr.mxu0 0.0
    %2482 = vmatpush1.xpose.msra.mxu0 0.0
    %2483 = vmatprep.subr.mxu0 0.0
    %2484 = vmatpush1.xpose.msra.mxu0 0.0
    %2485 = vmatprep.subr.mxu0 0.0
    %2486 = vmatpush1.xpose.msra.mxu0 0.0
    %2487 = vmatprep.subr.mxu0 0.0
    %2488 = vmatpush1.xpose.msra.mxu0 0.0
    %2489 = vmatprep.subr.mxu0 0.0
    %2490 = vmatpush1.xpose.msra.mxu0 0.0
    %2491 = vmatprep.subr.mxu0 0.0
    %2492 = vmatpush1.xpose.msra.mxu0 0.0
    %2493 = vmatprep.subr.mxu0 0.0
    %2494 = vmatpush1.xpose.msra.mxu0 0.0
    %2495 = vmatprep.subr.mxu0 0.0
    %2496 = vmatpush1.xpose.msra.mxu0 0.0
    %2497 = vmatprep.subr.mxu0 0.0
    %2498 = vmatpush1.xpose.msra.mxu0 0.0
    %2499 = vmatprep.subr.mxu0 0.0
    %2500 = vmatpush1.xpose.msra.mxu0 0.0
    %2501 = vmatprep.subr.mxu0 0.0
    %2502 = vmatpush1.xpose.msra.mxu0 0.0
    %2503 = vmatprep.subr.mxu0 0.0
    %2504 = vmatpush1.xpose.msra.mxu0 0.0
    %2505 = vmatprep.subr.mxu0 0.0
    %2506 = vmatpush1.xpose.msra.mxu0 0.0
    %2507 = vmatprep.subr.mxu0 0.0
    %2508 = vmatpush1.xpose.msra.mxu0 0.0
    %2509 = vmatprep.subr.mxu0 0.0
    %2510 = vmatpush1.xpose.msra.mxu0 0.0
    %2511 = vmatprep.subr.mxu0 0.0
    %2512 = vmatpush1.xpose.msra.mxu0 0.0
    %2513 = vmatprep.subr.mxu0 0.0
    %2514 = vmatpush1.xpose.msra.mxu0 0.0
    %2515 = vmatprep.subr.mxu0 0.0
    %2516 = vmatpush1.xpose.msra.mxu0 0.0
    %2517 = vmatprep.subr.mxu0 0.0
    %2518 = vmatpush1.xpose.msra.mxu0 0.0
    %2519 = vmatprep.subr.mxu0 0.0
    %2520 = vmatpush1.xpose.msra.mxu0 0.0
    %2521 = vmatprep.subr.mxu0 0.0
    %2522 = vmatpush1.xpose.msra.mxu0 0.0
    %2523 = vmatprep.subr.mxu0 0.0
    %2524 = vmatpush1.xpose.msra.mxu0 0.0
    %2525 = vmatprep.subr.mxu0 0.0
    %2526 = vmatpush1.xpose.msra.mxu0 0.0
    %2527 = vmatprep.subr.mxu0 0.0
    %2528 = vmatpush1.xpose.msra.mxu0 0.0
    %2529 = vmatprep.subr.mxu0 0.0
    %2530 = vmatpush1.xpose.msra.mxu0 0.0
    %2531 = vmatprep.subr.mxu0 0.0
    %2532 = vmatpush1.xpose.msra.mxu0 0.0
    %2533 = vmatprep.subr.mxu0 0.0
    %2534 = vmatpush1.xpose.msra.mxu0 0.0
    %2535 = vmatprep.subr.mxu0 0.0
    %2536 = vmatpush1.xpose.msra.mxu0 0.0
    %2537 = vmatprep.subr.mxu0 0.0
    %2538 = vmatpush1.xpose.msra.mxu0 0.0
    %2539 = vmatprep.mubr.f32.mxu0 0.0
    %2540 = vmatmul.mubr.f32.gmra.mrb[0].mxu0 %v2471
    %v2541 = vpop.f32.mrb[0].mxu0
    %v2542 = vadd.f32 0.0, %v2541
    %v2543 = vpop.f32.mrb[0].mxu0
    %2544 = vdwg.mxu0
    %v2545 = vmul.f32 %v2542, 0.5
    %v2546 = vsel %vm390, %v2545, -inf
    %2547 = vmax.xlane.f32.xlu0 %v2546
    %v2548 = vpop.xlane.xlu0 %2547
    %v2549 = vsub.f32 %v2545, %v2548
    %v2550 = vmul.f32 %v2549, 1.442695
    %v2551 = vpow.pop %v2550
    %v2552 = vsel %vm390, %v2551, 0.0
    %2553 = vadd.xlane.f32.xlu0 %v2552
    %v2554 = vpop.xlane.xlu0 %2553
    %v2555 = vrcp.pop %v2554
    %v2556 = vmul.f32 %v2551, %v2555
    %2557 = vrot.lane.b32.xlu0 %v291, 12
    %v2558 = vpop.permute.xlu0 %2557
    %v2561 = vsel %vm390, %v2556, 0
    %2563 = vmatprep.subr.mxu0 0.0
    %2564 = vmatpush1.msra.mxu0 %v2558
    %2565 = vmatprep.subr.mxu0 0.0
    %2566 = vmatpush1.msra.mxu0 0.0
    %2567 = vmatprep.subr.mxu0 0.0
    %2568 = vmatpush1.msra.mxu0 0.0
    %2569 = vmatprep.subr.mxu0 0.0
    %2570 = vmatpush1.msra.mxu0 0.0
    %2571 = vmatprep.subr.mxu0 0.0
    %2572 = vmatpush1.msra.mxu0 0.0
    %2573 = vmatprep.subr.mxu0 0.0
    %2574 = vmatpush1.msra.mxu0 0.0
    %2575 = vmatprep.subr.mxu0 0.0
    %2576 = vmatpush1.msra.mxu0 0.0
    %2577 = vmatprep.subr.mxu0 0.0
    %2578 = vmatpush1.msra.mxu0 0.0
    %2579 = vmatprep.subr.mxu0 0.0
    %2580 = vmatpush1.msra.mxu0 0.0
    %2581 = vmatprep.subr.mxu0 0.0
    %2582 = vmatpush1.msra.mxu0 0.0
    %2583 = vmatprep.subr.mxu0 0.0
    %2584 = vmatpush1.msra.mxu0 0.0
    %2585 = vmatprep.subr.mxu0 0.0
    %2586 = vmatpush1.msra.mxu0 0.0
    %2587 = vmatprep.subr.mxu0 0.0
    %2588 = vmatpush1.msra.mxu0 0.0
    %2589 = vmatprep.subr.mxu0 0.0
    %2590 = vmatpush1.msra.mxu0 0.0
    %2591 = vmatprep.subr.mxu0 0.0
    %2592 = vmatpush1.msra.mxu0 0.0
    %2593 = vmatprep.subr.mxu0 0.0
    %2594 = vmatpush1.msra.mxu0 0.0
    %2595 = vmatprep.subr.mxu0 0.0
    %2596 = vmatpush1.msra.mxu0 0.0
    %2597 = vmatprep.subr.mxu0 0.0
    %2598 = vmatpush1.msra.mxu0 0.0
    %2599 = vmatprep.subr.mxu0 0.0
    %2600 = vmatpush1.msra.mxu0 0.0
    %2601 = vmatprep.subr.mxu0 0.0
    %2602 = vmatpush1.msra.mxu0 0.0
    %2603 = vmatprep.subr.mxu0 0.0
    %2604 = vmatpush1.msra.mxu0 0.0
    %2605 = vmatprep.subr.mxu0 0.0
    %2606 = vmatpush1.msra.mxu0 0.0
    %2607 = vmatprep.subr.mxu0 0.0
    %2608 = vmatpush1.msra.mxu0 0.0
    %2609 = vmatprep.subr.mxu0 0.0
    %2610 = vmatpush1.msra.mxu0 0.0
    %2611 = vmatprep.subr.mxu0 0.0
    %2612 = vmatpush1.msra.mxu0 0.0
    %2613 = vmatprep.subr.mxu0 0.0
    %2614 = vmatpush1.msra.mxu0 0.0
    %2615 = vmatprep.subr.mxu0 0.0
    %2616 = vmatpush1.msra.mxu0 0.0
    %2617 = vmatprep.subr.mxu0 0.0
    %2618 = vmatpush1.msra.mxu0 0.0
    %2619 = vmatprep.subr.mxu0 0.0
    %2620 = vmatpush1.msra.mxu0 0.0
    %2621 = vmatprep.subr.mxu0 0.0
    %2622 = vmatpush1.msra.mxu0 0.0
    %2623 = vmatprep.subr.mxu0 0.0
    %2624 = vmatpush1.msra.mxu0 0.0
    %2625 = vmatprep.subr.mxu0 0.0
    %2626 = vmatpush1.msra.mxu0 0.0
    %2627 = vmatprep.mubr.f32.mxu0 0.0
    %2628 = vmatmul.mubr.f32.gmra.mrb[0].mxu0 %v2561
    %v2629 = vpop.f32.mrb[0].mxu0
    %v2630 = vadd.f32 0.0, %v2629
    %v2631 = vpop.f32.mrb[0].mxu0
    %2632 = vdwg.mxu0
    %2633 = vrot.lane.b32.xlu0 %v193, 72
    %v2634 = vpop.permute.xlu0 %2633
    %2635 = vrot.lane.b32.xlu0 %v193, 8
    %v2636 = vpop.permute.xlu0 %2635
    %v2637 = vsel %vm314, %v2634, 0
    %v2639 = vsel %vm314, %v2636, 0
    %2641 = vmatprep.subr.mxu0 0.0
    %2642 = vmatpush1.xpose.msra.mxu0 %v2639
    %2643 = vmatprep.subr.mxu0 0.0
    %2644 = vmatpush1.xpose.msra.mxu0 0.0
    %2645 = vmatprep.subr.mxu0 0.0
    %2646 = vmatpush1.xpose.msra.mxu0 0.0
    %2647 = vmatprep.subr.mxu0 0.0
    %2648 = vmatpush1.xpose.msra.mxu0 0.0
    %2649 = vmatprep.subr.mxu0 0.0
    %2650 = vmatpush1.xpose.msra.mxu0 0.0
    %2651 = vmatprep.subr.mxu0 0.0
    %2652 = vmatpush1.xpose.msra.mxu0 0.0
    %2653 = vmatprep.subr.mxu0 0.0
    %2654 = vmatpush1.xpose.msra.mxu0 0.0
    %2655 = vmatprep.subr.mxu0 0.0
    %2656 = vmatpush1.xpose.msra.mxu0 0.0
    %2657 = vmatprep.subr.mxu0 0.0
    %2658 = vmatpush1.xpose.msra.mxu0 0.0
    %2659 = vmatprep.subr.mxu0 0.0
    %2660 = vmatpush1.xpose.msra.mxu0 0.0
    %2661 = vmatprep.subr.mxu0 0.0
    %2662 = vmatpush1.xpose.msra.mxu0 0.0
    %2663 = vmatprep.subr.mxu0 0.0
    %2664 = vmatpush1.xpose.msra.mxu0 0.0
    %2665 = vmatprep.subr.mxu0 0.0
    %2666 = vmatpush1.xpose.msra.mxu0 0.0
    %2667 = vmatprep.subr.mxu0 0.0
    %2668 = vmatpush1.xpose.msra.mxu0 0.0
    %2669 = vmatprep.subr.mxu0 0.0
    %2670 = vmatpush1.xpose.msra.mxu0 0.0
    %2671 = vmatprep.subr.mxu0 0.0
    %2672 = vmatpush1.xpose.msra.mxu0 0.0
    %2673 = vmatprep.subr.mxu0 0.0
    %2674 = vmatpush1.xpose.msra.mxu0 0.0
    %2675 = vmatprep.subr.mxu0 0.0
    %2676 = vmatpush1.xpose.msra.mxu0 0.0
    %2677 = vmatprep.subr.mxu0 0.0
    %2678 = vmatpush1.xpose.msra.mxu0 0.0
    %2679 = vmatprep.subr.mxu0 0.0
    %2680 = vmatpush1.xpose.msra.mxu0 0.0
    %2681 = vmatprep.subr.mxu0 0.0
    %2682 = vmatpush1.xpose.msra.mxu0 0.0
    %2683 = vmatprep.subr.mxu0 0.0
    %2684 = vmatpush1.xpose.msra.mxu0 0.0
    %2685 = vmatprep.subr.mxu0 0.0
    %2686 = vmatpush1.xpose.msra.mxu0 0.0
    %2687 = vmatprep.subr.mxu0 0.0
    %2688 = vmatpush1.xpose.msra.mxu0 0.0
    %2689 = vmatprep.subr.mxu0 0.0
    %2690 = vmatpush1.xpose.msra.mxu0 0.0
    %2691 = vmatprep.subr.mxu0 0.0
    %2692 = vmatpush1.xpose.msra.mxu0 0.0
    %2693 = vmatprep.subr.mxu0 0.0
    %2694 = vmatpush1.xpose.msra.mxu0 0.0
    %2695 = vmatprep.subr.mxu0 0.0
    %2696 = vmatpush1.xpose.msra.mxu0 0.0
    %2697 = vmatprep.subr.mxu0 0.0
    %2698 = vmatpush1.xpose.msra.mxu0 0.0
    %2699 = vmatprep.subr.mxu0 0.0
    %2700 = vmatpush1.xpose.msra.mxu0 0.0
    %2701 = vmatprep.subr.mxu0 0.0
    %2702 = vmatpush1.xpose.msra.mxu0 0.0
    %2703 = vmatprep.subr.mxu0 0.0
    %2704 = vmatpush1.xpose.msra.mxu0 0.0
    %2705 = vmatprep.mubr.f32.mxu0 0.0
    %2706 = vmatmul.mubr.f32.gmra.mrb[0].mxu0 %v2637
    %v2707 = vpop.f32.mrb[0].mxu0
    %v2708 = vadd.f32 0.0, %v2707
    %v2709 = vpop.f32.mrb[0].mxu0
    %2710 = vdwg.mxu0
    %v2711 = vmul.f32 %v2708, 0.5
    %v2712 = vsel %vm390, %v2711, -inf
    %2713 = vmax.xlane.f32.xlu0 %v2712
    %v2714 = vpop.xlane.xlu0 %2713
    %v2715 = vsub.f32 %v2711, %v2714
    %v2716 = vmul.f32 %v2715, 1.442695
    %v2717 = vpow.pop %v2716
    %v2718 = vsel %vm390, %v2717, 0.0
    %2719 = vadd.xlane.f32.xlu0 %v2718
    %v2720 = vpop.xlane.xlu0 %2719
    %v2721 = vrcp.pop %v2720
    %v2722 = vmul.f32 %v2717, %v2721
    %2723 = vrot.lane.b32.xlu0 %v291, 8
    %v2724 = vpop.permute.xlu0 %2723
    %v2727 = vsel %vm390, %v2722, 0
    %2729 = vmatprep.subr.mxu0 0.0
    %2730 = vmatpush1.msra.mxu0 %v2724
    %2731 = vmatprep.subr.mxu0 0.0
    %2732 = vmatpush1.msra.mxu0 0.0
    %2733 = vmatprep.subr.mxu0 0.0
    %2734 = vmatpush1.msra.mxu0 0.0
    %2735 = vmatprep.subr.mxu0 0.0
    %2736 = vmatpush1.msra.mxu0 0.0
    %2737 = vmatprep.subr.mxu0 0.0
    %2738 = vmatpush1.msra.mxu0 0.0
    %2739 = vmatprep.subr.mxu0 0.0
    %2740 = vmatpush1.msra.mxu0 0.0
    %2741 = vmatprep.subr.mxu0 0.0
    %2742 = vmatpush1.msra.mxu0 0.0
    %2743 = vmatprep.subr.mxu0 0.0
    %2744 = vmatpush1.msra.mxu0 0.0
    %2745 = vmatprep.subr.mxu0 0.0
    %2746 = vmatpush1.msra.mxu0 0.0
    %2747 = vmatprep.subr.mxu0 0.0
    %2748 = vmatpush1.msra.mxu0 0.0
    %2749 = vmatprep.subr.mxu0 0.0
    %2750 = vmatpush1.msra.mxu0 0.0
    %2751 = vmatprep.subr.mxu0 0.0
    %2752 = vmatpush1.msra.mxu0 0.0
    %2753 = vmatprep.subr.mxu0 0.0
    %2754 = vmatpush1.msra.mxu0 0.0
    %2755 = vmatprep.subr.mxu0 0.0
    %2756 = vmatpush1.msra.mxu0 0.0
    %2757 = vmatprep.subr.mxu0 0.0
    %2758 = vmatpush1.msra.mxu0 0.0
    %2759 = vmatprep.subr.mxu0 0.0
    %2760 = vmatpush1.msra.mxu0 0.0
    %2761 = vmatprep.subr.mxu0 0.0
    %2762 = vmatpush1.msra.mxu0 0.0
    %2763 = vmatprep.subr.mxu0 0.0
    %2764 = vmatpush1.msra.mxu0 0.0
    %2765 = vmatprep.subr.mxu0 0.0
    %2766 = vmatpush1.msra.mxu0 0.0
    %2767 = vmatprep.subr.mxu0 0.0
    %2768 = vmatpush1.msra.mxu0 0.0
    %2769 = vmatprep.subr.mxu0 0.0
    %2770 = vmatpush1.msra.mxu0 0.0
    %2771 = vmatprep.subr.mxu0 0.0
    %2772 = vmatpush1.msra.mxu0 0.0
    %2773 = vmatprep.subr.mxu0 0.0
    %2774 = vmatpush1.msra.mxu0 0.0
    %2775 = vmatprep.subr.mxu0 0.0
    %2776 = vmatpush1.msra.mxu0 0.0
    %2777 = vmatprep.subr.mxu0 0.0
    %2778 = vmatpush1.msra.mxu0 0.0
    %2779 = vmatprep.subr.mxu0 0.0
    %2780 = vmatpush1.msra.mxu0 0.0
    %2781 = vmatprep.subr.mxu0 0.0
    %2782 = vmatpush1.msra.mxu0 0.0
    %2783 = vmatprep.subr.mxu0 0.0
    %2784 = vmatpush1.msra.mxu0 0.0
    %2785 = vmatprep.subr.mxu0 0.0
    %2786 = vmatpush1.msra.mxu0 0.0
    %2787 = vmatprep.subr.mxu0 0.0
    %2788 = vmatpush1.msra.mxu0 0.0
    %2789 = vmatprep.subr.mxu0 0.0
    %2790 = vmatpush1.msra.mxu0 0.0
    %2791 = vmatprep.subr.mxu0 0.0
    %2792 = vmatpush1.msra.mxu0 0.0
    %2793 = vmatprep.mubr.f32.mxu0 0.0
    %2794 = vmatmul.mubr.f32.gmra.mrb[0].mxu0 %v2727
    %v2795 = vpop.f32.mrb[0].mxu0
    %v2796 = vadd.f32 0.0, %v2795
    %v2797 = vpop.f32.mrb[0].mxu0
    %2798 = vdwg.mxu0
    %2799 = vrot.lane.b32.xlu0 %v193, 68
    %v2800 = vpop.permute.xlu0 %2799
    %2801 = vrot.lane.b32.xlu0 %v193, 4
    %v2802 = vpop.permute.xlu0 %2801
    %v2803 = vsel %vm314, %v2800, 0
    %v2805 = vsel %vm314, %v2802, 0
    %2807 = vmatprep.subr.mxu0 0.0
    %2808 = vmatpush1.xpose.msra.mxu0 %v2805
    %2809 = vmatprep.subr.mxu0 0.0
    %2810 = vmatpush1.xpose.msra.mxu0 0.0
    %2811 = vmatprep.subr.mxu0 0.0
    %2812 = vmatpush1.xpose.msra.mxu0 0.0
    %2813 = vmatprep.subr.mxu0 0.0
    %2814 = vmatpush1.xpose.msra.mxu0 0.0
    %2815 = vmatprep.subr.mxu0 0.0
    %2816 = vmatpush1.xpose.msra.mxu0 0.0
    %2817 = vmatprep.subr.mxu0 0.0
    %2818 = vmatpush1.xpose.msra.mxu0 0.0
    %2819 = vmatprep.subr.mxu0 0.0
    %2820 = vmatpush1.xpose.msra.mxu0 0.0
    %2821 = vmatprep.subr.mxu0 0.0
    %2822 = vmatpush1.xpose.msra.mxu0 0.0
    %2823 = vmatprep.subr.mxu0 0.0
    %2824 = vmatpush1.xpose.msra.mxu0 0.0
    %2825 = vmatprep.subr.mxu0 0.0
    %2826 = vmatpush1.xpose.msra.mxu0 0.0
    %2827 = vmatprep.subr.mxu0 0.0
    %2828 = vmatpush1.xpose.msra.mxu0 0.0
    %2829 = vmatprep.subr.mxu0 0.0
    %2830 = vmatpush1.xpose.msra.mxu0 0.0
    %2831 = vmatprep.subr.mxu0 0.0
    %2832 = vmatpush1.xpose.msra.mxu0 0.0
    %2833 = vmatprep.subr.mxu0 0.0
    %2834 = vmatpush1.xpose.msra.mxu0 0.0
    %2835 = vmatprep.subr.mxu0 0.0
    %2836 = vmatpush1.xpose.msra.mxu0 0.0
    %2837 = vmatprep.subr.mxu0 0.0
    %2838 = vmatpush1.xpose.msra.mxu0 0.0
    %2839 = vmatprep.subr.mxu0 0.0
    %2840 = vmatpush1.xpose.msra.mxu0 0.0
    %2841 = vmatprep.subr.mxu0 0.0
    %2842 = vmatpush1.xpose.msra.mxu0 0.0
    %2843 = vmatprep.subr.mxu0 0.0
    %2844 = vmatpush1.xpose.msra.mxu0 0.0
    %2845 = vmatprep.subr.mxu0 0.0
    %2846 = vmatpush1.xpose.msra.mxu0 0.0
    %2847 = vmatprep.subr.mxu0 0.0
    %2848 = vmatpush1.xpose.msra.mxu0 0.0
    %2849 = vmatprep.subr.mxu0 0.0
    %2850 = vmatpush1.xpose.msra.mxu0 0.0
    %2851 = vmatprep.subr.mxu0 0.0
    %2852 = vmatpush1.xpose.msra.mxu0 0.0
    %2853 = vmatprep.subr.mxu0 0.0
    %2854 = vmatpush1.xpose.msra.mxu0 0.0
    %2855 = vmatprep.subr.mxu0 0.0
    %2856 = vmatpush1.xpose.msra.mxu0 0.0
    %2857 = vmatprep.subr.mxu0 0.0
    %2858 = vmatpush1.xpose.msra.mxu0 0.0
    %2859 = vmatprep.subr.mxu0 0.0
    %2860 = vmatpush1.xpose.msra.mxu0 0.0
    %2861 = vmatprep.subr.mxu0 0.0
    %2862 = vmatpush1.xpose.msra.mxu0 0.0
    %2863 = vmatprep.subr.mxu0 0.0
    %2864 = vmatpush1.xpose.msra.mxu0 0.0
    %2865 = vmatprep.subr.mxu0 0.0
    %2866 = vmatpush1.xpose.msra.mxu0 0.0
    %2867 = vmatprep.subr.mxu0 0.0
    %2868 = vmatpush1.xpose.msra.mxu0 0.0
    %2869 = vmatprep.subr.mxu0 0.0
    %2870 = vmatpush1.xpose.msra.mxu0 0.0
    %2871 = vmatprep.mubr.f32.mxu0 0.0
    %2872 = vmatmul.mubr.f32.gmra.mrb[0].mxu0 %v2803
    %v2873 = vpop.f32.mrb[0].mxu0
    %v2874 = vadd.f32 0.0, %v2873
    %v2875 = vpop.f32.mrb[0].mxu0
    %2876 = vdwg.mxu0
    %v2877 = vmul.f32 %v2874, 0.5
    %v2878 = vsel %vm390, %v2877, -inf
    %2879 = vmax.xlane.f32.xlu0 %v2878
    %v2880 = vpop.xlane.xlu0 %2879
    %v2881 = vsub.f32 %v2877, %v2880
    %v2882 = vmul.f32 %v2881, 1.442695
    %v2883 = vpow.pop %v2882
    %v2884 = vsel %vm390, %v2883, 0.0
    %2885 = vadd.xlane.f32.xlu0 %v2884
    %v2886 = vpop.xlane.xlu0 %2885
    %v2887 = vrcp.pop %v2886
    %v2888 = vmul.f32 %v2883, %v2887
    %2889 = vrot.lane.b32.xlu0 %v291, 4
    %v2890 = vpop.permute.xlu0 %2889
    %v2893 = vsel %vm390, %v2888, 0
    %2895 = vmatprep.subr.mxu0 0.0
    %2896 = vmatpush1.msra.mxu0 %v2890
    %2897 = vmatprep.subr.mxu0 0.0
    %2898 = vmatpush1.msra.mxu0 0.0
    %2899 = vmatprep.subr.mxu0 0.0
    %2900 = vmatpush1.msra.mxu0 0.0
    %2901 = vmatprep.subr.mxu0 0.0
    %2902 = vmatpush1.msra.mxu0 0.0
    %2903 = vmatprep.subr.mxu0 0.0
    %2904 = vmatpush1.msra.mxu0 0.0
    %2905 = vmatprep.subr.mxu0 0.0
    %2906 = vmatpush1.msra.mxu0 0.0
    %2907 = vmatprep.subr.mxu0 0.0
    %2908 = vmatpush1.msra.mxu0 0.0
    %2909 = vmatprep.subr.mxu0 0.0
    %2910 = vmatpush1.msra.mxu0 0.0
    %2911 = vmatprep.subr.mxu0 0.0
    %2912 = vmatpush1.msra.mxu0 0.0
    %2913 = vmatprep.subr.mxu0 0.0
    %2914 = vmatpush1.msra.mxu0 0.0
    %2915 = vmatprep.subr.mxu0 0.0
    %2916 = vmatpush1.msra.mxu0 0.0
    %2917 = vmatprep.subr.mxu0 0.0
    %2918 = vmatpush1.msra.mxu0 0.0
    %2919 = vmatprep.subr.mxu0 0.0
    %2920 = vmatpush1.msra.mxu0 0.0
    %2921 = vmatprep.subr.mxu0 0.0
    %2922 = vmatpush1.msra.mxu0 0.0
    %2923 = vmatprep.subr.mxu0 0.0
    %2924 = vmatpush1.msra.mxu0 0.0
    %2925 = vmatprep.subr.mxu0 0.0
    %2926 = vmatpush1.msra.mxu0 0.0
    %2927 = vmatprep.subr.mxu0 0.0
    %2928 = vmatpush1.msra.mxu0 0.0
    %2929 = vmatprep.subr.mxu0 0.0
    %2930 = vmatpush1.msra.mxu0 0.0
    %2931 = vmatprep.subr.mxu0 0.0
    %2932 = vmatpush1.msra.mxu0 0.0
    %2933 = vmatprep.subr.mxu0 0.0
    %2934 = vmatpush1.msra.mxu0 0.0
    %2935 = vmatprep.subr.mxu0 0.0
    %2936 = vmatpush1.msra.mxu0 0.0
    %2937 = vmatprep.subr.mxu0 0.0
    %2938 = vmatpush1.msra.mxu0 0.0
    %2939 = vmatprep.subr.mxu0 0.0
    %2940 = vmatpush1.msra.mxu0 0.0
    %2941 = vmatprep.subr.mxu0 0.0
    %2942 = vmatpush1.msra.mxu0 0.0
    %2943 = vmatprep.subr.mxu0 0.0
    %2944 = vmatpush1.msra.mxu0 0.0
    %2945 = vmatprep.subr.mxu0 0.0
    %2946 = vmatpush1.msra.mxu0 0.0
    %2947 = vmatprep.subr.mxu0 0.0
    %2948 = vmatpush1.msra.mxu0 0.0
    %2949 = vmatprep.subr.mxu0 0.0
    %2950 = vmatpush1.msra.mxu0 0.0
    %2951 = vmatprep.subr.mxu0 0.0
    %2952 = vmatpush1.msra.mxu0 0.0
    %2953 = vmatprep.subr.mxu0 0.0
    %2954 = vmatpush1.msra.mxu0 0.0
    %2955 = vmatprep.subr.mxu0 0.0
    %2956 = vmatpush1.msra.mxu0 0.0
    %2957 = vmatprep.subr.mxu0 0.0
    %2958 = vmatpush1.msra.mxu0 0.0
    %2959 = vmatprep.mubr.f32.mxu0 0.0
    %2960 = vmatmul.mubr.f32.gmra.mrb[0].mxu0 %v2893
    %v2961 = vpop.f32.mrb[0].mxu0
    %v2962 = vadd.f32 0.0, %v2961
    %v2963 = vpop.f32.mrb[0].mxu0
    %2964 = vdwg.mxu0
    %2966 = vrot.lane.b32.xlu0 %v638, 4
    %v2967 = vpop.permute.xlu0 %2966
    %2970 = vrot.lane.b32.xlu0 %v804, 8
    %v2971 = vpop.permute.xlu0 %2970
    %2974 = vrot.lane.b32.xlu0 %v970, 12
    %v2975 = vpop.permute.xlu0 %2974
    %2978 = vrot.lane.b32.xlu0 %v1136, 16
    %v2979 = vpop.permute.xlu0 %2978
    %2982 = vrot.lane.b32.xlu0 %v1302, 20
    %v2983 = vpop.permute.xlu0 %2982
    %2986 = vrot.lane.b32.xlu0 %v1468, 24
    %v2987 = vpop.permute.xlu0 %2986
    %2990 = vrot.lane.b32.xlu0 %v1634, 28
    %v2991 = vpop.permute.xlu0 %2990
    %2994 = vrot.lane.b32.xlu0 %v1800, 32
    %v2995 = vpop.permute.xlu0 %2994
    %2998 = vrot.lane.b32.xlu0 %v1966, 36
    %v2999 = vpop.permute.xlu0 %2998
    %3002 = vrot.lane.b32.xlu0 %v2132, 40
    %v3003 = vpop.permute.xlu0 %3002
    %3006 = vrot.lane.b32.xlu0 %v2298, 44
    %v3007 = vpop.permute.xlu0 %3006
    %3010 = vrot.lane.b32.xlu0 %v2464, 48
    %v3011 = vpop.permute.xlu0 %3010
    %3014 = vrot.lane.b32.xlu0 %v2630, 52
    %v3015 = vpop.permute.xlu0 %3014
    %3018 = vrot.lane.b32.xlu0 %v2796, 56
    %v3019 = vpop.permute.xlu0 %3018
    %3022 = vrot.lane.b32.xlu0 %v2962, 60
    %v3023 = vpop.permute.xlu0 %3022
    %v3025 = vsel %vm314, %v472, %v2967
    %v3026 = vsel %vm390, %v3025, %v2971
    %vm3027 = vcmask 97280
    %v3028 = vsel %vm3027, %v3026, %v2975
    %vm3029 = vcmask 130048
    %v3030 = vsel %vm3029, %v3028, %v2979
    %vm3031 = vcmask 162816
    %v3032 = vsel %vm3031, %v3030, %v2983
    %vm3033 = vcmask 195584
    %v3034 = vsel %vm3033, %v3032, %v2987
    %vm3035 = vcmask 228352
    %v3036 = vsel %vm3035, %v3034, %v2991
    %vm3037 = vcmask 261120
    %v3038 = vsel %vm3037, %v3036, %v2995
    %vm3039 = vcmask 293888
    %v3040 = vsel %vm3039, %v3038, %v2999
    %vm3041 = vcmask 326656
    %v3042 = vsel %vm3041, %v3040, %v3003
    %vm3043 = vcmask 359424
    %v3044 = vsel %vm3043, %v3042, %v3007
    %vm3045 = vcmask 392192
    %v3046 = vsel %vm3045, %v3044, %v3011
    %vm3047 = vcmask 424960
    %v3048 = vsel %vm3047, %v3046, %v3015
    %vm3049 = vcmask 457728
    %v3050 = vsel %vm3049, %v3048, %v3019
    %vm3051 = vcmask 490496
    %v3052 = vsel %vm3051, %v3050, %v3023
    %3054 = vrot.lane.b32.xlu0 %v198, 64
    %v3055 = vpop.permute.xlu0 %3054
    %v3056 = vsel %vm314, %v198, 0
    %v3058 = vsel %vm314, %v3055, 0
    %3060 = vmatprep.subr.mxu0 0.0
    %3061 = vmatpush1.xpose.msra.mxu0 %v3058
    %3062 = vmatprep.subr.mxu0 0.0
    %3063 = vmatpush1.xpose.msra.mxu0 0.0
    %3064 = vmatprep.subr.mxu0 0.0
    %3065 = vmatpush1.xpose.msra.mxu0 0.0
    %3066 = vmatprep.subr.mxu0 0.0
    %3067 = vmatpush1.xpose.msra.mxu0 0.0
    %3068 = vmatprep.subr.mxu0 0.0
    %3069 = vmatpush1.xpose.msra.mxu0 0.0
    %3070 = vmatprep.subr.mxu0 0.0
    %3071 = vmatpush1.xpose.msra.mxu0 0.0
    %3072 = vmatprep.subr.mxu0 0.0
    %3073 = vmatpush1.xpose.msra.mxu0 0.0
    %3074 = vmatprep.subr.mxu0 0.0
    %3075 = vmatpush1.xpose.msra.mxu0 0.0
    %3076 = vmatprep.subr.mxu0 0.0
    %3077 = vmatpush1.xpose.msra.mxu0 0.0
    %3078 = vmatprep.subr.mxu0 0.0
    %3079 = vmatpush1.xpose.msra.mxu0 0.0
    %3080 = vmatprep.subr.mxu0 0.0
    %3081 = vmatpush1.xpose.msra.mxu0 0.0
    %3082 = vmatprep.subr.mxu0 0.0
    %3083 = vmatpush1.xpose.msra.mxu0 0.0
    %3084 = vmatprep.subr.mxu0 0.0
    %3085 = vmatpush1.xpose.msra.mxu0 0.0
    %3086 = vmatprep.subr.mxu0 0.0
    %3087 = vmatpush1.xpose.msra.mxu0 0.0
    %3088 = vmatprep.subr.mxu0 0.0
    %3089 = vmatpush1.xpose.msra.mxu0 0.0
    %3090 = vmatprep.subr.mxu0 0.0
    %3091 = vmatpush1.xpose.msra.mxu0 0.0
    %3092 = vmatprep.subr.mxu0 0.0
    %3093 = vmatpush1.xpose.msra.mxu0 0.0
    %3094 = vmatprep.subr.mxu0 0.0
    %3095 = vmatpush1.xpose.msra.mxu0 0.0
    %3096 = vmatprep.subr.mxu0 0.0
    %3097 = vmatpush1.xpose.msra.mxu0 0.0
    %3098 = vmatprep.subr.mxu0 0.0
    %3099 = vmatpush1.xpose.msra.mxu0 0.0
    %3100 = vmatprep.subr.mxu0 0.0
    %3101 = vmatpush1.xpose.msra.mxu0 0.0
    %3102 = vmatprep.subr.mxu0 0.0
    %3103 = vmatpush1.xpose.msra.mxu0 0.0
    %3104 = vmatprep.subr.mxu0 0.0
    %3105 = vmatpush1.xpose.msra.mxu0 0.0
    %3106 = vmatprep.subr.mxu0 0.0
    %3107 = vmatpush1.xpose.msra.mxu0 0.0
    %3108 = vmatprep.subr.mxu0 0.0
    %3109 = vmatpush1.xpose.msra.mxu0 0.0
    %3110 = vmatprep.subr.mxu0 0.0
    %3111 = vmatpush1.xpose.msra.mxu0 0.0
    %3112 = vmatprep.subr.mxu0 0.0
    %3113 = vmatpush1.xpose.msra.mxu0 0.0
    %3114 = vmatprep.subr.mxu0 0.0
    %3115 = vmatpush1.xpose.msra.mxu0 0.0
    %3116 = vmatprep.subr.mxu0 0.0
    %3117 = vmatpush1.xpose.msra.mxu0 0.0
    %3118 = vmatprep.subr.mxu0 0.0
    %3119 = vmatpush1.xpose.msra.mxu0 0.0
    %3120 = vmatprep.subr.mxu0 0.0
    %3121 = vmatpush1.xpose.msra.mxu0 0.0
    %3122 = vmatprep.subr.mxu0 0.0
    %3123 = vmatpush1.xpose.msra.mxu0 0.0
    %3124 = vmatprep.mubr.f32.mxu0 0.0
    %3125 = vmatmul.mubr.f32.gmra.mrb[0].mxu0 %v3056
    %v3126 = vpop.f32.mrb[0].mxu0
    %v3127 = vadd.f32 0.0, %v3126
    %v3128 = vpop.f32.mrb[0].mxu0
    %3129 = vdwg.mxu0
    %v3130 = vmul.f32 %v3127, 0.5
    %v3131 = vsel %vm390, %v3130, -inf
    %3132 = vmax.xlane.f32.xlu0 %v3131
    %v3133 = vpop.xlane.xlu0 %3132
    %v3134 = vsub.f32 %v3130, %v3133
    %v3135 = vmul.f32 %v3134, 1.442695
    %v3136 = vpow.pop %v3135
    %v3137 = vsel %vm390, %v3136, 0.0
    %3138 = vadd.xlane.f32.xlu0 %v3137
    %v3139 = vpop.xlane.xlu0 %3138
    %v3140 = vrcp.pop %v3139
    %v3141 = vmul.f32 %v3136, %v3140
    %v3143 = vsel %vm390, %v3141, 0
    %3145 = vmatprep.subr.mxu0 0.0
    %3146 = vmatpush1.msra.mxu0 %v306
    %3147 = vmatprep.subr.mxu0 0.0
    %3148 = vmatpush1.msra.mxu0 0.0
    %3149 = vmatprep.subr.mxu0 0.0
    %3150 = vmatpush1.msra.mxu0 0.0
    %3151 = vmatprep.subr.mxu0 0.0
    %3152 = vmatpush1.msra.mxu0 0.0
    %3153 = vmatprep.subr.mxu0 0.0
    %3154 = vmatpush1.msra.mxu0 0.0
    %3155 = vmatprep.subr.mxu0 0.0
    %3156 = vmatpush1.msra.mxu0 0.0
    %3157 = vmatprep.subr.mxu0 0.0
    %3158 = vmatpush1.msra.mxu0 0.0
    %3159 = vmatprep.subr.mxu0 0.0
    %3160 = vmatpush1.msra.mxu0 0.0
    %3161 = vmatprep.subr.mxu0 0.0
    %3162 = vmatpush1.msra.mxu0 0.0
    %3163 = vmatprep.subr.mxu0 0.0
    %3164 = vmatpush1.msra.mxu0 0.0
    %3165 = vmatprep.subr.mxu0 0.0
    %3166 = vmatpush1.msra.mxu0 0.0
    %3167 = vmatprep.subr.mxu0 0.0
    %3168 = vmatpush1.msra.mxu0 0.0
    %3169 = vmatprep.subr.mxu0 0.0
    %3170 = vmatpush1.msra.mxu0 0.0
    %3171 = vmatprep.subr.mxu0 0.0
    %3172 = vmatpush1.msra.mxu0 0.0
    %3173 = vmatprep.subr.mxu0 0.0
    %3174 = vmatpush1.msra.mxu0 0.0
    %3175 = vmatprep.subr.mxu0 0.0
    %3176 = vmatpush1.msra.mxu0 0.0
    %3177 = vmatprep.subr.mxu0 0.0
    %3178 = vmatpush1.msra.mxu0 0.0
    %3179 = vmatprep.subr.mxu0 0.0
    %3180 = vmatpush1.msra.mxu0 0.0
    %3181 = vmatprep.subr.mxu0 0.0
    %3182 = vmatpush1.msra.mxu0 0.0
    %3183 = vmatprep.subr.mxu0 0.0
    %3184 = vmatpush1.msra.mxu0 0.0
    %3185 = vmatprep.subr.mxu0 0.0
    %3186 = vmatpush1.msra.mxu0 0.0
    %3187 = vmatprep.subr.mxu0 0.0
    %3188 = vmatpush1.msra.mxu0 0.0
    %3189 = vmatprep.subr.mxu0 0.0
    %3190 = vmatpush1.msra.mxu0 0.0
    %3191 = vmatprep.subr.mxu0 0.0
    %3192 = vmatpush1.msra.mxu0 0.0
    %3193 = vmatprep.subr.mxu0 0.0
    %3194 = vmatpush1.msra.mxu0 0.0
    %3195 = vmatprep.subr.mxu0 0.0
    %3196 = vmatpush1.msra.mxu0 0.0
    %3197 = vmatprep.subr.mxu0 0.0
    %3198 = vmatpush1.msra.mxu0 0.0
    %3199 = vmatprep.subr.mxu0 0.0
    %3200 = vmatpush1.msra.mxu0 0.0
    %3201 = vmatprep.subr.mxu0 0.0
    %3202 = vmatpush1.msra.mxu0 0.0
    %3203 = vmatprep.subr.mxu0 0.0
    %3204 = vmatpush1.msra.mxu0 0.0
    %3205 = vmatprep.subr.mxu0 0.0
    %3206 = vmatpush1.msra.mxu0 0.0
    %3207 = vmatprep.subr.mxu0 0.0
    %3208 = vmatpush1.msra.mxu0 0.0
    %3209 = vmatprep.mubr.f32.mxu0 0.0
    %3210 = vmatmul.mubr.f32.gmra.mrb[0].mxu0 %v3143
    %v3211 = vpop.f32.mrb[0].mxu0
    %v3212 = vadd.f32 0.0, %v3211
    %v3213 = vpop.f32.mrb[0].mxu0
    %3214 = vdwg.mxu0
    %3215 = vrot.lane.b32.xlu0 %v198, 124
    %v3216 = vpop.permute.xlu0 %3215
    %3217 = vrot.lane.b32.xlu0 %v198, 60
    %v3218 = vpop.permute.xlu0 %3217
    %v3219 = vsel %vm314, %v3216, 0
    %v3221 = vsel %vm314, %v3218, 0
    %3223 = vmatprep.subr.mxu0 0.0
    %3224 = vmatpush1.xpose.msra.mxu0 %v3221
    %3225 = vmatprep.subr.mxu0 0.0
    %3226 = vmatpush1.xpose.msra.mxu0 0.0
    %3227 = vmatprep.subr.mxu0 0.0
    %3228 = vmatpush1.xpose.msra.mxu0 0.0
    %3229 = vmatprep.subr.mxu0 0.0
    %3230 = vmatpush1.xpose.msra.mxu0 0.0
    %3231 = vmatprep.subr.mxu0 0.0
    %3232 = vmatpush1.xpose.msra.mxu0 0.0
    %3233 = vmatprep.subr.mxu0 0.0
    %3234 = vmatpush1.xpose.msra.mxu0 0.0
    %3235 = vmatprep.subr.mxu0 0.0
    %3236 = vmatpush1.xpose.msra.mxu0 0.0
    %3237 = vmatprep.subr.mxu0 0.0
    %3238 = vmatpush1.xpose.msra.mxu0 0.0
    %3239 = vmatprep.subr.mxu0 0.0
    %3240 = vmatpush1.xpose.msra.mxu0 0.0
    %3241 = vmatprep.subr.mxu0 0.0
    %3242 = vmatpush1.xpose.msra.mxu0 0.0
    %3243 = vmatprep.subr.mxu0 0.0
    %3244 = vmatpush1.xpose.msra.mxu0 0.0
    %3245 = vmatprep.subr.mxu0 0.0
    %3246 = vmatpush1.xpose.msra.mxu0 0.0
    %3247 = vmatprep.subr.mxu0 0.0
    %3248 = vmatpush1.xpose.msra.mxu0 0.0
    %3249 = vmatprep.subr.mxu0 0.0
    %3250 = vmatpush1.xpose.msra.mxu0 0.0
    %3251 = vmatprep.subr.mxu0 0.0
    %3252 = vmatpush1.xpose.msra.mxu0 0.0
    %3253 = vmatprep.subr.mxu0 0.0
    %3254 = vmatpush1.xpose.msra.mxu0 0.0
    %3255 = vmatprep.subr.mxu0 0.0
    %3256 = vmatpush1.xpose.msra.mxu0 0.0
    %3257 = vmatprep.subr.mxu0 0.0
    %3258 = vmatpush1.xpose.msra.mxu0 0.0
    %3259 = vmatprep.subr.mxu0 0.0
    %3260 = vmatpush1.xpose.msra.mxu0 0.0
    %3261 = vmatprep.subr.mxu0 0.0
    %3262 = vmatpush1.xpose.msra.mxu0 0.0
    %3263 = vmatprep.subr.mxu0 0.0
    %3264 = vmatpush1.xpose.msra.mxu0 0.0
    %3265 = vmatprep.subr.mxu0 0.0
    %3266 = vmatpush1.xpose.msra.mxu0 0.0
    %3267 = vmatprep.subr.mxu0 0.0
    %3268 = vmatpush1.xpose.msra.mxu0 0.0
    %3269 = vmatprep.subr.mxu0 0.0
    %3270 = vmatpush1.xpose.msra.mxu0 0.0
    %3271 = vmatprep.subr.mxu0 0.0
    %3272 = vmatpush1.xpose.msra.mxu0 0.0
    %3273 = vmatprep.subr.mxu0 0.0
    %3274 = vmatpush1.xpose.msra.mxu0 0.0
    %3275 = vmatprep.subr.mxu0 0.0
    %3276 = vmatpush1.xpose.msra.mxu0 0.0
    %3277 = vmatprep.subr.mxu0 0.0
    %3278 = vmatpush1.xpose.msra.mxu0 0.0
    %3279 = vmatprep.subr.mxu0 0.0
    %3280 = vmatpush1.xpose.msra.mxu0 0.0
    %3281 = vmatprep.subr.mxu0 0.0
    %3282 = vmatpush1.xpose.msra.mxu0 0.0
    %3283 = vmatprep.subr.mxu0 0.0
    %3284 = vmatpush1.xpose.msra.mxu0 0.0
    %3285 = vmatprep.subr.mxu0 0.0
    %3286 = vmatpush1.xpose.msra.mxu0 0.0
    %3287 = vmatprep.mubr.f32.mxu0 0.0
    %3288 = vmatmul.mubr.f32.gmra.mrb[0].mxu0 %v3219
    %v3289 = vpop.f32.mrb[0].mxu0
    %v3290 = vadd.f32 0.0, %v3289
    %v3291 = vpop.f32.mrb[0].mxu0
    %3292 = vdwg.mxu0
    %v3293 = vmul.f32 %v3290, 0.5
    %v3294 = vsel %vm390, %v3293, -inf
    %3295 = vmax.xlane.f32.xlu0 %v3294
    %v3296 = vpop.xlane.xlu0 %3295
    %v3297 = vsub.f32 %v3293, %v3296
    %v3298 = vmul.f32 %v3297, 1.442695
    %v3299 = vpow.pop %v3298
    %v3300 = vsel %vm390, %v3299, 0.0
    %3301 = vadd.xlane.f32.xlu0 %v3300
    %v3302 = vpop.xlane.xlu0 %3301
    %v3303 = vrcp.pop %v3302
    %v3304 = vmul.f32 %v3299, %v3303
    %3305 = vrot.lane.b32.xlu0 %v296, 60
    %v3306 = vpop.permute.xlu0 %3305
    %v3309 = vsel %vm390, %v3304, 0
    %3311 = vmatprep.subr.mxu0 0.0
    %3312 = vmatpush1.msra.mxu0 %v3306
    %3313 = vmatprep.subr.mxu0 0.0
    %3314 = vmatpush1.msra.mxu0 0.0
    %3315 = vmatprep.subr.mxu0 0.0
    %3316 = vmatpush1.msra.mxu0 0.0
    %3317 = vmatprep.subr.mxu0 0.0
    %3318 = vmatpush1.msra.mxu0 0.0
    %3319 = vmatprep.subr.mxu0 0.0
    %3320 = vmatpush1.msra.mxu0 0.0
    %3321 = vmatprep.subr.mxu0 0.0
    %3322 = vmatpush1.msra.mxu0 0.0
    %3323 = vmatprep.subr.mxu0 0.0
    %3324 = vmatpush1.msra.mxu0 0.0
    %3325 = vmatprep.subr.mxu0 0.0
    %3326 = vmatpush1.msra.mxu0 0.0
    %3327 = vmatprep.subr.mxu0 0.0
    %3328 = vmatpush1.msra.mxu0 0.0
    %3329 = vmatprep.subr.mxu0 0.0
    %3330 = vmatpush1.msra.mxu0 0.0
    %3331 = vmatprep.subr.mxu0 0.0
    %3332 = vmatpush1.msra.mxu0 0.0
    %3333 = vmatprep.subr.mxu0 0.0
    %3334 = vmatpush1.msra.mxu0 0.0
    %3335 = vmatprep.subr.mxu0 0.0
    %3336 = vmatpush1.msra.mxu0 0.0
    %3337 = vmatprep.subr.mxu0 0.0
    %3338 = vmatpush1.msra.mxu0 0.0
    %3339 = vmatprep.subr.mxu0 0.0
    %3340 = vmatpush1.msra.mxu0 0.0
    %3341 = vmatprep.subr.mxu0 0.0
    %3342 = vmatpush1.msra.mxu0 0.0
    %3343 = vmatprep.subr.mxu0 0.0
    %3344 = vmatpush1.msra.mxu0 0.0
    %3345 = vmatprep.subr.mxu0 0.0
    %3346 = vmatpush1.msra.mxu0 0.0
    %3347 = vmatprep.subr.mxu0 0.0
    %3348 = vmatpush1.msra.mxu0 0.0
    %3349 = vmatprep.subr.mxu0 0.0
    %3350 = vmatpush1.msra.mxu0 0.0
    %3351 = vmatprep.subr.mxu0 0.0
    %3352 = vmatpush1.msra.mxu0 0.0
    %3353 = vmatprep.subr.mxu0 0.0
    %3354 = vmatpush1.msra.mxu0 0.0
    %3355 = vmatprep.subr.mxu0 0.0
    %3356 = vmatpush1.msra.mxu0 0.0
    %3357 = vmatprep.subr.mxu0 0.0
    %3358 = vmatpush1.msra.mxu0 0.0
    %3359 = vmatprep.subr.mxu0 0.0
    %3360 = vmatpush1.msra.mxu0 0.0
    %3361 = vmatprep.subr.mxu0 0.0
    %3362 = vmatpush1.msra.mxu0 0.0
    %3363 = vmatprep.subr.mxu0 0.0
    %3364 = vmatpush1.msra.mxu0 0.0
    %3365 = vmatprep.subr.mxu0 0.0
    %3366 = vmatpush1.msra.mxu0 0.0
    %3367 = vmatprep.subr.mxu0 0.0
    %3368 = vmatpush1.msra.mxu0 0.0
    %3369 = vmatprep.subr.mxu0 0.0
    %3370 = vmatpush1.msra.mxu0 0.0
    %3371 = vmatprep.subr.mxu0 0.0
    %3372 = vmatpush1.msra.mxu0 0.0
    %3373 = vmatprep.subr.mxu0 0.0
    %3374 = vmatpush1.msra.mxu0 0.0
    %3375 = vmatprep.mubr.f32.mxu0 0.0
    %3376 = vmatmul.mubr.f32.gmra.mrb[0].mxu0 %v3309
    %v3377 = vpop.f32.mrb[0].mxu0
    %v3378 = vadd.f32 0.0, %v3377
    %v3379 = vpop.f32.mrb[0].mxu0
    %3380 = vdwg.mxu0
    %3381 = vrot.lane.b32.xlu0 %v198, 120
    %v3382 = vpop.permute.xlu0 %3381
    %3383 = vrot.lane.b32.xlu0 %v198, 56
    %v3384 = vpop.permute.xlu0 %3383
    %v3385 = vsel %vm314, %v3382, 0
    %v3387 = vsel %vm314, %v3384, 0
    %3389 = vmatprep.subr.mxu0 0.0
    %3390 = vmatpush1.xpose.msra.mxu0 %v3387
    %3391 = vmatprep.subr.mxu0 0.0
    %3392 = vmatpush1.xpose.msra.mxu0 0.0
    %3393 = vmatprep.subr.mxu0 0.0
    %3394 = vmatpush1.xpose.msra.mxu0 0.0
    %3395 = vmatprep.subr.mxu0 0.0
    %3396 = vmatpush1.xpose.msra.mxu0 0.0
    %3397 = vmatprep.subr.mxu0 0.0
    %3398 = vmatpush1.xpose.msra.mxu0 0.0
    %3399 = vmatprep.subr.mxu0 0.0
    %3400 = vmatpush1.xpose.msra.mxu0 0.0
    %3401 = vmatprep.subr.mxu0 0.0
    %3402 = vmatpush1.xpose.msra.mxu0 0.0
    %3403 = vmatprep.subr.mxu0 0.0
    %3404 = vmatpush1.xpose.msra.mxu0 0.0
    %3405 = vmatprep.subr.mxu0 0.0
    %3406 = vmatpush1.xpose.msra.mxu0 0.0
    %3407 = vmatprep.subr.mxu0 0.0
    %3408 = vmatpush1.xpose.msra.mxu0 0.0
    %3409 = vmatprep.subr.mxu0 0.0
    %3410 = vmatpush1.xpose.msra.mxu0 0.0
    %3411 = vmatprep.subr.mxu0 0.0
    %3412 = vmatpush1.xpose.msra.mxu0 0.0
    %3413 = vmatprep.subr.mxu0 0.0
    %3414 = vmatpush1.xpose.msra.mxu0 0.0
    %3415 = vmatprep.subr.mxu0 0.0
    %3416 = vmatpush1.xpose.msra.mxu0 0.0
    %3417 = vmatprep.subr.mxu0 0.0
    %3418 = vmatpush1.xpose.msra.mxu0 0.0
    %3419 = vmatprep.subr.mxu0 0.0
    %3420 = vmatpush1.xpose.msra.mxu0 0.0
    %3421 = vmatprep.subr.mxu0 0.0
    %3422 = vmatpush1.xpose.msra.mxu0 0.0
    %3423 = vmatprep.subr.mxu0 0.0
    %3424 = vmatpush1.xpose.msra.mxu0 0.0
    %3425 = vmatprep.subr.mxu0 0.0
    %3426 = vmatpush1.xpose.msra.mxu0 0.0
    %3427 = vmatprep.subr.mxu0 0.0
    %3428 = vmatpush1.xpose.msra.mxu0 0.0
    %3429 = vmatprep.subr.mxu0 0.0
    %3430 = vmatpush1.xpose.msra.mxu0 0.0
    %3431 = vmatprep.subr.mxu0 0.0
    %3432 = vmatpush1.xpose.msra.mxu0 0.0
    %3433 = vmatprep.subr.mxu0 0.0
    %3434 = vmatpush1.xpose.msra.mxu0 0.0
    %3435 = vmatprep.subr.mxu0 0.0
    %3436 = vmatpush1.xpose.msra.mxu0 0.0
    %3437 = vmatprep.subr.mxu0 0.0
    %3438 = vmatpush1.xpose.msra.mxu0 0.0
    %3439 = vmatprep.subr.mxu0 0.0
    %3440 = vmatpush1.xpose.msra.mxu0 0.0
    %3441 = vmatprep.subr.mxu0 0.0
    %3442 = vmatpush1.xpose.msra.mxu0 0.0
    %3443 = vmatprep.subr.mxu0 0.0
    %3444 = vmatpush1.xpose.msra.mxu0 0.0
    %3445 = vmatprep.subr.mxu0 0.0
    %3446 = vmatpush1.xpose.msra.mxu0 0.0
    %3447 = vmatprep.subr.mxu0 0.0
    %3448 = vmatpush1.xpose.msra.mxu0 0.0
    %3449 = vmatprep.subr.mxu0 0.0
    %3450 = vmatpush1.xpose.msra.mxu0 0.0
    %3451 = vmatprep.subr.mxu0 0.0
    %3452 = vmatpush1.xpose.msra.mxu0 0.0
    %3453 = vmatprep.mubr.f32.mxu0 0.0
    %3454 = vmatmul.mubr.f32.gmra.mrb[0].mxu0 %v3385
    %v3455 = vpop.f32.mrb[0].mxu0
    %v3456 = vadd.f32 0.0, %v3455
    %v3457 = vpop.f32.mrb[0].mxu0
    %3458 = vdwg.mxu0
    %v3459 = vmul.f32 %v3456, 0.5
    %v3460 = vsel %vm390, %v3459, -inf
    %3461 = vmax.xlane.f32.xlu0 %v3460
    %v3462 = vpop.xlane.xlu0 %3461
    %v3463 = vsub.f32 %v3459, %v3462
    %v3464 = vmul.f32 %v3463, 1.442695
    %v3465 = vpow.pop %v3464
    %v3466 = vsel %vm390, %v3465, 0.0
    %3467 = vadd.xlane.f32.xlu0 %v3466
    %v3468 = vpop.xlane.xlu0 %3467
    %v3469 = vrcp.pop %v3468
    %v3470 = vmul.f32 %v3465, %v3469
    %3471 = vrot.lane.b32.xlu0 %v296, 56
    %v3472 = vpop.permute.xlu0 %3471
    %v3475 = vsel %vm390, %v3470, 0
    %3477 = vmatprep.subr.mxu0 0.0
    %3478 = vmatpush1.msra.mxu0 %v3472
    %3479 = vmatprep.subr.mxu0 0.0
    %3480 = vmatpush1.msra.mxu0 0.0
    %3481 = vmatprep.subr.mxu0 0.0
    %3482 = vmatpush1.msra.mxu0 0.0
    %3483 = vmatprep.subr.mxu0 0.0
    %3484 = vmatpush1.msra.mxu0 0.0
    %3485 = vmatprep.subr.mxu0 0.0
    %3486 = vmatpush1.msra.mxu0 0.0
    %3487 = vmatprep.subr.mxu0 0.0
    %3488 = vmatpush1.msra.mxu0 0.0
    %3489 = vmatprep.subr.mxu0 0.0
    %3490 = vmatpush1.msra.mxu0 0.0
    %3491 = vmatprep.subr.mxu0 0.0
    %3492 = vmatpush1.msra.mxu0 0.0
    %3493 = vmatprep.subr.mxu0 0.0
    %3494 = vmatpush1.msra.mxu0 0.0
    %3495 = vmatprep.subr.mxu0 0.0
    %3496 = vmatpush1.msra.mxu0 0.0
    %3497 = vmatprep.subr.mxu0 0.0
    %3498 = vmatpush1.msra.mxu0 0.0
    %3499 = vmatprep.subr.mxu0 0.0
    %3500 = vmatpush1.msra.mxu0 0.0
    %3501 = vmatprep.subr.mxu0 0.0
    %3502 = vmatpush1.msra.mxu0 0.0
    %3503 = vmatprep.subr.mxu0 0.0
    %3504 = vmatpush1.msra.mxu0 0.0
    %3505 = vmatprep.subr.mxu0 0.0
    %3506 = vmatpush1.msra.mxu0 0.0
    %3507 = vmatprep.subr.mxu0 0.0
    %3508 = vmatpush1.msra.mxu0 0.0
    %3509 = vmatprep.subr.mxu0 0.0
    %3510 = vmatpush1.msra.mxu0 0.0
    %3511 = vmatprep.subr.mxu0 0.0
    %3512 = vmatpush1.msra.mxu0 0.0
    %3513 = vmatprep.subr.mxu0 0.0
    %3514 = vmatpush1.msra.mxu0 0.0
    %3515 = vmatprep.subr.mxu0 0.0
    %3516 = vmatpush1.msra.mxu0 0.0
    %3517 = vmatprep.subr.mxu0 0.0
    %3518 = vmatpush1.msra.mxu0 0.0
    %3519 = vmatprep.subr.mxu0 0.0
    %3520 = vmatpush1.msra.mxu0 0.0
    %3521 = vmatprep.subr.mxu0 0.0
    %3522 = vmatpush1.msra.mxu0 0.0
    %3523 = vmatprep.subr.mxu0 0.0
    %3524 = vmatpush1.msra.mxu0 0.0
    %3525 = vmatprep.subr.mxu0 0.0
    %3526 = vmatpush1.msra.mxu0 0.0
    %3527 = vmatprep.subr.mxu0 0.0
    %3528 = vmatpush1.msra.mxu0 0.0
    %3529 = vmatprep.subr.mxu0 0.0
    %3530 = vmatpush1.msra.mxu0 0.0
    %3531 = vmatprep.subr.mxu0 0.0
    %3532 = vmatpush1.msra.mxu0 0.0
    %3533 = vmatprep.subr.mxu0 0.0
    %3534 = vmatpush1.msra.mxu0 0.0
    %3535 = vmatprep.subr.mxu0 0.0
    %3536 = vmatpush1.msra.mxu0 0.0
    %3537 = vmatprep.subr.mxu0 0.0
    %3538 = vmatpush1.msra.mxu0 0.0
    %3539 = vmatprep.subr.mxu0 0.0
    %3540 = vmatpush1.msra.mxu0 0.0
    %3541 = vmatprep.mubr.f32.mxu0 0.0
    %3542 = vmatmul.mubr.f32.gmra.mrb[0].mxu0 %v3475
    %v3543 = vpop.f32.mrb[0].mxu0
    %v3544 = vadd.f32 0.0, %v3543
    %v3545 = vpop.f32.mrb[0].mxu0
    %3546 = vdwg.mxu0
    %3547 = vrot.lane.b32.xlu0 %v198, 116
    %v3548 = vpop.permute.xlu0 %3547
    %3549 = vrot.lane.b32.xlu0 %v198, 52
    %v3550 = vpop.permute.xlu0 %3549
    %v3551 = vsel %vm314, %v3548, 0
    %v3553 = vsel %vm314, %v3550, 0
    %3555 = vmatprep.subr.mxu0 0.0
    %3556 = vmatpush1.xpose.msra.mxu0 %v3553
    %3557 = vmatprep.subr.mxu0 0.0
    %3558 = vmatpush1.xpose.msra.mxu0 0.0
    %3559 = vmatprep.subr.mxu0 0.0
    %3560 = vmatpush1.xpose.msra.mxu0 0.0
    %3561 = vmatprep.subr.mxu0 0.0
    %3562 = vmatpush1.xpose.msra.mxu0 0.0
    %3563 = vmatprep.subr.mxu0 0.0
    %3564 = vmatpush1.xpose.msra.mxu0 0.0
    %3565 = vmatprep.subr.mxu0 0.0
    %3566 = vmatpush1.xpose.msra.mxu0 0.0
    %3567 = vmatprep.subr.mxu0 0.0
    %3568 = vmatpush1.xpose.msra.mxu0 0.0
    %3569 = vmatprep.subr.mxu0 0.0
    %3570 = vmatpush1.xpose.msra.mxu0 0.0
    %3571 = vmatprep.subr.mxu0 0.0
    %3572 = vmatpush1.xpose.msra.mxu0 0.0
    %3573 = vmatprep.subr.mxu0 0.0
    %3574 = vmatpush1.xpose.msra.mxu0 0.0
    %3575 = vmatprep.subr.mxu0 0.0
    %3576 = vmatpush1.xpose.msra.mxu0 0.0
    %3577 = vmatprep.subr.mxu0 0.0
    %3578 = vmatpush1.xpose.msra.mxu0 0.0
    %3579 = vmatprep.subr.mxu0 0.0
    %3580 = vmatpush1.xpose.msra.mxu0 0.0
    %3581 = vmatprep.subr.mxu0 0.0
    %3582 = vmatpush1.xpose.msra.mxu0 0.0
    %3583 = vmatprep.subr.mxu0 0.0
    %3584 = vmatpush1.xpose.msra.mxu0 0.0
    %3585 = vmatprep.subr.mxu0 0.0
    %3586 = vmatpush1.xpose.msra.mxu0 0.0
    %3587 = vmatprep.subr.mxu0 0.0
    %3588 = vmatpush1.xpose.msra.mxu0 0.0
    %3589 = vmatprep.subr.mxu0 0.0
    %3590 = vmatpush1.xpose.msra.mxu0 0.0
    %3591 = vmatprep.subr.mxu0 0.0
    %3592 = vmatpush1.xpose.msra.mxu0 0.0
    %3593 = vmatprep.subr.mxu0 0.0
    %3594 = vmatpush1.xpose.msra.mxu0 0.0
    %3595 = vmatprep.subr.mxu0 0.0
    %3596 = vmatpush1.xpose.msra.mxu0 0.0
    %3597 = vmatprep.subr.mxu0 0.0
    %3598 = vmatpush1.xpose.msra.mxu0 0.0
    %3599 = vmatprep.subr.mxu0 0.0
    %3600 = vmatpush1.xpose.msra.mxu0 0.0
    %3601 = vmatprep.subr.mxu0 0.0
    %3602 = vmatpush1.xpose.msra.mxu0 0.0
    %3603 = vmatprep.subr.mxu0 0.0
    %3604 = vmatpush1.xpose.msra.mxu0 0.0
    %3605 = vmatprep.subr.mxu0 0.0
    %3606 = vmatpush1.xpose.msra.mxu0 0.0
    %3607 = vmatprep.subr.mxu0 0.0
    %3608 = vmatpush1.xpose.msra.mxu0 0.0
    %3609 = vmatprep.subr.mxu0 0.0
    %3610 = vmatpush1.xpose.msra.mxu0 0.0
    %3611 = vmatprep.subr.mxu0 0.0
    %3612 = vmatpush1.xpose.msra.mxu0 0.0
    %3613 = vmatprep.subr.mxu0 0.0
    %3614 = vmatpush1.xpose.msra.mxu0 0.0
    %3615 = vmatprep.subr.mxu0 0.0
    %3616 = vmatpush1.xpose.msra.mxu0 0.0
    %3617 = vmatprep.subr.mxu0 0.0
    %3618 = vmatpush1.xpose.msra.mxu0 0.0
    %3619 = vmatprep.mubr.f32.mxu0 0.0
    %3620 = vmatmul.mubr.f32.gmra.mrb[0].mxu0 %v3551
    %v3621 = vpop.f32.mrb[0].mxu0
    %v3622 = vadd.f32 0.0, %v3621
    %v3623 = vpop.f32.mrb[0].mxu0
    %3624 = vdwg.mxu0
    %v3625 = vmul.f32 %v3622, 0.5
    %v3626 = vsel %vm390, %v3625, -inf
    %3627 = vmax.xlane.f32.xlu0 %v3626
    %v3628 = vpop.xlane.xlu0 %3627
    %v3629 = vsub.f32 %v3625, %v3628
    %v3630 = vmul.f32 %v3629, 1.442695
    %v3631 = vpow.pop %v3630
    %v3632 = vsel %vm390, %v3631, 0.0
    %3633 = vadd.xlane.f32.xlu0 %v3632
    %v3634 = vpop.xlane.xlu0 %3633
    %v3635 = vrcp.pop %v3634
    %v3636 = vmul.f32 %v3631, %v3635
    %3637 = vrot.lane.b32.xlu0 %v296, 52
    %v3638 = vpop.permute.xlu0 %3637
    %v3641 = vsel %vm390, %v3636, 0
    %3643 = vmatprep.subr.mxu0 0.0
    %3644 = vmatpush1.msra.mxu0 %v3638
    %3645 = vmatprep.subr.mxu0 0.0
    %3646 = vmatpush1.msra.mxu0 0.0
    %3647 = vmatprep.subr.mxu0 0.0
    %3648 = vmatpush1.msra.mxu0 0.0
    %3649 = vmatprep.subr.mxu0 0.0
    %3650 = vmatpush1.msra.mxu0 0.0
    %3651 = vmatprep.subr.mxu0 0.0
    %3652 = vmatpush1.msra.mxu0 0.0
    %3653 = vmatprep.subr.mxu0 0.0
    %3654 = vmatpush1.msra.mxu0 0.0
    %3655 = vmatprep.subr.mxu0 0.0
    %3656 = vmatpush1.msra.mxu0 0.0
    %3657 = vmatprep.subr.mxu0 0.0
    %3658 = vmatpush1.msra.mxu0 0.0
    %3659 = vmatprep.subr.mxu0 0.0
    %3660 = vmatpush1.msra.mxu0 0.0
    %3661 = vmatprep.subr.mxu0 0.0
    %3662 = vmatpush1.msra.mxu0 0.0
    %3663 = vmatprep.subr.mxu0 0.0
    %3664 = vmatpush1.msra.mxu0 0.0
    %3665 = vmatprep.subr.mxu0 0.0
    %3666 = vmatpush1.msra.mxu0 0.0
    %3667 = vmatprep.subr.mxu0 0.0
    %3668 = vmatpush1.msra.mxu0 0.0
    %3669 = vmatprep.subr.mxu0 0.0
    %3670 = vmatpush1.msra.mxu0 0.0
    %3671 = vmatprep.subr.mxu0 0.0
    %3672 = vmatpush1.msra.mxu0 0.0
    %3673 = vmatprep.subr.mxu0 0.0
    %3674 = vmatpush1.msra.mxu0 0.0
    %3675 = vmatprep.subr.mxu0 0.0
    %3676 = vmatpush1.msra.mxu0 0.0
    %3677 = vmatprep.subr.mxu0 0.0
    %3678 = vmatpush1.msra.mxu0 0.0
    %3679 = vmatprep.subr.mxu0 0.0
    %3680 = vmatpush1.msra.mxu0 0.0
    %3681 = vmatprep.subr.mxu0 0.0
    %3682 = vmatpush1.msra.mxu0 0.0
    %3683 = vmatprep.subr.mxu0 0.0
    %3684 = vmatpush1.msra.mxu0 0.0
    %3685 = vmatprep.subr.mxu0 0.0
    %3686 = vmatpush1.msra.mxu0 0.0
    %3687 = vmatprep.subr.mxu0 0.0
    %3688 = vmatpush1.msra.mxu0 0.0
    %3689 = vmatprep.subr.mxu0 0.0
    %3690 = vmatpush1.msra.mxu0 0.0
    %3691 = vmatprep.subr.mxu0 0.0
    %3692 = vmatpush1.msra.mxu0 0.0
    %3693 = vmatprep.subr.mxu0 0.0
    %3694 = vmatpush1.msra.mxu0 0.0
    %3695 = vmatprep.subr.mxu0 0.0
    %3696 = vmatpush1.msra.mxu0 0.0
    %3697 = vmatprep.subr.mxu0 0.0
    %3698 = vmatpush1.msra.mxu0 0.0
    %3699 = vmatprep.subr.mxu0 0.0
    %3700 = vmatpush1.msra.mxu0 0.0
    %3701 = vmatprep.subr.mxu0 0.0
    %3702 = vmatpush1.msra.mxu0 0.0
    %3703 = vmatprep.subr.mxu0 0.0
    %3704 = vmatpush1.msra.mxu0 0.0
    %3705 = vmatprep.subr.mxu0 0.0
    %3706 = vmatpush1.msra.mxu0 0.0
    %3707 = vmatprep.mubr.f32.mxu0 0.0
    %3708 = vmatmul.mubr.f32.gmra.mrb[0].mxu0 %v3641
    %v3709 = vpop.f32.mrb[0].mxu0
    %v3710 = vadd.f32 0.0, %v3709
    %v3711 = vpop.f32.mrb[0].mxu0
    %3712 = vdwg.mxu0
    %3713 = vrot.lane.b32.xlu0 %v198, 112
    %v3714 = vpop.permute.xlu0 %3713
    %3715 = vrot.lane.b32.xlu0 %v198, 48
    %v3716 = vpop.permute.xlu0 %3715
    %v3717 = vsel %vm314, %v3714, 0
    %v3719 = vsel %vm314, %v3716, 0
    %3721 = vmatprep.subr.mxu0 0.0
    %3722 = vmatpush1.xpose.msra.mxu0 %v3719
    %3723 = vmatprep.subr.mxu0 0.0
    %3724 = vmatpush1.xpose.msra.mxu0 0.0
    %3725 = vmatprep.subr.mxu0 0.0
    %3726 = vmatpush1.xpose.msra.mxu0 0.0
    %3727 = vmatprep.subr.mxu0 0.0
    %3728 = vmatpush1.xpose.msra.mxu0 0.0
    %3729 = vmatprep.subr.mxu0 0.0
    %3730 = vmatpush1.xpose.msra.mxu0 0.0
    %3731 = vmatprep.subr.mxu0 0.0
    %3732 = vmatpush1.xpose.msra.mxu0 0.0
    %3733 = vmatprep.subr.mxu0 0.0
    %3734 = vmatpush1.xpose.msra.mxu0 0.0
    %3735 = vmatprep.subr.mxu0 0.0
    %3736 = vmatpush1.xpose.msra.mxu0 0.0
    %3737 = vmatprep.subr.mxu0 0.0
    %3738 = vmatpush1.xpose.msra.mxu0 0.0
    %3739 = vmatprep.subr.mxu0 0.0
    %3740 = vmatpush1.xpose.msra.mxu0 0.0
    %3741 = vmatprep.subr.mxu0 0.0
    %3742 = vmatpush1.xpose.msra.mxu0 0.0
    %3743 = vmatprep.subr.mxu0 0.0
    %3744 = vmatpush1.xpose.msra.mxu0 0.0
    %3745 = vmatprep.subr.mxu0 0.0
    %3746 = vmatpush1.xpose.msra.mxu0 0.0
    %3747 = vmatprep.subr.mxu0 0.0
    %3748 = vmatpush1.xpose.msra.mxu0 0.0
    %3749 = vmatprep.subr.mxu0 0.0
    %3750 = vmatpush1.xpose.msra.mxu0 0.0
    %3751 = vmatprep.subr.mxu0 0.0
    %3752 = vmatpush1.xpose.msra.mxu0 0.0
    %3753 = vmatprep.subr.mxu0 0.0
    %3754 = vmatpush1.xpose.msra.mxu0 0.0
    %3755 = vmatprep.subr.mxu0 0.0
    %3756 = vmatpush1.xpose.msra.mxu0 0.0
    %3757 = vmatprep.subr.mxu0 0.0
    %3758 = vmatpush1.xpose.msra.mxu0 0.0
    %3759 = vmatprep.subr.mxu0 0.0
    %3760 = vmatpush1.xpose.msra.mxu0 0.0
    %3761 = vmatprep.subr.mxu0 0.0
    %3762 = vmatpush1.xpose.msra.mxu0 0.0
    %3763 = vmatprep.subr.mxu0 0.0
    %3764 = vmatpush1.xpose.msra.mxu0 0.0
    %3765 = vmatprep.subr.mxu0 0.0
    %3766 = vmatpush1.xpose.msra.mxu0 0.0
    %3767 = vmatprep.subr.mxu0 0.0
    %3768 = vmatpush1.xpose.msra.mxu0 0.0
    %3769 = vmatprep.subr.mxu0 0.0
    %3770 = vmatpush1.xpose.msra.mxu0 0.0
    %3771 = vmatprep.subr.mxu0 0.0
    %3772 = vmatpush1.xpose.msra.mxu0 0.0
    %3773 = vmatprep.subr.mxu0 0.0
    %3774 = vmatpush1.xpose.msra.mxu0 0.0
    %3775 = vmatprep.subr.mxu0 0.0
    %3776 = vmatpush1.xpose.msra.mxu0 0.0
    %3777 = vmatprep.subr.mxu0 0.0
    %3778 = vmatpush1.xpose.msra.mxu0 0.0
    %3779 = vmatprep.subr.mxu0 0.0
    %3780 = vmatpush1.xpose.msra.mxu0 0.0
    %3781 = vmatprep.subr.mxu0 0.0
    %3782 = vmatpush1.xpose.msra.mxu0 0.0
    %3783 = vmatprep.subr.mxu0 0.0
    %3784 = vmatpush1.xpose.msra.mxu0 0.0
    %3785 = vmatprep.mubr.f32.mxu0 0.0
    %3786 = vmatmul.mubr.f32.gmra.mrb[0].mxu0 %v3717
    %v3787 = vpop.f32.mrb[0].mxu0
    %v3788 = vadd.f32 0.0, %v3787
    %v3789 = vpop.f32.mrb[0].mxu0
    %3790 = vdwg.mxu0
    %v3791 = vmul.f32 %v3788, 0.5
    %v3792 = vsel %vm390, %v3791, -inf
    %3793 = vmax.xlane.f32.xlu0 %v3792
    %v3794 = vpop.xlane.xlu0 %3793
    %v3795 = vsub.f32 %v3791, %v3794
    %v3796 = vmul.f32 %v3795, 1.442695
    %v3797 = vpow.pop %v3796
    %v3798 = vsel %vm390, %v3797, 0.0
    %3799 = vadd.xlane.f32.xlu0 %v3798
    %v3800 = vpop.xlane.xlu0 %3799
    %v3801 = vrcp.pop %v3800
    %v3802 = vmul.f32 %v3797, %v3801
    %3803 = vrot.lane.b32.xlu0 %v296, 48
    %v3804 = vpop.permute.xlu0 %3803
    %v3807 = vsel %vm390, %v3802, 0
    %3809 = vmatprep.subr.mxu0 0.0
    %3810 = vmatpush1.msra.mxu0 %v3804
    %3811 = vmatprep.subr.mxu0 0.0
    %3812 = vmatpush1.msra.mxu0 0.0
    %3813 = vmatprep.subr.mxu0 0.0
    %3814 = vmatpush1.msra.mxu0 0.0
    %3815 = vmatprep.subr.mxu0 0.0
    %3816 = vmatpush1.msra.mxu0 0.0
    %3817 = vmatprep.subr.mxu0 0.0
    %3818 = vmatpush1.msra.mxu0 0.0
    %3819 = vmatprep.subr.mxu0 0.0
    %3820 = vmatpush1.msra.mxu0 0.0
    %3821 = vmatprep.subr.mxu0 0.0
    %3822 = vmatpush1.msra.mxu0 0.0
    %3823 = vmatprep.subr.mxu0 0.0
    %3824 = vmatpush1.msra.mxu0 0.0
    %3825 = vmatprep.subr.mxu0 0.0
    %3826 = vmatpush1.msra.mxu0 0.0
    %3827 = vmatprep.subr.mxu0 0.0
    %3828 = vmatpush1.msra.mxu0 0.0
    %3829 = vmatprep.subr.mxu0 0.0
    %3830 = vmatpush1.msra.mxu0 0.0
    %3831 = vmatprep.subr.mxu0 0.0
    %3832 = vmatpush1.msra.mxu0 0.0
    %3833 = vmatprep.subr.mxu0 0.0
    %3834 = vmatpush1.msra.mxu0 0.0
    %3835 = vmatprep.subr.mxu0 0.0
    %3836 = vmatpush1.msra.mxu0 0.0
    %3837 = vmatprep.subr.mxu0 0.0
    %3838 = vmatpush1.msra.mxu0 0.0
    %3839 = vmatprep.subr.mxu0 0.0
    %3840 = vmatpush1.msra.mxu0 0.0
    %3841 = vmatprep.subr.mxu0 0.0
    %3842 = vmatpush1.msra.mxu0 0.0
    %3843 = vmatprep.subr.mxu0 0.0
    %3844 = vmatpush1.msra.mxu0 0.0
    %3845 = vmatprep.subr.mxu0 0.0
    %3846 = vmatpush1.msra.mxu0 0.0
    %3847 = vmatprep.subr.mxu0 0.0
    %3848 = vmatpush1.msra.mxu0 0.0
    %3849 = vmatprep.subr.mxu0 0.0
    %3850 = vmatpush1.msra.mxu0 0.0
    %3851 = vmatprep.subr.mxu0 0.0
    %3852 = vmatpush1.msra.mxu0 0.0
    %3853 = vmatprep.subr.mxu0 0.0
    %3854 = vmatpush1.msra.mxu0 0.0
    %3855 = vmatprep.subr.mxu0 0.0
    %3856 = vmatpush1.msra.mxu0 0.0
    %3857 = vmatprep.subr.mxu0 0.0
    %3858 = vmatpush1.msra.mxu0 0.0
    %3859 = vmatprep.subr.mxu0 0.0
    %3860 = vmatpush1.msra.mxu0 0.0
    %3861 = vmatprep.subr.mxu0 0.0
    %3862 = vmatpush1.msra.mxu0 0.0
    %3863 = vmatprep.subr.mxu0 0.0
    %3864 = vmatpush1.msra.mxu0 0.0
    %3865 = vmatprep.subr.mxu0 0.0
    %3866 = vmatpush1.msra.mxu0 0.0
    %3867 = vmatprep.subr.mxu0 0.0
    %3868 = vmatpush1.msra.mxu0 0.0
    %3869 = vmatprep.subr.mxu0 0.0
    %3870 = vmatpush1.msra.mxu0 0.0
    %3871 = vmatprep.subr.mxu0 0.0
    %3872 = vmatpush1.msra.mxu0 0.0
    %3873 = vmatprep.mubr.f32.mxu0 0.0
    %3874 = vmatmul.mubr.f32.gmra.mrb[0].mxu0 %v3807
    %v3875 = vpop.f32.mrb[0].mxu0
    %v3876 = vadd.f32 0.0, %v3875
    %v3877 = vpop.f32.mrb[0].mxu0
    %3878 = vdwg.mxu0
    %3879 = vrot.lane.b32.xlu0 %v198, 108
    %v3880 = vpop.permute.xlu0 %3879
    %3881 = vrot.lane.b32.xlu0 %v198, 44
    %v3882 = vpop.permute.xlu0 %3881
    %v3883 = vsel %vm314, %v3880, 0
    %v3885 = vsel %vm314, %v3882, 0
    %3887 = vmatprep.subr.mxu0 0.0
    %3888 = vmatpush1.xpose.msra.mxu0 %v3885
    %3889 = vmatprep.subr.mxu0 0.0
    %3890 = vmatpush1.xpose.msra.mxu0 0.0
    %3891 = vmatprep.subr.mxu0 0.0
    %3892 = vmatpush1.xpose.msra.mxu0 0.0
    %3893 = vmatprep.subr.mxu0 0.0
    %3894 = vmatpush1.xpose.msra.mxu0 0.0
    %3895 = vmatprep.subr.mxu0 0.0
    %3896 = vmatpush1.xpose.msra.mxu0 0.0
    %3897 = vmatprep.subr.mxu0 0.0
    %3898 = vmatpush1.xpose.msra.mxu0 0.0
    %3899 = vmatprep.subr.mxu0 0.0
    %3900 = vmatpush1.xpose.msra.mxu0 0.0
    %3901 = vmatprep.subr.mxu0 0.0
    %3902 = vmatpush1.xpose.msra.mxu0 0.0
    %3903 = vmatprep.subr.mxu0 0.0
    %3904 = vmatpush1.xpose.msra.mxu0 0.0
    %3905 = vmatprep.subr.mxu0 0.0
    %3906 = vmatpush1.xpose.msra.mxu0 0.0
    %3907 = vmatprep.subr.mxu0 0.0
    %3908 = vmatpush1.xpose.msra.mxu0 0.0
    %3909 = vmatprep.subr.mxu0 0.0
    %3910 = vmatpush1.xpose.msra.mxu0 0.0
    %3911 = vmatprep.subr.mxu0 0.0
    %3912 = vmatpush1.xpose.msra.mxu0 0.0
    %3913 = vmatprep.subr.mxu0 0.0
    %3914 = vmatpush1.xpose.msra.mxu0 0.0
    %3915 = vmatprep.subr.mxu0 0.0
    %3916 = vmatpush1.xpose.msra.mxu0 0.0
    %3917 = vmatprep.subr.mxu0 0.0
    %3918 = vmatpush1.xpose.msra.mxu0 0.0
    %3919 = vmatprep.subr.mxu0 0.0
    %3920 = vmatpush1.xpose.msra.mxu0 0.0
    %3921 = vmatprep.subr.mxu0 0.0
    %3922 = vmatpush1.xpose.msra.mxu0 0.0
    %3923 = vmatprep.subr.mxu0 0.0
    %3924 = vmatpush1.xpose.msra.mxu0 0.0
    %3925 = vmatprep.subr.mxu0 0.0
    %3926 = vmatpush1.xpose.msra.mxu0 0.0
    %3927 = vmatprep.subr.mxu0 0.0
    %3928 = vmatpush1.xpose.msra.mxu0 0.0
    %3929 = vmatprep.subr.mxu0 0.0
    %3930 = vmatpush1.xpose.msra.mxu0 0.0
    %3931 = vmatprep.subr.mxu0 0.0
    %3932 = vmatpush1.xpose.msra.mxu0 0.0
    %3933 = vmatprep.subr.mxu0 0.0
    %3934 = vmatpush1.xpose.msra.mxu0 0.0
    %3935 = vmatprep.subr.mxu0 0.0
    %3936 = vmatpush1.xpose.msra.mxu0 0.0
    %3937 = vmatprep.subr.mxu0 0.0
    %3938 = vmatpush1.xpose.msra.mxu0 0.0
    %3939 = vmatprep.subr.mxu0 0.0
    %3940 = vmatpush1.xpose.msra.mxu0 0.0
    %3941 = vmatprep.subr.mxu0 0.0
    %3942 = vmatpush1.xpose.msra.mxu0 0.0
    %3943 = vmatprep.subr.mxu0 0.0
    %3944 = vmatpush1.xpose.msra.mxu0 0.0
    %3945 = vmatprep.subr.mxu0 0.0
    %3946 = vmatpush1.xpose.msra.mxu0 0.0
    %3947 = vmatprep.subr.mxu0 0.0
    %3948 = vmatpush1.xpose.msra.mxu0 0.0
    %3949 = vmatprep.subr.mxu0 0.0
    %3950 = vmatpush1.xpose.msra.mxu0 0.0
    %3951 = vmatprep.mubr.f32.mxu0 0.0
    %3952 = vmatmul.mubr.f32.gmra.mrb[0].mxu0 %v3883
    %v3953 = vpop.f32.mrb[0].mxu0
    %v3954 = vadd.f32 0.0, %v3953
    %v3955 = vpop.f32.mrb[0].mxu0
    %3956 = vdwg.mxu0
    %v3957 = vmul.f32 %v3954, 0.5
    %v3958 = vsel %vm390, %v3957, -inf
    %3959 = vmax.xlane.f32.xlu0 %v3958
    %v3960 = vpop.xlane.xlu0 %3959
    %v3961 = vsub.f32 %v3957, %v3960
    %v3962 = vmul.f32 %v3961, 1.442695
    %v3963 = vpow.pop %v3962
    %v3964 = vsel %vm390, %v3963, 0.0
    %3965 = vadd.xlane.f32.xlu0 %v3964
    %v3966 = vpop.xlane.xlu0 %3965
    %v3967 = vrcp.pop %v3966
    %v3968 = vmul.f32 %v3963, %v3967
    %3969 = vrot.lane.b32.xlu0 %v296, 44
    %v3970 = vpop.permute.xlu0 %3969
    %v3973 = vsel %vm390, %v3968, 0
    %3975 = vmatprep.subr.mxu0 0.0
    %3976 = vmatpush1.msra.mxu0 %v3970
    %3977 = vmatprep.subr.mxu0 0.0
    %3978 = vmatpush1.msra.mxu0 0.0
    %3979 = vmatprep.subr.mxu0 0.0
    %3980 = vmatpush1.msra.mxu0 0.0
    %3981 = vmatprep.subr.mxu0 0.0
    %3982 = vmatpush1.msra.mxu0 0.0
    %3983 = vmatprep.subr.mxu0 0.0
    %3984 = vmatpush1.msra.mxu0 0.0
    %3985 = vmatprep.subr.mxu0 0.0
    %3986 = vmatpush1.msra.mxu0 0.0
    %3987 = vmatprep.subr.mxu0 0.0
    %3988 = vmatpush1.msra.mxu0 0.0
    %3989 = vmatprep.subr.mxu0 0.0
    %3990 = vmatpush1.msra.mxu0 0.0
    %3991 = vmatprep.subr.mxu0 0.0
    %3992 = vmatpush1.msra.mxu0 0.0
    %3993 = vmatprep.subr.mxu0 0.0
    %3994 = vmatpush1.msra.mxu0 0.0
    %3995 = vmatprep.subr.mxu0 0.0
    %3996 = vmatpush1.msra.mxu0 0.0
    %3997 = vmatprep.subr.mxu0 0.0
    %3998 = vmatpush1.msra.mxu0 0.0
    %3999 = vmatprep.subr.mxu0 0.0
    %4000 = vmatpush1.msra.mxu0 0.0
    %4001 = vmatprep.subr.mxu0 0.0
    %4002 = vmatpush1.msra.mxu0 0.0
    %4003 = vmatprep.subr.mxu0 0.0
    %4004 = vmatpush1.msra.mxu0 0.0
    %4005 = vmatprep.subr.mxu0 0.0
    %4006 = vmatpush1.msra.mxu0 0.0
    %4007 = vmatprep.subr.mxu0 0.0
    %4008 = vmatpush1.msra.mxu0 0.0
    %4009 = vmatprep.subr.mxu0 0.0
    %4010 = vmatpush1.msra.mxu0 0.0
    %4011 = vmatprep.subr.mxu0 0.0
    %4012 = vmatpush1.msra.mxu0 0.0
    %4013 = vmatprep.subr.mxu0 0.0
    %4014 = vmatpush1.msra.mxu0 0.0
    %4015 = vmatprep.subr.mxu0 0.0
    %4016 = vmatpush1.msra.mxu0 0.0
    %4017 = vmatprep.subr.mxu0 0.0
    %4018 = vmatpush1.msra.mxu0 0.0
    %4019 = vmatprep.subr.mxu0 0.0
    %4020 = vmatpush1.msra.mxu0 0.0
    %4021 = vmatprep.subr.mxu0 0.0
    %4022 = vmatpush1.msra.mxu0 0.0
    %4023 = vmatprep.subr.mxu0 0.0
    %4024 = vmatpush1.msra.mxu0 0.0
    %4025 = vmatprep.subr.mxu0 0.0
    %4026 = vmatpush1.msra.mxu0 0.0
    %4027 = vmatprep.subr.mxu0 0.0
    %4028 = vmatpush1.msra.mxu0 0.0
    %4029 = vmatprep.subr.mxu0 0.0
    %4030 = vmatpush1.msra.mxu0 0.0
    %4031 = vmatprep.subr.mxu0 0.0
    %4032 = vmatpush1.msra.mxu0 0.0
    %4033 = vmatprep.subr.mxu0 0.0
    %4034 = vmatpush1.msra.mxu0 0.0
    %4035 = vmatprep.subr.mxu0 0.0
    %4036 = vmatpush1.msra.mxu0 0.0
    %4037 = vmatprep.subr.mxu0 0.0
    %4038 = vmatpush1.msra.mxu0 0.0
    %4039 = vmatprep.mubr.f32.mxu0 0.0
    %4040 = vmatmul.mubr.f32.gmra.mrb[0].mxu0 %v3973
    %v4041 = vpop.f32.mrb[0].mxu0
    %v4042 = vadd.f32 0.0, %v4041
    %v4043 = vpop.f32.mrb[0].mxu0
    %4044 = vdwg.mxu0
    %4045 = vrot.lane.b32.xlu0 %v198, 104
    %v4046 = vpop.permute.xlu0 %4045
    %4047 = vrot.lane.b32.xlu0 %v198, 40
    %v4048 = vpop.permute.xlu0 %4047
    %v4049 = vsel %vm314, %v4046, 0
    %v4051 = vsel %vm314, %v4048, 0
    %4053 = vmatprep.subr.mxu0 0.0
    %4054 = vmatpush1.xpose.msra.mxu0 %v4051
    %4055 = vmatprep.subr.mxu0 0.0
    %4056 = vmatpush1.xpose.msra.mxu0 0.0
    %4057 = vmatprep.subr.mxu0 0.0
    %4058 = vmatpush1.xpose.msra.mxu0 0.0
    %4059 = vmatprep.subr.mxu0 0.0
    %4060 = vmatpush1.xpose.msra.mxu0 0.0
    %4061 = vmatprep.subr.mxu0 0.0
    %4062 = vmatpush1.xpose.msra.mxu0 0.0
    %4063 = vmatprep.subr.mxu0 0.0
    %4064 = vmatpush1.xpose.msra.mxu0 0.0
    %4065 = vmatprep.subr.mxu0 0.0
    %4066 = vmatpush1.xpose.msra.mxu0 0.0
    %4067 = vmatprep.subr.mxu0 0.0
    %4068 = vmatpush1.xpose.msra.mxu0 0.0
    %4069 = vmatprep.subr.mxu0 0.0
    %4070 = vmatpush1.xpose.msra.mxu0 0.0
    %4071 = vmatprep.subr.mxu0 0.0
    %4072 = vmatpush1.xpose.msra.mxu0 0.0
    %4073 = vmatprep.subr.mxu0 0.0
    %4074 = vmatpush1.xpose.msra.mxu0 0.0
    %4075 = vmatprep.subr.mxu0 0.0
    %4076 = vmatpush1.xpose.msra.mxu0 0.0
    %4077 = vmatprep.subr.mxu0 0.0
    %4078 = vmatpush1.xpose.msra.mxu0 0.0
    %4079 = vmatprep.subr.mxu0 0.0
    %4080 = vmatpush1.xpose.msra.mxu0 0.0
    %4081 = vmatprep.subr.mxu0 0.0
    %4082 = vmatpush1.xpose.msra.mxu0 0.0
    %4083 = vmatprep.subr.mxu0 0.0
    %4084 = vmatpush1.xpose.msra.mxu0 0.0
    %4085 = vmatprep.subr.mxu0 0.0
    %4086 = vmatpush1.xpose.msra.mxu0 0.0
    %4087 = vmatprep.subr.mxu0 0.0
    %4088 = vmatpush1.xpose.msra.mxu0 0.0
    %4089 = vmatprep.subr.mxu0 0.0
    %4090 = vmatpush1.xpose.msra.mxu0 0.0
    %4091 = vmatprep.subr.mxu0 0.0
    %4092 = vmatpush1.xpose.msra.mxu0 0.0
    %4093 = vmatprep.subr.mxu0 0.0
    %4094 = vmatpush1.xpose.msra.mxu0 0.0
    %4095 = vmatprep.subr.mxu0 0.0
    %4096 = vmatpush1.xpose.msra.mxu0 0.0
    %4097 = vmatprep.subr.mxu0 0.0
    %4098 = vmatpush1.xpose.msra.mxu0 0.0
    %4099 = vmatprep.subr.mxu0 0.0
    %4100 = vmatpush1.xpose.msra.mxu0 0.0
    %4101 = vmatprep.subr.mxu0 0.0
    %4102 = vmatpush1.xpose.msra.mxu0 0.0
    %4103 = vmatprep.subr.mxu0 0.0
    %4104 = vmatpush1.xpose.msra.mxu0 0.0
    %4105 = vmatprep.subr.mxu0 0.0
    %4106 = vmatpush1.xpose.msra.mxu0 0.0
    %4107 = vmatprep.subr.mxu0 0.0
    %4108 = vmatpush1.xpose.msra.mxu0 0.0
    %4109 = vmatprep.subr.mxu0 0.0
    %4110 = vmatpush1.xpose.msra.mxu0 0.0
    %4111 = vmatprep.subr.mxu0 0.0
    %4112 = vmatpush1.xpose.msra.mxu0 0.0
    %4113 = vmatprep.subr.mxu0 0.0
    %4114 = vmatpush1.xpose.msra.mxu0 0.0
    %4115 = vmatprep.subr.mxu0 0.0
    %4116 = vmatpush1.xpose.msra.mxu0 0.0
    %4117 = vmatprep.mubr.f32.mxu0 0.0
    %4118 = vmatmul.mubr.f32.gmra.mrb[0].mxu0 %v4049
    %v4119 = vpop.f32.mrb[0].mxu0
    %v4120 = vadd.f32 0.0, %v4119
    %v4121 = vpop.f32.mrb[0].mxu0
    %4122 = vdwg.mxu0
    %v4123 = vmul.f32 %v4120, 0.5
    %v4124 = vsel %vm390, %v4123, -inf
    %4125 = vmax.xlane.f32.xlu0 %v4124
    %v4126 = vpop.xlane.xlu0 %4125
    %v4127 = vsub.f32 %v4123, %v4126
    %v4128 = vmul.f32 %v4127, 1.442695
    %v4129 = vpow.pop %v4128
    %v4130 = vsel %vm390, %v4129, 0.0
    %4131 = vadd.xlane.f32.xlu0 %v4130
    %v4132 = vpop.xlane.xlu0 %4131
    %v4133 = vrcp.pop %v4132
    %v4134 = vmul.f32 %v4129, %v4133
    %4135 = vrot.lane.b32.xlu0 %v296, 40
    %v4136 = vpop.permute.xlu0 %4135
    %v4139 = vsel %vm390, %v4134, 0
    %4141 = vmatprep.subr.mxu0 0.0
    %4142 = vmatpush1.msra.mxu0 %v4136
    %4143 = vmatprep.subr.mxu0 0.0
    %4144 = vmatpush1.msra.mxu0 0.0
    %4145 = vmatprep.subr.mxu0 0.0
    %4146 = vmatpush1.msra.mxu0 0.0
    %4147 = vmatprep.subr.mxu0 0.0
    %4148 = vmatpush1.msra.mxu0 0.0
    %4149 = vmatprep.subr.mxu0 0.0
    %4150 = vmatpush1.msra.mxu0 0.0
    %4151 = vmatprep.subr.mxu0 0.0
    %4152 = vmatpush1.msra.mxu0 0.0
    %4153 = vmatprep.subr.mxu0 0.0
    %4154 = vmatpush1.msra.mxu0 0.0
    %4155 = vmatprep.subr.mxu0 0.0
    %4156 = vmatpush1.msra.mxu0 0.0
    %4157 = vmatprep.subr.mxu0 0.0
    %4158 = vmatpush1.msra.mxu0 0.0
    %4159 = vmatprep.subr.mxu0 0.0
    %4160 = vmatpush1.msra.mxu0 0.0
    %4161 = vmatprep.subr.mxu0 0.0
    %4162 = vmatpush1.msra.mxu0 0.0
    %4163 = vmatprep.subr.mxu0 0.0
    %4164 = vmatpush1.msra.mxu0 0.0
    %4165 = vmatprep.subr.mxu0 0.0
    %4166 = vmatpush1.msra.mxu0 0.0
    %4167 = vmatprep.subr.mxu0 0.0
    %4168 = vmatpush1.msra.mxu0 0.0
    %4169 = vmatprep.subr.mxu0 0.0
    %4170 = vmatpush1.msra.mxu0 0.0
    %4171 = vmatprep.subr.mxu0 0.0
    %4172 = vmatpush1.msra.mxu0 0.0
    %4173 = vmatprep.subr.mxu0 0.0
    %4174 = vmatpush1.msra.mxu0 0.0
    %4175 = vmatprep.subr.mxu0 0.0
    %4176 = vmatpush1.msra.mxu0 0.0
    %4177 = vmatprep.subr.mxu0 0.0
    %4178 = vmatpush1.msra.mxu0 0.0
    %4179 = vmatprep.subr.mxu0 0.0
    %4180 = vmatpush1.msra.mxu0 0.0
    %4181 = vmatprep.subr.mxu0 0.0
    %4182 = vmatpush1.msra.mxu0 0.0
    %4183 = vmatprep.subr.mxu0 0.0
    %4184 = vmatpush1.msra.mxu0 0.0
    %4185 = vmatprep.subr.mxu0 0.0
    %4186 = vmatpush1.msra.mxu0 0.0
    %4187 = vmatprep.subr.mxu0 0.0
    %4188 = vmatpush1.msra.mxu0 0.0
    %4189 = vmatprep.subr.mxu0 0.0
    %4190 = vmatpush1.msra.mxu0 0.0
    %4191 = vmatprep.subr.mxu0 0.0
    %4192 = vmatpush1.msra.mxu0 0.0
    %4193 = vmatprep.subr.mxu0 0.0
    %4194 = vmatpush1.msra.mxu0 0.0
    %4195 = vmatprep.subr.mxu0 0.0
    %4196 = vmatpush1.msra.mxu0 0.0
    %4197 = vmatprep.subr.mxu0 0.0
    %4198 = vmatpush1.msra.mxu0 0.0
    %4199 = vmatprep.subr.mxu0 0.0
    %4200 = vmatpush1.msra.mxu0 0.0
    %4201 = vmatprep.subr.mxu0 0.0
    %4202 = vmatpush1.msra.mxu0 0.0
    %4203 = vmatprep.subr.mxu0 0.0
    %4204 = vmatpush1.msra.mxu0 0.0
    %4205 = vmatprep.mubr.f32.mxu0 0.0
    %4206 = vmatmul.mubr.f32.gmra.mrb[0].mxu0 %v4139
    %v4207 = vpop.f32.mrb[0].mxu0
    %v4208 = vadd.f32 0.0, %v4207
    %v4209 = vpop.f32.mrb[0].mxu0
    %4210 = vdwg.mxu0
    %4211 = vrot.lane.b32.xlu0 %v198, 100
    %v4212 = vpop.permute.xlu0 %4211
    %4213 = vrot.lane.b32.xlu0 %v198, 36
    %v4214 = vpop.permute.xlu0 %4213
    %v4215 = vsel %vm314, %v4212, 0
    %v4217 = vsel %vm314, %v4214, 0
    %4219 = vmatprep.subr.mxu0 0.0
    %4220 = vmatpush1.xpose.msra.mxu0 %v4217
    %4221 = vmatprep.subr.mxu0 0.0
    %4222 = vmatpush1.xpose.msra.mxu0 0.0
    %4223 = vmatprep.subr.mxu0 0.0
    %4224 = vmatpush1.xpose.msra.mxu0 0.0
    %4225 = vmatprep.subr.mxu0 0.0
    %4226 = vmatpush1.xpose.msra.mxu0 0.0
    %4227 = vmatprep.subr.mxu0 0.0
    %4228 = vmatpush1.xpose.msra.mxu0 0.0
    %4229 = vmatprep.subr.mxu0 0.0
    %4230 = vmatpush1.xpose.msra.mxu0 0.0
    %4231 = vmatprep.subr.mxu0 0.0
    %4232 = vmatpush1.xpose.msra.mxu0 0.0
    %4233 = vmatprep.subr.mxu0 0.0
    %4234 = vmatpush1.xpose.msra.mxu0 0.0
    %4235 = vmatprep.subr.mxu0 0.0
    %4236 = vmatpush1.xpose.msra.mxu0 0.0
    %4237 = vmatprep.subr.mxu0 0.0
    %4238 = vmatpush1.xpose.msra.mxu0 0.0
    %4239 = vmatprep.subr.mxu0 0.0
    %4240 = vmatpush1.xpose.msra.mxu0 0.0
    %4241 = vmatprep.subr.mxu0 0.0
    %4242 = vmatpush1.xpose.msra.mxu0 0.0
    %4243 = vmatprep.subr.mxu0 0.0
    %4244 = vmatpush1.xpose.msra.mxu0 0.0
    %4245 = vmatprep.subr.mxu0 0.0
    %4246 = vmatpush1.xpose.msra.mxu0 0.0
    %4247 = vmatprep.subr.mxu0 0.0
    %4248 = vmatpush1.xpose.msra.mxu0 0.0
    %4249 = vmatprep.subr.mxu0 0.0
    %4250 = vmatpush1.xpose.msra.mxu0 0.0
    %4251 = vmatprep.subr.mxu0 0.0
    %4252 = vmatpush1.xpose.msra.mxu0 0.0
    %4253 = vmatprep.subr.mxu0 0.0
    %4254 = vmatpush1.xpose.msra.mxu0 0.0
    %4255 = vmatprep.subr.mxu0 0.0
    %4256 = vmatpush1.xpose.msra.mxu0 0.0
    %4257 = vmatprep.subr.mxu0 0.0
    %4258 = vmatpush1.xpose.msra.mxu0 0.0
    %4259 = vmatprep.subr.mxu0 0.0
    %4260 = vmatpush1.xpose.msra.mxu0 0.0
    %4261 = vmatprep.subr.mxu0 0.0
    %4262 = vmatpush1.xpose.msra.mxu0 0.0
    %4263 = vmatprep.subr.mxu0 0.0
    %4264 = vmatpush1.xpose.msra.mxu0 0.0
    %4265 = vmatprep.subr.mxu0 0.0
    %4266 = vmatpush1.xpose.msra.mxu0 0.0
    %4267 = vmatprep.subr.mxu0 0.0
    %4268 = vmatpush1.xpose.msra.mxu0 0.0
    %4269 = vmatprep.subr.mxu0 0.0
    %4270 = vmatpush1.xpose.msra.mxu0 0.0
    %4271 = vmatprep.subr.mxu0 0.0
    %4272 = vmatpush1.xpose.msra.mxu0 0.0
    %4273 = vmatprep.subr.mxu0 0.0
    %4274 = vmatpush1.xpose.msra.mxu0 0.0
    %4275 = vmatprep.subr.mxu0 0.0
    %4276 = vmatpush1.xpose.msra.mxu0 0.0
    %4277 = vmatprep.subr.mxu0 0.0
    %4278 = vmatpush1.xpose.msra.mxu0 0.0
    %4279 = vmatprep.subr.mxu0 0.0
    %4280 = vmatpush1.xpose.msra.mxu0 0.0
    %4281 = vmatprep.subr.mxu0 0.0
    %4282 = vmatpush1.xpose.msra.mxu0 0.0
    %4283 = vmatprep.mubr.f32.mxu0 0.0
    %4284 = vmatmul.mubr.f32.gmra.mrb[0].mxu0 %v4215
    %v4285 = vpop.f32.mrb[0].mxu0
    %v4286 = vadd.f32 0.0, %v4285
    %v4287 = vpop.f32.mrb[0].mxu0
    %4288 = vdwg.mxu0
    %v4289 = vmul.f32 %v4286, 0.5
    %v4290 = vsel %vm390, %v4289, -inf
    %4291 = vmax.xlane.f32.xlu0 %v4290
    %v4292 = vpop.xlane.xlu0 %4291
    %v4293 = vsub.f32 %v4289, %v4292
    %v4294 = vmul.f32 %v4293, 1.442695
    %v4295 = vpow.pop %v4294
    %v4296 = vsel %vm390, %v4295, 0.0
    %4297 = vadd.xlane.f32.xlu0 %v4296
    %v4298 = vpop.xlane.xlu0 %4297
    %v4299 = vrcp.pop %v4298
    %v4300 = vmul.f32 %v4295, %v4299
    %4301 = vrot.lane.b32.xlu0 %v296, 36
    %v4302 = vpop.permute.xlu0 %4301
    %v4305 = vsel %vm390, %v4300, 0
    %4307 = vmatprep.subr.mxu0 0.0
    %4308 = vmatpush1.msra.mxu0 %v4302
    %4309 = vmatprep.subr.mxu0 0.0
    %4310 = vmatpush1.msra.mxu0 0.0
    %4311 = vmatprep.subr.mxu0 0.0
    %4312 = vmatpush1.msra.mxu0 0.0
    %4313 = vmatprep.subr.mxu0 0.0
    %4314 = vmatpush1.msra.mxu0 0.0
    %4315 = vmatprep.subr.mxu0 0.0
    %4316 = vmatpush1.msra.mxu0 0.0
    %4317 = vmatprep.subr.mxu0 0.0
    %4318 = vmatpush1.msra.mxu0 0.0
    %4319 = vmatprep.subr.mxu0 0.0
    %4320 = vmatpush1.msra.mxu0 0.0
    %4321 = vmatprep.subr.mxu0 0.0
    %4322 = vmatpush1.msra.mxu0 0.0
    %4323 = vmatprep.subr.mxu0 0.0
    %4324 = vmatpush1.msra.mxu0 0.0
    %4325 = vmatprep.subr.mxu0 0.0
    %4326 = vmatpush1.msra.mxu0 0.0
    %4327 = vmatprep.subr.mxu0 0.0
    %4328 = vmatpush1.msra.mxu0 0.0
    %4329 = vmatprep.subr.mxu0 0.0
    %4330 = vmatpush1.msra.mxu0 0.0
    %4331 = vmatprep.subr.mxu0 0.0
    %4332 = vmatpush1.msra.mxu0 0.0
    %4333 = vmatprep.subr.mxu0 0.0
    %4334 = vmatpush1.msra.mxu0 0.0
    %4335 = vmatprep.subr.mxu0 0.0
    %4336 = vmatpush1.msra.mxu0 0.0
    %4337 = vmatprep.subr.mxu0 0.0
    %4338 = vmatpush1.msra.mxu0 0.0
    %4339 = vmatprep.subr.mxu0 0.0
    %4340 = vmatpush1.msra.mxu0 0.0
    %4341 = vmatprep.subr.mxu0 0.0
    %4342 = vmatpush1.msra.mxu0 0.0
    %4343 = vmatprep.subr.mxu0 0.0
    %4344 = vmatpush1.msra.mxu0 0.0
    %4345 = vmatprep.subr.mxu0 0.0
    %4346 = vmatpush1.msra.mxu0 0.0
    %4347 = vmatprep.subr.mxu0 0.0
    %4348 = vmatpush1.msra.mxu0 0.0
    %4349 = vmatprep.subr.mxu0 0.0
    %4350 = vmatpush1.msra.mxu0 0.0
    %4351 = vmatprep.subr.mxu0 0.0
    %4352 = vmatpush1.msra.mxu0 0.0
    %4353 = vmatprep.subr.mxu0 0.0
    %4354 = vmatpush1.msra.mxu0 0.0
    %4355 = vmatprep.subr.mxu0 0.0
    %4356 = vmatpush1.msra.mxu0 0.0
    %4357 = vmatprep.subr.mxu0 0.0
    %4358 = vmatpush1.msra.mxu0 0.0
    %4359 = vmatprep.subr.mxu0 0.0
    %4360 = vmatpush1.msra.mxu0 0.0
    %4361 = vmatprep.subr.mxu0 0.0
    %4362 = vmatpush1.msra.mxu0 0.0
    %4363 = vmatprep.subr.mxu0 0.0
    %4364 = vmatpush1.msra.mxu0 0.0
    %4365 = vmatprep.subr.mxu0 0.0
    %4366 = vmatpush1.msra.mxu0 0.0
    %4367 = vmatprep.subr.mxu0 0.0
    %4368 = vmatpush1.msra.mxu0 0.0
    %4369 = vmatprep.subr.mxu0 0.0
    %4370 = vmatpush1.msra.mxu0 0.0
    %4371 = vmatprep.mubr.f32.mxu0 0.0
    %4372 = vmatmul.mubr.f32.gmra.mrb[0].mxu0 %v4305
    %v4373 = vpop.f32.mrb[0].mxu0
    %v4374 = vadd.f32 0.0, %v4373
    %v4375 = vpop.f32.mrb[0].mxu0
    %4376 = vdwg.mxu0
    %4377 = vrot.lane.b32.xlu0 %v198, 96
    %v4378 = vpop.permute.xlu0 %4377
    %4379 = vrot.lane.b32.xlu0 %v198, 32
    %v4380 = vpop.permute.xlu0 %4379
    %v4381 = vsel %vm314, %v4378, 0
    %v4383 = vsel %vm314, %v4380, 0
    %4385 = vmatprep.subr.mxu0 0.0
    %4386 = vmatpush1.xpose.msra.mxu0 %v4383
    %4387 = vmatprep.subr.mxu0 0.0
    %4388 = vmatpush1.xpose.msra.mxu0 0.0
    %4389 = vmatprep.subr.mxu0 0.0
    %4390 = vmatpush1.xpose.msra.mxu0 0.0
    %4391 = vmatprep.subr.mxu0 0.0
    %4392 = vmatpush1.xpose.msra.mxu0 0.0
    %4393 = vmatprep.subr.mxu0 0.0
    %4394 = vmatpush1.xpose.msra.mxu0 0.0
    %4395 = vmatprep.subr.mxu0 0.0
    %4396 = vmatpush1.xpose.msra.mxu0 0.0
    %4397 = vmatprep.subr.mxu0 0.0
    %4398 = vmatpush1.xpose.msra.mxu0 0.0
    %4399 = vmatprep.subr.mxu0 0.0
    %4400 = vmatpush1.xpose.msra.mxu0 0.0
    %4401 = vmatprep.subr.mxu0 0.0
    %4402 = vmatpush1.xpose.msra.mxu0 0.0
    %4403 = vmatprep.subr.mxu0 0.0
    %4404 = vmatpush1.xpose.msra.mxu0 0.0
    %4405 = vmatprep.subr.mxu0 0.0
    %4406 = vmatpush1.xpose.msra.mxu0 0.0
    %4407 = vmatprep.subr.mxu0 0.0
    %4408 = vmatpush1.xpose.msra.mxu0 0.0
    %4409 = vmatprep.subr.mxu0 0.0
    %4410 = vmatpush1.xpose.msra.mxu0 0.0
    %4411 = vmatprep.subr.mxu0 0.0
    %4412 = vmatpush1.xpose.msra.mxu0 0.0
    %4413 = vmatprep.subr.mxu0 0.0
    %4414 = vmatpush1.xpose.msra.mxu0 0.0
    %4415 = vmatprep.subr.mxu0 0.0
    %4416 = vmatpush1.xpose.msra.mxu0 0.0
    %4417 = vmatprep.subr.mxu0 0.0
    %4418 = vmatpush1.xpose.msra.mxu0 0.0
    %4419 = vmatprep.subr.mxu0 0.0
    %4420 = vmatpush1.xpose.msra.mxu0 0.0
    %4421 = vmatprep.subr.mxu0 0.0
    %4422 = vmatpush1.xpose.msra.mxu0 0.0
    %4423 = vmatprep.subr.mxu0 0.0
    %4424 = vmatpush1.xpose.msra.mxu0 0.0
    %4425 = vmatprep.subr.mxu0 0.0
    %4426 = vmatpush1.xpose.msra.mxu0 0.0
    %4427 = vmatprep.subr.mxu0 0.0
    %4428 = vmatpush1.xpose.msra.mxu0 0.0
    %4429 = vmatprep.subr.mxu0 0.0
    %4430 = vmatpush1.xpose.msra.mxu0 0.0
    %4431 = vmatprep.subr.mxu0 0.0
    %4432 = vmatpush1.xpose.msra.mxu0 0.0
    %4433 = vmatprep.subr.mxu0 0.0
    %4434 = vmatpush1.xpose.msra.mxu0 0.0
    %4435 = vmatprep.subr.mxu0 0.0
    %4436 = vmatpush1.xpose.msra.mxu0 0.0
    %4437 = vmatprep.subr.mxu0 0.0
    %4438 = vmatpush1.xpose.msra.mxu0 0.0
    %4439 = vmatprep.subr.mxu0 0.0
    %4440 = vmatpush1.xpose.msra.mxu0 0.0
    %4441 = vmatprep.subr.mxu0 0.0
    %4442 = vmatpush1.xpose.msra.mxu0 0.0
    %4443 = vmatprep.subr.mxu0 0.0
    %4444 = vmatpush1.xpose.msra.mxu0 0.0
    %4445 = vmatprep.subr.mxu0 0.0
    %4446 = vmatpush1.xpose.msra.mxu0 0.0
    %4447 = vmatprep.subr.mxu0 0.0
    %4448 = vmatpush1.xpose.msra.mxu0 0.0
    %4449 = vmatprep.mubr.f32.mxu0 0.0
    %4450 = vmatmul.mubr.f32.gmra.mrb[0].mxu0 %v4381
    %v4451 = vpop.f32.mrb[0].mxu0
    %v4452 = vadd.f32 0.0, %v4451
    %v4453 = vpop.f32.mrb[0].mxu0
    %4454 = vdwg.mxu0
    %v4455 = vmul.f32 %v4452, 0.5
    %v4456 = vsel %vm390, %v4455, -inf
    %4457 = vmax.xlane.f32.xlu0 %v4456
    %v4458 = vpop.xlane.xlu0 %4457
    %v4459 = vsub.f32 %v4455, %v4458
    %v4460 = vmul.f32 %v4459, 1.442695
    %v4461 = vpow.pop %v4460
    %v4462 = vsel %vm390, %v4461, 0.0
    %4463 = vadd.xlane.f32.xlu0 %v4462
    %v4464 = vpop.xlane.xlu0 %4463
    %v4465 = vrcp.pop %v4464
    %v4466 = vmul.f32 %v4461, %v4465
    %4467 = vrot.lane.b32.xlu0 %v296, 32
    %v4468 = vpop.permute.xlu0 %4467
    %v4471 = vsel %vm390, %v4466, 0
    %4473 = vmatprep.subr.mxu0 0.0
    %4474 = vmatpush1.msra.mxu0 %v4468
    %4475 = vmatprep.subr.mxu0 0.0
    %4476 = vmatpush1.msra.mxu0 0.0
    %4477 = vmatprep.subr.mxu0 0.0
    %4478 = vmatpush1.msra.mxu0 0.0
    %4479 = vmatprep.subr.mxu0 0.0
    %4480 = vmatpush1.msra.mxu0 0.0
    %4481 = vmatprep.subr.mxu0 0.0
    %4482 = vmatpush1.msra.mxu0 0.0
    %4483 = vmatprep.subr.mxu0 0.0
    %4484 = vmatpush1.msra.mxu0 0.0
    %4485 = vmatprep.subr.mxu0 0.0
    %4486 = vmatpush1.msra.mxu0 0.0
    %4487 = vmatprep.subr.mxu0 0.0
    %4488 = vmatpush1.msra.mxu0 0.0
    %4489 = vmatprep.subr.mxu0 0.0
    %4490 = vmatpush1.msra.mxu0 0.0
    %4491 = vmatprep.subr.mxu0 0.0
    %4492 = vmatpush1.msra.mxu0 0.0
    %4493 = vmatprep.subr.mxu0 0.0
    %4494 = vmatpush1.msra.mxu0 0.0
    %4495 = vmatprep.subr.mxu0 0.0
    %4496 = vmatpush1.msra.mxu0 0.0
    %4497 = vmatprep.subr.mxu0 0.0
    %4498 = vmatpush1.msra.mxu0 0.0
    %4499 = vmatprep.subr.mxu0 0.0
    %4500 = vmatpush1.msra.mxu0 0.0
    %4501 = vmatprep.subr.mxu0 0.0
    %4502 = vmatpush1.msra.mxu0 0.0
    %4503 = vmatprep.subr.mxu0 0.0
    %4504 = vmatpush1.msra.mxu0 0.0
    %4505 = vmatprep.subr.mxu0 0.0
    %4506 = vmatpush1.msra.mxu0 0.0
    %4507 = vmatprep.subr.mxu0 0.0
    %4508 = vmatpush1.msra.mxu0 0.0
    %4509 = vmatprep.subr.mxu0 0.0
    %4510 = vmatpush1.msra.mxu0 0.0
    %4511 = vmatprep.subr.mxu0 0.0
    %4512 = vmatpush1.msra.mxu0 0.0
    %4513 = vmatprep.subr.mxu0 0.0
    %4514 = vmatpush1.msra.mxu0 0.0
    %4515 = vmatprep.subr.mxu0 0.0
    %4516 = vmatpush1.msra.mxu0 0.0
    %4517 = vmatprep.subr.mxu0 0.0
    %4518 = vmatpush1.msra.mxu0 0.0
    %4519 = vmatprep.subr.mxu0 0.0
    %4520 = vmatpush1.msra.mxu0 0.0
    %4521 = vmatprep.subr.mxu0 0.0
    %4522 = vmatpush1.msra.mxu0 0.0
    %4523 = vmatprep.subr.mxu0 0.0
    %4524 = vmatpush1.msra.mxu0 0.0
    %4525 = vmatprep.subr.mxu0 0.0
    %4526 = vmatpush1.msra.mxu0 0.0
    %4527 = vmatprep.subr.mxu0 0.0
    %4528 = vmatpush1.msra.mxu0 0.0
    %4529 = vmatprep.subr.mxu0 0.0
    %4530 = vmatpush1.msra.mxu0 0.0
    %4531 = vmatprep.subr.mxu0 0.0
    %4532 = vmatpush1.msra.mxu0 0.0
    %4533 = vmatprep.subr.mxu0 0.0
    %4534 = vmatpush1.msra.mxu0 0.0
    %4535 = vmatprep.subr.mxu0 0.0
    %4536 = vmatpush1.msra.mxu0 0.0
    %4537 = vmatprep.mubr.f32.mxu0 0.0
    %4538 = vmatmul.mubr.f32.gmra.mrb[0].mxu0 %v4471
    %v4539 = vpop.f32.mrb[0].mxu0
    %v4540 = vadd.f32 0.0, %v4539
    %v4541 = vpop.f32.mrb[0].mxu0
    %4542 = vdwg.mxu0
    %4543 = vrot.lane.b32.xlu0 %v198, 92
    %v4544 = vpop.permute.xlu0 %4543
    %4545 = vrot.lane.b32.xlu0 %v198, 28
    %v4546 = vpop.permute.xlu0 %4545
    %v4547 = vsel %vm314, %v4544, 0
    %v4549 = vsel %vm314, %v4546, 0
    %4551 = vmatprep.subr.mxu0 0.0
    %4552 = vmatpush1.xpose.msra.mxu0 %v4549
    %4553 = vmatprep.subr.mxu0 0.0
    %4554 = vmatpush1.xpose.msra.mxu0 0.0
    %4555 = vmatprep.subr.mxu0 0.0
    %4556 = vmatpush1.xpose.msra.mxu0 0.0
    %4557 = vmatprep.subr.mxu0 0.0
    %4558 = vmatpush1.xpose.msra.mxu0 0.0
    %4559 = vmatprep.subr.mxu0 0.0
    %4560 = vmatpush1.xpose.msra.mxu0 0.0
    %4561 = vmatprep.subr.mxu0 0.0
    %4562 = vmatpush1.xpose.msra.mxu0 0.0
    %4563 = vmatprep.subr.mxu0 0.0
    %4564 = vmatpush1.xpose.msra.mxu0 0.0
    %4565 = vmatprep.subr.mxu0 0.0
    %4566 = vmatpush1.xpose.msra.mxu0 0.0
    %4567 = vmatprep.subr.mxu0 0.0
    %4568 = vmatpush1.xpose.msra.mxu0 0.0
    %4569 = vmatprep.subr.mxu0 0.0
    %4570 = vmatpush1.xpose.msra.mxu0 0.0
    %4571 = vmatprep.subr.mxu0 0.0
    %4572 = vmatpush1.xpose.msra.mxu0 0.0
    %4573 = vmatprep.subr.mxu0 0.0
    %4574 = vmatpush1.xpose.msra.mxu0 0.0
    %4575 = vmatprep.subr.mxu0 0.0
    %4576 = vmatpush1.xpose.msra.mxu0 0.0
    %4577 = vmatprep.subr.mxu0 0.0
    %4578 = vmatpush1.xpose.msra.mxu0 0.0
    %4579 = vmatprep.subr.mxu0 0.0
    %4580 = vmatpush1.xpose.msra.mxu0 0.0
    %4581 = vmatprep.subr.mxu0 0.0
    %4582 = vmatpush1.xpose.msra.mxu0 0.0
    %4583 = vmatprep.subr.mxu0 0.0
    %4584 = vmatpush1.xpose.msra.mxu0 0.0
    %4585 = vmatprep.subr.mxu0 0.0
    %4586 = vmatpush1.xpose.msra.mxu0 0.0
    %4587 = vmatprep.subr.mxu0 0.0
    %4588 = vmatpush1.xpose.msra.mxu0 0.0
    %4589 = vmatprep.subr.mxu0 0.0
    %4590 = vmatpush1.xpose.msra.mxu0 0.0
    %4591 = vmatprep.subr.mxu0 0.0
    %4592 = vmatpush1.xpose.msra.mxu0 0.0
    %4593 = vmatprep.subr.mxu0 0.0
    %4594 = vmatpush1.xpose.msra.mxu0 0.0
    %4595 = vmatprep.subr.mxu0 0.0
    %4596 = vmatpush1.xpose.msra.mxu0 0.0
    %4597 = vmatprep.subr.mxu0 0.0
    %4598 = vmatpush1.xpose.msra.mxu0 0.0
    %4599 = vmatprep.subr.mxu0 0.0
    %4600 = vmatpush1.xpose.msra.mxu0 0.0
    %4601 = vmatprep.subr.mxu0 0.0
    %4602 = vmatpush1.xpose.msra.mxu0 0.0
    %4603 = vmatprep.subr.mxu0 0.0
    %4604 = vmatpush1.xpose.msra.mxu0 0.0
    %4605 = vmatprep.subr.mxu0 0.0
    %4606 = vmatpush1.xpose.msra.mxu0 0.0
    %4607 = vmatprep.subr.mxu0 0.0
    %4608 = vmatpush1.xpose.msra.mxu0 0.0
    %4609 = vmatprep.subr.mxu0 0.0
    %4610 = vmatpush1.xpose.msra.mxu0 0.0
    %4611 = vmatprep.subr.mxu0 0.0
    %4612 = vmatpush1.xpose.msra.mxu0 0.0
    %4613 = vmatprep.subr.mxu0 0.0
    %4614 = vmatpush1.xpose.msra.mxu0 0.0
    %4615 = vmatprep.mubr.f32.mxu0 0.0
    %4616 = vmatmul.mubr.f32.gmra.mrb[0].mxu0 %v4547
    %v4617 = vpop.f32.mrb[0].mxu0
    %v4618 = vadd.f32 0.0, %v4617
    %v4619 = vpop.f32.mrb[0].mxu0
    %4620 = vdwg.mxu0
    %v4621 = vmul.f32 %v4618, 0.5
    %v4622 = vsel %vm390, %v4621, -inf
    %4623 = vmax.xlane.f32.xlu0 %v4622
    %v4624 = vpop.xlane.xlu0 %4623
    %v4625 = vsub.f32 %v4621, %v4624
    %v4626 = vmul.f32 %v4625, 1.442695
    %v4627 = vpow.pop %v4626
    %v4628 = vsel %vm390, %v4627, 0.0
    %4629 = vadd.xlane.f32.xlu0 %v4628
    %v4630 = vpop.xlane.xlu0 %4629
    %v4631 = vrcp.pop %v4630
    %v4632 = vmul.f32 %v4627, %v4631
    %4633 = vrot.lane.b32.xlu0 %v296, 28
    %v4634 = vpop.permute.xlu0 %4633
    %v4637 = vsel %vm390, %v4632, 0
    %4639 = vmatprep.subr.mxu0 0.0
    %4640 = vmatpush1.msra.mxu0 %v4634
    %4641 = vmatprep.subr.mxu0 0.0
    %4642 = vmatpush1.msra.mxu0 0.0
    %4643 = vmatprep.subr.mxu0 0.0
    %4644 = vmatpush1.msra.mxu0 0.0
    %4645 = vmatprep.subr.mxu0 0.0
    %4646 = vmatpush1.msra.mxu0 0.0
    %4647 = vmatprep.subr.mxu0 0.0
    %4648 = vmatpush1.msra.mxu0 0.0
    %4649 = vmatprep.subr.mxu0 0.0
    %4650 = vmatpush1.msra.mxu0 0.0
    %4651 = vmatprep.subr.mxu0 0.0
    %4652 = vmatpush1.msra.mxu0 0.0
    %4653 = vmatprep.subr.mxu0 0.0
    %4654 = vmatpush1.msra.mxu0 0.0
    %4655 = vmatprep.subr.mxu0 0.0
    %4656 = vmatpush1.msra.mxu0 0.0
    %4657 = vmatprep.subr.mxu0 0.0
    %4658 = vmatpush1.msra.mxu0 0.0
    %4659 = vmatprep.subr.mxu0 0.0
    %4660 = vmatpush1.msra.mxu0 0.0
    %4661 = vmatprep.subr.mxu0 0.0
    %4662 = vmatpush1.msra.mxu0 0.0
    %4663 = vmatprep.subr.mxu0 0.0
    %4664 = vmatpush1.msra.mxu0 0.0
    %4665 = vmatprep.subr.mxu0 0.0
    %4666 = vmatpush1.msra.mxu0 0.0
    %4667 = vmatprep.subr.mxu0 0.0
    %4668 = vmatpush1.msra.mxu0 0.0
    %4669 = vmatprep.subr.mxu0 0.0
    %4670 = vmatpush1.msra.mxu0 0.0
    %4671 = vmatprep.subr.mxu0 0.0
    %4672 = vmatpush1.msra.mxu0 0.0
    %4673 = vmatprep.subr.mxu0 0.0
    %4674 = vmatpush1.msra.mxu0 0.0
    %4675 = vmatprep.subr.mxu0 0.0
    %4676 = vmatpush1.msra.mxu0 0.0
    %4677 = vmatprep.subr.mxu0 0.0
    %4678 = vmatpush1.msra.mxu0 0.0
    %4679 = vmatprep.subr.mxu0 0.0
    %4680 = vmatpush1.msra.mxu0 0.0
    %4681 = vmatprep.subr.mxu0 0.0
    %4682 = vmatpush1.msra.mxu0 0.0
    %4683 = vmatprep.subr.mxu0 0.0
    %4684 = vmatpush1.msra.mxu0 0.0
    %4685 = vmatprep.subr.mxu0 0.0
    %4686 = vmatpush1.msra.mxu0 0.0
    %4687 = vmatprep.subr.mxu0 0.0
    %4688 = vmatpush1.msra.mxu0 0.0
    %4689 = vmatprep.subr.mxu0 0.0
    %4690 = vmatpush1.msra.mxu0 0.0
    %4691 = vmatprep.subr.mxu0 0.0
    %4692 = vmatpush1.msra.mxu0 0.0
    %4693 = vmatprep.subr.mxu0 0.0
    %4694 = vmatpush1.msra.mxu0 0.0
    %4695 = vmatprep.subr.mxu0 0.0
    %4696 = vmatpush1.msra.mxu0 0.0
    %4697 = vmatprep.subr.mxu0 0.0
    %4698 = vmatpush1.msra.mxu0 0.0
    %4699 = vmatprep.subr.mxu0 0.0
    %4700 = vmatpush1.msra.mxu0 0.0
    %4701 = vmatprep.subr.mxu0 0.0
    %4702 = vmatpush1.msra.mxu0 0.0
    %4703 = vmatprep.mubr.f32.mxu0 0.0
    %4704 = vmatmul.mubr.f32.gmra.mrb[0].mxu0 %v4637
    %v4705 = vpop.f32.mrb[0].mxu0
    %v4706 = vadd.f32 0.0, %v4705
    %v4707 = vpop.f32.mrb[0].mxu0
    %4708 = vdwg.mxu0
    %4709 = vrot.lane.b32.xlu0 %v198, 88
    %v4710 = vpop.permute.xlu0 %4709
    %4711 = vrot.lane.b32.xlu0 %v198, 24
    %v4712 = vpop.permute.xlu0 %4711
    %v4713 = vsel %vm314, %v4710, 0
    %v4715 = vsel %vm314, %v4712, 0
    %4717 = vmatprep.subr.mxu0 0.0
    %4718 = vmatpush1.xpose.msra.mxu0 %v4715
    %4719 = vmatprep.subr.mxu0 0.0
    %4720 = vmatpush1.xpose.msra.mxu0 0.0
    %4721 = vmatprep.subr.mxu0 0.0
    %4722 = vmatpush1.xpose.msra.mxu0 0.0
    %4723 = vmatprep.subr.mxu0 0.0
    %4724 = vmatpush1.xpose.msra.mxu0 0.0
    %4725 = vmatprep.subr.mxu0 0.0
    %4726 = vmatpush1.xpose.msra.mxu0 0.0
    %4727 = vmatprep.subr.mxu0 0.0
    %4728 = vmatpush1.xpose.msra.mxu0 0.0
    %4729 = vmatprep.subr.mxu0 0.0
    %4730 = vmatpush1.xpose.msra.mxu0 0.0
    %4731 = vmatprep.subr.mxu0 0.0
    %4732 = vmatpush1.xpose.msra.mxu0 0.0
    %4733 = vmatprep.subr.mxu0 0.0
    %4734 = vmatpush1.xpose.msra.mxu0 0.0
    %4735 = vmatprep.subr.mxu0 0.0
    %4736 = vmatpush1.xpose.msra.mxu0 0.0
    %4737 = vmatprep.subr.mxu0 0.0
    %4738 = vmatpush1.xpose.msra.mxu0 0.0
    %4739 = vmatprep.subr.mxu0 0.0
    %4740 = vmatpush1.xpose.msra.mxu0 0.0
    %4741 = vmatprep.subr.mxu0 0.0
    %4742 = vmatpush1.xpose.msra.mxu0 0.0
    %4743 = vmatprep.subr.mxu0 0.0
    %4744 = vmatpush1.xpose.msra.mxu0 0.0
    %4745 = vmatprep.subr.mxu0 0.0
    %4746 = vmatpush1.xpose.msra.mxu0 0.0
    %4747 = vmatprep.subr.mxu0 0.0
    %4748 = vmatpush1.xpose.msra.mxu0 0.0
    %4749 = vmatprep.subr.mxu0 0.0
    %4750 = vmatpush1.xpose.msra.mxu0 0.0
    %4751 = vmatprep.subr.mxu0 0.0
    %4752 = vmatpush1.xpose.msra.mxu0 0.0
    %4753 = vmatprep.subr.mxu0 0.0
    %4754 = vmatpush1.xpose.msra.mxu0 0.0
    %4755 = vmatprep.subr.mxu0 0.0
    %4756 = vmatpush1.xpose.msra.mxu0 0.0
    %4757 = vmatprep.subr.mxu0 0.0
    %4758 = vmatpush1.xpose.msra.mxu0 0.0
    %4759 = vmatprep.subr.mxu0 0.0
    %4760 = vmatpush1.xpose.msra.mxu0 0.0
    %4761 = vmatprep.subr.mxu0 0.0
    %4762 = vmatpush1.xpose.msra.mxu0 0.0
    %4763 = vmatprep.subr.mxu0 0.0
    %4764 = vmatpush1.xpose.msra.mxu0 0.0
    %4765 = vmatprep.subr.mxu0 0.0
    %4766 = vmatpush1.xpose.msra.mxu0 0.0
    %4767 = vmatprep.subr.mxu0 0.0
    %4768 = vmatpush1.xpose.msra.mxu0 0.0
    %4769 = vmatprep.subr.mxu0 0.0
    %4770 = vmatpush1.xpose.msra.mxu0 0.0
    %4771 = vmatprep.subr.mxu0 0.0
    %4772 = vmatpush1.xpose.msra.mxu0 0.0
    %4773 = vmatprep.subr.mxu0 0.0
    %4774 = vmatpush1.xpose.msra.mxu0 0.0
    %4775 = vmatprep.subr.mxu0 0.0
    %4776 = vmatpush1.xpose.msra.mxu0 0.0
    %4777 = vmatprep.subr.mxu0 0.0
    %4778 = vmatpush1.xpose.msra.mxu0 0.0
    %4779 = vmatprep.subr.mxu0 0.0
    %4780 = vmatpush1.xpose.msra.mxu0 0.0
    %4781 = vmatprep.mubr.f32.mxu0 0.0
    %4782 = vmatmul.mubr.f32.gmra.mrb[0].mxu0 %v4713
    %v4783 = vpop.f32.mrb[0].mxu0
    %v4784 = vadd.f32 0.0, %v4783
    %v4785 = vpop.f32.mrb[0].mxu0
    %4786 = vdwg.mxu0
    %v4787 = vmul.f32 %v4784, 0.5
    %v4788 = vsel %vm390, %v4787, -inf
    %4789 = vmax.xlane.f32.xlu0 %v4788
    %v4790 = vpop.xlane.xlu0 %4789
    %v4791 = vsub.f32 %v4787, %v4790
    %v4792 = vmul.f32 %v4791, 1.442695
    %v4793 = vpow.pop %v4792
    %v4794 = vsel %vm390, %v4793, 0.0
    %4795 = vadd.xlane.f32.xlu0 %v4794
    %v4796 = vpop.xlane.xlu0 %4795
    %v4797 = vrcp.pop %v4796
    %v4798 = vmul.f32 %v4793, %v4797
    %4799 = vrot.lane.b32.xlu0 %v296, 24
    %v4800 = vpop.permute.xlu0 %4799
    %v4803 = vsel %vm390, %v4798, 0
    %4805 = vmatprep.subr.mxu0 0.0
    %4806 = vmatpush1.msra.mxu0 %v4800
    %4807 = vmatprep.subr.mxu0 0.0
    %4808 = vmatpush1.msra.mxu0 0.0
    %4809 = vmatprep.subr.mxu0 0.0
    %4810 = vmatpush1.msra.mxu0 0.0
    %4811 = vmatprep.subr.mxu0 0.0
    %4812 = vmatpush1.msra.mxu0 0.0
    %4813 = vmatprep.subr.mxu0 0.0
    %4814 = vmatpush1.msra.mxu0 0.0
    %4815 = vmatprep.subr.mxu0 0.0
    %4816 = vmatpush1.msra.mxu0 0.0
    %4817 = vmatprep.subr.mxu0 0.0
    %4818 = vmatpush1.msra.mxu0 0.0
    %4819 = vmatprep.subr.mxu0 0.0
    %4820 = vmatpush1.msra.mxu0 0.0
    %4821 = vmatprep.subr.mxu0 0.0
    %4822 = vmatpush1.msra.mxu0 0.0
    %4823 = vmatprep.subr.mxu0 0.0
    %4824 = vmatpush1.msra.mxu0 0.0
    %4825 = vmatprep.subr.mxu0 0.0
    %4826 = vmatpush1.msra.mxu0 0.0
    %4827 = vmatprep.subr.mxu0 0.0
    %4828 = vmatpush1.msra.mxu0 0.0
    %4829 = vmatprep.subr.mxu0 0.0
    %4830 = vmatpush1.msra.mxu0 0.0
    %4831 = vmatprep.subr.mxu0 0.0
    %4832 = vmatpush1.msra.mxu0 0.0
    %4833 = vmatprep.subr.mxu0 0.0
    %4834 = vmatpush1.msra.mxu0 0.0
    %4835 = vmatprep.subr.mxu0 0.0
    %4836 = vmatpush1.msra.mxu0 0.0
    %4837 = vmatprep.subr.mxu0 0.0
    %4838 = vmatpush1.msra.mxu0 0.0
    %4839 = vmatprep.subr.mxu0 0.0
    %4840 = vmatpush1.msra.mxu0 0.0
    %4841 = vmatprep.subr.mxu0 0.0
    %4842 = vmatpush1.msra.mxu0 0.0
    %4843 = vmatprep.subr.mxu0 0.0
    %4844 = vmatpush1.msra.mxu0 0.0
    %4845 = vmatprep.subr.mxu0 0.0
    %4846 = vmatpush1.msra.mxu0 0.0
    %4847 = vmatprep.subr.mxu0 0.0
    %4848 = vmatpush1.msra.mxu0 0.0
    %4849 = vmatprep.subr.mxu0 0.0
    %4850 = vmatpush1.msra.mxu0 0.0
    %4851 = vmatprep.subr.mxu0 0.0
    %4852 = vmatpush1.msra.mxu0 0.0
    %4853 = vmatprep.subr.mxu0 0.0
    %4854 = vmatpush1.msra.mxu0 0.0
    %4855 = vmatprep.subr.mxu0 0.0
    %4856 = vmatpush1.msra.mxu0 0.0
    %4857 = vmatprep.subr.mxu0 0.0
    %4858 = vmatpush1.msra.mxu0 0.0
    %4859 = vmatprep.subr.mxu0 0.0
    %4860 = vmatpush1.msra.mxu0 0.0
    %4861 = vmatprep.subr.mxu0 0.0
    %4862 = vmatpush1.msra.mxu0 0.0
    %4863 = vmatprep.subr.mxu0 0.0
    %4864 = vmatpush1.msra.mxu0 0.0
    %4865 = vmatprep.subr.mxu0 0.0
    %4866 = vmatpush1.msra.mxu0 0.0
    %4867 = vmatprep.subr.mxu0 0.0
    %4868 = vmatpush1.msra.mxu0 0.0
    %4869 = vmatprep.mubr.f32.mxu0 0.0
    %4870 = vmatmul.mubr.f32.gmra.mrb[0].mxu0 %v4803
    %v4871 = vpop.f32.mrb[0].mxu0
    %v4872 = vadd.f32 0.0, %v4871
    %v4873 = vpop.f32.mrb[0].mxu0
    %4874 = vdwg.mxu0
    %4875 = vrot.lane.b32.xlu0 %v198, 84
    %v4876 = vpop.permute.xlu0 %4875
    %4877 = vrot.lane.b32.xlu0 %v198, 20
    %v4878 = vpop.permute.xlu0 %4877
    %v4879 = vsel %vm314, %v4876, 0
    %v4881 = vsel %vm314, %v4878, 0
    %4883 = vmatprep.subr.mxu0 0.0
    %4884 = vmatpush1.xpose.msra.mxu0 %v4881
    %4885 = vmatprep.subr.mxu0 0.0
    %4886 = vmatpush1.xpose.msra.mxu0 0.0
    %4887 = vmatprep.subr.mxu0 0.0
    %4888 = vmatpush1.xpose.msra.mxu0 0.0
    %4889 = vmatprep.subr.mxu0 0.0
    %4890 = vmatpush1.xpose.msra.mxu0 0.0
    %4891 = vmatprep.subr.mxu0 0.0
    %4892 = vmatpush1.xpose.msra.mxu0 0.0
    %4893 = vmatprep.subr.mxu0 0.0
    %4894 = vmatpush1.xpose.msra.mxu0 0.0
    %4895 = vmatprep.subr.mxu0 0.0
    %4896 = vmatpush1.xpose.msra.mxu0 0.0
    %4897 = vmatprep.subr.mxu0 0.0
    %4898 = vmatpush1.xpose.msra.mxu0 0.0
    %4899 = vmatprep.subr.mxu0 0.0
    %4900 = vmatpush1.xpose.msra.mxu0 0.0
    %4901 = vmatprep.subr.mxu0 0.0
    %4902 = vmatpush1.xpose.msra.mxu0 0.0
    %4903 = vmatprep.subr.mxu0 0.0
    %4904 = vmatpush1.xpose.msra.mxu0 0.0
    %4905 = vmatprep.subr.mxu0 0.0
    %4906 = vmatpush1.xpose.msra.mxu0 0.0
    %4907 = vmatprep.subr.mxu0 0.0
    %4908 = vmatpush1.xpose.msra.mxu0 0.0
    %4909 = vmatprep.subr.mxu0 0.0
    %4910 = vmatpush1.xpose.msra.mxu0 0.0
    %4911 = vmatprep.subr.mxu0 0.0
    %4912 = vmatpush1.xpose.msra.mxu0 0.0
    %4913 = vmatprep.subr.mxu0 0.0
    %4914 = vmatpush1.xpose.msra.mxu0 0.0
    %4915 = vmatprep.subr.mxu0 0.0
    %4916 = vmatpush1.xpose.msra.mxu0 0.0
    %4917 = vmatprep.subr.mxu0 0.0
    %4918 = vmatpush1.xpose.msra.mxu0 0.0
    %4919 = vmatprep.subr.mxu0 0.0
    %4920 = vmatpush1.xpose.msra.mxu0 0.0
    %4921 = vmatprep.subr.mxu0 0.0
    %4922 = vmatpush1.xpose.msra.mxu0 0.0
    %4923 = vmatprep.subr.mxu0 0.0
    %4924 = vmatpush1.xpose.msra.mxu0 0.0
    %4925 = vmatprep.subr.mxu0 0.0
    %4926 = vmatpush1.xpose.msra.mxu0 0.0
    %4927 = vmatprep.subr.mxu0 0.0
    %4928 = vmatpush1.xpose.msra.mxu0 0.0
    %4929 = vmatprep.subr.mxu0 0.0
    %4930 = vmatpush1.xpose.msra.mxu0 0.0
    %4931 = vmatprep.subr.mxu0 0.0
    %4932 = vmatpush1.xpose.msra.mxu0 0.0
    %4933 = vmatprep.subr.mxu0 0.0
    %4934 = vmatpush1.xpose.msra.mxu0 0.0
    %4935 = vmatprep.subr.mxu0 0.0
    %4936 = vmatpush1.xpose.msra.mxu0 0.0
    %4937 = vmatprep.subr.mxu0 0.0
    %4938 = vmatpush1.xpose.msra.mxu0 0.0
    %4939 = vmatprep.subr.mxu0 0.0
    %4940 = vmatpush1.xpose.msra.mxu0 0.0
    %4941 = vmatprep.subr.mxu0 0.0
    %4942 = vmatpush1.xpose.msra.mxu0 0.0
    %4943 = vmatprep.subr.mxu0 0.0
    %4944 = vmatpush1.xpose.msra.mxu0 0.0
    %4945 = vmatprep.subr.mxu0 0.0
    %4946 = vmatpush1.xpose.msra.mxu0 0.0
    %4947 = vmatprep.mubr.f32.mxu0 0.0
    %4948 = vmatmul.mubr.f32.gmra.mrb[0].mxu0 %v4879
    %v4949 = vpop.f32.mrb[0].mxu0
    %v4950 = vadd.f32 0.0, %v4949
    %v4951 = vpop.f32.mrb[0].mxu0
    %4952 = vdwg.mxu0
    %v4953 = vmul.f32 %v4950, 0.5
    %v4954 = vsel %vm390, %v4953, -inf
    %4955 = vmax.xlane.f32.xlu0 %v4954
    %v4956 = vpop.xlane.xlu0 %4955
    %v4957 = vsub.f32 %v4953, %v4956
    %v4958 = vmul.f32 %v4957, 1.442695
    %v4959 = vpow.pop %v4958
    %v4960 = vsel %vm390, %v4959, 0.0
    %4961 = vadd.xlane.f32.xlu0 %v4960
    %v4962 = vpop.xlane.xlu0 %4961
    %v4963 = vrcp.pop %v4962
    %v4964 = vmul.f32 %v4959, %v4963
    %4965 = vrot.lane.b32.xlu0 %v296, 20
    %v4966 = vpop.permute.xlu0 %4965
    %v4969 = vsel %vm390, %v4964, 0
    %4971 = vmatprep.subr.mxu0 0.0
    %4972 = vmatpush1.msra.mxu0 %v4966
    %4973 = vmatprep.subr.mxu0 0.0
    %4974 = vmatpush1.msra.mxu0 0.0
    %4975 = vmatprep.subr.mxu0 0.0
    %4976 = vmatpush1.msra.mxu0 0.0
    %4977 = vmatprep.subr.mxu0 0.0
    %4978 = vmatpush1.msra.mxu0 0.0
    %4979 = vmatprep.subr.mxu0 0.0
    %4980 = vmatpush1.msra.mxu0 0.0
    %4981 = vmatprep.subr.mxu0 0.0
    %4982 = vmatpush1.msra.mxu0 0.0
    %4983 = vmatprep.subr.mxu0 0.0
    %4984 = vmatpush1.msra.mxu0 0.0
    %4985 = vmatprep.subr.mxu0 0.0
    %4986 = vmatpush1.msra.mxu0 0.0
    %4987 = vmatprep.subr.mxu0 0.0
    %4988 = vmatpush1.msra.mxu0 0.0
    %4989 = vmatprep.subr.mxu0 0.0
    %4990 = vmatpush1.msra.mxu0 0.0
    %4991 = vmatprep.subr.mxu0 0.0
    %4992 = vmatpush1.msra.mxu0 0.0
    %4993 = vmatprep.subr.mxu0 0.0
    %4994 = vmatpush1.msra.mxu0 0.0
    %4995 = vmatprep.subr.mxu0 0.0
    %4996 = vmatpush1.msra.mxu0 0.0
    %4997 = vmatprep.subr.mxu0 0.0
    %4998 = vmatpush1.msra.mxu0 0.0
    %4999 = vmatprep.subr.mxu0 0.0
    %5000 = vmatpush1.msra.mxu0 0.0
    %5001 = vmatprep.subr.mxu0 0.0
    %5002 = vmatpush1.msra.mxu0 0.0
    %5003 = vmatprep.subr.mxu0 0.0
    %5004 = vmatpush1.msra.mxu0 0.0
    %5005 = vmatprep.subr.mxu0 0.0
    %5006 = vmatpush1.msra.mxu0 0.0
    %5007 = vmatprep.subr.mxu0 0.0
    %5008 = vmatpush1.msra.mxu0 0.0
    %5009 = vmatprep.subr.mxu0 0.0
    %5010 = vmatpush1.msra.mxu0 0.0
    %5011 = vmatprep.subr.mxu0 0.0
    %5012 = vmatpush1.msra.mxu0 0.0
    %5013 = vmatprep.subr.mxu0 0.0
    %5014 = vmatpush1.msra.mxu0 0.0
    %5015 = vmatprep.subr.mxu0 0.0
    %5016 = vmatpush1.msra.mxu0 0.0
    %5017 = vmatprep.subr.mxu0 0.0
    %5018 = vmatpush1.msra.mxu0 0.0
    %5019 = vmatprep.subr.mxu0 0.0
    %5020 = vmatpush1.msra.mxu0 0.0
    %5021 = vmatprep.subr.mxu0 0.0
    %5022 = vmatpush1.msra.mxu0 0.0
    %5023 = vmatprep.subr.mxu0 0.0
    %5024 = vmatpush1.msra.mxu0 0.0
    %5025 = vmatprep.subr.mxu0 0.0
    %5026 = vmatpush1.msra.mxu0 0.0
    %5027 = vmatprep.subr.mxu0 0.0
    %5028 = vmatpush1.msra.mxu0 0.0
    %5029 = vmatprep.subr.mxu0 0.0
    %5030 = vmatpush1.msra.mxu0 0.0
    %5031 = vmatprep.subr.mxu0 0.0
    %5032 = vmatpush1.msra.mxu0 0.0
    %5033 = vmatprep.subr.mxu0 0.0
    %5034 = vmatpush1.msra.mxu0 0.0
    %5035 = vmatprep.mubr.f32.mxu0 0.0
    %5036 = vmatmul.mubr.f32.gmra.mrb[0].mxu0 %v4969
    %v5037 = vpop.f32.mrb[0].mxu0
    %v5038 = vadd.f32 0.0, %v5037
    %v5039 = vpop.f32.mrb[0].mxu0
    %5040 = vdwg.mxu0
    %5041 = vrot.lane.b32.xlu0 %v198, 80
    %v5042 = vpop.permute.xlu0 %5041
    %5043 = vrot.lane.b32.xlu0 %v198, 16
    %v5044 = vpop.permute.xlu0 %5043
    %v5045 = vsel %vm314, %v5042, 0
    %v5047 = vsel %vm314, %v5044, 0
    %5049 = vmatprep.subr.mxu0 0.0
    %5050 = vmatpush1.xpose.msra.mxu0 %v5047
    %5051 = vmatprep.subr.mxu0 0.0
    %5052 = vmatpush1.xpose.msra.mxu0 0.0
    %5053 = vmatprep.subr.mxu0 0.0
    %5054 = vmatpush1.xpose.msra.mxu0 0.0
    %5055 = vmatprep.subr.mxu0 0.0
    %5056 = vmatpush1.xpose.msra.mxu0 0.0
    %5057 = vmatprep.subr.mxu0 0.0
    %5058 = vmatpush1.xpose.msra.mxu0 0.0
    %5059 = vmatprep.subr.mxu0 0.0
    %5060 = vmatpush1.xpose.msra.mxu0 0.0
    %5061 = vmatprep.subr.mxu0 0.0
    %5062 = vmatpush1.xpose.msra.mxu0 0.0
    %5063 = vmatprep.subr.mxu0 0.0
    %5064 = vmatpush1.xpose.msra.mxu0 0.0
    %5065 = vmatprep.subr.mxu0 0.0
    %5066 = vmatpush1.xpose.msra.mxu0 0.0
    %5067 = vmatprep.subr.mxu0 0.0
    %5068 = vmatpush1.xpose.msra.mxu0 0.0
    %5069 = vmatprep.subr.mxu0 0.0
    %5070 = vmatpush1.xpose.msra.mxu0 0.0
    %5071 = vmatprep.subr.mxu0 0.0
    %5072 = vmatpush1.xpose.msra.mxu0 0.0
    %5073 = vmatprep.subr.mxu0 0.0
    %5074 = vmatpush1.xpose.msra.mxu0 0.0
    %5075 = vmatprep.subr.mxu0 0.0
    %5076 = vmatpush1.xpose.msra.mxu0 0.0
    %5077 = vmatprep.subr.mxu0 0.0
    %5078 = vmatpush1.xpose.msra.mxu0 0.0
    %5079 = vmatprep.subr.mxu0 0.0
    %5080 = vmatpush1.xpose.msra.mxu0 0.0
    %5081 = vmatprep.subr.mxu0 0.0
    %5082 = vmatpush1.xpose.msra.mxu0 0.0
    %5083 = vmatprep.subr.mxu0 0.0
    %5084 = vmatpush1.xpose.msra.mxu0 0.0
    %5085 = vmatprep.subr.mxu0 0.0
    %5086 = vmatpush1.xpose.msra.mxu0 0.0
    %5087 = vmatprep.subr.mxu0 0.0
    %5088 = vmatpush1.xpose.msra.mxu0 0.0
    %5089 = vmatprep.subr.mxu0 0.0
    %5090 = vmatpush1.xpose.msra.mxu0 0.0
    %5091 = vmatprep.subr.mxu0 0.0
    %5092 = vmatpush1.xpose.msra.mxu0 0.0
    %5093 = vmatprep.subr.mxu0 0.0
    %5094 = vmatpush1.xpose.msra.mxu0 0.0
    %5095 = vmatprep.subr.mxu0 0.0
    %5096 = vmatpush1.xpose.msra.mxu0 0.0
    %5097 = vmatprep.subr.mxu0 0.0
    %5098 = vmatpush1.xpose.msra.mxu0 0.0
    %5099 = vmatprep.subr.mxu0 0.0
    %5100 = vmatpush1.xpose.msra.mxu0 0.0
    %5101 = vmatprep.subr.mxu0 0.0
    %5102 = vmatpush1.xpose.msra.mxu0 0.0
    %5103 = vmatprep.subr.mxu0 0.0
    %5104 = vmatpush1.xpose.msra.mxu0 0.0
    %5105 = vmatprep.subr.mxu0 0.0
    %5106 = vmatpush1.xpose.msra.mxu0 0.0
    %5107 = vmatprep.subr.mxu0 0.0
    %5108 = vmatpush1.xpose.msra.mxu0 0.0
    %5109 = vmatprep.subr.mxu0 0.0
    %5110 = vmatpush1.xpose.msra.mxu0 0.0
    %5111 = vmatprep.subr.mxu0 0.0
    %5112 = vmatpush1.xpose.msra.mxu0 0.0
    %5113 = vmatprep.mubr.f32.mxu0 0.0
    %5114 = vmatmul.mubr.f32.gmra.mrb[0].mxu0 %v5045
    %v5115 = vpop.f32.mrb[0].mxu0
    %v5116 = vadd.f32 0.0, %v5115
    %v5117 = vpop.f32.mrb[0].mxu0
    %5118 = vdwg.mxu0
    %v5119 = vmul.f32 %v5116, 0.5
    %v5120 = vsel %vm390, %v5119, -inf
    %5121 = vmax.xlane.f32.xlu0 %v5120
    %v5122 = vpop.xlane.xlu0 %5121
    %v5123 = vsub.f32 %v5119, %v5122
    %v5124 = vmul.f32 %v5123, 1.442695
    %v5125 = vpow.pop %v5124
    %v5126 = vsel %vm390, %v5125, 0.0
    %5127 = vadd.xlane.f32.xlu0 %v5126
    %v5128 = vpop.xlane.xlu0 %5127
    %v5129 = vrcp.pop %v5128
    %v5130 = vmul.f32 %v5125, %v5129
    %5131 = vrot.lane.b32.xlu0 %v296, 16
    %v5132 = vpop.permute.xlu0 %5131
    %v5135 = vsel %vm390, %v5130, 0
    %5137 = vmatprep.subr.mxu0 0.0
    %5138 = vmatpush1.msra.mxu0 %v5132
    %5139 = vmatprep.subr.mxu0 0.0
    %5140 = vmatpush1.msra.mxu0 0.0
    %5141 = vmatprep.subr.mxu0 0.0
    %5142 = vmatpush1.msra.mxu0 0.0
    %5143 = vmatprep.subr.mxu0 0.0
    %5144 = vmatpush1.msra.mxu0 0.0
    %5145 = vmatprep.subr.mxu0 0.0
    %5146 = vmatpush1.msra.mxu0 0.0
    %5147 = vmatprep.subr.mxu0 0.0
    %5148 = vmatpush1.msra.mxu0 0.0
    %5149 = vmatprep.subr.mxu0 0.0
    %5150 = vmatpush1.msra.mxu0 0.0
    %5151 = vmatprep.subr.mxu0 0.0
    %5152 = vmatpush1.msra.mxu0 0.0
    %5153 = vmatprep.subr.mxu0 0.0
    %5154 = vmatpush1.msra.mxu0 0.0
    %5155 = vmatprep.subr.mxu0 0.0
    %5156 = vmatpush1.msra.mxu0 0.0
    %5157 = vmatprep.subr.mxu0 0.0
    %5158 = vmatpush1.msra.mxu0 0.0
    %5159 = vmatprep.subr.mxu0 0.0
    %5160 = vmatpush1.msra.mxu0 0.0
    %5161 = vmatprep.subr.mxu0 0.0
    %5162 = vmatpush1.msra.mxu0 0.0
    %5163 = vmatprep.subr.mxu0 0.0
    %5164 = vmatpush1.msra.mxu0 0.0
    %5165 = vmatprep.subr.mxu0 0.0
    %5166 = vmatpush1.msra.mxu0 0.0
    %5167 = vmatprep.subr.mxu0 0.0
    %5168 = vmatpush1.msra.mxu0 0.0
    %5169 = vmatprep.subr.mxu0 0.0
    %5170 = vmatpush1.msra.mxu0 0.0
    %5171 = vmatprep.subr.mxu0 0.0
    %5172 = vmatpush1.msra.mxu0 0.0
    %5173 = vmatprep.subr.mxu0 0.0
    %5174 = vmatpush1.msra.mxu0 0.0
    %5175 = vmatprep.subr.mxu0 0.0
    %5176 = vmatpush1.msra.mxu0 0.0
    %5177 = vmatprep.subr.mxu0 0.0
    %5178 = vmatpush1.msra.mxu0 0.0
    %5179 = vmatprep.subr.mxu0 0.0
    %5180 = vmatpush1.msra.mxu0 0.0
    %5181 = vmatprep.subr.mxu0 0.0
    %5182 = vmatpush1.msra.mxu0 0.0
    %5183 = vmatprep.subr.mxu0 0.0
    %5184 = vmatpush1.msra.mxu0 0.0
    %5185 = vmatprep.subr.mxu0 0.0
    %5186 = vmatpush1.msra.mxu0 0.0
    %5187 = vmatprep.subr.mxu0 0.0
    %5188 = vmatpush1.msra.mxu0 0.0
    %5189 = vmatprep.subr.mxu0 0.0
    %5190 = vmatpush1.msra.mxu0 0.0
    %5191 = vmatprep.subr.mxu0 0.0
    %5192 = vmatpush1.msra.mxu0 0.0
    %5193 = vmatprep.subr.mxu0 0.0
    %5194 = vmatpush1.msra.mxu0 0.0
    %5195 = vmatprep.subr.mxu0 0.0
    %5196 = vmatpush1.msra.mxu0 0.0
    %5197 = vmatprep.subr.mxu0 0.0
    %5198 = vmatpush1.msra.mxu0 0.0
    %5199 = vmatprep.subr.mxu0 0.0
    %5200 = vmatpush1.msra.mxu0 0.0
    %5201 = vmatprep.mubr.f32.mxu0 0.0
    %5202 = vmatmul.mubr.f32.gmra.mrb[0].mxu0 %v5135
    %v5203 = vpop.f32.mrb[0].mxu0
    %v5204 = vadd.f32 0.0, %v5203
    %v5205 = vpop.f32.mrb[0].mxu0
    %5206 = vdwg.mxu0
    %5207 = vrot.lane.b32.xlu0 %v198, 76
    %v5208 = vpop.permute.xlu0 %5207
    %5209 = vrot.lane.b32.xlu0 %v198, 12
    %v5210 = vpop.permute.xlu0 %5209
    %v5211 = vsel %vm314, %v5208, 0
    %v5213 = vsel %vm314, %v5210, 0
    %5215 = vmatprep.subr.mxu0 0.0
    %5216 = vmatpush1.xpose.msra.mxu0 %v5213
    %5217 = vmatprep.subr.mxu0 0.0
    %5218 = vmatpush1.xpose.msra.mxu0 0.0
    %5219 = vmatprep.subr.mxu0 0.0
    %5220 = vmatpush1.xpose.msra.mxu0 0.0
    %5221 = vmatprep.subr.mxu0 0.0
    %5222 = vmatpush1.xpose.msra.mxu0 0.0
    %5223 = vmatprep.subr.mxu0 0.0
    %5224 = vmatpush1.xpose.msra.mxu0 0.0
    %5225 = vmatprep.subr.mxu0 0.0
    %5226 = vmatpush1.xpose.msra.mxu0 0.0
    %5227 = vmatprep.subr.mxu0 0.0
    %5228 = vmatpush1.xpose.msra.mxu0 0.0
    %5229 = vmatprep.subr.mxu0 0.0
    %5230 = vmatpush1.xpose.msra.mxu0 0.0
    %5231 = vmatprep.subr.mxu0 0.0
    %5232 = vmatpush1.xpose.msra.mxu0 0.0
    %5233 = vmatprep.subr.mxu0 0.0
    %5234 = vmatpush1.xpose.msra.mxu0 0.0
    %5235 = vmatprep.subr.mxu0 0.0
    %5236 = vmatpush1.xpose.msra.mxu0 0.0
    %5237 = vmatprep.subr.mxu0 0.0
    %5238 = vmatpush1.xpose.msra.mxu0 0.0
    %5239 = vmatprep.subr.mxu0 0.0
    %5240 = vmatpush1.xpose.msra.mxu0 0.0
    %5241 = vmatprep.subr.mxu0 0.0
    %5242 = vmatpush1.xpose.msra.mxu0 0.0
    %5243 = vmatprep.subr.mxu0 0.0
    %5244 = vmatpush1.xpose.msra.mxu0 0.0
    %5245 = vmatprep.subr.mxu0 0.0
    %5246 = vmatpush1.xpose.msra.mxu0 0.0
    %5247 = vmatprep.subr.mxu0 0.0
    %5248 = vmatpush1.xpose.msra.mxu0 0.0
    %5249 = vmatprep.subr.mxu0 0.0
    %5250 = vmatpush1.xpose.msra.mxu0 0.0
    %5251 = vmatprep.subr.mxu0 0.0
    %5252 = vmatpush1.xpose.msra.mxu0 0.0
    %5253 = vmatprep.subr.mxu0 0.0
    %5254 = vmatpush1.xpose.msra.mxu0 0.0
    %5255 = vmatprep.subr.mxu0 0.0
    %5256 = vmatpush1.xpose.msra.mxu0 0.0
    %5257 = vmatprep.subr.mxu0 0.0
    %5258 = vmatpush1.xpose.msra.mxu0 0.0
    %5259 = vmatprep.subr.mxu0 0.0
    %5260 = vmatpush1.xpose.msra.mxu0 0.0
    %5261 = vmatprep.subr.mxu0 0.0
    %5262 = vmatpush1.xpose.msra.mxu0 0.0
    %5263 = vmatprep.subr.mxu0 0.0
    %5264 = vmatpush1.xpose.msra.mxu0 0.0
    %5265 = vmatprep.subr.mxu0 0.0
    %5266 = vmatpush1.xpose.msra.mxu0 0.0
    %5267 = vmatprep.subr.mxu0 0.0
    %5268 = vmatpush1.xpose.msra.mxu0 0.0
    %5269 = vmatprep.subr.mxu0 0.0
    %5270 = vmatpush1.xpose.msra.mxu0 0.0
    %5271 = vmatprep.subr.mxu0 0.0
    %5272 = vmatpush1.xpose.msra.mxu0 0.0
    %5273 = vmatprep.subr.mxu0 0.0
    %5274 = vmatpush1.xpose.msra.mxu0 0.0
    %5275 = vmatprep.subr.mxu0 0.0
    %5276 = vmatpush1.xpose.msra.mxu0 0.0
    %5277 = vmatprep.subr.mxu0 0.0
    %5278 = vmatpush1.xpose.msra.mxu0 0.0
    %5279 = vmatprep.mubr.f32.mxu0 0.0
    %5280 = vmatmul.mubr.f32.gmra.mrb[0].mxu0 %v5211
    %v5281 = vpop.f32.mrb[0].mxu0
    %v5282 = vadd.f32 0.0, %v5281
    %v5283 = vpop.f32.mrb[0].mxu0
    %5284 = vdwg.mxu0
    %v5285 = vmul.f32 %v5282, 0.5
    %v5286 = vsel %vm390, %v5285, -inf
    %5287 = vmax.xlane.f32.xlu0 %v5286
    %v5288 = vpop.xlane.xlu0 %5287
    %v5289 = vsub.f32 %v5285, %v5288
    %v5290 = vmul.f32 %v5289, 1.442695
    %v5291 = vpow.pop %v5290
    %v5292 = vsel %vm390, %v5291, 0.0
    %5293 = vadd.xlane.f32.xlu0 %v5292
    %v5294 = vpop.xlane.xlu0 %5293
    %v5295 = vrcp.pop %v5294
    %v5296 = vmul.f32 %v5291, %v5295
    %5297 = vrot.lane.b32.xlu0 %v296, 12
    %v5298 = vpop.permute.xlu0 %5297
    %v5301 = vsel %vm390, %v5296, 0
    %5303 = vmatprep.subr.mxu0 0.0
    %5304 = vmatpush1.msra.mxu0 %v5298
    %5305 = vmatprep.subr.mxu0 0.0
    %5306 = vmatpush1.msra.mxu0 0.0
    %5307 = vmatprep.subr.mxu0 0.0
    %5308 = vmatpush1.msra.mxu0 0.0
    %5309 = vmatprep.subr.mxu0 0.0
    %5310 = vmatpush1.msra.mxu0 0.0
    %5311 = vmatprep.subr.mxu0 0.0
    %5312 = vmatpush1.msra.mxu0 0.0
    %5313 = vmatprep.subr.mxu0 0.0
    %5314 = vmatpush1.msra.mxu0 0.0
    %5315 = vmatprep.subr.mxu0 0.0
    %5316 = vmatpush1.msra.mxu0 0.0
    %5317 = vmatprep.subr.mxu0 0.0
    %5318 = vmatpush1.msra.mxu0 0.0
    %5319 = vmatprep.subr.mxu0 0.0
    %5320 = vmatpush1.msra.mxu0 0.0
    %5321 = vmatprep.subr.mxu0 0.0
    %5322 = vmatpush1.msra.mxu0 0.0
    %5323 = vmatprep.subr.mxu0 0.0
    %5324 = vmatpush1.msra.mxu0 0.0
    %5325 = vmatprep.subr.mxu0 0.0
    %5326 = vmatpush1.msra.mxu0 0.0
    %5327 = vmatprep.subr.mxu0 0.0
    %5328 = vmatpush1.msra.mxu0 0.0
    %5329 = vmatprep.subr.mxu0 0.0
    %5330 = vmatpush1.msra.mxu0 0.0
    %5331 = vmatprep.subr.mxu0 0.0
    %5332 = vmatpush1.msra.mxu0 0.0
    %5333 = vmatprep.subr.mxu0 0.0
    %5334 = vmatpush1.msra.mxu0 0.0
    %5335 = vmatprep.subr.mxu0 0.0
    %5336 = vmatpush1.msra.mxu0 0.0
    %5337 = vmatprep.subr.mxu0 0.0
    %5338 = vmatpush1.msra.mxu0 0.0
    %5339 = vmatprep.subr.mxu0 0.0
    %5340 = vmatpush1.msra.mxu0 0.0
    %5341 = vmatprep.subr.mxu0 0.0
    %5342 = vmatpush1.msra.mxu0 0.0
    %5343 = vmatprep.subr.mxu0 0.0
    %5344 = vmatpush1.msra.mxu0 0.0
    %5345 = vmatprep.subr.mxu0 0.0
    %5346 = vmatpush1.msra.mxu0 0.0
    %5347 = vmatprep.subr.mxu0 0.0
    %5348 = vmatpush1.msra.mxu0 0.0
    %5349 = vmatprep.subr.mxu0 0.0
    %5350 = vmatpush1.msra.mxu0 0.0
    %5351 = vmatprep.subr.mxu0 0.0
    %5352 = vmatpush1.msra.mxu0 0.0
    %5353 = vmatprep.subr.mxu0 0.0
    %5354 = vmatpush1.msra.mxu0 0.0
    %5355 = vmatprep.subr.mxu0 0.0
    %5356 = vmatpush1.msra.mxu0 0.0
    %5357 = vmatprep.subr.mxu0 0.0
    %5358 = vmatpush1.msra.mxu0 0.0
    %5359 = vmatprep.subr.mxu0 0.0
    %5360 = vmatpush1.msra.mxu0 0.0
    %5361 = vmatprep.subr.mxu0 0.0
    %5362 = vmatpush1.msra.mxu0 0.0
    %5363 = vmatprep.subr.mxu0 0.0
    %5364 = vmatpush1.msra.mxu0 0.0
    %5365 = vmatprep.subr.mxu0 0.0
    %5366 = vmatpush1.msra.mxu0 0.0
    %5367 = vmatprep.mubr.f32.mxu0 0.0
    %5368 = vmatmul.mubr.f32.gmra.mrb[0].mxu0 %v5301
    %v5369 = vpop.f32.mrb[0].mxu0
    %v5370 = vadd.f32 0.0, %v5369
    %v5371 = vpop.f32.mrb[0].mxu0
    %5372 = vdwg.mxu0
    %5373 = vrot.lane.b32.xlu0 %v198, 72
    %v5374 = vpop.permute.xlu0 %5373
    %5375 = vrot.lane.b32.xlu0 %v198, 8
    %v5376 = vpop.permute.xlu0 %5375
    %v5377 = vsel %vm314, %v5374, 0
    %v5379 = vsel %vm314, %v5376, 0
    %5381 = vmatprep.subr.mxu0 0.0
    %5382 = vmatpush1.xpose.msra.mxu0 %v5379
    %5383 = vmatprep.subr.mxu0 0.0
    %5384 = vmatpush1.xpose.msra.mxu0 0.0
    %5385 = vmatprep.subr.mxu0 0.0
    %5386 = vmatpush1.xpose.msra.mxu0 0.0
    %5387 = vmatprep.subr.mxu0 0.0
    %5388 = vmatpush1.xpose.msra.mxu0 0.0
    %5389 = vmatprep.subr.mxu0 0.0
    %5390 = vmatpush1.xpose.msra.mxu0 0.0
    %5391 = vmatprep.subr.mxu0 0.0
    %5392 = vmatpush1.xpose.msra.mxu0 0.0
    %5393 = vmatprep.subr.mxu0 0.0
    %5394 = vmatpush1.xpose.msra.mxu0 0.0
    %5395 = vmatprep.subr.mxu0 0.0
    %5396 = vmatpush1.xpose.msra.mxu0 0.0
    %5397 = vmatprep.subr.mxu0 0.0
    %5398 = vmatpush1.xpose.msra.mxu0 0.0
    %5399 = vmatprep.subr.mxu0 0.0
    %5400 = vmatpush1.xpose.msra.mxu0 0.0
    %5401 = vmatprep.subr.mxu0 0.0
    %5402 = vmatpush1.xpose.msra.mxu0 0.0
    %5403 = vmatprep.subr.mxu0 0.0
    %5404 = vmatpush1.xpose.msra.mxu0 0.0
    %5405 = vmatprep.subr.mxu0 0.0
    %5406 = vmatpush1.xpose.msra.mxu0 0.0
    %5407 = vmatprep.subr.mxu0 0.0
    %5408 = vmatpush1.xpose.msra.mxu0 0.0
    %5409 = vmatprep.subr.mxu0 0.0
    %5410 = vmatpush1.xpose.msra.mxu0 0.0
    %5411 = vmatprep.subr.mxu0 0.0
    %5412 = vmatpush1.xpose.msra.mxu0 0.0
    %5413 = vmatprep.subr.mxu0 0.0
    %5414 = vmatpush1.xpose.msra.mxu0 0.0
    %5415 = vmatprep.subr.mxu0 0.0
    %5416 = vmatpush1.xpose.msra.mxu0 0.0
    %5417 = vmatprep.subr.mxu0 0.0
    %5418 = vmatpush1.xpose.msra.mxu0 0.0
    %5419 = vmatprep.subr.mxu0 0.0
    %5420 = vmatpush1.xpose.msra.mxu0 0.0
    %5421 = vmatprep.subr.mxu0 0.0
    %5422 = vmatpush1.xpose.msra.mxu0 0.0
    %5423 = vmatprep.subr.mxu0 0.0
    %5424 = vmatpush1.xpose.msra.mxu0 0.0
    %5425 = vmatprep.subr.mxu0 0.0
    %5426 = vmatpush1.xpose.msra.mxu0 0.0
    %5427 = vmatprep.subr.mxu0 0.0
    %5428 = vmatpush1.xpose.msra.mxu0 0.0
    %5429 = vmatprep.subr.mxu0 0.0
    %5430 = vmatpush1.xpose.msra.mxu0 0.0
    %5431 = vmatprep.subr.mxu0 0.0
    %5432 = vmatpush1.xpose.msra.mxu0 0.0
    %5433 = vmatprep.subr.mxu0 0.0
    %5434 = vmatpush1.xpose.msra.mxu0 0.0
    %5435 = vmatprep.subr.mxu0 0.0
    %5436 = vmatpush1.xpose.msra.mxu0 0.0
    %5437 = vmatprep.subr.mxu0 0.0
    %5438 = vmatpush1.xpose.msra.mxu0 0.0
    %5439 = vmatprep.subr.mxu0 0.0
    %5440 = vmatpush1.xpose.msra.mxu0 0.0
    %5441 = vmatprep.subr.mxu0 0.0
    %5442 = vmatpush1.xpose.msra.mxu0 0.0
    %5443 = vmatprep.subr.mxu0 0.0
    %5444 = vmatpush1.xpose.msra.mxu0 0.0
    %5445 = vmatprep.mubr.f32.mxu0 0.0
    %5446 = vmatmul.mubr.f32.gmra.mrb[0].mxu0 %v5377
    %v5447 = vpop.f32.mrb[0].mxu0
    %v5448 = vadd.f32 0.0, %v5447
    %v5449 = vpop.f32.mrb[0].mxu0
    %5450 = vdwg.mxu0
    %v5451 = vmul.f32 %v5448, 0.5
    %v5452 = vsel %vm390, %v5451, -inf
    %5453 = vmax.xlane.f32.xlu0 %v5452
    %v5454 = vpop.xlane.xlu0 %5453
    %v5455 = vsub.f32 %v5451, %v5454
    %v5456 = vmul.f32 %v5455, 1.442695
    %v5457 = vpow.pop %v5456
    %v5458 = vsel %vm390, %v5457, 0.0
    %5459 = vadd.xlane.f32.xlu0 %v5458
    %v5460 = vpop.xlane.xlu0 %5459
    %v5461 = vrcp.pop %v5460
    %v5462 = vmul.f32 %v5457, %v5461
    %5463 = vrot.lane.b32.xlu0 %v296, 8
    %v5464 = vpop.permute.xlu0 %5463
    %v5467 = vsel %vm390, %v5462, 0
    %5469 = vmatprep.subr.mxu0 0.0
    %5470 = vmatpush1.msra.mxu0 %v5464
    %5471 = vmatprep.subr.mxu0 0.0
    %5472 = vmatpush1.msra.mxu0 0.0
    %5473 = vmatprep.subr.mxu0 0.0
    %5474 = vmatpush1.msra.mxu0 0.0
    %5475 = vmatprep.subr.mxu0 0.0
    %5476 = vmatpush1.msra.mxu0 0.0
    %5477 = vmatprep.subr.mxu0 0.0
    %5478 = vmatpush1.msra.mxu0 0.0
    %5479 = vmatprep.subr.mxu0 0.0
    %5480 = vmatpush1.msra.mxu0 0.0
    %5481 = vmatprep.subr.mxu0 0.0
    %5482 = vmatpush1.msra.mxu0 0.0
    %5483 = vmatprep.subr.mxu0 0.0
    %5484 = vmatpush1.msra.mxu0 0.0
    %5485 = vmatprep.subr.mxu0 0.0
    %5486 = vmatpush1.msra.mxu0 0.0
    %5487 = vmatprep.subr.mxu0 0.0
    %5488 = vmatpush1.msra.mxu0 0.0
    %5489 = vmatprep.subr.mxu0 0.0
    %5490 = vmatpush1.msra.mxu0 0.0
    %5491 = vmatprep.subr.mxu0 0.0
    %5492 = vmatpush1.msra.mxu0 0.0
    %5493 = vmatprep.subr.mxu0 0.0
    %5494 = vmatpush1.msra.mxu0 0.0
    %5495 = vmatprep.subr.mxu0 0.0
    %5496 = vmatpush1.msra.mxu0 0.0
    %5497 = vmatprep.subr.mxu0 0.0
    %5498 = vmatpush1.msra.mxu0 0.0
    %5499 = vmatprep.subr.mxu0 0.0
    %5500 = vmatpush1.msra.mxu0 0.0
    %5501 = vmatprep.subr.mxu0 0.0
    %5502 = vmatpush1.msra.mxu0 0.0
    %5503 = vmatprep.subr.mxu0 0.0
    %5504 = vmatpush1.msra.mxu0 0.0
    %5505 = vmatprep.subr.mxu0 0.0
    %5506 = vmatpush1.msra.mxu0 0.0
    %5507 = vmatprep.subr.mxu0 0.0
    %5508 = vmatpush1.msra.mxu0 0.0
    %5509 = vmatprep.subr.mxu0 0.0
    %5510 = vmatpush1.msra.mxu0 0.0
    %5511 = vmatprep.subr.mxu0 0.0
    %5512 = vmatpush1.msra.mxu0 0.0
    %5513 = vmatprep.subr.mxu0 0.0
    %5514 = vmatpush1.msra.mxu0 0.0
    %5515 = vmatprep.subr.mxu0 0.0
    %5516 = vmatpush1.msra.mxu0 0.0
    %5517 = vmatprep.subr.mxu0 0.0
    %5518 = vmatpush1.msra.mxu0 0.0
    %5519 = vmatprep.subr.mxu0 0.0
    %5520 = vmatpush1.msra.mxu0 0.0
    %5521 = vmatprep.subr.mxu0 0.0
    %5522 = vmatpush1.msra.mxu0 0.0
    %5523 = vmatprep.subr.mxu0 0.0
    %5524 = vmatpush1.msra.mxu0 0.0
    %5525 = vmatprep.subr.mxu0 0.0
    %5526 = vmatpush1.msra.mxu0 0.0
    %5527 = vmatprep.subr.mxu0 0.0
    %5528 = vmatpush1.msra.mxu0 0.0
    %5529 = vmatprep.subr.mxu0 0.0
    %5530 = vmatpush1.msra.mxu0 0.0
    %5531 = vmatprep.subr.mxu0 0.0
    %5532 = vmatpush1.msra.mxu0 0.0
    %5533 = vmatprep.mubr.f32.mxu0 0.0
    %5534 = vmatmul.mubr.f32.gmra.mrb[0].mxu0 %v5467
    %v5535 = vpop.f32.mrb[0].mxu0
    %v5536 = vadd.f32 0.0, %v5535
    %v5537 = vpop.f32.mrb[0].mxu0
    %5538 = vdwg.mxu0
    %5539 = vrot.lane.b32.xlu0 %v198, 68
    %v5540 = vpop.permute.xlu0 %5539
    %5541 = vrot.lane.b32.xlu0 %v198, 4
    %v5542 = vpop.permute.xlu0 %5541
    %v5543 = vsel %vm314, %v5540, 0
    %v5545 = vsel %vm314, %v5542, 0
    %5547 = vmatprep.subr.mxu0 0.0
    %5548 = vmatpush1.xpose.msra.mxu0 %v5545
    %5549 = vmatprep.subr.mxu0 0.0
    %5550 = vmatpush1.xpose.msra.mxu0 0.0
    %5551 = vmatprep.subr.mxu0 0.0
    %5552 = vmatpush1.xpose.msra.mxu0 0.0
    %5553 = vmatprep.subr.mxu0 0.0
    %5554 = vmatpush1.xpose.msra.mxu0 0.0
    %5555 = vmatprep.subr.mxu0 0.0
    %5556 = vmatpush1.xpose.msra.mxu0 0.0
    %5557 = vmatprep.subr.mxu0 0.0
    %5558 = vmatpush1.xpose.msra.mxu0 0.0
    %5559 = vmatprep.subr.mxu0 0.0
    %5560 = vmatpush1.xpose.msra.mxu0 0.0
    %5561 = vmatprep.subr.mxu0 0.0
    %5562 = vmatpush1.xpose.msra.mxu0 0.0
    %5563 = vmatprep.subr.mxu0 0.0
    %5564 = vmatpush1.xpose.msra.mxu0 0.0
    %5565 = vmatprep.subr.mxu0 0.0
    %5566 = vmatpush1.xpose.msra.mxu0 0.0
    %5567 = vmatprep.subr.mxu0 0.0
    %5568 = vmatpush1.xpose.msra.mxu0 0.0
    %5569 = vmatprep.subr.mxu0 0.0
    %5570 = vmatpush1.xpose.msra.mxu0 0.0
    %5571 = vmatprep.subr.mxu0 0.0
    %5572 = vmatpush1.xpose.msra.mxu0 0.0
    %5573 = vmatprep.subr.mxu0 0.0
    %5574 = vmatpush1.xpose.msra.mxu0 0.0
    %5575 = vmatprep.subr.mxu0 0.0
    %5576 = vmatpush1.xpose.msra.mxu0 0.0
    %5577 = vmatprep.subr.mxu0 0.0
    %5578 = vmatpush1.xpose.msra.mxu0 0.0
    %5579 = vmatprep.subr.mxu0 0.0
    %5580 = vmatpush1.xpose.msra.mxu0 0.0
    %5581 = vmatprep.subr.mxu0 0.0
    %5582 = vmatpush1.xpose.msra.mxu0 0.0
    %5583 = vmatprep.subr.mxu0 0.0
    %5584 = vmatpush1.xpose.msra.mxu0 0.0
    %5585 = vmatprep.subr.mxu0 0.0
    %5586 = vmatpush1.xpose.msra.mxu0 0.0
    %5587 = vmatprep.subr.mxu0 0.0
    %5588 = vmatpush1.xpose.msra.mxu0 0.0
    %5589 = vmatprep.subr.mxu0 0.0
    %5590 = vmatpush1.xpose.msra.mxu0 0.0
    %5591 = vmatprep.subr.mxu0 0.0
    %5592 = vmatpush1.xpose.msra.mxu0 0.0
    %5593 = vmatprep.subr.mxu0 0.0
    %5594 = vmatpush1.xpose.msra.mxu0 0.0
    %5595 = vmatprep.subr.mxu0 0.0
    %5596 = vmatpush1.xpose.msra.mxu0 0.0
    %5597 = vmatprep.subr.mxu0 0.0
    %5598 = vmatpush1.xpose.msra.mxu0 0.0
    %5599 = vmatprep.subr.mxu0 0.0
    %5600 = vmatpush1.xpose.msra.mxu0 0.0
    %5601 = vmatprep.subr.mxu0 0.0
    %5602 = vmatpush1.xpose.msra.mxu0 0.0
    %5603 = vmatprep.subr.mxu0 0.0
    %5604 = vmatpush1.xpose.msra.mxu0 0.0
    %5605 = vmatprep.subr.mxu0 0.0
    %5606 = vmatpush1.xpose.msra.mxu0 0.0
    %5607 = vmatprep.subr.mxu0 0.0
    %5608 = vmatpush1.xpose.msra.mxu0 0.0
    %5609 = vmatprep.subr.mxu0 0.0
    %5610 = vmatpush1.xpose.msra.mxu0 0.0
    %5611 = vmatprep.mubr.f32.mxu0 0.0
    %5612 = vmatmul.mubr.f32.gmra.mrb[0].mxu0 %v5543
    %v5613 = vpop.f32.mrb[0].mxu0
    %v5614 = vadd.f32 0.0, %v5613
    %v5615 = vpop.f32.mrb[0].mxu0
    %5616 = vdwg.mxu0
    %v5617 = vmul.f32 %v5614, 0.5
    %v5618 = vsel %vm390, %v5617, -inf
    %5619 = vmax.xlane.f32.xlu0 %v5618
    %v5620 = vpop.xlane.xlu0 %5619
    %v5621 = vsub.f32 %v5617, %v5620
    %v5622 = vmul.f32 %v5621, 1.442695
    %v5623 = vpow.pop %v5622
    %v5624 = vsel %vm390, %v5623, 0.0
    %5625 = vadd.xlane.f32.xlu0 %v5624
    %v5626 = vpop.xlane.xlu0 %5625
    %v5627 = vrcp.pop %v5626
    %v5628 = vmul.f32 %v5623, %v5627
    %5629 = vrot.lane.b32.xlu0 %v296, 4
    %v5630 = vpop.permute.xlu0 %5629
    %v5633 = vsel %vm390, %v5628, 0
    %5635 = vmatprep.subr.mxu0 0.0
    %5636 = vmatpush1.msra.mxu0 %v5630
    %5637 = vmatprep.subr.mxu0 0.0
    %5638 = vmatpush1.msra.mxu0 0.0
    %5639 = vmatprep.subr.mxu0 0.0
    %5640 = vmatpush1.msra.mxu0 0.0
    %5641 = vmatprep.subr.mxu0 0.0
    %5642 = vmatpush1.msra.mxu0 0.0
    %5643 = vmatprep.subr.mxu0 0.0
    %5644 = vmatpush1.msra.mxu0 0.0
    %5645 = vmatprep.subr.mxu0 0.0
    %5646 = vmatpush1.msra.mxu0 0.0
    %5647 = vmatprep.subr.mxu0 0.0
    %5648 = vmatpush1.msra.mxu0 0.0
    %5649 = vmatprep.subr.mxu0 0.0
    %5650 = vmatpush1.msra.mxu0 0.0
    %5651 = vmatprep.subr.mxu0 0.0
    %5652 = vmatpush1.msra.mxu0 0.0
    %5653 = vmatprep.subr.mxu0 0.0
    %5654 = vmatpush1.msra.mxu0 0.0
    %5655 = vmatprep.subr.mxu0 0.0
    %5656 = vmatpush1.msra.mxu0 0.0
    %5657 = vmatprep.subr.mxu0 0.0
    %5658 = vmatpush1.msra.mxu0 0.0
    %5659 = vmatprep.subr.mxu0 0.0
    %5660 = vmatpush1.msra.mxu0 0.0
    %5661 = vmatprep.subr.mxu0 0.0
    %5662 = vmatpush1.msra.mxu0 0.0
    %5663 = vmatprep.subr.mxu0 0.0
    %5664 = vmatpush1.msra.mxu0 0.0
    %5665 = vmatprep.subr.mxu0 0.0
    %5666 = vmatpush1.msra.mxu0 0.0
    %5667 = vmatprep.subr.mxu0 0.0
    %5668 = vmatpush1.msra.mxu0 0.0
    %5669 = vmatprep.subr.mxu0 0.0
    %5670 = vmatpush1.msra.mxu0 0.0
    %5671 = vmatprep.subr.mxu0 0.0
    %5672 = vmatpush1.msra.mxu0 0.0
    %5673 = vmatprep.subr.mxu0 0.0
    %5674 = vmatpush1.msra.mxu0 0.0
    %5675 = vmatprep.subr.mxu0 0.0
    %5676 = vmatpush1.msra.mxu0 0.0
    %5677 = vmatprep.subr.mxu0 0.0
    %5678 = vmatpush1.msra.mxu0 0.0
    %5679 = vmatprep.subr.mxu0 0.0
    %5680 = vmatpush1.msra.mxu0 0.0
    %5681 = vmatprep.subr.mxu0 0.0
    %5682 = vmatpush1.msra.mxu0 0.0
    %5683 = vmatprep.subr.mxu0 0.0
    %5684 = vmatpush1.msra.mxu0 0.0
    %5685 = vmatprep.subr.mxu0 0.0
    %5686 = vmatpush1.msra.mxu0 0.0
    %5687 = vmatprep.subr.mxu0 0.0
    %5688 = vmatpush1.msra.mxu0 0.0
    %5689 = vmatprep.subr.mxu0 0.0
    %5690 = vmatpush1.msra.mxu0 0.0
    %5691 = vmatprep.subr.mxu0 0.0
    %5692 = vmatpush1.msra.mxu0 0.0
    %5693 = vmatprep.subr.mxu0 0.0
    %5694 = vmatpush1.msra.mxu0 0.0
    %5695 = vmatprep.subr.mxu0 0.0
    %5696 = vmatpush1.msra.mxu0 0.0
    %5697 = vmatprep.subr.mxu0 0.0
    %5698 = vmatpush1.msra.mxu0 0.0
    %5699 = vmatprep.mubr.f32.mxu0 0.0
    %5700 = vmatmul.mubr.f32.gmra.mrb[0].mxu0 %v5633
    %v5701 = vpop.f32.mrb[0].mxu0
    %v5702 = vadd.f32 0.0, %v5701
    %v5703 = vpop.f32.mrb[0].mxu0
    %5704 = vdwg.mxu0
    %5706 = vrot.lane.b32.xlu0 %v3378, 4
    %v5707 = vpop.permute.xlu0 %5706
    %5710 = vrot.lane.b32.xlu0 %v3544, 8
    %v5711 = vpop.permute.xlu0 %5710
    %5714 = vrot.lane.b32.xlu0 %v3710, 12
    %v5715 = vpop.permute.xlu0 %5714
    %5718 = vrot.lane.b32.xlu0 %v3876, 16
    %v5719 = vpop.permute.xlu0 %5718
    %5722 = vrot.lane.b32.xlu0 %v4042, 20
    %v5723 = vpop.permute.xlu0 %5722
    %5726 = vrot.lane.b32.xlu0 %v4208, 24
    %v5727 = vpop.permute.xlu0 %5726
    %5730 = vrot.lane.b32.xlu0 %v4374, 28
    %v5731 = vpop.permute.xlu0 %5730
    %5734 = vrot.lane.b32.xlu0 %v4540, 32
    %v5735 = vpop.permute.xlu0 %5734
    %5738 = vrot.lane.b32.xlu0 %v4706, 36
    %v5739 = vpop.permute.xlu0 %5738
    %5742 = vrot.lane.b32.xlu0 %v4872, 40
    %v5743 = vpop.permute.xlu0 %5742
    %5746 = vrot.lane.b32.xlu0 %v5038, 44
    %v5747 = vpop.permute.xlu0 %5746
    %5750 = vrot.lane.b32.xlu0 %v5204, 48
    %v5751 = vpop.permute.xlu0 %5750
    %5754 = vrot.lane.b32.xlu0 %v5370, 52
    %v5755 = vpop.permute.xlu0 %5754
    %5758 = vrot.lane.b32.xlu0 %v5536, 56
    %v5759 = vpop.permute.xlu0 %5758
    %5762 = vrot.lane.b32.xlu0 %v5702, 60
    %v5763 = vpop.permute.xlu0 %5762
    %v5765 = vsel %vm314, %v3212, %v5707
    %v5766 = vsel %vm390, %v5765, %v5711
    %v5767 = vsel %vm3027, %v5766, %v5715
    %v5768 = vsel %vm3029, %v5767, %v5719
    %v5769 = vsel %vm3031, %v5768, %v5723
    %v5770 = vsel %vm3033, %v5769, %v5727
    %v5771 = vsel %vm3035, %v5770, %v5731
    %v5772 = vsel %vm3037, %v5771, %v5735
    %v5773 = vsel %vm3039, %v5772, %v5739
    %v5774 = vsel %vm3041, %v5773, %v5743
    %v5775 = vsel %vm3043, %v5774, %v5747
    %v5776 = vsel %vm3045, %v5775, %v5751
    %v5777 = vsel %vm3047, %v5776, %v5755
    %v5778 = vsel %vm3049, %v5777, %v5759
    %v5779 = vsel %vm3051, %v5778, %v5763
    %v5780 = vld [vmem:[#allocation10] sm:$0xff]
    %v5781 = vld [vmem:[#allocation10 + $0x8] sm:$0xff]
    %v5782 = vld [vmem:[#allocation10 + $0x10] sm:$0xff]
    %v5783 = vld [vmem:[#allocation10 + $0x18] sm:$0xff]
    %v5784 = vld [vmem:[#allocation10 + $0x20] sm:$0xff]
    %v5785 = vld [vmem:[#allocation10 + $0x28] sm:$0xff]
    %v5786 = vld [vmem:[#allocation10 + $0x30] sm:$0xff]
    %v5787 = vld [vmem:[#allocation10 + $0x38] sm:$0xff]
    %v5788 = vld [vmem:[%s7] sm:$0x1]
    %v5790 = vlaneseq
    %v5791 = vshrl.u32 %v5790, 7
    %v5792 = vsub.s32 0, %v5791
    %v5793 = vrot.slane %v5788, %v5792
    %v5796 = vsel %vm119, %v3052, 0
    %v5799 = vsel %vm119, %v5779, 0
    %5801 = vmatprep.subr.mxu0 0.0
    %5802 = vmatpush1.msra.mxu0 %v5780
    %5803 = vmatprep.subr.mxu0 0.0
    %5804 = vmatpush1.msra.mxu0 %v5781
    %5805 = vmatprep.subr.mxu0 0.0
    %5806 = vmatpush1.msra.mxu0 %v5782
    %5807 = vmatprep.subr.mxu0 0.0
    %5808 = vmatpush1.msra.mxu0 %v5783
    %5809 = vmatprep.subr.mxu0 0.0
    %5810 = vmatpush1.msra.mxu0 %v5784
    %5811 = vmatprep.subr.mxu0 0.0
    %5812 = vmatpush1.msra.mxu0 %v5785
    %5813 = vmatprep.subr.mxu0 0.0
    %5814 = vmatpush1.msra.mxu0 %v5786
    %5815 = vmatprep.subr.mxu0 0.0
    %5816 = vmatpush1.msra.mxu0 %v5787
    %5817 = vmatprep.subr.mxu0 0.0
    %5818 = vmatpush1.msra.mxu0 0.0
    %5819 = vmatprep.subr.mxu0 0.0
    %5820 = vmatpush1.msra.mxu0 0.0
    %5821 = vmatprep.subr.mxu0 0.0
    %5822 = vmatpush1.msra.mxu0 0.0
    %5823 = vmatprep.subr.mxu0 0.0
    %5824 = vmatpush1.msra.mxu0 0.0
    %5825 = vmatprep.subr.mxu0 0.0
    %5826 = vmatpush1.msra.mxu0 0.0
    %5827 = vmatprep.subr.mxu0 0.0
    %5828 = vmatpush1.msra.mxu0 0.0
    %5829 = vmatprep.subr.mxu0 0.0
    %5830 = vmatpush1.msra.mxu0 0.0
    %5831 = vmatprep.subr.mxu0 0.0
    %5832 = vmatpush1.msra.mxu0 0.0
    %5833 = vmatprep.subr.mxu0 0.0
    %5834 = vmatpush1.msra.mxu0 0.0
    %5835 = vmatprep.subr.mxu0 0.0
    %5836 = vmatpush1.msra.mxu0 0.0
    %5837 = vmatprep.subr.mxu0 0.0
    %5838 = vmatpush1.msra.mxu0 0.0
    %5839 = vmatprep.subr.mxu0 0.0
    %5840 = vmatpush1.msra.mxu0 0.0
    %5841 = vmatprep.subr.mxu0 0.0
    %5842 = vmatpush1.msra.mxu0 0.0
    %5843 = vmatprep.subr.mxu0 0.0
    %5844 = vmatpush1.msra.mxu0 0.0
    %5845 = vmatprep.subr.mxu0 0.0
    %5846 = vmatpush1.msra.mxu0 0.0
    %5847 = vmatprep.subr.mxu0 0.0
    %5848 = vmatpush1.msra.mxu0 0.0
    %5849 = vmatprep.subr.mxu0 0.0
    %5850 = vmatpush1.msra.mxu0 0.0
    %5851 = vmatprep.subr.mxu0 0.0
    %5852 = vmatpush1.msra.mxu0 0.0
    %5853 = vmatprep.subr.mxu0 0.0
    %5854 = vmatpush1.msra.mxu0 0.0
    %5855 = vmatprep.subr.mxu0 0.0
    %5856 = vmatpush1.msra.mxu0 0.0
    %5857 = vmatprep.subr.mxu0 0.0
    %5858 = vmatpush1.msra.mxu0 0.0
    %5859 = vmatprep.subr.mxu0 0.0
    %5860 = vmatpush1.msra.mxu0 0.0
    %5861 = vmatprep.subr.mxu0 0.0
    %5862 = vmatpush1.msra.mxu0 0.0
    %5863 = vmatprep.subr.mxu0 0.0
    %5864 = vmatpush1.msra.mxu0 0.0
    %5865 = vmatprep.mubr.f32.mxu0 0.0
    %5866 = vmatmul.mubr.f32.gmra.mrb[0].mxu0 %v5796
    %v5867 = vpop.f32.mrb[0].mxu0
    %v5868 = vadd.f32 %v5793, %v5867
    %v5869 = vpop.f32.mrb[0].mxu0
    %5870 = vmatprep.mubr.f32.mxu0 0.0
    %5871 = vmatmul.mubr.f32.gmra.mrb[0].mxu0 %v5799
    %v5872 = vpop.f32.mrb[0].mxu0
    %v5873 = vadd.f32 %v5793, %v5872
    %v5874 = vpop.f32.mrb[0].mxu0
    %5875 = vdwg.mxu0
    %5876 = vst.msk [vmem:[#allocation11] sm:$0xff] %vm119, %v5868
    %5877 = vst.msk [vmem:[#allocation11 + $0x8] sm:$0xff] %vm119, %v5873
    // Predicated region
    $region54: #{model_forward.1} parent=1 // pred_check
      _
    $region55: #{model_forward.1} parent=1 // pred_check_branch
      %5879 = sbr.rel (0) target = $region57
    $region56: #{model_forward.1} parent=1 // pred_region
      %s5881 = ssub.s32 256, 256
      %5882 = vsyncadd [#allocation4], %s5881
      %s5883 = sshll.u32 [#allocation11], 4
      %s5884 = int_to_ptr.vmem [resolvable:$true] %s5883
      %5889 = dma.vmem_to_hbm [thread:$0]  %s5884, 256, %s8, [#allocation4], 128, 128, 8
    $region57: #{model_forward.1} parent=1 // pred_fallthru
      _
    // Predicated region
    $region58: #{model_forward.1} parent=1 // pred_check
      _
    $region59: #{model_forward.1} parent=1 // pred_check_branch
      %5891 = sbr.rel (0) target = $region61
    $region60: #{model_forward.1} parent=1 // pred_region
      %s5893 = ssub.s32 256, 256
      %5894 = vsyncadd [#allocation13], %s5893
      %s5895 = sshll.u32 [#allocation12], 4
      %s5896 = int_to_ptr.vmem [resolvable:$true] %s5895
      %5901 = dma.vmem_to_hbm [thread:$0]  %s5896, 256, %s9, [#allocation13], 128, 128, 8
    $region61: #{model_forward.1} parent=1 // pred_fallthru
      _
    // Predicated region
    $region62: #{model_forward.1} parent=1 // pred_check
      _
    $region63: #{model_forward.1} parent=1 // pred_check_branch
      %5903 = sbr.rel (0) target = $region65
    $region64: #{model_forward.1} parent=1 // pred_region
      %s5905 = ssub.s32 256, 256
      %5906 = vsyncadd [#allocation13], %s5905
      %s5907 = sshll.u32 [#allocation14], 4
      %s5908 = int_to_ptr.vmem [resolvable:$true] %s5907
      %5913 = dma.vmem_to_hbm [thread:$0]  %s5908, 256, %s10, [#allocation13], 128, 128, 8
    $region65: #{model_forward.1} parent=1 // pred_fallthru
      _
    // Predicated region
    $region66: #{model_forward.1} parent=1 // pred_check
      _
    $region67: #{model_forward.1} parent=1 // pred_check_branch
      %5915 = sbr.rel (0) target = $region69
    $region68: #{model_forward.1} parent=1 // pred_region
      %5916 = dma.done [#allocation4], 256
    $region69: #{model_forward.1} parent=1 // pred_fallthru
      _
    // Predicated region
    $region70: #{model_forward.1} parent=1 // pred_check
      _
    $region71: #{model_forward.1} parent=1 // pred_check_branch
      %5918 = sbr.rel (0) target = $region73
    $region72: #{model_forward.1} parent=1 // pred_region
      %5919 = dma.done [#allocation13], 256
    $region73: #{model_forward.1} parent=1 // pred_fallthru
      _
    // Predicated region
    $region74: #{model_forward.1} parent=1 // pred_check
      _
    $region75: #{model_forward.1} parent=1 // pred_check_branch
      %5921 = sbr.rel (0) target = $region77
    $region76: #{model_forward.1} parent=1 // pred_region
      %5922 = dma.done [#allocation13], 256
    $region77: #{model_forward.1} parent=1 // pred_fallthru
      _
    %5923 = vsyncpa [#allocation3], 1
    %5924 = vsyncpa [#allocation6], 1
    %5925 = vsyncpa [#allocation9], 1
    %5926 = vsyncpa [#allocation4], 1
    %5927 = vsyncpa [#allocation13], 1

</llo_original>
